<compile_context>
chip_gen: v5e
topology: v5e:2x2
jax: 0.10.0
libtpu: 0.0.40
codegen_flags: <defaults>
</compile_context>

<pallas_src>
import math

import jax
import jax.numpy as jnp
from jax import lax
from jax.experimental import pallas as pl
from jax.experimental.pallas import tpu as pltpu


def _ceil_to(a, m):
    return -(-a // m) * m


# ---------------------------------------------------------------------------
# Static polyphase tap derivation for one axis of the transposed convolution.
# For output index  out = s*base + r  the contributing taps are (kk, off) with
# padded-input index  base + off  (offsets already shifted by the left pad).
# ---------------------------------------------------------------------------
def _phase_taps(in_size, k, s, p, out_size):
    phases = []
    for r in range(s):
        taps = [(kk, (r + p - kk) // s) for kk in range(k)
                if (r + p - kk) % s == 0]
        assert taps, "every output phase needs at least one kernel tap"
        phases.append(taps)
    counts = [len(range(r, out_size, s)) for r in range(s)]
    assert len(set(counts)) == 1 and counts[0] * s == out_size, \
        "output size must split evenly across phases (holds for k=4, s=2)"
    cnt = counts[0]
    offs = [off for taps in phases for (_, off) in taps]
    pad_l = max(0, -min(offs))
    need = max(offs) + cnt + pad_l          # max padded-input index used + 1
    pad_r = max(0, need - (in_size + pad_l))
    phases = [[(kk, off + pad_l) for (kk, off) in taps] for taps in phases]
    return phases, cnt, pad_l, pad_r


# ---------------------------------------------------------------------------
# Pallas kernel: fused union-tap im2col (VMEM gather) + single MXU dot + bias.
# One grid step computes TD output-depth slices, all sH*sW phases at once.
# ---------------------------------------------------------------------------
def _make_kernel(TD, d_union, h_union, w_union, Hh, Wh, Cin):
    HW = Hh * Wh
    M = TD * HW

    def kernel(xb_ref, xh_ref, w_ref, b_ref, o_ref):
        # Depth window for this step: TD body slabs + (kD-1) halo slabs.
        x_win = jnp.concatenate([xb_ref[0], xh_ref[0]], axis=0)
        # im2col over the UNION of taps (shared by all phases); 27 slices per
        # TD output depths instead of 48 per single depth previously.
        cols = []
        for od in d_union:
            for oh in h_union:
                for ow in w_union:
                    sl = x_win[od:od + TD, oh:oh + Hh, ow:ow + Wh, :]
                    cols.append(sl.reshape(M, Cin))
        patches = jnp.concatenate(cols, axis=-1)              # (M, Ku) bf16
        # One MXU dot per grid step; all sH*sW phases fused into the N dim.
        acc = jnp.dot(patches, w_ref[...],
                      preferred_element_type=jnp.float32)     # (M, P*Cout) f32
        # Exactly P*Cout output lanes: no zero-channel padding written to HBM.
        o_ref[0, 0, :, :] = (acc + b_ref[...]).astype(o_ref.dtype)

    return kernel


# ---------------------------------------------------------------------------
# Forward pass (wrapper: layout plumbing in XLA, hot loop in Pallas).
# ---------------------------------------------------------------------------
def cylindrical_conv_trans(x, weight, bias, *,
                           kernel_size=(3, 4, 4), stride=(1, 2, 2),
                           padding=1, output_padding=0):
    # x: (N, Cin, D, H, W);  weight: (Cin, Cout, kD, kH, kW) (ConvTranspose3d)
    assert output_padding == 0
    if isinstance(padding, int):
        padding = [padding] * 3
    pad_orig = list(padding)
    circ = pad_orig[1]                       # circular pad along phi (H axis)
    kD, kH, kW = kernel_size
    sD, sH, sW = stride
    assert sD == 1, "depth stride != 1 is not used by CylindricalConvTrans"
    assert kD >= 2
    # the module overwrites the phi padding with kernel_size[1] - 1
    pD, pH, pW = pad_orig[0], kH - 1, pad_orig[2]

    N, Cin, D, H, W = x.shape
    Cout = weight.shape[1]

    # ---- 1) bf16 first (halves every later copy), channels-last, phi wrap --
    xb = jnp.transpose(x.astype(jnp.bfloat16), (0, 2, 3, 4, 1))  # N,D,H,W,C
    xb = jnp.pad(xb, ((0, 0), (0, 0), (circ, circ), (0, 0), (0, 0)),
                 mode="wrap")
    Hc = H + 2 * circ

    # ---- 2) polyphase decomposition of the transposed conv -----------------
    Do = (D - 1) * sD - 2 * pD + kD
    Ho = (Hc - 1) * sH - 2 * pH + kH
    Wo = (W - 1) * sW - 2 * pW + kW

    d_ph, Dcnt, pdl, pdr = _phase_taps(D, kD, sD, pD, Do)
    h_ph, Hh, phl, phr = _phase_taps(Hc, kH, sH, pH, Ho)
    w_ph, Wh, pwl, pwr = _phase_taps(W, kW, sW, pW, Wo)
    assert len(d_ph) == 1 and Dcnt == Do                        # sD == 1
    d_taps = d_ph[0]

    d_union = sorted({off for (_, off) in d_taps})
    h_union = sorted({off for taps in h_ph for (_, off) in taps})
    w_union = sorted({off for taps in w_ph for (_, off) in taps})
    halo_d = max(d_union)                     # extra depth slabs past the body
    assert halo_d >= 1

    HW = Hh * Wh
    P = sH * sW
    PCout = P * Cout
    Ku = len(d_union) * len(h_union) * len(w_union) * Cin
    Hp = Hc + phl + phr
    Wp = W + pwl + pwr

    # ---- 3) VMEM-aware depth-block size (per TPU generation) ---------------
    try:
        vmem_cap = int(pltpu.get_tpu_info().vmem_capacity_bytes)
    except Exception:
        vmem_cap = 64 * 1024 * 1024           # conservative (v7x-sized) fallback
    budget = int(vmem_cap * 0.45)
    vmem_limit = max(32 * 1024 * 1024, min(int(vmem_cap * 0.75), 100 << 20))

    plane_in = Hp * Wp * Cin * 2              # one bf16 input depth slab
    per_depth = (2 * plane_in                 # body block (double-buffered)
                 + 2 * HW * PCout * 4         # output block (double-buffered)
                 + HW * Ku * 2                # patch-matrix temporary
                 + plane_in                   # concatenated window temporary
                 + HW * PCout * 4)            # dot-result temporary
    fixed = (2 * halo_d * plane_in            # halo block (double-buffered)
             + Ku * PCout * 2 + PCout * 4)    # weights + bias (single buffer)
    td_cap = int((budget - fixed) // max(per_depth, 1))
    td_cap = max(halo_d, (td_cap // halo_d) * halo_d)
    TD = min(td_cap, _ceil_to(Do, halo_d))    # TD % halo_d == 0 by construction
    assert TD % halo_d == 0
    NDB = -(-Do // TD)
    Do_pad = NDB * TD

    # one zero-pad call for D/H/W (depth padded so body+halo blocks stay in
    # bounds even when Do is rounded up to a multiple of TD)
    Dp_target = Do_pad + halo_d
    pdr_ext = max(0, Dp_target - (D + pdl + pdr))
    xb = jnp.pad(xb, ((0, 0), (pdl, pdr + pdr_ext), (phl, phr),
                      (pwl, pwr), (0, 0)))
    assert xb.shape[2] == Hp and xb.shape[3] == Wp
    assert xb.shape[1] >= Do_pad + halo_d

    # ---- 4) union-tap weight: rows ordered exactly like the kernel's loops,
    #         columns = (phase, Cout); invalid (phase, offset) pairs are zero -
    d_map = {off: kk for (kk, off) in d_taps}
    h_maps = [{off: kk for (kk, off) in taps} for taps in h_ph]
    w_maps = [{off: kk for (kk, off) in taps} for taps in w_ph]
    zeros_blk = jnp.zeros((Cin, Cout), weight.dtype)
    rows = []
    for od in d_union:
        kd = d_map.get(od)
        for oh in h_union:
            for ow in w_union:
                cols = []
                for rh in range(sH):
                    kh = h_maps[rh].get(oh)
                    for rw in range(sW):
                        kw = w_maps[rw].get(ow)
                        if kd is None or kh is None or kw is None:
                            cols.append(zeros_blk)
                        else:
                            cols.append(weight[:, :, kd, kh, kw])   # (Cin,Cout)
                rows.append(jnp.concatenate(cols, axis=1))          # (Cin,P*Cout)
    wmat = jnp.concatenate(rows, axis=0).astype(jnp.bfloat16)       # (Ku,P*Cout)
    bmat = jnp.tile(bias.astype(jnp.float32), P).reshape(1, PCout)

    # ---- 5) Pallas call: fused im2col + single dot per (n, depth-block) ----
    kernel = _make_kernel(TD, d_union, h_union, w_union, Hh, Wh, Cin)

    body_spec = pl.BlockSpec((1, TD, Hp, Wp, Cin),
                             lambda n, db: (n, db, 0, 0, 0))
    halo_spec = pl.BlockSpec((1, halo_d, Hp, Wp, Cin),
                             lambda n, db: (n, (db + 1) * (TD // halo_d),
                                            0, 0, 0))
    # constant inputs: single-buffered (index_map never changes)
    w_spec = pl.BlockSpec((Ku, PCout), lambda n, db: (0, 0),
                          pipeline_mode=pl.Buffered(1))
    b_spec = pl.BlockSpec((1, PCout), lambda n, db: (0, 0),
                          pipeline_mode=pl.Buffered(1))
    # out block covers the full last two dims (TD*HW, P*Cout) -> (8,128) rule OK
    out_spec = pl.BlockSpec((1, 1, TD * HW, PCout),
                            lambda n, db: (n, db, 0, 0))

    out_k = pl.pallas_call(
        kernel,
        out_shape=jax.ShapeDtypeStruct((N, NDB, TD * HW, PCout), x.dtype),
        grid_spec=pltpu.PrefetchScalarGridSpec(
            num_scalar_prefetch=0,
            grid=(N, NDB),
            in_specs=[body_spec, halo_spec, w_spec, b_spec],
            out_specs=out_spec,
        ),
        compiler_params=pltpu.CompilerParams(
            dimension_semantics=("parallel", "parallel"),
            vmem_limit_bytes=vmem_limit,
        ),
    )(xb, xb, wmat, bmat)

    # ---- 6) interleave phases back to NCDHW (cheap XLA layout plumbing) ----
    out = out_k.reshape(N, NDB * TD, Hh, Wh, sH, sW, Cout)
    out = out.transpose(0, 6, 1, 2, 4, 3, 5)      # n, c, d, ih, rh, iw, rw
    out = out.reshape(N, Cout, NDB * TD, Ho, Wo)
    return out[:, :, :Do]


# ---------------------------------------------------------------------------
# Pure-JAX reference (XLA conv) for correctness checking.
# ---------------------------------------------------------------------------
def reference_conv_trans(x, weight, bias, *, kernel_size=(3, 4, 4),
                         stride=(1, 2, 2), padding=1):
    if isinstance(padding, int):
        padding = [padding] * 3
    circ = padding[1]
    kD, kH, kW = kernel_size
    pD, pH, pW = padding[0], kH - 1, padding[2]
    xp = jnp.pad(x, ((0, 0), (0, 0), (0, 0), (circ, circ), (0, 0)), mode="wrap")
    rhs = jnp.transpose(weight, (1, 0, 2, 3, 4))[:, :, ::-1, ::-1, ::-1]
    out = lax.conv_general_dilated(
        xp, rhs,
        window_strides=(1, 1, 1),
        padding=[(kD - 1 - pD,) * 2, (kH - 1 - pH,) * 2, (kW - 1 - pW,) * 2],
        lhs_dilation=stride,
        dimension_numbers=("NCDHW", "OIDHW", "NCDHW"),
        precision=lax.Precision.HIGHEST)
    return out + bias.reshape(1, -1, 1, 1, 1)


if __name__ == "__main__":
    dim_in, dim_out = 4, 8
    N, D, H, W = 2, 4, 16, 16
    kD, kH, kW = 3, 4, 4

    key = jax.random.PRNGKey(0)
    kx, kw_, kb_ = jax.random.split(key, 3)
    fan_in = dim_in * kD * kH * kW
    bound = 1.0 / math.sqrt(fan_in)
    weight = jax.random.uniform(kw_, (dim_in, dim_out, kD, kH, kW),
                                jnp.float32, minval=-bound, maxval=bound)
    bias = jax.random.uniform(kb_, (dim_out,), jnp.float32,
                              minval=-bound, maxval=bound)
    x = jax.random.normal(kx, (N, dim_in, D, H, W), jnp.float32)

    fwd = jax.jit(cylindrical_conv_trans)
    out = jax.block_until_ready(fwd(x, weight, bias))
    assert out.shape == (N, dim_out, D, 2 * H, 2 * W), out.shape

    ref = jax.block_until_ready(reference_conv_trans(x, weight, bias))
    max_err = float(jnp.max(jnp.abs(out - ref)))
    # bf16 MXU inputs with f32 accumulation -> slightly looser tolerance than
    # the HIGHEST-precision XLA reference.
    assert jnp.allclose(out, ref, atol=1e-2, rtol=1e-2), max_err

    print("KERNEL_OK")
</pallas_src>

<mosaic_0001>
module attributes {stable_mosaic.version = 11 : i64} {
  func.func @kernel(%arg0: i32, %arg1: i32, %arg2: memref<1x4x18x18x4xbf16, #tpu.memory_space<vmem>>, %arg3: memref<1x2x18x18x4xbf16, #tpu.memory_space<vmem>>, %arg4: memref<108x32xbf16, #tpu.memory_space<vmem>>, %arg5: memref<1x32xf32, #tpu.memory_space<vmem>>, %arg6: memref<1x1x1024x32xf32, #tpu.memory_space<vmem>>) attributes {dimension_semantics = [#tpu.dimension_semantics<parallel>, #tpu.dimension_semantics<parallel>], iteration_bounds = array<i64: 2, 1>, scalar_prefetch = 0 : i64, scratch_operands = 0 : i64, tpu.core_type = #tpu.core_type<tc>, window_params = [{transform_indices = @transform_0, window_bounds = array<i64: 1, 4, 18, 18, 4>}, {transform_indices = @transform_1, window_bounds = array<i64: 1, 2, 18, 18, 4>}, {pipeline_mode = #tpu.pipeline_mode<synchronous>, transform_indices = @transform_2, window_bounds = array<i64: 108, 32>}, {pipeline_mode = #tpu.pipeline_mode<synchronous>, transform_indices = @transform_3, window_bounds = array<i64: 1, 32>}, {transform_indices = @transform_4, window_bounds = array<i64: 1, 1, 1024, 32>}]} {
    %c0 = arith.constant 0 : index
    %c0_0 = arith.constant 0 : index
    %c0_1 = arith.constant 0 : index
    %c0_2 = arith.constant 0 : index
    %c0_3 = arith.constant 0 : index
    %0 = vector.load %arg2[%c0, %c0_0, %c0_1, %c0_2, %c0_3] : memref<1x4x18x18x4xbf16, #tpu.memory_space<vmem>>, vector<1x4x18x18x4xbf16>
    %1 = vector.shape_cast %0 : vector<1x4x18x18x4xbf16> to vector<4x18x18x4xbf16>
    %c0_4 = arith.constant 0 : index
    %c0_5 = arith.constant 0 : index
    %c0_6 = arith.constant 0 : index
    %c0_7 = arith.constant 0 : index
    %c0_8 = arith.constant 0 : index
    %2 = vector.load %arg3[%c0_4, %c0_5, %c0_6, %c0_7, %c0_8] : memref<1x2x18x18x4xbf16, #tpu.memory_space<vmem>>, vector<1x2x18x18x4xbf16>
    %3 = vector.shape_cast %2 : vector<1x2x18x18x4xbf16> to vector<2x18x18x4xbf16>
    %4 = tpu.concatenate %1, %3 in 0 : vector<4x18x18x4xbf16>, vector<2x18x18x4xbf16> -> vector<6x18x18x4xbf16>
    %5 = vector.extract_strided_slice %4 {offsets = [0, 0, 0, 0], sizes = [4, 16, 16, 4], strides = [1, 1, 1, 1]} : vector<6x18x18x4xbf16> to vector<4x16x16x4xbf16>
    %6 = vector.shape_cast %5 : vector<4x16x16x4xbf16> to vector<1024x4xbf16>
    %7 = vector.extract_strided_slice %4 {offsets = [0, 0, 1, 0], sizes = [4, 16, 16, 4], strides = [1, 1, 1, 1]} : vector<6x18x18x4xbf16> to vector<4x16x16x4xbf16>
    %8 = vector.shape_cast %7 : vector<4x16x16x4xbf16> to vector<1024x4xbf16>
    %9 = vector.extract_strided_slice %4 {offsets = [0, 0, 2, 0], sizes = [4, 16, 16, 4], strides = [1, 1, 1, 1]} : vector<6x18x18x4xbf16> to vector<4x16x16x4xbf16>
    %10 = vector.shape_cast %9 : vector<4x16x16x4xbf16> to vector<1024x4xbf16>
    %11 = vector.extract_strided_slice %4 {offsets = [0, 1, 0, 0], sizes = [4, 16, 16, 4], strides = [1, 1, 1, 1]} : vector<6x18x18x4xbf16> to vector<4x16x16x4xbf16>
    %12 = vector.shape_cast %11 : vector<4x16x16x4xbf16> to vector<1024x4xbf16>
    %13 = vector.extract_strided_slice %4 {offsets = [0, 1, 1, 0], sizes = [4, 16, 16, 4], strides = [1, 1, 1, 1]} : vector<6x18x18x4xbf16> to vector<4x16x16x4xbf16>
    %14 = vector.shape_cast %13 : vector<4x16x16x4xbf16> to vector<1024x4xbf16>
    %15 = vector.extract_strided_slice %4 {offsets = [0, 1, 2, 0], sizes = [4, 16, 16, 4], strides = [1, 1, 1, 1]} : vector<6x18x18x4xbf16> to vector<4x16x16x4xbf16>
    %16 = vector.shape_cast %15 : vector<4x16x16x4xbf16> to vector<1024x4xbf16>
    %17 = vector.extract_strided_slice %4 {offsets = [0, 2, 0, 0], sizes = [4, 16, 16, 4], strides = [1, 1, 1, 1]} : vector<6x18x18x4xbf16> to vector<4x16x16x4xbf16>
    %18 = vector.shape_cast %17 : vector<4x16x16x4xbf16> to vector<1024x4xbf16>
    %19 = vector.extract_strided_slice %4 {offsets = [0, 2, 1, 0], sizes = [4, 16, 16, 4], strides = [1, 1, 1, 1]} : vector<6x18x18x4xbf16> to vector<4x16x16x4xbf16>
    %20 = vector.shape_cast %19 : vector<4x16x16x4xbf16> to vector<1024x4xbf16>
    %21 = vector.extract_strided_slice %4 {offsets = [0, 2, 2, 0], sizes = [4, 16, 16, 4], strides = [1, 1, 1, 1]} : vector<6x18x18x4xbf16> to vector<4x16x16x4xbf16>
    %22 = vector.shape_cast %21 : vector<4x16x16x4xbf16> to vector<1024x4xbf16>
    %23 = vector.extract_strided_slice %4 {offsets = [1, 0, 0, 0], sizes = [4, 16, 16, 4], strides = [1, 1, 1, 1]} : vector<6x18x18x4xbf16> to vector<4x16x16x4xbf16>
    %24 = vector.shape_cast %23 : vector<4x16x16x4xbf16> to vector<1024x4xbf16>
    %25 = vector.extract_strided_slice %4 {offsets = [1, 0, 1, 0], sizes = [4, 16, 16, 4], strides = [1, 1, 1, 1]} : vector<6x18x18x4xbf16> to vector<4x16x16x4xbf16>
    %26 = vector.shape_cast %25 : vector<4x16x16x4xbf16> to vector<1024x4xbf16>
    %27 = vector.extract_strided_slice %4 {offsets = [1, 0, 2, 0], sizes = [4, 16, 16, 4], strides = [1, 1, 1, 1]} : vector<6x18x18x4xbf16> to vector<4x16x16x4xbf16>
    %28 = vector.shape_cast %27 : vector<4x16x16x4xbf16> to vector<1024x4xbf16>
    %29 = vector.extract_strided_slice %4 {offsets = [1, 1, 0, 0], sizes = [4, 16, 16, 4], strides = [1, 1, 1, 1]} : vector<6x18x18x4xbf16> to vector<4x16x16x4xbf16>
    %30 = vector.shape_cast %29 : vector<4x16x16x4xbf16> to vector<1024x4xbf16>
    %31 = vector.extract_strided_slice %4 {offsets = [1, 1, 1, 0], sizes = [4, 16, 16, 4], strides = [1, 1, 1, 1]} : vector<6x18x18x4xbf16> to vector<4x16x16x4xbf16>
    %32 = vector.shape_cast %31 : vector<4x16x16x4xbf16> to vector<1024x4xbf16>
    %33 = vector.extract_strided_slice %4 {offsets = [1, 1, 2, 0], sizes = [4, 16, 16, 4], strides = [1, 1, 1, 1]} : vector<6x18x18x4xbf16> to vector<4x16x16x4xbf16>
    %34 = vector.shape_cast %33 : vector<4x16x16x4xbf16> to vector<1024x4xbf16>
    %35 = vector.extract_strided_slice %4 {offsets = [1, 2, 0, 0], sizes = [4, 16, 16, 4], strides = [1, 1, 1, 1]} : vector<6x18x18x4xbf16> to vector<4x16x16x4xbf16>
    %36 = vector.shape_cast %35 : vector<4x16x16x4xbf16> to vector<1024x4xbf16>
    %37 = vector.extract_strided_slice %4 {offsets = [1, 2, 1, 0], sizes = [4, 16, 16, 4], strides = [1, 1, 1, 1]} : vector<6x18x18x4xbf16> to vector<4x16x16x4xbf16>
    %38 = vector.shape_cast %37 : vector<4x16x16x4xbf16> to vector<1024x4xbf16>
    %39 = vector.extract_strided_slice %4 {offsets = [1, 2, 2, 0], sizes = [4, 16, 16, 4], strides = [1, 1, 1, 1]} : vector<6x18x18x4xbf16> to vector<4x16x16x4xbf16>
    %40 = vector.shape_cast %39 : vector<4x16x16x4xbf16> to vector<1024x4xbf16>
    %41 = vector.extract_strided_slice %4 {offsets = [2, 0, 0, 0], sizes = [4, 16, 16, 4], strides = [1, 1, 1, 1]} : vector<6x18x18x4xbf16> to vector<4x16x16x4xbf16>
    %42 = vector.shape_cast %41 : vector<4x16x16x4xbf16> to vector<1024x4xbf16>
    %43 = vector.extract_strided_slice %4 {offsets = [2, 0, 1, 0], sizes = [4, 16, 16, 4], strides = [1, 1, 1, 1]} : vector<6x18x18x4xbf16> to vector<4x16x16x4xbf16>
    %44 = vector.shape_cast %43 : vector<4x16x16x4xbf16> to vector<1024x4xbf16>
    %45 = vector.extract_strided_slice %4 {offsets = [2, 0, 2, 0], sizes = [4, 16, 16, 4], strides = [1, 1, 1, 1]} : vector<6x18x18x4xbf16> to vector<4x16x16x4xbf16>
    %46 = vector.shape_cast %45 : vector<4x16x16x4xbf16> to vector<1024x4xbf16>
    %47 = vector.extract_strided_slice %4 {offsets = [2, 1, 0, 0], sizes = [4, 16, 16, 4], strides = [1, 1, 1, 1]} : vector<6x18x18x4xbf16> to vector<4x16x16x4xbf16>
    %48 = vector.shape_cast %47 : vector<4x16x16x4xbf16> to vector<1024x4xbf16>
    %49 = vector.extract_strided_slice %4 {offsets = [2, 1, 1, 0], sizes = [4, 16, 16, 4], strides = [1, 1, 1, 1]} : vector<6x18x18x4xbf16> to vector<4x16x16x4xbf16>
    %50 = vector.shape_cast %49 : vector<4x16x16x4xbf16> to vector<1024x4xbf16>
    %51 = vector.extract_strided_slice %4 {offsets = [2, 1, 2, 0], sizes = [4, 16, 16, 4], strides = [1, 1, 1, 1]} : vector<6x18x18x4xbf16> to vector<4x16x16x4xbf16>
    %52 = vector.shape_cast %51 : vector<4x16x16x4xbf16> to vector<1024x4xbf16>
    %53 = vector.extract_strided_slice %4 {offsets = [2, 2, 0, 0], sizes = [4, 16, 16, 4], strides = [1, 1, 1, 1]} : vector<6x18x18x4xbf16> to vector<4x16x16x4xbf16>
    %54 = vector.shape_cast %53 : vector<4x16x16x4xbf16> to vector<1024x4xbf16>
    %55 = vector.extract_strided_slice %4 {offsets = [2, 2, 1, 0], sizes = [4, 16, 16, 4], strides = [1, 1, 1, 1]} : vector<6x18x18x4xbf16> to vector<4x16x16x4xbf16>
    %56 = vector.shape_cast %55 : vector<4x16x16x4xbf16> to vector<1024x4xbf16>
    %57 = vector.extract_strided_slice %4 {offsets = [2, 2, 2, 0], sizes = [4, 16, 16, 4], strides = [1, 1, 1, 1]} : vector<6x18x18x4xbf16> to vector<4x16x16x4xbf16>
    %58 = vector.shape_cast %57 : vector<4x16x16x4xbf16> to vector<1024x4xbf16>
    %59 = tpu.concatenate %6, %8, %10, %12, %14, %16, %18, %20, %22, %24, %26, %28, %30, %32, %34, %36 in 1 : vector<1024x4xbf16>, vector<1024x4xbf16>, vector<1024x4xbf16>, vector<1024x4xbf16>, vector<1024x4xbf16>, vector<1024x4xbf16>, vector<1024x4xbf16>, vector<1024x4xbf16>, vector<1024x4xbf16>, vector<1024x4xbf16>, vector<1024x4xbf16>, vector<1024x4xbf16>, vector<1024x4xbf16>, vector<1024x4xbf16>, vector<1024x4xbf16>, vector<1024x4xbf16> -> vector<1024x64xbf16>
    %60 = tpu.concatenate %38, %40, %42, %44, %46, %48, %50, %52, %54, %56, %58 in 1 : vector<1024x4xbf16>, vector<1024x4xbf16>, vector<1024x4xbf16>, vector<1024x4xbf16>, vector<1024x4xbf16>, vector<1024x4xbf16>, vector<1024x4xbf16>, vector<1024x4xbf16>, vector<1024x4xbf16>, vector<1024x4xbf16>, vector<1024x4xbf16> -> vector<1024x44xbf16>
    %61 = tpu.concatenate %59, %60 in 1 : vector<1024x64xbf16>, vector<1024x44xbf16> -> vector<1024x108xbf16>
    %c0_9 = arith.constant 0 : index
    %c0_10 = arith.constant 0 : index
    %62 = vector.load %arg4[%c0_9, %c0_10] : memref<108x32xbf16, #tpu.memory_space<vmem>>, vector<108x32xbf16>
    %cst = arith.constant dense<0.000000e+00> : vector<1024x32xf32>
    %63 = tpu.matmul %61, %62, %cst {dimension_numbers = #tpu.dot_dimension_numbers<[1], [0], [0], [1], [0, 0, 1, 1], [], []>} : vector<1024x108xbf16>, vector<108x32xbf16>, vector<1024x32xf32> -> vector<1024x32xf32>
    %c0_11 = arith.constant 0 : index
    %c0_12 = arith.constant 0 : index
    %64 = vector.load %arg5[%c0_11, %c0_12] : memref<1x32xf32, #tpu.memory_space<vmem>>, vector<1x32xf32>
    %65 = vector.broadcast %64 : vector<1x32xf32> to vector<1024x32xf32>
    %66 = arith.addf %63, %65 : vector<1024x32xf32>
    %c0_13 = arith.constant 0 : index
    %c0_14 = arith.constant 0 : index
    %c0_15 = arith.constant 0 : index
    %c0_16 = arith.constant 0 : index
    %67 = vector.load %arg6[%c0_13, %c0_14, %c0_15, %c0_16] : memref<1x1x1024x32xf32, #tpu.memory_space<vmem>>, vector<1x1x1024x32xf32>
    %68 = vector.shape_cast %67 : vector<1x1x1024x32xf32> to vector<1024x32xf32>
    %69 = vector.shape_cast %66 : vector<1024x32xf32> to vector<1x1x1024x32xf32>
    tpu.vector_store %arg6[%c0_13, %c0_14, %c0_15, %c0_16], %69 {strides = array<i32>} : memref<1x1x1024x32xf32, #tpu.memory_space<vmem>>, vector<1x1x1024x32xf32>,
    return
  }
  func.func @transform_0(%arg0: i32, %arg1: i32) -> (i32, i32, i32, i32, i32) {
    %c0_i32 = arith.constant 0 : i32
    %c0_i32_0 = arith.constant 0 : i32
    %c0_i32_1 = arith.constant 0 : i32
    %c0_i32_2 = arith.constant 0 : i32
    return %arg0, %arg1, %c0_i32, %c0_i32_0, %c0_i32_1 : i32, i32, i32, i32, i32
  }
  func.func @transform_1(%arg0: i32, %arg1: i32) -> (i32, i32, i32, i32, i32) {
    %c1_i32 = arith.constant 1 : i32
    %0 = arith.addi %arg1, %c1_i32 : i32
    %c2_i32 = arith.constant 2 : i32
    %1 = arith.muli %0, %c2_i32 : i32
    %c0_i32 = arith.constant 0 : i32
    %c0_i32_0 = arith.constant 0 : i32
    %c0_i32_1 = arith.constant 0 : i32
    %c0_i32_2 = arith.constant 0 : i32
    return %arg0, %1, %c0_i32, %c0_i32_0, %c0_i32_1 : i32, i32, i32, i32, i32
  }
  func.func @transform_2(%arg0: i32, %arg1: i32) -> (i32, i32) {
    %c0_i32 = arith.constant 0 : i32
    %c0_i32_0 = arith.constant 0 : i32
    %c0_i32_1 = arith.constant 0 : i32
    return %c0_i32, %c0_i32_0 : i32, i32
  }
  func.func @transform_3(%arg0: i32, %arg1: i32) -> (i32, i32) {
    %c0_i32 = arith.constant 0 : i32
    %c0_i32_0 = arith.constant 0 : i32
    %c0_i32_1 = arith.constant 0 : i32
    return %c0_i32, %c0_i32_0 : i32, i32
  }
  func.func @transform_4(%arg0: i32, %arg1: i32) -> (i32, i32, i32, i32) {
    %c0_i32 = arith.constant 0 : i32
    %c0_i32_0 = arith.constant 0 : i32
    %c0_i32_1 = arith.constant 0 : i32
    return %arg0, %arg1, %c0_i32, %c0_i32_0 : i32, i32, i32, i32
  }
}

</mosaic_0001>

<llo_original>
// kernel: tile.9
$region0: #{tile.9}
  %s0 = inlined_call_operand.vmem [shape: f32[4,8], index: 0, kind: input, shape index: {}]
  %s1 = inlined_call_operand.vmem [shape: f32[1,32], index: 1, kind: output, shape index: {}]
  $region1: #{tile.9} parent=0
    #allocation0 [shape = 'u8[4096]{0}', space=vmem, size = 0x1000, scoped, tag = 'scoped mem for output reshape']
    #allocation1 [shape = 'u8[4096]{0}', space=vmem, size = 0x1000, scoped, tag = 'scoped mem for input reshape']
    %s3 = ssub.s32 16, 1
    %v4 = vld [vmem:[%s0] sm:%s3]
    %5 = vst [vmem:[#allocation1] sm:%s3] %v4
    %v6 = vld [vmem:[#allocation1] sm:$0x1]
    %vm7 = vcmask 64512
    %8 = vst.msk [vmem:[#allocation0] sm:$0x1] %vm7, %v6
    %s9 = scalar_lea.vmem [#allocation1], 3
    %v10 = vld [vmem:[%s9] sm:$0x1]
    %11 = vrot.lane.b32.xlu0 %v10, 24
    %v12 = vpop.permute.xlu0 %11
    %vm13 = vcmask 261312
    %14 = vst.msk [vmem:[#allocation0] sm:$0x1] %vm13, %v12
    %s15 = scalar_lea.vmem [#allocation1], 2
    %v16 = vld [vmem:[%s15] sm:$0x1]
    %17 = vrot.lane.b32.xlu0 %v16, 16
    %v18 = vpop.permute.xlu0 %17
    %vm19 = vcmask 195712
    %20 = vst.msk [vmem:[#allocation0] sm:$0x1] %vm19, %v18
    %s21 = scalar_lea.vmem [#allocation1], 1
    %v22 = vld [vmem:[%s21] sm:$0x1]
    %23 = vrot.lane.b32.xlu0 %v22, 8
    %v24 = vpop.permute.xlu0 %23
    %vm25 = vcmask 130112
    %26 = vst.msk [vmem:[#allocation0] sm:$0x1] %vm25, %v24
    %s28 = ssub.s32 2, 1
    %v29 = vld [vmem:[#allocation0] sm:%s28]
    %s31 = ssub.s32 2, 1
    %32 = vst [vmem:[%s1] sm:%s31] %v29

// kernel: tile.8
$region0: #{tile.8}
  #allocation2 [shape = 's32[1]{0}', space=sflag, size = 0x4, scoped, tag = 'scoped memory for tile.8']
  %s0 = inlined_call_operand.hbm [shape: f32[8], index: 0, kind: input, shape index: {}]
  %s1 = inlined_call_operand.vmem [shape: f32[4,8], index: 1, kind: output, shape index: {}]
  $region1: #{tile.8} parent=0
    #allocation0 [shape = 'u8[512]{0}', space=vmem, size = 0x400, scoped, tag = 'operand span for operand 0']
    #allocation1 [shape = 's32[1]{0}', space=sflag, size = 0x4, scoped, tag = 'scoped memory for tile.8']
    %2 = vsyncpa [#allocation1], 0
    // Predicated region
    $region2: #{tile.8} parent=1 // pred_check
      _
    $region3: #{tile.8} parent=1 // pred_check_branch
      %4 = sbr.rel (0) target = $region5
    $region4: #{tile.8} parent=1 // pred_region
      %6 = vsyncadd [#allocation1], 0
      %s8 = sshll.u32 %s0, 4
      %s9 = int_to_ptr.hbm [resolvable:$true] %s8
      %s10 = sshll.u32 [#allocation0], 4
      %s11 = int_to_ptr.vmem [resolvable:$true] %s10
      %13 = dma.hbm_to_vmem [thread:$0]  %s9, 16, %s11, [#allocation1]
    $region5: #{tile.8} parent=1 // pred_fallthru
      _
    // Predicated region
    $region6: #{tile.8} parent=1 // pred_check
      _
    $region7: #{tile.8} parent=1 // pred_check_branch
      %15 = sbr.rel (0) target = $region9
    $region8: #{tile.8} parent=1 // pred_region
      %17 = dma.done [#allocation1], 16
    $region9: #{tile.8} parent=1 // pred_fallthru
      _
    %v18 = vld [vmem:[#allocation0] ss:$0 sm:$0xff]
    %19 = vst [vmem:[%s1] sm:$0xf] %v18
    %20 = vsyncpa [#allocation1], 1

// kernel: cylindrical_conv_trans.1
$region0: #{cylindrical_conv_trans.1}
  #allocation0 [shape = 'u32[]', space=smem, size = 0x4, offset = 0x4, fixed_abs, tag = 'smem constant byte address 0x4 - core index']
  #allocation1 [shape = 'u32[72,128]{1,0:T(1,128)}', space=vmem, size = 0x9000, scoped, tag = 'internal scratch']
  %s0 = inlined_call_operand.vmem [shape: bf16[2,6,18,18,4], index: 0, kind: input, shape index: {}, may-alias: {0,1}]
  %s1 = inlined_call_operand.vmem [shape: bf16[2,6,18,18,4], index: 1, kind: input, shape index: {}, may-alias: {0,1}]
  %s2 = inlined_call_operand.vmem [shape: bf16[108,32], index: 2, kind: input, shape index: {}]
  %s3 = inlined_call_operand.vmem [shape: f32[1,32], index: 3, kind: input, shape index: {}]
  %s4 = inlined_call_operand.vmem [shape: f32[2,1,1024,32], index: 4, kind: output, shape index: {}]
  %s5 = sld [smem:[#allocation0]]
  $region49: #{cylindrical_conv_trans.1} parent=0
    _
  %s7 = ssub.s32 1, %s5
  %s8 = scalar_select 0, %s7, %s5
  loop: start=0, step=1, limit=4
  $region2: #{cylindrical_conv_trans.1} parent=0 // loop_pre_header
    _
  $region3: #{cylindrical_conv_trans.1} parent=0 // loop_header
    %s10 = sphi 0, %s14
    %p11 = scmp.ge.s32.totalorder %s10, 4
    %s17 = sphi 0, %s29
    %s18 = sphi 0, %s25
    %s19 = sphi 0, %s17
    %s20 = sphi 0, %s18
    %s21 = sphi 0, %s19
    %s22 = sphi 0, %s20
    %s34 = sphi 0, %s36
    %s37 = sphi 0, %s34
    %s38 = sphi 0, %s37
    %s54 = sphi 0, %s38
    %s66 = sphi 0, %s68
    %s69 = sphi 0, %s66
    %s70 = sphi 0, %s69
    %s86 = sphi 0, %s70
    %s90 = sphi 0, %s90
    %s92 = sphi 0, %s90
    %s93 = sphi 0, %s92
    %s107 = sphi 0, %s93
    %s111 = sphi 0, %s111
    %s113 = sphi 0, %s111
    %s114 = sphi 0, %s113
    %s128 = sphi 0, %s114
    %s136 = sphi 0, %s138
    %s139 = sphi 0, %s136
    %s140 = sphi 0, %s139
    %s156 = sphi 0, %s140
  $region4: #{cylindrical_conv_trans.1} parent=0 // loop_header_branch
    %13 = sbr.rel (%p11) target = $region8
  $region5: #{cylindrical_conv_trans.1} parent=0 // loop_body
    %s15 = ssub.s32 %s10, 1
    %s16 = ssub.s32 %s10, 2
    %s23 = sadd.s32 1, %s18
    %p24 = scmp.ge.s32.totalorder %s23, 1
    %s25 = scalar_select %p24, 0, %s23
    %s26 = sadd.s32 1, %s17
    %s27 = scalar_select %p24, %s26, %s17
    %p28 = scmp.ge.s32.totalorder %s27, 2
    %s29 = scalar_select %p28, 0, %s27
    %s30 = ssub.s32 %s17, %s29
    %s31 = ssub.s32 %s18, %s25
    %s32 = sor.u32 %s30, %s31
    %p33 = scmp.eq.s32.totalorder %s32, 0
    %s35 = sadd.s32 %s34, 1
    %s36 = scalar_select %p33, %s34, %s35
    %p39 = pneg %p33
    %p40 = scmp.eq.s32.totalorder %s10, 1
    %p41 = por %p39, %p40
    %p42 = scmp.ne.s32.totalorder %s34, %s37
    %p43 = scmp.eq.s32.totalorder %s10, 0
    %p44 = por %p42, %p43
    %p45 = scmp.ne.s32.totalorder %s34, %s37
    %p46 = scmp.eq.s32.totalorder %s15, 1
    %p47 = por %p45, %p46
    %p48 = scmp.ne.s32.totalorder %s37, %s38
    %p49 = scmp.eq.s32.totalorder %s15, 0
    %p50 = por %p48, %p49
    %p51 = scmp.ne.s32.totalorder %s37, %s38
    %p52 = scmp.eq.s32.totalorder %s16, 1
    %p53 = por %p51, %p52
    %p55 = scmp.ne.s32.totalorder %s38, %s54
    %p56 = scmp.eq.s32.totalorder %s16, 0
    %p57 = por %p55, %p56
    %s58 = sadd.s32 %s18, 1
    %s59 = smul.u32 %s58, 2
    %s60 = sadd.s32 %s25, 1
    %s61 = smul.u32 %s60, 2
    %s62 = ssub.s32 %s17, %s29
    %s63 = ssub.s32 %s59, %s61
    %s64 = sor.u32 %s62, %s63
    %p65 = scmp.eq.s32.totalorder %s64, 0
    %s67 = sadd.s32 %s66, 1
    %s68 = scalar_select %p65, %s66, %s67
    %p71 = pneg %p65
    %p72 = scmp.eq.s32.totalorder %s10, 1
    %p73 = por %p71, %p72
    %p74 = scmp.ne.s32.totalorder %s66, %s69
    %p75 = scmp.eq.s32.totalorder %s10, 0
    %p76 = por %p74, %p75
    %p77 = scmp.ne.s32.totalorder %s66, %s69
    %p78 = scmp.eq.s32.totalorder %s15, 1
    %p79 = por %p77, %p78
    %p80 = scmp.ne.s32.totalorder %s69, %s70
    %p81 = scmp.eq.s32.totalorder %s15, 0
    %p82 = por %p80, %p81
    %p83 = scmp.ne.s32.totalorder %s69, %s70
    %p84 = scmp.eq.s32.totalorder %s16, 1
    %p85 = por %p83, %p84
    %p87 = scmp.ne.s32.totalorder %s70, %s86
    %p88 = scmp.eq.s32.totalorder %s16, 0
    %p89 = por %p87, %p88
    %s91 = sadd.s32 %s90, 1
    %p94 = scmp.eq.s32.totalorder %s10, 1
    %p95 = scmp.ne.s32.totalorder %s90, %s92
    %p96 = scmp.eq.s32.totalorder %s10, 0
    %p97 = por %p95, %p96
    %p98 = scmp.ne.s32.totalorder %s90, %s92
    %p99 = scmp.eq.s32.totalorder %s15, 1
    %p100 = por %p98, %p99
    %p101 = scmp.ne.s32.totalorder %s92, %s93
    %p102 = scmp.eq.s32.totalorder %s15, 0
    %p103 = por %p101, %p102
    %p104 = scmp.ne.s32.totalorder %s92, %s93
    %p105 = scmp.eq.s32.totalorder %s16, 1
    %p106 = por %p104, %p105
    %p108 = scmp.ne.s32.totalorder %s93, %s107
    %p109 = scmp.eq.s32.totalorder %s16, 0
    %p110 = por %p108, %p109
    %s112 = sadd.s32 %s111, 1
    %p115 = scmp.eq.s32.totalorder %s10, 1
    %p116 = scmp.ne.s32.totalorder %s111, %s113
    %p117 = scmp.eq.s32.totalorder %s10, 0
    %p118 = por %p116, %p117
    %p119 = scmp.ne.s32.totalorder %s111, %s113
    %p120 = scmp.eq.s32.totalorder %s15, 1
    %p121 = por %p119, %p120
    %p122 = scmp.ne.s32.totalorder %s113, %s114
    %p123 = scmp.eq.s32.totalorder %s15, 0
    %p124 = por %p122, %p123
    %p125 = scmp.ne.s32.totalorder %s113, %s114
    %p126 = scmp.eq.s32.totalorder %s16, 1
    %p127 = por %p125, %p126
    %p129 = scmp.ne.s32.totalorder %s114, %s128
    %p130 = scmp.eq.s32.totalorder %s16, 0
    %p131 = por %p129, %p130
    %s132 = ssub.s32 %s17, %s29
    %s133 = ssub.s32 %s18, %s25
    %s134 = sor.u32 %s132, %s133
    %p135 = scmp.eq.s32.totalorder %s134, 0
    %s137 = sadd.s32 %s136, 1
    %s138 = scalar_select %p135, %s136, %s137
    %p141 = pneg %p135
    %p142 = scmp.eq.s32.totalorder %s10, 1
    %p143 = por %p141, %p142
    %p144 = scmp.ne.s32.totalorder %s136, %s139
    %p145 = scmp.eq.s32.totalorder %s10, 0
    %p146 = por %p144, %p145
    %p147 = scmp.ne.s32.totalorder %s136, %s139
    %p148 = scmp.eq.s32.totalorder %s15, 1
    %p149 = por %p147, %p148
    %p150 = scmp.ne.s32.totalorder %s139, %s140
    %p151 = scmp.eq.s32.totalorder %s15, 0
    %p152 = por %p150, %p151
    %p153 = scmp.ne.s32.totalorder %s139, %s140
    %p154 = scmp.eq.s32.totalorder %s16, 1
    %p155 = por %p153, %p154
    %p157 = scmp.ne.s32.totalorder %s140, %s156
    %p158 = scmp.eq.s32.totalorder %s16, 0
    %p159 = por %p157, %p158
    %p160 = scmp.le.s32.totalorder 1, %s10
    %p161 = scmp.lt.s32.totalorder %s10, 3
    %p162 = pnand %p160, %p161
    %p163 = pneg %p162
    // Predicated region
    $region9: #{cylindrical_conv_trans.1} parent=5 // pred_check
      _
    $region10: #{cylindrical_conv_trans.1} parent=5 // pred_check_branch
      %165 = sbr.rel (%p162) target = $region12
    $region11: #{cylindrical_conv_trans.1} parent=5 // pred_region
      %s166 = ssub.s32 %s10, 1
      // Predicated region
      $region13: #{cylindrical_conv_trans.1} parent=11 // pred_check
        %p167 = pneg %p103
      $region14: #{cylindrical_conv_trans.1} parent=11 // pred_check_branch
        %169 = sbr.rel (%p167) target = $region16
      $region15: #{cylindrical_conv_trans.1} parent=11 // pred_region
        _
      $region16: #{cylindrical_conv_trans.1} parent=11 // pred_fallthru
        _
      // Predicated region
      $region17: #{cylindrical_conv_trans.1} parent=11 // pred_check
        %p170 = pneg %p124
      $region18: #{cylindrical_conv_trans.1} parent=11 // pred_check_branch
        %172 = sbr.rel (%p170) target = $region20
      $region19: #{cylindrical_conv_trans.1} parent=11 // pred_region
        _
      $region20: #{cylindrical_conv_trans.1} parent=11 // pred_fallthru
        _
    $region12: #{cylindrical_conv_trans.1} parent=5 // pred_fallthru
      _
    %p173 = scmp.lt.s32.totalorder %s10, 2
    // Predicated region
    $region21: #{cylindrical_conv_trans.1} parent=5 // pred_check
      %p174 = pneg %p173
    $region22: #{cylindrical_conv_trans.1} parent=5 // pred_check_branch
      %176 = sbr.rel (%p174) target = $region24
    $region23: #{cylindrical_conv_trans.1} parent=5 // pred_region
      // Predicated region
      $region25: #{cylindrical_conv_trans.1} parent=23 // pred_check
        %p177 = pneg %p44
      $region26: #{cylindrical_conv_trans.1} parent=23 // pred_check_branch
        %179 = sbr.rel (%p177) target = $region28
      $region27: #{cylindrical_conv_trans.1} parent=23 // pred_region
        %s180 = smul.u32 4, %s18
        %s181 = ssub.s32 6, %s180
        %p182 = scmp.lt.s32.totalorder %s181, 4
        %s183 = scalar_select %p182, %s181, 4
        %s184 = smul.u32 4, %s183
        %s185 = smul.u32 %s184, 18
        %s186 = smul.u32 %s185, 3
        %p187 = scmp.lt.s32.totalorder %s17, 1
        %s188 = scalar_select %p187, %s17, 1
        %p189 = scmp.lt.s32.totalorder %s180, 5
        %s190 = scalar_select %p189, %s180, 5
        %s191 = smul.addr %s190, 54
        %s192 = smul.addr %s188, 324
        %s193 = sadd.s32 %s191, %s192
        %s194 = smul.addr %s193, 4
        %s195 = scalar_lea.vmem %s0, %s194
        %s196 = smul.u32 4, %s18
        %s197 = ssub.s32 6, %s196
        %p198 = scmp.lt.s32.totalorder %s197, 4
        %s199 = scalar_select %p198, %s197, 4
        %s200 = smul.u32 4, %s199
        %s201 = smul.u32 %s200, 18
        %s202 = smul.u32 %s201, 3
      $region28: #{cylindrical_conv_trans.1} parent=23 // pred_fallthru
        _
      // Predicated region
      $region29: #{cylindrical_conv_trans.1} parent=23 // pred_check
        %p203 = pneg %p76
      $region30: #{cylindrical_conv_trans.1} parent=23 // pred_check_branch
        %205 = sbr.rel (%p203) target = $region32
      $region31: #{cylindrical_conv_trans.1} parent=23 // pred_region
        %s206 = sadd.s32 %s18, 1
        %s207 = smul.u32 %s206, 2
        %s208 = smul.u32 2, %s207
        %p209 = scmp.lt.s32.totalorder %s17, 1
        %s210 = scalar_select %p209, %s17, 1
        %p211 = scmp.lt.s32.totalorder %s208, 5
        %s212 = scalar_select %p211, %s208, 5
        %s213 = smul.addr %s212, 54
        %s214 = smul.addr %s210, 324
        %s215 = sadd.s32 %s213, %s214
        %s216 = smul.addr %s215, 4
        %s217 = scalar_lea.vmem %s1, %s216
        %s218 = sadd.s32 %s18, 1
        %s219 = smul.u32 %s218, 2
        %s220 = smul.u32 2, %s219
      $region32: #{cylindrical_conv_trans.1} parent=23 // pred_fallthru
        _
    $region24: #{cylindrical_conv_trans.1} parent=5 // pred_fallthru
      _
    %p221 = scmp.le.s32.totalorder 1, %s10
    %p222 = scmp.lt.s32.totalorder %s10, 3
    %p223 = pnand %p221, %p222
    %p224 = pneg %p223
    // Predicated region
    $region33: #{cylindrical_conv_trans.1} parent=5 // pred_check
      _
    $region34: #{cylindrical_conv_trans.1} parent=5 // pred_check_branch
      %226 = sbr.rel (%p223) target = $region36
    $region35: #{cylindrical_conv_trans.1} parent=5 // pred_region
      %s227 = ssub.s32 %s10, 1
      %s228 = smul.u32 4, %s20
      %s229 = ssub.s32 6, %s228
      %p230 = scmp.lt.s32.totalorder %s229, 4
      %s231 = scalar_select %p230, %s229, 4
      %s232 = smul.u32 4, %s231
      %s233 = smul.u32 %s232, 18
      %s234 = smul.u32 %s233, 3
      %p235 = scmp.lt.s32.totalorder %s19, 1
      %s236 = scalar_select %p235, %s19, 1
      %p237 = scmp.lt.s32.totalorder %s228, 5
      %s238 = scalar_select %p237, %s228, 5
      %s239 = smul.addr %s238, 54
      %s240 = smul.addr %s236, 324
      %s241 = sadd.s32 %s239, %s240
      %s242 = smul.addr %s241, 4
      %s243 = scalar_lea.vmem %s0, %s242
      %p244 = pneg %p50
      %p245 = pneg %p47
      %s246 = sadd.s32 %s20, 1
      %s247 = smul.u32 %s246, 2
      %s248 = smul.u32 2, %s247
      %p249 = scmp.lt.s32.totalorder %s19, 1
      %s250 = scalar_select %p249, %s19, 1
      %p251 = scmp.lt.s32.totalorder %s248, 5
      %s252 = scalar_select %p251, %s248, 5
      %s253 = smul.addr %s252, 54
      %s254 = smul.addr %s250, 324
      %s255 = sadd.s32 %s253, %s254
      %s256 = smul.addr %s255, 4
      %s257 = scalar_lea.vmem %s1, %s256
      %p258 = pneg %p82
      %p259 = pneg %p79
      %p260 = pneg %p103
      %p261 = pneg %p100
      %p262 = pneg %p124
      %p263 = pneg %p121
      %p264 = pneg %p152
      %p265 = pneg %p149
      %p266 = scmp.lt.s32.totalorder %s19, 1
      %s267 = scalar_select %p266, %s19, 1
      %p268 = scmp.lt.s32.totalorder %s20, 0
      %s269 = scalar_select %p268, %s20, 0
      %s270 = smul.addr %s269, 128
      %s271 = smul.addr %s267, 128
      %s272 = sadd.s32 %s270, %s271
      %s273 = smul.addr %s272, 8
      %s274 = scalar_lea.vmem %s4, %s273
      %s275 = smul.u32 4, %s20
      %s276 = ssub.s32 6, %s275
      %p277 = scmp.lt.s32.totalorder %s276, 4
      %s278 = scalar_select %p277, %s276, 4
      %s279 = smul.u32 4, %s278
      %s280 = smul.u32 %s279, 18
      %s281 = smul.u32 %s280, 3
      %p282 = scmp.lt.s32.totalorder %s19, 1
      %s283 = scalar_select %p282, %s19, 1
      %p284 = scmp.lt.s32.totalorder %s275, 5
      %s285 = scalar_select %p284, %s275, 5
      %s286 = smul.addr %s285, 54
      %s287 = smul.addr %s283, 324
      %s288 = sadd.s32 %s286, %s287
      %s289 = smul.addr %s288, 4
      %s290 = scalar_lea.vmem %s0, %s289
      %s291 = smul.u32 4, %s20
      %s292 = ssub.s32 6, %s291
      %p293 = scmp.lt.s32.totalorder %s292, 4
      %s294 = scalar_select %p293, %s292, 4
      %s295 = smul.u32 4, %s294
      %s296 = smul.u32 %s295, 18
      %s297 = smul.u32 %s296, 3
      %s298 = sadd.s32 %s20, 1
      %s299 = smul.u32 %s298, 2
      %s300 = smul.u32 2, %s299
      %p301 = scmp.lt.s32.totalorder %s19, 1
      %s302 = scalar_select %p301, %s19, 1
      %p303 = scmp.lt.s32.totalorder %s300, 5
      %s304 = scalar_select %p303, %s300, 5
      %s305 = smul.addr %s304, 54
      %s306 = smul.addr %s302, 324
      %s307 = sadd.s32 %s305, %s306
      %s308 = smul.addr %s307, 4
      %s309 = scalar_lea.vmem %s1, %s308
      %s310 = sadd.s32 %s20, 1
      %s311 = smul.u32 %s310, 2
      %s312 = smul.u32 2, %s311
      %p313 = scmp.lt.s32.totalorder %s19, 1
      %s314 = scalar_select %p313, %s19, 1
      %p315 = scmp.lt.s32.totalorder %s20, 0
      %s316 = scalar_select %p315, %s20, 0
      %s317 = smul.addr %s316, 128
      %s318 = smul.addr %s314, 128
      %s319 = sadd.s32 %s317, %s318
      %s320 = smul.addr %s319, 8
      %s321 = scalar_lea.vmem %s4, %s320
      %v323 = vld [vmem:[%s290] sm:$0xf]
      %v324 = vld [vmem:[%s290 + $0x4] sm:$0xf]
      %v325 = vld [vmem:[%s290 + $0x8] sm:$0x1]
      %v326 = vld [vmem:[%s290 + $0xc] sm:$0xf]
      %v327 = vld [vmem:[%s290 + $0x10] sm:$0xf]
      %v328 = vld [vmem:[%s290 + $0x14] sm:$0x1]
      %v329 = vld [vmem:[%s290 + $0x18] sm:$0xf]
      %v330 = vld [vmem:[%s290 + $0x1c] sm:$0xf]
      %v331 = vld [vmem:[%s290 + $0x20] sm:$0x1]
      %v332 = vld [vmem:[%s290 + $0x24] sm:$0xf]
      %v333 = vld [vmem:[%s290 + $0x28] sm:$0xf]
      %v334 = vld [vmem:[%s290 + $0x2c] sm:$0x1]
      %v335 = vld [vmem:[%s290 + $0x30] sm:$0xf]
      %v336 = vld [vmem:[%s290 + $0x34] sm:$0xf]
      %v337 = vld [vmem:[%s290 + $0x38] sm:$0x1]
      %v338 = vld [vmem:[%s290 + $0x3c] sm:$0xf]
      %v339 = vld [vmem:[%s290 + $0x40] sm:$0xf]
      %v340 = vld [vmem:[%s290 + $0x44] sm:$0x1]
      %v341 = vld [vmem:[%s290 + $0x48] sm:$0xf]
      %v342 = vld [vmem:[%s290 + $0x4c] sm:$0xf]
      %v343 = vld [vmem:[%s290 + $0x50] sm:$0x1]
      %v344 = vld [vmem:[%s290 + $0x54] sm:$0xf]
      %v345 = vld [vmem:[%s290 + $0x58] sm:$0xf]
      %v346 = vld [vmem:[%s290 + $0x5c] sm:$0x1]
      %v347 = vld [vmem:[%s290 + $0x60] sm:$0xf]
      %v348 = vld [vmem:[%s290 + $0x64] sm:$0xf]
      %v349 = vld [vmem:[%s290 + $0x68] sm:$0x1]
      %v350 = vld [vmem:[%s290 + $0x6c] sm:$0xf]
      %v351 = vld [vmem:[%s290 + $0x70] sm:$0xf]
      %v352 = vld [vmem:[%s290 + $0x74] sm:$0x1]
      %v353 = vld [vmem:[%s290 + $0x78] sm:$0xf]
      %v354 = vld [vmem:[%s290 + $0x7c] sm:$0xf]
      %v355 = vld [vmem:[%s290 + $0x80] sm:$0x1]
      %v356 = vld [vmem:[%s290 + $0x84] sm:$0xf]
      %v357 = vld [vmem:[%s290 + $0x88] sm:$0xf]
      %v358 = vld [vmem:[%s290 + $0x8c] sm:$0x1]
      %v359 = vld [vmem:[%s290 + $0x90] sm:$0xf]
      %v360 = vld [vmem:[%s290 + $0x94] sm:$0xf]
      %v361 = vld [vmem:[%s290 + $0x98] sm:$0x1]
      %v362 = vld [vmem:[%s290 + $0x9c] sm:$0xf]
      %v363 = vld [vmem:[%s290 + $0xa0] sm:$0xf]
      %v364 = vld [vmem:[%s290 + $0xa4] sm:$0x1]
      %v365 = vld [vmem:[%s290 + $0xa8] sm:$0xf]
      %v366 = vld [vmem:[%s290 + $0xac] sm:$0xf]
      %v367 = vld [vmem:[%s290 + $0xb0] sm:$0x1]
      %v368 = vld [vmem:[%s290 + $0xb4] sm:$0xf]
      %v369 = vld [vmem:[%s290 + $0xb8] sm:$0xf]
      %v370 = vld [vmem:[%s290 + $0xbc] sm:$0x1]
      %v371 = vld [vmem:[%s290 + $0xc0] sm:$0xf]
      %v372 = vld [vmem:[%s290 + $0xc4] sm:$0xf]
      %v373 = vld [vmem:[%s290 + $0xc8] sm:$0x1]
      %v374 = vld [vmem:[%s290 + $0xcc] sm:$0xf]
      %v375 = vld [vmem:[%s290 + $0xd0] sm:$0xf]
      %v376 = vld [vmem:[%s290 + $0xd4] sm:$0x1]
      %v377 = vld [vmem:[%s290 + $0xd8] sm:$0xf]
      %v378 = vld [vmem:[%s290 + $0xdc] sm:$0xf]
      %v379 = vld [vmem:[%s290 + $0xe0] sm:$0x1]
      %v380 = vld [vmem:[%s290 + $0xe4] sm:$0xf]
      %v381 = vld [vmem:[%s290 + $0xe8] sm:$0xf]
      %v382 = vld [vmem:[%s290 + $0xec] sm:$0x1]
      %v383 = vld [vmem:[%s290 + $0xf0] sm:$0xf]
      %v384 = vld [vmem:[%s290 + $0xf4] sm:$0xf]
      %v385 = vld [vmem:[%s290 + $0xf8] sm:$0x1]
      %v386 = vld [vmem:[%s290 + $0xfc] sm:$0xf]
      %v387 = vld [vmem:[%s290 + $0x100] sm:$0xf]
      %v388 = vld [vmem:[%s290 + $0x104] sm:$0x1]
      %v389 = vld [vmem:[%s290 + $0x108] sm:$0xf]
      %v390 = vld [vmem:[%s290 + $0x10c] sm:$0xf]
      %v391 = vld [vmem:[%s290 + $0x110] sm:$0x1]
      %v392 = vld [vmem:[%s290 + $0x114] sm:$0xf]
      %v393 = vld [vmem:[%s290 + $0x118] sm:$0xf]
      %v394 = vld [vmem:[%s290 + $0x11c] sm:$0x1]
      %v395 = vld [vmem:[%s290 + $0x120] sm:$0xf]
      %v396 = vld [vmem:[%s290 + $0x124] sm:$0xf]
      %v397 = vld [vmem:[%s290 + $0x128] sm:$0x1]
      %v398 = vld [vmem:[%s290 + $0x12c] sm:$0xf]
      %v399 = vld [vmem:[%s290 + $0x130] sm:$0xf]
      %v400 = vld [vmem:[%s290 + $0x134] sm:$0x1]
      %v401 = vld [vmem:[%s290 + $0x138] sm:$0xf]
      %v402 = vld [vmem:[%s290 + $0x13c] sm:$0xf]
      %v403 = vld [vmem:[%s290 + $0x140] sm:$0x1]
      %v404 = vld [vmem:[%s290 + $0x144] sm:$0xf]
      %v405 = vld [vmem:[%s290 + $0x148] sm:$0xf]
      %v406 = vld [vmem:[%s290 + $0x14c] sm:$0x1]
      %v407 = vld [vmem:[%s290 + $0x150] sm:$0xf]
      %v408 = vld [vmem:[%s290 + $0x154] sm:$0xf]
      %v409 = vld [vmem:[%s290 + $0x158] sm:$0x1]
      %v410 = vld [vmem:[%s290 + $0x15c] sm:$0xf]
      %v411 = vld [vmem:[%s290 + $0x160] sm:$0xf]
      %v412 = vld [vmem:[%s290 + $0x164] sm:$0x1]
      %v413 = vld [vmem:[%s290 + $0x168] sm:$0xf]
      %v414 = vld [vmem:[%s290 + $0x16c] sm:$0xf]
      %v415 = vld [vmem:[%s290 + $0x170] sm:$0x1]
      %v416 = vld [vmem:[%s290 + $0x174] sm:$0xf]
      %v417 = vld [vmem:[%s290 + $0x178] sm:$0xf]
      %v418 = vld [vmem:[%s290 + $0x17c] sm:$0x1]
      %v419 = vld [vmem:[%s290 + $0x180] sm:$0xf]
      %v420 = vld [vmem:[%s290 + $0x184] sm:$0xf]
      %v421 = vld [vmem:[%s290 + $0x188] sm:$0x1]
      %v422 = vld [vmem:[%s290 + $0x18c] sm:$0xf]
      %v423 = vld [vmem:[%s290 + $0x190] sm:$0xf]
      %v424 = vld [vmem:[%s290 + $0x194] sm:$0x1]
      %v425 = vld [vmem:[%s290 + $0x198] sm:$0xf]
      %v426 = vld [vmem:[%s290 + $0x19c] sm:$0xf]
      %v427 = vld [vmem:[%s290 + $0x1a0] sm:$0x1]
      %v428 = vld [vmem:[%s290 + $0x1a4] sm:$0xf]
      %v429 = vld [vmem:[%s290 + $0x1a8] sm:$0xf]
      %v430 = vld [vmem:[%s290 + $0x1ac] sm:$0x1]
      %v431 = vld [vmem:[%s290 + $0x1b0] sm:$0xf]
      %v432 = vld [vmem:[%s290 + $0x1b4] sm:$0xf]
      %v433 = vld [vmem:[%s290 + $0x1b8] sm:$0x1]
      %v434 = vld [vmem:[%s290 + $0x1bc] sm:$0xf]
      %v435 = vld [vmem:[%s290 + $0x1c0] sm:$0xf]
      %v436 = vld [vmem:[%s290 + $0x1c4] sm:$0x1]
      %v437 = vld [vmem:[%s290 + $0x1c8] sm:$0xf]
      %v438 = vld [vmem:[%s290 + $0x1cc] sm:$0xf]
      %v439 = vld [vmem:[%s290 + $0x1d0] sm:$0x1]
      %v440 = vld [vmem:[%s290 + $0x1d4] sm:$0xf]
      %v441 = vld [vmem:[%s290 + $0x1d8] sm:$0xf]
      %v442 = vld [vmem:[%s290 + $0x1dc] sm:$0x1]
      %v443 = vld [vmem:[%s290 + $0x1e0] sm:$0xf]
      %v444 = vld [vmem:[%s290 + $0x1e4] sm:$0xf]
      %v445 = vld [vmem:[%s290 + $0x1e8] sm:$0x1]
      %v446 = vld [vmem:[%s290 + $0x1ec] sm:$0xf]
      %v447 = vld [vmem:[%s290 + $0x1f0] sm:$0xf]
      %v448 = vld [vmem:[%s290 + $0x1f4] sm:$0x1]
      %v449 = vld [vmem:[%s290 + $0x1f8] sm:$0xf]
      %v450 = vld [vmem:[%s290 + $0x1fc] sm:$0xf]
      %v451 = vld [vmem:[%s290 + $0x200] sm:$0x1]
      %v452 = vld [vmem:[%s290 + $0x204] sm:$0xf]
      %v453 = vld [vmem:[%s290 + $0x208] sm:$0xf]
      %v454 = vld [vmem:[%s290 + $0x20c] sm:$0x1]
      %v455 = vld [vmem:[%s290 + $0x210] sm:$0xf]
      %v456 = vld [vmem:[%s290 + $0x214] sm:$0xf]
      %v457 = vld [vmem:[%s290 + $0x218] sm:$0x1]
      %v458 = vld [vmem:[%s290 + $0x21c] sm:$0xf]
      %v459 = vld [vmem:[%s290 + $0x220] sm:$0xf]
      %v460 = vld [vmem:[%s290 + $0x224] sm:$0x1]
      %v461 = vld [vmem:[%s290 + $0x228] sm:$0xf]
      %v462 = vld [vmem:[%s290 + $0x22c] sm:$0xf]
      %v463 = vld [vmem:[%s290 + $0x230] sm:$0x1]
      %v464 = vld [vmem:[%s290 + $0x234] sm:$0xf]
      %v465 = vld [vmem:[%s290 + $0x238] sm:$0xf]
      %v466 = vld [vmem:[%s290 + $0x23c] sm:$0x1]
      %v467 = vld [vmem:[%s290 + $0x240] sm:$0xf]
      %v468 = vld [vmem:[%s290 + $0x244] sm:$0xf]
      %v469 = vld [vmem:[%s290 + $0x248] sm:$0x1]
      %v470 = vld [vmem:[%s290 + $0x24c] sm:$0xf]
      %v471 = vld [vmem:[%s290 + $0x250] sm:$0xf]
      %v472 = vld [vmem:[%s290 + $0x254] sm:$0x1]
      %v473 = vld [vmem:[%s290 + $0x258] sm:$0xf]
      %v474 = vld [vmem:[%s290 + $0x25c] sm:$0xf]
      %v475 = vld [vmem:[%s290 + $0x260] sm:$0x1]
      %v476 = vld [vmem:[%s290 + $0x264] sm:$0xf]
      %v477 = vld [vmem:[%s290 + $0x268] sm:$0xf]
      %v478 = vld [vmem:[%s290 + $0x26c] sm:$0x1]
      %v479 = vld [vmem:[%s290 + $0x270] sm:$0xf]
      %v480 = vld [vmem:[%s290 + $0x274] sm:$0xf]
      %v481 = vld [vmem:[%s290 + $0x278] sm:$0x1]
      %v482 = vld [vmem:[%s290 + $0x27c] sm:$0xf]
      %v483 = vld [vmem:[%s290 + $0x280] sm:$0xf]
      %v484 = vld [vmem:[%s290 + $0x284] sm:$0x1]
      %v485 = vld [vmem:[%s290 + $0x288] sm:$0xf]
      %v486 = vld [vmem:[%s290 + $0x28c] sm:$0xf]
      %v487 = vld [vmem:[%s290 + $0x290] sm:$0x1]
      %v488 = vld [vmem:[%s290 + $0x294] sm:$0xf]
      %v489 = vld [vmem:[%s290 + $0x298] sm:$0xf]
      %v490 = vld [vmem:[%s290 + $0x29c] sm:$0x1]
      %v491 = vld [vmem:[%s290 + $0x2a0] sm:$0xf]
      %v492 = vld [vmem:[%s290 + $0x2a4] sm:$0xf]
      %v493 = vld [vmem:[%s290 + $0x2a8] sm:$0x1]
      %v494 = vld [vmem:[%s290 + $0x2ac] sm:$0xf]
      %v495 = vld [vmem:[%s290 + $0x2b0] sm:$0xf]
      %v496 = vld [vmem:[%s290 + $0x2b4] sm:$0x1]
      %v497 = vld [vmem:[%s290 + $0x2b8] sm:$0xf]
      %v498 = vld [vmem:[%s290 + $0x2bc] sm:$0xf]
      %v499 = vld [vmem:[%s290 + $0x2c0] sm:$0x1]
      %v500 = vld [vmem:[%s290 + $0x2c4] sm:$0xf]
      %v501 = vld [vmem:[%s290 + $0x2c8] sm:$0xf]
      %v502 = vld [vmem:[%s290 + $0x2cc] sm:$0x1]
      %v503 = vld [vmem:[%s290 + $0x2d0] sm:$0xf]
      %v504 = vld [vmem:[%s290 + $0x2d4] sm:$0xf]
      %v505 = vld [vmem:[%s290 + $0x2d8] sm:$0x1]
      %v506 = vld [vmem:[%s290 + $0x2dc] sm:$0xf]
      %v507 = vld [vmem:[%s290 + $0x2e0] sm:$0xf]
      %v508 = vld [vmem:[%s290 + $0x2e4] sm:$0x1]
      %v509 = vld [vmem:[%s290 + $0x2e8] sm:$0xf]
      %v510 = vld [vmem:[%s290 + $0x2ec] sm:$0xf]
      %v511 = vld [vmem:[%s290 + $0x2f0] sm:$0x1]
      %v512 = vld [vmem:[%s290 + $0x2f4] sm:$0xf]
      %v513 = vld [vmem:[%s290 + $0x2f8] sm:$0xf]
      %v514 = vld [vmem:[%s290 + $0x2fc] sm:$0x1]
      %v515 = vld [vmem:[%s290 + $0x300] sm:$0xf]
      %v516 = vld [vmem:[%s290 + $0x304] sm:$0xf]
      %v517 = vld [vmem:[%s290 + $0x308] sm:$0x1]
      %v518 = vld [vmem:[%s290 + $0x30c] sm:$0xf]
      %v519 = vld [vmem:[%s290 + $0x310] sm:$0xf]
      %v520 = vld [vmem:[%s290 + $0x314] sm:$0x1]
      %v521 = vld [vmem:[%s290 + $0x318] sm:$0xf]
      %v522 = vld [vmem:[%s290 + $0x31c] sm:$0xf]
      %v523 = vld [vmem:[%s290 + $0x320] sm:$0x1]
      %v524 = vld [vmem:[%s290 + $0x324] sm:$0xf]
      %v525 = vld [vmem:[%s290 + $0x328] sm:$0xf]
      %v526 = vld [vmem:[%s290 + $0x32c] sm:$0x1]
      %v527 = vld [vmem:[%s290 + $0x330] sm:$0xf]
      %v528 = vld [vmem:[%s290 + $0x334] sm:$0xf]
      %v529 = vld [vmem:[%s290 + $0x338] sm:$0x1]
      %v530 = vld [vmem:[%s290 + $0x33c] sm:$0xf]
      %v531 = vld [vmem:[%s290 + $0x340] sm:$0xf]
      %v532 = vld [vmem:[%s290 + $0x344] sm:$0x1]
      %v533 = vld [vmem:[%s290 + $0x348] sm:$0xf]
      %v534 = vld [vmem:[%s290 + $0x34c] sm:$0xf]
      %v535 = vld [vmem:[%s290 + $0x350] sm:$0x1]
      %v536 = vld [vmem:[%s290 + $0x354] sm:$0xf]
      %v537 = vld [vmem:[%s290 + $0x358] sm:$0xf]
      %v538 = vld [vmem:[%s290 + $0x35c] sm:$0x1]
      %v539 = vld [vmem:[%s309] sm:$0xf]
      %v540 = vld [vmem:[%s309 + $0x4] sm:$0xf]
      %v541 = vld [vmem:[%s309 + $0x8] sm:$0x1]
      %v542 = vld [vmem:[%s309 + $0xc] sm:$0xf]
      %v543 = vld [vmem:[%s309 + $0x10] sm:$0xf]
      %v544 = vld [vmem:[%s309 + $0x14] sm:$0x1]
      %v545 = vld [vmem:[%s309 + $0x18] sm:$0xf]
      %v546 = vld [vmem:[%s309 + $0x1c] sm:$0xf]
      %v547 = vld [vmem:[%s309 + $0x20] sm:$0x1]
      %v548 = vld [vmem:[%s309 + $0x24] sm:$0xf]
      %v549 = vld [vmem:[%s309 + $0x28] sm:$0xf]
      %v550 = vld [vmem:[%s309 + $0x2c] sm:$0x1]
      %v551 = vld [vmem:[%s309 + $0x30] sm:$0xf]
      %v552 = vld [vmem:[%s309 + $0x34] sm:$0xf]
      %v553 = vld [vmem:[%s309 + $0x38] sm:$0x1]
      %v554 = vld [vmem:[%s309 + $0x3c] sm:$0xf]
      %v555 = vld [vmem:[%s309 + $0x40] sm:$0xf]
      %v556 = vld [vmem:[%s309 + $0x44] sm:$0x1]
      %v557 = vld [vmem:[%s309 + $0x48] sm:$0xf]
      %v558 = vld [vmem:[%s309 + $0x4c] sm:$0xf]
      %v559 = vld [vmem:[%s309 + $0x50] sm:$0x1]
      %v560 = vld [vmem:[%s309 + $0x54] sm:$0xf]
      %v561 = vld [vmem:[%s309 + $0x58] sm:$0xf]
      %v562 = vld [vmem:[%s309 + $0x5c] sm:$0x1]
      %v563 = vld [vmem:[%s309 + $0x60] sm:$0xf]
      %v564 = vld [vmem:[%s309 + $0x64] sm:$0xf]
      %v565 = vld [vmem:[%s309 + $0x68] sm:$0x1]
      %v566 = vld [vmem:[%s309 + $0x6c] sm:$0xf]
      %v567 = vld [vmem:[%s309 + $0x70] sm:$0xf]
      %v568 = vld [vmem:[%s309 + $0x74] sm:$0x1]
      %v569 = vld [vmem:[%s309 + $0x78] sm:$0xf]
      %v570 = vld [vmem:[%s309 + $0x7c] sm:$0xf]
      %v571 = vld [vmem:[%s309 + $0x80] sm:$0x1]
      %v572 = vld [vmem:[%s309 + $0x84] sm:$0xf]
      %v573 = vld [vmem:[%s309 + $0x88] sm:$0xf]
      %v574 = vld [vmem:[%s309 + $0x8c] sm:$0x1]
      %v575 = vld [vmem:[%s309 + $0x90] sm:$0xf]
      %v576 = vld [vmem:[%s309 + $0x94] sm:$0xf]
      %v577 = vld [vmem:[%s309 + $0x98] sm:$0x1]
      %v578 = vld [vmem:[%s309 + $0x9c] sm:$0xf]
      %v579 = vld [vmem:[%s309 + $0xa0] sm:$0xf]
      %v580 = vld [vmem:[%s309 + $0xa4] sm:$0x1]
      %v581 = vld [vmem:[%s309 + $0xa8] sm:$0xf]
      %v582 = vld [vmem:[%s309 + $0xac] sm:$0xf]
      %v583 = vld [vmem:[%s309 + $0xb0] sm:$0x1]
      %v584 = vld [vmem:[%s309 + $0xb4] sm:$0xf]
      %v585 = vld [vmem:[%s309 + $0xb8] sm:$0xf]
      %v586 = vld [vmem:[%s309 + $0xbc] sm:$0x1]
      %v587 = vld [vmem:[%s309 + $0xc0] sm:$0xf]
      %v588 = vld [vmem:[%s309 + $0xc4] sm:$0xf]
      %v589 = vld [vmem:[%s309 + $0xc8] sm:$0x1]
      %v590 = vld [vmem:[%s309 + $0xcc] sm:$0xf]
      %v591 = vld [vmem:[%s309 + $0xd0] sm:$0xf]
      %v592 = vld [vmem:[%s309 + $0xd4] sm:$0x1]
      %v593 = vld [vmem:[%s309 + $0xd8] sm:$0xf]
      %v594 = vld [vmem:[%s309 + $0xdc] sm:$0xf]
      %v595 = vld [vmem:[%s309 + $0xe0] sm:$0x1]
      %v596 = vld [vmem:[%s309 + $0xe4] sm:$0xf]
      %v597 = vld [vmem:[%s309 + $0xe8] sm:$0xf]
      %v598 = vld [vmem:[%s309 + $0xec] sm:$0x1]
      %v599 = vld [vmem:[%s309 + $0xf0] sm:$0xf]
      %v600 = vld [vmem:[%s309 + $0xf4] sm:$0xf]
      %v601 = vld [vmem:[%s309 + $0xf8] sm:$0x1]
      %v602 = vld [vmem:[%s309 + $0xfc] sm:$0xf]
      %v603 = vld [vmem:[%s309 + $0x100] sm:$0xf]
      %v604 = vld [vmem:[%s309 + $0x104] sm:$0x1]
      %v605 = vld [vmem:[%s309 + $0x108] sm:$0xf]
      %v606 = vld [vmem:[%s309 + $0x10c] sm:$0xf]
      %v607 = vld [vmem:[%s309 + $0x110] sm:$0x1]
      %v608 = vld [vmem:[%s309 + $0x114] sm:$0xf]
      %v609 = vld [vmem:[%s309 + $0x118] sm:$0xf]
      %v610 = vld [vmem:[%s309 + $0x11c] sm:$0x1]
      %v611 = vld [vmem:[%s309 + $0x120] sm:$0xf]
      %v612 = vld [vmem:[%s309 + $0x124] sm:$0xf]
      %v613 = vld [vmem:[%s309 + $0x128] sm:$0x1]
      %v614 = vld [vmem:[%s309 + $0x12c] sm:$0xf]
      %v615 = vld [vmem:[%s309 + $0x130] sm:$0xf]
      %v616 = vld [vmem:[%s309 + $0x134] sm:$0x1]
      %v617 = vld [vmem:[%s309 + $0x138] sm:$0xf]
      %v618 = vld [vmem:[%s309 + $0x13c] sm:$0xf]
      %v619 = vld [vmem:[%s309 + $0x140] sm:$0x1]
      %v620 = vld [vmem:[%s309 + $0x144] sm:$0xf]
      %v621 = vld [vmem:[%s309 + $0x148] sm:$0xf]
      %v622 = vld [vmem:[%s309 + $0x14c] sm:$0x1]
      %v623 = vld [vmem:[%s309 + $0x150] sm:$0xf]
      %v624 = vld [vmem:[%s309 + $0x154] sm:$0xf]
      %v625 = vld [vmem:[%s309 + $0x158] sm:$0x1]
      %v626 = vld [vmem:[%s309 + $0x15c] sm:$0xf]
      %v627 = vld [vmem:[%s309 + $0x160] sm:$0xf]
      %v628 = vld [vmem:[%s309 + $0x164] sm:$0x1]
      %v629 = vld [vmem:[%s309 + $0x168] sm:$0xf]
      %v630 = vld [vmem:[%s309 + $0x16c] sm:$0xf]
      %v631 = vld [vmem:[%s309 + $0x170] sm:$0x1]
      %v632 = vld [vmem:[%s309 + $0x174] sm:$0xf]
      %v633 = vld [vmem:[%s309 + $0x178] sm:$0xf]
      %v634 = vld [vmem:[%s309 + $0x17c] sm:$0x1]
      %v635 = vld [vmem:[%s309 + $0x180] sm:$0xf]
      %v636 = vld [vmem:[%s309 + $0x184] sm:$0xf]
      %v637 = vld [vmem:[%s309 + $0x188] sm:$0x1]
      %v638 = vld [vmem:[%s309 + $0x18c] sm:$0xf]
      %v639 = vld [vmem:[%s309 + $0x190] sm:$0xf]
      %v640 = vld [vmem:[%s309 + $0x194] sm:$0x1]
      %v641 = vld [vmem:[%s309 + $0x198] sm:$0xf]
      %v642 = vld [vmem:[%s309 + $0x19c] sm:$0xf]
      %v643 = vld [vmem:[%s309 + $0x1a0] sm:$0x1]
      %v644 = vld [vmem:[%s309 + $0x1a4] sm:$0xf]
      %v645 = vld [vmem:[%s309 + $0x1a8] sm:$0xf]
      %v646 = vld [vmem:[%s309 + $0x1ac] sm:$0x1]
      %vm647 = vsmask.f32 3328
      %vm648 = vsmask.f32 7440
      %vm649 = vmor %vm647, %vm648
      %v651 = vshrl.u32 %v323, 16
      %v653 = vrot.slane %v651, 4
      %v654 = vshll.u32 %v323, 16
      %v656 = vrot.slane %v654, 5
      %v657 = vor.u32 %v653, %v656
      %v658 = vrot.slane %v657, 4
      %v660 = vshll.u32 %v324, 16
      %v662 = vrot.slane %v660, 5
      %v663 = vsel %vm649, %v658, %v662
      %v664 = vshrl.u32 %v324, 16
      %v666 = vrot.slane %v664, 4
      %v667 = vor.u32 %v666, %v662
      %v668 = vrot.slane %v667, 4
      %v670 = vshll.u32 %v325, 16
      %v672 = vrot.slane %v670, 5
      %v673 = vsel %vm649, %v668, %v672
      %v675 = vshrl.u32 %v326, 16
      %v677 = vrot.slane %v675, 4
      %v678 = vshll.u32 %v326, 16
      %v680 = vrot.slane %v678, 5
      %v681 = vor.u32 %v677, %v680
      %v682 = vrot.slane %v681, 4
      %v684 = vshll.u32 %v327, 16
      %v686 = vrot.slane %v684, 5
      %v687 = vsel %vm649, %v682, %v686
      %v688 = vshrl.u32 %v327, 16
      %v690 = vrot.slane %v688, 4
      %v691 = vor.u32 %v690, %v686
      %v692 = vrot.slane %v691, 4
      %v694 = vshll.u32 %v328, 16
      %v696 = vrot.slane %v694, 5
      %v697 = vsel %vm649, %v692, %v696
      %v699 = vshrl.u32 %v329, 16
      %v701 = vrot.slane %v699, 4
      %v702 = vshll.u32 %v329, 16
      %v704 = vrot.slane %v702, 5
      %v705 = vor.u32 %v701, %v704
      %v706 = vrot.slane %v705, 4
      %v708 = vshll.u32 %v330, 16
      %v710 = vrot.slane %v708, 5
      %v711 = vsel %vm649, %v706, %v710
      %v712 = vshrl.u32 %v330, 16
      %v714 = vrot.slane %v712, 4
      %v715 = vor.u32 %v714, %v710
      %v716 = vrot.slane %v715, 4
      %v718 = vshll.u32 %v331, 16
      %v720 = vrot.slane %v718, 5
      %v721 = vsel %vm649, %v716, %v720
      %v723 = vshrl.u32 %v332, 16
      %v725 = vrot.slane %v723, 4
      %v726 = vshll.u32 %v332, 16
      %v728 = vrot.slane %v726, 5
      %v729 = vor.u32 %v725, %v728
      %v730 = vrot.slane %v729, 4
      %v732 = vshll.u32 %v333, 16
      %v734 = vrot.slane %v732, 5
      %v735 = vsel %vm649, %v730, %v734
      %v736 = vshrl.u32 %v333, 16
      %v738 = vrot.slane %v736, 4
      %v739 = vor.u32 %v738, %v734
      %v740 = vrot.slane %v739, 4
      %v742 = vshll.u32 %v334, 16
      %v744 = vrot.slane %v742, 5
      %v745 = vsel %vm649, %v740, %v744
      %v747 = vshrl.u32 %v335, 16
      %v749 = vrot.slane %v747, 4
      %v750 = vshll.u32 %v335, 16
      %v752 = vrot.slane %v750, 5
      %v753 = vor.u32 %v749, %v752
      %v754 = vrot.slane %v753, 4
      %v756 = vshll.u32 %v336, 16
      %v758 = vrot.slane %v756, 5
      %v759 = vsel %vm649, %v754, %v758
      %v760 = vshrl.u32 %v336, 16
      %v762 = vrot.slane %v760, 4
      %v763 = vor.u32 %v762, %v758
      %v764 = vrot.slane %v763, 4
      %v766 = vshll.u32 %v337, 16
      %v768 = vrot.slane %v766, 5
      %v769 = vsel %vm649, %v764, %v768
      %v771 = vshrl.u32 %v338, 16
      %v773 = vrot.slane %v771, 4
      %v774 = vshll.u32 %v338, 16
      %v776 = vrot.slane %v774, 5
      %v777 = vor.u32 %v773, %v776
      %v778 = vrot.slane %v777, 4
      %v780 = vshll.u32 %v339, 16
      %v782 = vrot.slane %v780, 5
      %v783 = vsel %vm649, %v778, %v782
      %v784 = vshrl.u32 %v339, 16
      %v786 = vrot.slane %v784, 4
      %v787 = vor.u32 %v786, %v782
      %v788 = vrot.slane %v787, 4
      %v790 = vshll.u32 %v340, 16
      %v792 = vrot.slane %v790, 5
      %v793 = vsel %vm649, %v788, %v792
      %v795 = vshrl.u32 %v341, 16
      %v797 = vrot.slane %v795, 4
      %v798 = vshll.u32 %v341, 16
      %v800 = vrot.slane %v798, 5
      %v801 = vor.u32 %v797, %v800
      %v802 = vrot.slane %v801, 4
      %v804 = vshll.u32 %v342, 16
      %v806 = vrot.slane %v804, 5
      %v807 = vsel %vm649, %v802, %v806
      %v808 = vshrl.u32 %v342, 16
      %v810 = vrot.slane %v808, 4
      %v811 = vor.u32 %v810, %v806
      %v812 = vrot.slane %v811, 4
      %v814 = vshll.u32 %v343, 16
      %v816 = vrot.slane %v814, 5
      %v817 = vsel %vm649, %v812, %v816
      %v819 = vshrl.u32 %v344, 16
      %v821 = vrot.slane %v819, 4
      %v822 = vshll.u32 %v344, 16
      %v824 = vrot.slane %v822, 5
      %v825 = vor.u32 %v821, %v824
      %v826 = vrot.slane %v825, 4
      %v828 = vshll.u32 %v345, 16
      %v830 = vrot.slane %v828, 5
      %v831 = vsel %vm649, %v826, %v830
      %v832 = vshrl.u32 %v345, 16
      %v834 = vrot.slane %v832, 4
      %v835 = vor.u32 %v834, %v830
      %v836 = vrot.slane %v835, 4
      %v838 = vshll.u32 %v346, 16
      %v840 = vrot.slane %v838, 5
      %v841 = vsel %vm649, %v836, %v840
      %v843 = vshrl.u32 %v347, 16
      %v845 = vrot.slane %v843, 4
      %v846 = vshll.u32 %v347, 16
      %v848 = vrot.slane %v846, 5
      %v849 = vor.u32 %v845, %v848
      %v850 = vrot.slane %v849, 4
      %v852 = vshll.u32 %v348, 16
      %v854 = vrot.slane %v852, 5
      %v855 = vsel %vm649, %v850, %v854
      %v856 = vshrl.u32 %v348, 16
      %v858 = vrot.slane %v856, 4
      %v859 = vor.u32 %v858, %v854
      %v860 = vrot.slane %v859, 4
      %v862 = vshll.u32 %v349, 16
      %v864 = vrot.slane %v862, 5
      %v865 = vsel %vm649, %v860, %v864
      %v867 = vshrl.u32 %v350, 16
      %v869 = vrot.slane %v867, 4
      %v870 = vshll.u32 %v350, 16
      %v872 = vrot.slane %v870, 5
      %v873 = vor.u32 %v869, %v872
      %v874 = vrot.slane %v873, 4
      %v876 = vshll.u32 %v351, 16
      %v878 = vrot.slane %v876, 5
      %v879 = vsel %vm649, %v874, %v878
      %v880 = vshrl.u32 %v351, 16
      %v882 = vrot.slane %v880, 4
      %v883 = vor.u32 %v882, %v878
      %v884 = vrot.slane %v883, 4
      %v886 = vshll.u32 %v352, 16
      %v888 = vrot.slane %v886, 5
      %v889 = vsel %vm649, %v884, %v888
      %v891 = vshrl.u32 %v353, 16
      %v893 = vrot.slane %v891, 4
      %v894 = vshll.u32 %v353, 16
      %v896 = vrot.slane %v894, 5
      %v897 = vor.u32 %v893, %v896
      %v898 = vrot.slane %v897, 4
      %v900 = vshll.u32 %v354, 16
      %v902 = vrot.slane %v900, 5
      %v903 = vsel %vm649, %v898, %v902
      %v904 = vshrl.u32 %v354, 16
      %v906 = vrot.slane %v904, 4
      %v907 = vor.u32 %v906, %v902
      %v908 = vrot.slane %v907, 4
      %v910 = vshll.u32 %v355, 16
      %v912 = vrot.slane %v910, 5
      %v913 = vsel %vm649, %v908, %v912
      %v915 = vshrl.u32 %v356, 16
      %v917 = vrot.slane %v915, 4
      %v918 = vshll.u32 %v356, 16
      %v920 = vrot.slane %v918, 5
      %v921 = vor.u32 %v917, %v920
      %v922 = vrot.slane %v921, 4
      %v924 = vshll.u32 %v357, 16
      %v926 = vrot.slane %v924, 5
      %v927 = vsel %vm649, %v922, %v926
      %v928 = vshrl.u32 %v357, 16
      %v930 = vrot.slane %v928, 4
      %v931 = vor.u32 %v930, %v926
      %v932 = vrot.slane %v931, 4
      %v934 = vshll.u32 %v358, 16
      %v936 = vrot.slane %v934, 5
      %v937 = vsel %vm649, %v932, %v936
      %v939 = vshrl.u32 %v359, 16
      %v941 = vrot.slane %v939, 4
      %v942 = vshll.u32 %v359, 16
      %v944 = vrot.slane %v942, 5
      %v945 = vor.u32 %v941, %v944
      %v946 = vrot.slane %v945, 4
      %v948 = vshll.u32 %v360, 16
      %v950 = vrot.slane %v948, 5
      %v951 = vsel %vm649, %v946, %v950
      %v952 = vshrl.u32 %v360, 16
      %v954 = vrot.slane %v952, 4
      %v955 = vor.u32 %v954, %v950
      %v956 = vrot.slane %v955, 4
      %v958 = vshll.u32 %v361, 16
      %v960 = vrot.slane %v958, 5
      %v961 = vsel %vm649, %v956, %v960
      %v963 = vshrl.u32 %v362, 16
      %v965 = vrot.slane %v963, 4
      %v966 = vshll.u32 %v362, 16
      %v968 = vrot.slane %v966, 5
      %v969 = vor.u32 %v965, %v968
      %v970 = vrot.slane %v969, 4
      %v972 = vshll.u32 %v363, 16
      %v974 = vrot.slane %v972, 5
      %v975 = vsel %vm649, %v970, %v974
      %v976 = vshrl.u32 %v363, 16
      %v978 = vrot.slane %v976, 4
      %v979 = vor.u32 %v978, %v974
      %v980 = vrot.slane %v979, 4
      %v982 = vshll.u32 %v364, 16
      %v984 = vrot.slane %v982, 5
      %v985 = vsel %vm649, %v980, %v984
      %v987 = vshrl.u32 %v365, 16
      %v989 = vrot.slane %v987, 4
      %v990 = vshll.u32 %v365, 16
      %v992 = vrot.slane %v990, 5
      %v993 = vor.u32 %v989, %v992
      %v994 = vrot.slane %v993, 4
      %v996 = vshll.u32 %v366, 16
      %v998 = vrot.slane %v996, 5
      %v999 = vsel %vm649, %v994, %v998
      %v1000 = vshrl.u32 %v366, 16
      %v1002 = vrot.slane %v1000, 4
      %v1003 = vor.u32 %v1002, %v998
      %v1004 = vrot.slane %v1003, 4
      %v1006 = vshll.u32 %v367, 16
      %v1008 = vrot.slane %v1006, 5
      %v1009 = vsel %vm649, %v1004, %v1008
      %v1011 = vshrl.u32 %v368, 16
      %v1013 = vrot.slane %v1011, 4
      %v1014 = vshll.u32 %v368, 16
      %v1016 = vrot.slane %v1014, 5
      %v1017 = vor.u32 %v1013, %v1016
      %v1018 = vrot.slane %v1017, 4
      %v1020 = vshll.u32 %v369, 16
      %v1022 = vrot.slane %v1020, 5
      %v1023 = vsel %vm649, %v1018, %v1022
      %v1024 = vshrl.u32 %v369, 16
      %v1026 = vrot.slane %v1024, 4
      %v1027 = vor.u32 %v1026, %v1022
      %v1028 = vrot.slane %v1027, 4
      %v1030 = vshll.u32 %v370, 16
      %v1032 = vrot.slane %v1030, 5
      %v1033 = vsel %vm649, %v1028, %v1032
      %v1035 = vshrl.u32 %v377, 16
      %v1037 = vrot.slane %v1035, 4
      %v1038 = vshll.u32 %v377, 16
      %v1040 = vrot.slane %v1038, 5
      %v1041 = vor.u32 %v1037, %v1040
      %v1042 = vrot.slane %v1041, 4
      %v1044 = vshll.u32 %v378, 16
      %v1046 = vrot.slane %v1044, 5
      %v1047 = vsel %vm649, %v1042, %v1046
      %v1048 = vshrl.u32 %v378, 16
      %v1050 = vrot.slane %v1048, 4
      %v1051 = vor.u32 %v1050, %v1046
      %v1052 = vrot.slane %v1051, 4
      %v1054 = vshll.u32 %v379, 16
      %v1056 = vrot.slane %v1054, 5
      %v1057 = vsel %vm649, %v1052, %v1056
      %v1059 = vshrl.u32 %v380, 16
      %v1061 = vrot.slane %v1059, 4
      %v1062 = vshll.u32 %v380, 16
      %v1064 = vrot.slane %v1062, 5
      %v1065 = vor.u32 %v1061, %v1064
      %v1066 = vrot.slane %v1065, 4
      %v1068 = vshll.u32 %v381, 16
      %v1070 = vrot.slane %v1068, 5
      %v1071 = vsel %vm649, %v1066, %v1070
      %v1072 = vshrl.u32 %v381, 16
      %v1074 = vrot.slane %v1072, 4
      %v1075 = vor.u32 %v1074, %v1070
      %v1076 = vrot.slane %v1075, 4
      %v1078 = vshll.u32 %v382, 16
      %v1080 = vrot.slane %v1078, 5
      %v1081 = vsel %vm649, %v1076, %v1080
      %v1083 = vshrl.u32 %v383, 16
      %v1085 = vrot.slane %v1083, 4
      %v1086 = vshll.u32 %v383, 16
      %v1088 = vrot.slane %v1086, 5
      %v1089 = vor.u32 %v1085, %v1088
      %v1090 = vrot.slane %v1089, 4
      %v1092 = vshll.u32 %v384, 16
      %v1094 = vrot.slane %v1092, 5
      %v1095 = vsel %vm649, %v1090, %v1094
      %v1096 = vshrl.u32 %v384, 16
      %v1098 = vrot.slane %v1096, 4
      %v1099 = vor.u32 %v1098, %v1094
      %v1100 = vrot.slane %v1099, 4
      %v1102 = vshll.u32 %v385, 16
      %v1104 = vrot.slane %v1102, 5
      %v1105 = vsel %vm649, %v1100, %v1104
      %v1107 = vshrl.u32 %v386, 16
      %v1109 = vrot.slane %v1107, 4
      %v1110 = vshll.u32 %v386, 16
      %v1112 = vrot.slane %v1110, 5
      %v1113 = vor.u32 %v1109, %v1112
      %v1114 = vrot.slane %v1113, 4
      %v1116 = vshll.u32 %v387, 16
      %v1118 = vrot.slane %v1116, 5
      %v1119 = vsel %vm649, %v1114, %v1118
      %v1120 = vshrl.u32 %v387, 16
      %v1122 = vrot.slane %v1120, 4
      %v1123 = vor.u32 %v1122, %v1118
      %v1124 = vrot.slane %v1123, 4
      %v1126 = vshll.u32 %v388, 16
      %v1128 = vrot.slane %v1126, 5
      %v1129 = vsel %vm649, %v1124, %v1128
      %v1131 = vshrl.u32 %v389, 16
      %v1133 = vrot.slane %v1131, 4
      %v1134 = vshll.u32 %v389, 16
      %v1136 = vrot.slane %v1134, 5
      %v1137 = vor.u32 %v1133, %v1136
      %v1138 = vrot.slane %v1137, 4
      %v1140 = vshll.u32 %v390, 16
      %v1142 = vrot.slane %v1140, 5
      %v1143 = vsel %vm649, %v1138, %v1142
      %v1144 = vshrl.u32 %v390, 16
      %v1146 = vrot.slane %v1144, 4
      %v1147 = vor.u32 %v1146, %v1142
      %v1148 = vrot.slane %v1147, 4
      %v1150 = vshll.u32 %v391, 16
      %v1152 = vrot.slane %v1150, 5
      %v1153 = vsel %vm649, %v1148, %v1152
      %v1155 = vshrl.u32 %v392, 16
      %v1157 = vrot.slane %v1155, 4
      %v1158 = vshll.u32 %v392, 16
      %v1160 = vrot.slane %v1158, 5
      %v1161 = vor.u32 %v1157, %v1160
      %v1162 = vrot.slane %v1161, 4
      %v1164 = vshll.u32 %v393, 16
      %v1166 = vrot.slane %v1164, 5
      %v1167 = vsel %vm649, %v1162, %v1166
      %v1168 = vshrl.u32 %v393, 16
      %v1170 = vrot.slane %v1168, 4
      %v1171 = vor.u32 %v1170, %v1166
      %v1172 = vrot.slane %v1171, 4
      %v1174 = vshll.u32 %v394, 16
      %v1176 = vrot.slane %v1174, 5
      %v1177 = vsel %vm649, %v1172, %v1176
      %v1179 = vshrl.u32 %v395, 16
      %v1181 = vrot.slane %v1179, 4
      %v1182 = vshll.u32 %v395, 16
      %v1184 = vrot.slane %v1182, 5
      %v1185 = vor.u32 %v1181, %v1184
      %v1186 = vrot.slane %v1185, 4
      %v1188 = vshll.u32 %v396, 16
      %v1190 = vrot.slane %v1188, 5
      %v1191 = vsel %vm649, %v1186, %v1190
      %v1192 = vshrl.u32 %v396, 16
      %v1194 = vrot.slane %v1192, 4
      %v1195 = vor.u32 %v1194, %v1190
      %v1196 = vrot.slane %v1195, 4
      %v1198 = vshll.u32 %v397, 16
      %v1200 = vrot.slane %v1198, 5
      %v1201 = vsel %vm649, %v1196, %v1200
      %v1203 = vshrl.u32 %v398, 16
      %v1205 = vrot.slane %v1203, 4
      %v1206 = vshll.u32 %v398, 16
      %v1208 = vrot.slane %v1206, 5
      %v1209 = vor.u32 %v1205, %v1208
      %v1210 = vrot.slane %v1209, 4
      %v1212 = vshll.u32 %v399, 16
      %v1214 = vrot.slane %v1212, 5
      %v1215 = vsel %vm649, %v1210, %v1214
      %v1216 = vshrl.u32 %v399, 16
      %v1218 = vrot.slane %v1216, 4
      %v1219 = vor.u32 %v1218, %v1214
      %v1220 = vrot.slane %v1219, 4
      %v1222 = vshll.u32 %v400, 16
      %v1224 = vrot.slane %v1222, 5
      %v1225 = vsel %vm649, %v1220, %v1224
      %v1227 = vshrl.u32 %v401, 16
      %v1229 = vrot.slane %v1227, 4
      %v1230 = vshll.u32 %v401, 16
      %v1232 = vrot.slane %v1230, 5
      %v1233 = vor.u32 %v1229, %v1232
      %v1234 = vrot.slane %v1233, 4
      %v1236 = vshll.u32 %v402, 16
      %v1238 = vrot.slane %v1236, 5
      %v1239 = vsel %vm649, %v1234, %v1238
      %v1240 = vshrl.u32 %v402, 16
      %v1242 = vrot.slane %v1240, 4
      %v1243 = vor.u32 %v1242, %v1238
      %v1244 = vrot.slane %v1243, 4
      %v1246 = vshll.u32 %v403, 16
      %v1248 = vrot.slane %v1246, 5
      %v1249 = vsel %vm649, %v1244, %v1248
      %v1251 = vshrl.u32 %v404, 16
      %v1253 = vrot.slane %v1251, 4
      %v1254 = vshll.u32 %v404, 16
      %v1256 = vrot.slane %v1254, 5
      %v1257 = vor.u32 %v1253, %v1256
      %v1258 = vrot.slane %v1257, 4
      %v1260 = vshll.u32 %v405, 16
      %v1262 = vrot.slane %v1260, 5
      %v1263 = vsel %vm649, %v1258, %v1262
      %v1264 = vshrl.u32 %v405, 16
      %v1266 = vrot.slane %v1264, 4
      %v1267 = vor.u32 %v1266, %v1262
      %v1268 = vrot.slane %v1267, 4
      %v1270 = vshll.u32 %v406, 16
      %v1272 = vrot.slane %v1270, 5
      %v1273 = vsel %vm649, %v1268, %v1272
      %v1275 = vshrl.u32 %v407, 16
      %v1277 = vrot.slane %v1275, 4
      %v1278 = vshll.u32 %v407, 16
      %v1280 = vrot.slane %v1278, 5
      %v1281 = vor.u32 %v1277, %v1280
      %v1282 = vrot.slane %v1281, 4
      %v1284 = vshll.u32 %v408, 16
      %v1286 = vrot.slane %v1284, 5
      %v1287 = vsel %vm649, %v1282, %v1286
      %v1288 = vshrl.u32 %v408, 16
      %v1290 = vrot.slane %v1288, 4
      %v1291 = vor.u32 %v1290, %v1286
      %v1292 = vrot.slane %v1291, 4
      %v1294 = vshll.u32 %v409, 16
      %v1296 = vrot.slane %v1294, 5
      %v1297 = vsel %vm649, %v1292, %v1296
      %v1299 = vshrl.u32 %v410, 16
      %v1301 = vrot.slane %v1299, 4
      %v1302 = vshll.u32 %v410, 16
      %v1304 = vrot.slane %v1302, 5
      %v1305 = vor.u32 %v1301, %v1304
      %v1306 = vrot.slane %v1305, 4
      %v1308 = vshll.u32 %v411, 16
      %v1310 = vrot.slane %v1308, 5
      %v1311 = vsel %vm649, %v1306, %v1310
      %v1312 = vshrl.u32 %v411, 16
      %v1314 = vrot.slane %v1312, 4
      %v1315 = vor.u32 %v1314, %v1310
      %v1316 = vrot.slane %v1315, 4
      %v1318 = vshll.u32 %v412, 16
      %v1320 = vrot.slane %v1318, 5
      %v1321 = vsel %vm649, %v1316, %v1320
      %v1323 = vshrl.u32 %v413, 16
      %v1325 = vrot.slane %v1323, 4
      %v1326 = vshll.u32 %v413, 16
      %v1328 = vrot.slane %v1326, 5
      %v1329 = vor.u32 %v1325, %v1328
      %v1330 = vrot.slane %v1329, 4
      %v1332 = vshll.u32 %v414, 16
      %v1334 = vrot.slane %v1332, 5
      %v1335 = vsel %vm649, %v1330, %v1334
      %v1336 = vshrl.u32 %v414, 16
      %v1338 = vrot.slane %v1336, 4
      %v1339 = vor.u32 %v1338, %v1334
      %v1340 = vrot.slane %v1339, 4
      %v1342 = vshll.u32 %v415, 16
      %v1344 = vrot.slane %v1342, 5
      %v1345 = vsel %vm649, %v1340, %v1344
      %v1347 = vshrl.u32 %v416, 16
      %v1349 = vrot.slane %v1347, 4
      %v1350 = vshll.u32 %v416, 16
      %v1352 = vrot.slane %v1350, 5
      %v1353 = vor.u32 %v1349, %v1352
      %v1354 = vrot.slane %v1353, 4
      %v1356 = vshll.u32 %v417, 16
      %v1358 = vrot.slane %v1356, 5
      %v1359 = vsel %vm649, %v1354, %v1358
      %v1360 = vshrl.u32 %v417, 16
      %v1362 = vrot.slane %v1360, 4
      %v1363 = vor.u32 %v1362, %v1358
      %v1364 = vrot.slane %v1363, 4
      %v1366 = vshll.u32 %v418, 16
      %v1368 = vrot.slane %v1366, 5
      %v1369 = vsel %vm649, %v1364, %v1368
      %v1371 = vshrl.u32 %v419, 16
      %v1373 = vrot.slane %v1371, 4
      %v1374 = vshll.u32 %v419, 16
      %v1376 = vrot.slane %v1374, 5
      %v1377 = vor.u32 %v1373, %v1376
      %v1378 = vrot.slane %v1377, 4
      %v1380 = vshll.u32 %v420, 16
      %v1382 = vrot.slane %v1380, 5
      %v1383 = vsel %vm649, %v1378, %v1382
      %v1384 = vshrl.u32 %v420, 16
      %v1386 = vrot.slane %v1384, 4
      %v1387 = vor.u32 %v1386, %v1382
      %v1388 = vrot.slane %v1387, 4
      %v1390 = vshll.u32 %v421, 16
      %v1392 = vrot.slane %v1390, 5
      %v1393 = vsel %vm649, %v1388, %v1392
      %v1395 = vshrl.u32 %v422, 16
      %v1397 = vrot.slane %v1395, 4
      %v1398 = vshll.u32 %v422, 16
      %v1400 = vrot.slane %v1398, 5
      %v1401 = vor.u32 %v1397, %v1400
      %v1402 = vrot.slane %v1401, 4
      %v1404 = vshll.u32 %v423, 16
      %v1406 = vrot.slane %v1404, 5
      %v1407 = vsel %vm649, %v1402, %v1406
      %v1408 = vshrl.u32 %v423, 16
      %v1410 = vrot.slane %v1408, 4
      %v1411 = vor.u32 %v1410, %v1406
      %v1412 = vrot.slane %v1411, 4
      %v1414 = vshll.u32 %v424, 16
      %v1416 = vrot.slane %v1414, 5
      %v1417 = vsel %vm649, %v1412, %v1416
      %v1419 = vshrl.u32 %v431, 16
      %v1421 = vrot.slane %v1419, 4
      %v1422 = vshll.u32 %v431, 16
      %v1424 = vrot.slane %v1422, 5
      %v1425 = vor.u32 %v1421, %v1424
      %v1426 = vrot.slane %v1425, 4
      %v1428 = vshll.u32 %v432, 16
      %v1430 = vrot.slane %v1428, 5
      %v1431 = vsel %vm649, %v1426, %v1430
      %v1432 = vshrl.u32 %v432, 16
      %v1434 = vrot.slane %v1432, 4
      %v1435 = vor.u32 %v1434, %v1430
      %v1436 = vrot.slane %v1435, 4
      %v1438 = vshll.u32 %v433, 16
      %v1440 = vrot.slane %v1438, 5
      %v1441 = vsel %vm649, %v1436, %v1440
      %v1443 = vshrl.u32 %v434, 16
      %v1445 = vrot.slane %v1443, 4
      %v1446 = vshll.u32 %v434, 16
      %v1448 = vrot.slane %v1446, 5
      %v1449 = vor.u32 %v1445, %v1448
      %v1450 = vrot.slane %v1449, 4
      %v1452 = vshll.u32 %v435, 16
      %v1454 = vrot.slane %v1452, 5
      %v1455 = vsel %vm649, %v1450, %v1454
      %v1456 = vshrl.u32 %v435, 16
      %v1458 = vrot.slane %v1456, 4
      %v1459 = vor.u32 %v1458, %v1454
      %v1460 = vrot.slane %v1459, 4
      %v1462 = vshll.u32 %v436, 16
      %v1464 = vrot.slane %v1462, 5
      %v1465 = vsel %vm649, %v1460, %v1464
      %v1467 = vshrl.u32 %v437, 16
      %v1469 = vrot.slane %v1467, 4
      %v1470 = vshll.u32 %v437, 16
      %v1472 = vrot.slane %v1470, 5
      %v1473 = vor.u32 %v1469, %v1472
      %v1474 = vrot.slane %v1473, 4
      %v1476 = vshll.u32 %v438, 16
      %v1478 = vrot.slane %v1476, 5
      %v1479 = vsel %vm649, %v1474, %v1478
      %v1480 = vshrl.u32 %v438, 16
      %v1482 = vrot.slane %v1480, 4
      %v1483 = vor.u32 %v1482, %v1478
      %v1484 = vrot.slane %v1483, 4
      %v1486 = vshll.u32 %v439, 16
      %v1488 = vrot.slane %v1486, 5
      %v1489 = vsel %vm649, %v1484, %v1488
      %v1491 = vshrl.u32 %v440, 16
      %v1493 = vrot.slane %v1491, 4
      %v1494 = vshll.u32 %v440, 16
      %v1496 = vrot.slane %v1494, 5
      %v1497 = vor.u32 %v1493, %v1496
      %v1498 = vrot.slane %v1497, 4
      %v1500 = vshll.u32 %v441, 16
      %v1502 = vrot.slane %v1500, 5
      %v1503 = vsel %vm649, %v1498, %v1502
      %v1504 = vshrl.u32 %v441, 16
      %v1506 = vrot.slane %v1504, 4
      %v1507 = vor.u32 %v1506, %v1502
      %v1508 = vrot.slane %v1507, 4
      %v1510 = vshll.u32 %v442, 16
      %v1512 = vrot.slane %v1510, 5
      %v1513 = vsel %vm649, %v1508, %v1512
      %v1515 = vshrl.u32 %v443, 16
      %v1517 = vrot.slane %v1515, 4
      %v1518 = vshll.u32 %v443, 16
      %v1520 = vrot.slane %v1518, 5
      %v1521 = vor.u32 %v1517, %v1520
      %v1522 = vrot.slane %v1521, 4
      %v1524 = vshll.u32 %v444, 16
      %v1526 = vrot.slane %v1524, 5
      %v1527 = vsel %vm649, %v1522, %v1526
      %v1528 = vshrl.u32 %v444, 16
      %v1530 = vrot.slane %v1528, 4
      %v1531 = vor.u32 %v1530, %v1526
      %v1532 = vrot.slane %v1531, 4
      %v1534 = vshll.u32 %v445, 16
      %v1536 = vrot.slane %v1534, 5
      %v1537 = vsel %vm649, %v1532, %v1536
      %v1539 = vshrl.u32 %v446, 16
      %v1541 = vrot.slane %v1539, 4
      %v1542 = vshll.u32 %v446, 16
      %v1544 = vrot.slane %v1542, 5
      %v1545 = vor.u32 %v1541, %v1544
      %v1546 = vrot.slane %v1545, 4
      %v1548 = vshll.u32 %v447, 16
      %v1550 = vrot.slane %v1548, 5
      %v1551 = vsel %vm649, %v1546, %v1550
      %v1552 = vshrl.u32 %v447, 16
      %v1554 = vrot.slane %v1552, 4
      %v1555 = vor.u32 %v1554, %v1550
      %v1556 = vrot.slane %v1555, 4
      %v1558 = vshll.u32 %v448, 16
      %v1560 = vrot.slane %v1558, 5
      %v1561 = vsel %vm649, %v1556, %v1560
      %v1563 = vshrl.u32 %v449, 16
      %v1565 = vrot.slane %v1563, 4
      %v1566 = vshll.u32 %v449, 16
      %v1568 = vrot.slane %v1566, 5
      %v1569 = vor.u32 %v1565, %v1568
      %v1570 = vrot.slane %v1569, 4
      %v1572 = vshll.u32 %v450, 16
      %v1574 = vrot.slane %v1572, 5
      %v1575 = vsel %vm649, %v1570, %v1574
      %v1576 = vshrl.u32 %v450, 16
      %v1578 = vrot.slane %v1576, 4
      %v1579 = vor.u32 %v1578, %v1574
      %v1580 = vrot.slane %v1579, 4
      %v1582 = vshll.u32 %v451, 16
      %v1584 = vrot.slane %v1582, 5
      %v1585 = vsel %vm649, %v1580, %v1584
      %v1587 = vshrl.u32 %v452, 16
      %v1589 = vrot.slane %v1587, 4
      %v1590 = vshll.u32 %v452, 16
      %v1592 = vrot.slane %v1590, 5
      %v1593 = vor.u32 %v1589, %v1592
      %v1594 = vrot.slane %v1593, 4
      %v1596 = vshll.u32 %v453, 16
      %v1598 = vrot.slane %v1596, 5
      %v1599 = vsel %vm649, %v1594, %v1598
      %v1600 = vshrl.u32 %v453, 16
      %v1602 = vrot.slane %v1600, 4
      %v1603 = vor.u32 %v1602, %v1598
      %v1604 = vrot.slane %v1603, 4
      %v1606 = vshll.u32 %v454, 16
      %v1608 = vrot.slane %v1606, 5
      %v1609 = vsel %vm649, %v1604, %v1608
      %v1611 = vshrl.u32 %v455, 16
      %v1613 = vrot.slane %v1611, 4
      %v1614 = vshll.u32 %v455, 16
      %v1616 = vrot.slane %v1614, 5
      %v1617 = vor.u32 %v1613, %v1616
      %v1618 = vrot.slane %v1617, 4
      %v1620 = vshll.u32 %v456, 16
      %v1622 = vrot.slane %v1620, 5
      %v1623 = vsel %vm649, %v1618, %v1622
      %v1624 = vshrl.u32 %v456, 16
      %v1626 = vrot.slane %v1624, 4
      %v1627 = vor.u32 %v1626, %v1622
      %v1628 = vrot.slane %v1627, 4
      %v1630 = vshll.u32 %v457, 16
      %v1632 = vrot.slane %v1630, 5
      %v1633 = vsel %vm649, %v1628, %v1632
      %v1635 = vshrl.u32 %v458, 16
      %v1637 = vrot.slane %v1635, 4
      %v1638 = vshll.u32 %v458, 16
      %v1640 = vrot.slane %v1638, 5
      %v1641 = vor.u32 %v1637, %v1640
      %v1642 = vrot.slane %v1641, 4
      %v1644 = vshll.u32 %v459, 16
      %v1646 = vrot.slane %v1644, 5
      %v1647 = vsel %vm649, %v1642, %v1646
      %v1648 = vshrl.u32 %v459, 16
      %v1650 = vrot.slane %v1648, 4
      %v1651 = vor.u32 %v1650, %v1646
      %v1652 = vrot.slane %v1651, 4
      %v1654 = vshll.u32 %v460, 16
      %v1656 = vrot.slane %v1654, 5
      %v1657 = vsel %vm649, %v1652, %v1656
      %v1659 = vshrl.u32 %v461, 16
      %v1661 = vrot.slane %v1659, 4
      %v1662 = vshll.u32 %v461, 16
      %v1664 = vrot.slane %v1662, 5
      %v1665 = vor.u32 %v1661, %v1664
      %v1666 = vrot.slane %v1665, 4
      %v1668 = vshll.u32 %v462, 16
      %v1670 = vrot.slane %v1668, 5
      %v1671 = vsel %vm649, %v1666, %v1670
      %v1672 = vshrl.u32 %v462, 16
      %v1674 = vrot.slane %v1672, 4
      %v1675 = vor.u32 %v1674, %v1670
      %v1676 = vrot.slane %v1675, 4
      %v1678 = vshll.u32 %v463, 16
      %v1680 = vrot.slane %v1678, 5
      %v1681 = vsel %vm649, %v1676, %v1680
      %v1683 = vshrl.u32 %v464, 16
      %v1685 = vrot.slane %v1683, 4
      %v1686 = vshll.u32 %v464, 16
      %v1688 = vrot.slane %v1686, 5
      %v1689 = vor.u32 %v1685, %v1688
      %v1690 = vrot.slane %v1689, 4
      %v1692 = vshll.u32 %v465, 16
      %v1694 = vrot.slane %v1692, 5
      %v1695 = vsel %vm649, %v1690, %v1694
      %v1696 = vshrl.u32 %v465, 16
      %v1698 = vrot.slane %v1696, 4
      %v1699 = vor.u32 %v1698, %v1694
      %v1700 = vrot.slane %v1699, 4
      %v1702 = vshll.u32 %v466, 16
      %v1704 = vrot.slane %v1702, 5
      %v1705 = vsel %vm649, %v1700, %v1704
      %v1707 = vshrl.u32 %v467, 16
      %v1709 = vrot.slane %v1707, 4
      %v1710 = vshll.u32 %v467, 16
      %v1712 = vrot.slane %v1710, 5
      %v1713 = vor.u32 %v1709, %v1712
      %v1714 = vrot.slane %v1713, 4
      %v1716 = vshll.u32 %v468, 16
      %v1718 = vrot.slane %v1716, 5
      %v1719 = vsel %vm649, %v1714, %v1718
      %v1720 = vshrl.u32 %v468, 16
      %v1722 = vrot.slane %v1720, 4
      %v1723 = vor.u32 %v1722, %v1718
      %v1724 = vrot.slane %v1723, 4
      %v1726 = vshll.u32 %v469, 16
      %v1728 = vrot.slane %v1726, 5
      %v1729 = vsel %vm649, %v1724, %v1728
      %v1731 = vshrl.u32 %v470, 16
      %v1733 = vrot.slane %v1731, 4
      %v1734 = vshll.u32 %v470, 16
      %v1736 = vrot.slane %v1734, 5
      %v1737 = vor.u32 %v1733, %v1736
      %v1738 = vrot.slane %v1737, 4
      %v1740 = vshll.u32 %v471, 16
      %v1742 = vrot.slane %v1740, 5
      %v1743 = vsel %vm649, %v1738, %v1742
      %v1744 = vshrl.u32 %v471, 16
      %v1746 = vrot.slane %v1744, 4
      %v1747 = vor.u32 %v1746, %v1742
      %v1748 = vrot.slane %v1747, 4
      %v1750 = vshll.u32 %v472, 16
      %v1752 = vrot.slane %v1750, 5
      %v1753 = vsel %vm649, %v1748, %v1752
      %v1755 = vshrl.u32 %v473, 16
      %v1757 = vrot.slane %v1755, 4
      %v1758 = vshll.u32 %v473, 16
      %v1760 = vrot.slane %v1758, 5
      %v1761 = vor.u32 %v1757, %v1760
      %v1762 = vrot.slane %v1761, 4
      %v1764 = vshll.u32 %v474, 16
      %v1766 = vrot.slane %v1764, 5
      %v1767 = vsel %vm649, %v1762, %v1766
      %v1768 = vshrl.u32 %v474, 16
      %v1770 = vrot.slane %v1768, 4
      %v1771 = vor.u32 %v1770, %v1766
      %v1772 = vrot.slane %v1771, 4
      %v1774 = vshll.u32 %v475, 16
      %v1776 = vrot.slane %v1774, 5
      %v1777 = vsel %vm649, %v1772, %v1776
      %v1779 = vshrl.u32 %v476, 16
      %v1781 = vrot.slane %v1779, 4
      %v1782 = vshll.u32 %v476, 16
      %v1784 = vrot.slane %v1782, 5
      %v1785 = vor.u32 %v1781, %v1784
      %v1786 = vrot.slane %v1785, 4
      %v1788 = vshll.u32 %v477, 16
      %v1790 = vrot.slane %v1788, 5
      %v1791 = vsel %vm649, %v1786, %v1790
      %v1792 = vshrl.u32 %v477, 16
      %v1794 = vrot.slane %v1792, 4
      %v1795 = vor.u32 %v1794, %v1790
      %v1796 = vrot.slane %v1795, 4
      %v1798 = vshll.u32 %v478, 16
      %v1800 = vrot.slane %v1798, 5
      %v1801 = vsel %vm649, %v1796, %v1800
      %v1803 = vshrl.u32 %v485, 16
      %v1805 = vrot.slane %v1803, 4
      %v1806 = vshll.u32 %v485, 16
      %v1808 = vrot.slane %v1806, 5
      %v1809 = vor.u32 %v1805, %v1808
      %v1810 = vrot.slane %v1809, 4
      %v1812 = vshll.u32 %v486, 16
      %v1814 = vrot.slane %v1812, 5
      %v1815 = vsel %vm649, %v1810, %v1814
      %v1816 = vshrl.u32 %v486, 16
      %v1818 = vrot.slane %v1816, 4
      %v1819 = vor.u32 %v1818, %v1814
      %v1820 = vrot.slane %v1819, 4
      %v1822 = vshll.u32 %v487, 16
      %v1824 = vrot.slane %v1822, 5
      %v1825 = vsel %vm649, %v1820, %v1824
      %v1827 = vshrl.u32 %v488, 16
      %v1829 = vrot.slane %v1827, 4
      %v1830 = vshll.u32 %v488, 16
      %v1832 = vrot.slane %v1830, 5
      %v1833 = vor.u32 %v1829, %v1832
      %v1834 = vrot.slane %v1833, 4
      %v1836 = vshll.u32 %v489, 16
      %v1838 = vrot.slane %v1836, 5
      %v1839 = vsel %vm649, %v1834, %v1838
      %v1840 = vshrl.u32 %v489, 16
      %v1842 = vrot.slane %v1840, 4
      %v1843 = vor.u32 %v1842, %v1838
      %v1844 = vrot.slane %v1843, 4
      %v1846 = vshll.u32 %v490, 16
      %v1848 = vrot.slane %v1846, 5
      %v1849 = vsel %vm649, %v1844, %v1848
      %v1851 = vshrl.u32 %v491, 16
      %v1853 = vrot.slane %v1851, 4
      %v1854 = vshll.u32 %v491, 16
      %v1856 = vrot.slane %v1854, 5
      %v1857 = vor.u32 %v1853, %v1856
      %v1858 = vrot.slane %v1857, 4
      %v1860 = vshll.u32 %v492, 16
      %v1862 = vrot.slane %v1860, 5
      %v1863 = vsel %vm649, %v1858, %v1862
      %v1864 = vshrl.u32 %v492, 16
      %v1866 = vrot.slane %v1864, 4
      %v1867 = vor.u32 %v1866, %v1862
      %v1868 = vrot.slane %v1867, 4
      %v1870 = vshll.u32 %v493, 16
      %v1872 = vrot.slane %v1870, 5
      %v1873 = vsel %vm649, %v1868, %v1872
      %v1875 = vshrl.u32 %v494, 16
      %v1877 = vrot.slane %v1875, 4
      %v1878 = vshll.u32 %v494, 16
      %v1880 = vrot.slane %v1878, 5
      %v1881 = vor.u32 %v1877, %v1880
      %v1882 = vrot.slane %v1881, 4
      %v1884 = vshll.u32 %v495, 16
      %v1886 = vrot.slane %v1884, 5
      %v1887 = vsel %vm649, %v1882, %v1886
      %v1888 = vshrl.u32 %v495, 16
      %v1890 = vrot.slane %v1888, 4
      %v1891 = vor.u32 %v1890, %v1886
      %v1892 = vrot.slane %v1891, 4
      %v1894 = vshll.u32 %v496, 16
      %v1896 = vrot.slane %v1894, 5
      %v1897 = vsel %vm649, %v1892, %v1896
      %v1899 = vshrl.u32 %v497, 16
      %v1901 = vrot.slane %v1899, 4
      %v1902 = vshll.u32 %v497, 16
      %v1904 = vrot.slane %v1902, 5
      %v1905 = vor.u32 %v1901, %v1904
      %v1906 = vrot.slane %v1905, 4
      %v1908 = vshll.u32 %v498, 16
      %v1910 = vrot.slane %v1908, 5
      %v1911 = vsel %vm649, %v1906, %v1910
      %v1912 = vshrl.u32 %v498, 16
      %v1914 = vrot.slane %v1912, 4
      %v1915 = vor.u32 %v1914, %v1910
      %v1916 = vrot.slane %v1915, 4
      %v1918 = vshll.u32 %v499, 16
      %v1920 = vrot.slane %v1918, 5
      %v1921 = vsel %vm649, %v1916, %v1920
      %v1923 = vshrl.u32 %v500, 16
      %v1925 = vrot.slane %v1923, 4
      %v1926 = vshll.u32 %v500, 16
      %v1928 = vrot.slane %v1926, 5
      %v1929 = vor.u32 %v1925, %v1928
      %v1930 = vrot.slane %v1929, 4
      %v1932 = vshll.u32 %v501, 16
      %v1934 = vrot.slane %v1932, 5
      %v1935 = vsel %vm649, %v1930, %v1934
      %v1936 = vshrl.u32 %v501, 16
      %v1938 = vrot.slane %v1936, 4
      %v1939 = vor.u32 %v1938, %v1934
      %v1940 = vrot.slane %v1939, 4
      %v1942 = vshll.u32 %v502, 16
      %v1944 = vrot.slane %v1942, 5
      %v1945 = vsel %vm649, %v1940, %v1944
      %v1947 = vshrl.u32 %v503, 16
      %v1949 = vrot.slane %v1947, 4
      %v1950 = vshll.u32 %v503, 16
      %v1952 = vrot.slane %v1950, 5
      %v1953 = vor.u32 %v1949, %v1952
      %v1954 = vrot.slane %v1953, 4
      %v1956 = vshll.u32 %v504, 16
      %v1958 = vrot.slane %v1956, 5
      %v1959 = vsel %vm649, %v1954, %v1958
      %v1960 = vshrl.u32 %v504, 16
      %v1962 = vrot.slane %v1960, 4
      %v1963 = vor.u32 %v1962, %v1958
      %v1964 = vrot.slane %v1963, 4
      %v1966 = vshll.u32 %v505, 16
      %v1968 = vrot.slane %v1966, 5
      %v1969 = vsel %vm649, %v1964, %v1968
      %v1971 = vshrl.u32 %v506, 16
      %v1973 = vrot.slane %v1971, 4
      %v1974 = vshll.u32 %v506, 16
      %v1976 = vrot.slane %v1974, 5
      %v1977 = vor.u32 %v1973, %v1976
      %v1978 = vrot.slane %v1977, 4
      %v1980 = vshll.u32 %v507, 16
      %v1982 = vrot.slane %v1980, 5
      %v1983 = vsel %vm649, %v1978, %v1982
      %v1984 = vshrl.u32 %v507, 16
      %v1986 = vrot.slane %v1984, 4
      %v1987 = vor.u32 %v1986, %v1982
      %v1988 = vrot.slane %v1987, 4
      %v1990 = vshll.u32 %v508, 16
      %v1992 = vrot.slane %v1990, 5
      %v1993 = vsel %vm649, %v1988, %v1992
      %v1995 = vshrl.u32 %v509, 16
      %v1997 = vrot.slane %v1995, 4
      %v1998 = vshll.u32 %v509, 16
      %v2000 = vrot.slane %v1998, 5
      %v2001 = vor.u32 %v1997, %v2000
      %v2002 = vrot.slane %v2001, 4
      %v2004 = vshll.u32 %v510, 16
      %v2006 = vrot.slane %v2004, 5
      %v2007 = vsel %vm649, %v2002, %v2006
      %v2008 = vshrl.u32 %v510, 16
      %v2010 = vrot.slane %v2008, 4
      %v2011 = vor.u32 %v2010, %v2006
      %v2012 = vrot.slane %v2011, 4
      %v2014 = vshll.u32 %v511, 16
      %v2016 = vrot.slane %v2014, 5
      %v2017 = vsel %vm649, %v2012, %v2016
      %v2019 = vshrl.u32 %v512, 16
      %v2021 = vrot.slane %v2019, 4
      %v2022 = vshll.u32 %v512, 16
      %v2024 = vrot.slane %v2022, 5
      %v2025 = vor.u32 %v2021, %v2024
      %v2026 = vrot.slane %v2025, 4
      %v2028 = vshll.u32 %v513, 16
      %v2030 = vrot.slane %v2028, 5
      %v2031 = vsel %vm649, %v2026, %v2030
      %v2032 = vshrl.u32 %v513, 16
      %v2034 = vrot.slane %v2032, 4
      %v2035 = vor.u32 %v2034, %v2030
      %v2036 = vrot.slane %v2035, 4
      %v2038 = vshll.u32 %v514, 16
      %v2040 = vrot.slane %v2038, 5
      %v2041 = vsel %vm649, %v2036, %v2040
      %v2043 = vshrl.u32 %v515, 16
      %v2045 = vrot.slane %v2043, 4
      %v2046 = vshll.u32 %v515, 16
      %v2048 = vrot.slane %v2046, 5
      %v2049 = vor.u32 %v2045, %v2048
      %v2050 = vrot.slane %v2049, 4
      %v2052 = vshll.u32 %v516, 16
      %v2054 = vrot.slane %v2052, 5
      %v2055 = vsel %vm649, %v2050, %v2054
      %v2056 = vshrl.u32 %v516, 16
      %v2058 = vrot.slane %v2056, 4
      %v2059 = vor.u32 %v2058, %v2054
      %v2060 = vrot.slane %v2059, 4
      %v2062 = vshll.u32 %v517, 16
      %v2064 = vrot.slane %v2062, 5
      %v2065 = vsel %vm649, %v2060, %v2064
      %v2067 = vshrl.u32 %v518, 16
      %v2069 = vrot.slane %v2067, 4
      %v2070 = vshll.u32 %v518, 16
      %v2072 = vrot.slane %v2070, 5
      %v2073 = vor.u32 %v2069, %v2072
      %v2074 = vrot.slane %v2073, 4
      %v2076 = vshll.u32 %v519, 16
      %v2078 = vrot.slane %v2076, 5
      %v2079 = vsel %vm649, %v2074, %v2078
      %v2080 = vshrl.u32 %v519, 16
      %v2082 = vrot.slane %v2080, 4
      %v2083 = vor.u32 %v2082, %v2078
      %v2084 = vrot.slane %v2083, 4
      %v2086 = vshll.u32 %v520, 16
      %v2088 = vrot.slane %v2086, 5
      %v2089 = vsel %vm649, %v2084, %v2088
      %v2091 = vshrl.u32 %v521, 16
      %v2093 = vrot.slane %v2091, 4
      %v2094 = vshll.u32 %v521, 16
      %v2096 = vrot.slane %v2094, 5
      %v2097 = vor.u32 %v2093, %v2096
      %v2098 = vrot.slane %v2097, 4
      %v2100 = vshll.u32 %v522, 16
      %v2102 = vrot.slane %v2100, 5
      %v2103 = vsel %vm649, %v2098, %v2102
      %v2104 = vshrl.u32 %v522, 16
      %v2106 = vrot.slane %v2104, 4
      %v2107 = vor.u32 %v2106, %v2102
      %v2108 = vrot.slane %v2107, 4
      %v2110 = vshll.u32 %v523, 16
      %v2112 = vrot.slane %v2110, 5
      %v2113 = vsel %vm649, %v2108, %v2112
      %v2115 = vshrl.u32 %v524, 16
      %v2117 = vrot.slane %v2115, 4
      %v2118 = vshll.u32 %v524, 16
      %v2120 = vrot.slane %v2118, 5
      %v2121 = vor.u32 %v2117, %v2120
      %v2122 = vrot.slane %v2121, 4
      %v2124 = vshll.u32 %v525, 16
      %v2126 = vrot.slane %v2124, 5
      %v2127 = vsel %vm649, %v2122, %v2126
      %v2128 = vshrl.u32 %v525, 16
      %v2130 = vrot.slane %v2128, 4
      %v2131 = vor.u32 %v2130, %v2126
      %v2132 = vrot.slane %v2131, 4
      %v2134 = vshll.u32 %v526, 16
      %v2136 = vrot.slane %v2134, 5
      %v2137 = vsel %vm649, %v2132, %v2136
      %v2139 = vshrl.u32 %v527, 16
      %v2141 = vrot.slane %v2139, 4
      %v2142 = vshll.u32 %v527, 16
      %v2144 = vrot.slane %v2142, 5
      %v2145 = vor.u32 %v2141, %v2144
      %v2146 = vrot.slane %v2145, 4
      %v2148 = vshll.u32 %v528, 16
      %v2150 = vrot.slane %v2148, 5
      %v2151 = vsel %vm649, %v2146, %v2150
      %v2152 = vshrl.u32 %v528, 16
      %v2154 = vrot.slane %v2152, 4
      %v2155 = vor.u32 %v2154, %v2150
      %v2156 = vrot.slane %v2155, 4
      %v2158 = vshll.u32 %v529, 16
      %v2160 = vrot.slane %v2158, 5
      %v2161 = vsel %vm649, %v2156, %v2160
      %v2163 = vshrl.u32 %v530, 16
      %v2165 = vrot.slane %v2163, 4
      %v2166 = vshll.u32 %v530, 16
      %v2168 = vrot.slane %v2166, 5
      %v2169 = vor.u32 %v2165, %v2168
      %v2170 = vrot.slane %v2169, 4
      %v2172 = vshll.u32 %v531, 16
      %v2174 = vrot.slane %v2172, 5
      %v2175 = vsel %vm649, %v2170, %v2174
      %v2176 = vshrl.u32 %v531, 16
      %v2178 = vrot.slane %v2176, 4
      %v2179 = vor.u32 %v2178, %v2174
      %v2180 = vrot.slane %v2179, 4
      %v2182 = vshll.u32 %v532, 16
      %v2184 = vrot.slane %v2182, 5
      %v2185 = vsel %vm649, %v2180, %v2184
      %vm2378 = vcmask 1042432
      %vm2379 = vcmask 1046532
      %vm2380 = vmor %vm2378, %vm2379
      %v2381 = vrot.slane %v323, 5
      %v2382 = vrot.slane %v2381, 4
      %v2383 = vrot.slane %v324, 5
      %v2384 = vsel %vm2380, %v2382, %v2383
      %v2385 = vrot.slane %v2383, 4
      %v2386 = vrot.slane %v325, 5
      %v2387 = vsel %vm2380, %v2385, %v2386
      %v2388 = vrot.slane %v326, 5
      %v2389 = vrot.slane %v2388, 4
      %v2390 = vrot.slane %v327, 5
      %v2391 = vsel %vm2380, %v2389, %v2390
      %v2392 = vrot.slane %v2390, 4
      %v2393 = vrot.slane %v328, 5
      %v2394 = vsel %vm2380, %v2392, %v2393
      %v2395 = vrot.slane %v329, 5
      %v2396 = vrot.slane %v2395, 4
      %v2397 = vrot.slane %v330, 5
      %v2398 = vsel %vm2380, %v2396, %v2397
      %v2399 = vrot.slane %v2397, 4
      %v2400 = vrot.slane %v331, 5
      %v2401 = vsel %vm2380, %v2399, %v2400
      %v2402 = vrot.slane %v332, 5
      %v2403 = vrot.slane %v2402, 4
      %v2404 = vrot.slane %v333, 5
      %v2405 = vsel %vm2380, %v2403, %v2404
      %v2406 = vrot.slane %v2404, 4
      %v2407 = vrot.slane %v334, 5
      %v2408 = vsel %vm2380, %v2406, %v2407
      %v2409 = vrot.slane %v335, 5
      %v2410 = vrot.slane %v2409, 4
      %v2411 = vrot.slane %v336, 5
      %v2412 = vsel %vm2380, %v2410, %v2411
      %v2413 = vrot.slane %v2411, 4
      %v2414 = vrot.slane %v337, 5
      %v2415 = vsel %vm2380, %v2413, %v2414
      %v2416 = vrot.slane %v338, 5
      %v2417 = vrot.slane %v2416, 4
      %v2418 = vrot.slane %v339, 5
      %v2419 = vsel %vm2380, %v2417, %v2418
      %v2420 = vrot.slane %v2418, 4
      %v2421 = vrot.slane %v340, 5
      %v2422 = vsel %vm2380, %v2420, %v2421
      %v2423 = vrot.slane %v341, 5
      %v2424 = vrot.slane %v2423, 4
      %v2425 = vrot.slane %v342, 5
      %v2426 = vsel %vm2380, %v2424, %v2425
      %v2427 = vrot.slane %v2425, 4
      %v2428 = vrot.slane %v343, 5
      %v2429 = vsel %vm2380, %v2427, %v2428
      %v2430 = vrot.slane %v344, 5
      %v2431 = vrot.slane %v2430, 4
      %v2432 = vrot.slane %v345, 5
      %v2433 = vsel %vm2380, %v2431, %v2432
      %v2434 = vrot.slane %v2432, 4
      %v2435 = vrot.slane %v346, 5
      %v2436 = vsel %vm2380, %v2434, %v2435
      %v2437 = vrot.slane %v347, 5
      %v2438 = vrot.slane %v2437, 4
      %v2439 = vrot.slane %v348, 5
      %v2440 = vsel %vm2380, %v2438, %v2439
      %v2441 = vrot.slane %v2439, 4
      %v2442 = vrot.slane %v349, 5
      %v2443 = vsel %vm2380, %v2441, %v2442
      %v2444 = vrot.slane %v350, 5
      %v2445 = vrot.slane %v2444, 4
      %v2446 = vrot.slane %v351, 5
      %v2447 = vsel %vm2380, %v2445, %v2446
      %v2448 = vrot.slane %v2446, 4
      %v2449 = vrot.slane %v352, 5
      %v2450 = vsel %vm2380, %v2448, %v2449
      %v2451 = vrot.slane %v353, 5
      %v2452 = vrot.slane %v2451, 4
      %v2453 = vrot.slane %v354, 5
      %v2454 = vsel %vm2380, %v2452, %v2453
      %v2455 = vrot.slane %v2453, 4
      %v2456 = vrot.slane %v355, 5
      %v2457 = vsel %vm2380, %v2455, %v2456
      %v2458 = vrot.slane %v356, 5
      %v2459 = vrot.slane %v2458, 4
      %v2460 = vrot.slane %v357, 5
      %v2461 = vsel %vm2380, %v2459, %v2460
      %v2462 = vrot.slane %v2460, 4
      %v2463 = vrot.slane %v358, 5
      %v2464 = vsel %vm2380, %v2462, %v2463
      %v2465 = vrot.slane %v359, 5
      %v2466 = vrot.slane %v2465, 4
      %v2467 = vrot.slane %v360, 5
      %v2468 = vsel %vm2380, %v2466, %v2467
      %v2469 = vrot.slane %v2467, 4
      %v2470 = vrot.slane %v361, 5
      %v2471 = vsel %vm2380, %v2469, %v2470
      %v2472 = vrot.slane %v362, 5
      %v2473 = vrot.slane %v2472, 4
      %v2474 = vrot.slane %v363, 5
      %v2475 = vsel %vm2380, %v2473, %v2474
      %v2476 = vrot.slane %v2474, 4
      %v2477 = vrot.slane %v364, 5
      %v2478 = vsel %vm2380, %v2476, %v2477
      %v2479 = vrot.slane %v365, 5
      %v2480 = vrot.slane %v2479, 4
      %v2481 = vrot.slane %v366, 5
      %v2482 = vsel %vm2380, %v2480, %v2481
      %v2483 = vrot.slane %v2481, 4
      %v2484 = vrot.slane %v367, 5
      %v2485 = vsel %vm2380, %v2483, %v2484
      %v2486 = vrot.slane %v368, 5
      %v2487 = vrot.slane %v2486, 4
      %v2488 = vrot.slane %v369, 5
      %v2489 = vsel %vm2380, %v2487, %v2488
      %v2490 = vrot.slane %v2488, 4
      %v2491 = vrot.slane %v370, 5
      %v2492 = vsel %vm2380, %v2490, %v2491
      %v2493 = vrot.slane %v377, 5
      %v2494 = vrot.slane %v2493, 4
      %v2495 = vrot.slane %v378, 5
      %v2496 = vsel %vm2380, %v2494, %v2495
      %v2497 = vrot.slane %v2495, 4
      %v2498 = vrot.slane %v379, 5
      %v2499 = vsel %vm2380, %v2497, %v2498
      %v2500 = vrot.slane %v380, 5
      %v2501 = vrot.slane %v2500, 4
      %v2502 = vrot.slane %v381, 5
      %v2503 = vsel %vm2380, %v2501, %v2502
      %v2504 = vrot.slane %v2502, 4
      %v2505 = vrot.slane %v382, 5
      %v2506 = vsel %vm2380, %v2504, %v2505
      %v2507 = vrot.slane %v383, 5
      %v2508 = vrot.slane %v2507, 4
      %v2509 = vrot.slane %v384, 5
      %v2510 = vsel %vm2380, %v2508, %v2509
      %v2511 = vrot.slane %v2509, 4
      %v2512 = vrot.slane %v385, 5
      %v2513 = vsel %vm2380, %v2511, %v2512
      %v2514 = vrot.slane %v386, 5
      %v2515 = vrot.slane %v2514, 4
      %v2516 = vrot.slane %v387, 5
      %v2517 = vsel %vm2380, %v2515, %v2516
      %v2518 = vrot.slane %v2516, 4
      %v2519 = vrot.slane %v388, 5
      %v2520 = vsel %vm2380, %v2518, %v2519
      %v2521 = vrot.slane %v389, 5
      %v2522 = vrot.slane %v2521, 4
      %v2523 = vrot.slane %v390, 5
      %v2524 = vsel %vm2380, %v2522, %v2523
      %v2525 = vrot.slane %v2523, 4
      %v2526 = vrot.slane %v391, 5
      %v2527 = vsel %vm2380, %v2525, %v2526
      %v2528 = vrot.slane %v392, 5
      %v2529 = vrot.slane %v2528, 4
      %v2530 = vrot.slane %v393, 5
      %v2531 = vsel %vm2380, %v2529, %v2530
      %v2532 = vrot.slane %v2530, 4
      %v2533 = vrot.slane %v394, 5
      %v2534 = vsel %vm2380, %v2532, %v2533
      %v2535 = vrot.slane %v395, 5
      %v2536 = vrot.slane %v2535, 4
      %v2537 = vrot.slane %v396, 5
      %v2538 = vsel %vm2380, %v2536, %v2537
      %v2539 = vrot.slane %v2537, 4
      %v2540 = vrot.slane %v397, 5
      %v2541 = vsel %vm2380, %v2539, %v2540
      %v2542 = vrot.slane %v398, 5
      %v2543 = vrot.slane %v2542, 4
      %v2544 = vrot.slane %v399, 5
      %v2545 = vsel %vm2380, %v2543, %v2544
      %v2546 = vrot.slane %v2544, 4
      %v2547 = vrot.slane %v400, 5
      %v2548 = vsel %vm2380, %v2546, %v2547
      %v2549 = vrot.slane %v401, 5
      %v2550 = vrot.slane %v2549, 4
      %v2551 = vrot.slane %v402, 5
      %v2552 = vsel %vm2380, %v2550, %v2551
      %v2553 = vrot.slane %v2551, 4
      %v2554 = vrot.slane %v403, 5
      %v2555 = vsel %vm2380, %v2553, %v2554
      %v2556 = vrot.slane %v404, 5
      %v2557 = vrot.slane %v2556, 4
      %v2558 = vrot.slane %v405, 5
      %v2559 = vsel %vm2380, %v2557, %v2558
      %v2560 = vrot.slane %v2558, 4
      %v2561 = vrot.slane %v406, 5
      %v2562 = vsel %vm2380, %v2560, %v2561
      %v2563 = vrot.slane %v407, 5
      %v2564 = vrot.slane %v2563, 4
      %v2565 = vrot.slane %v408, 5
      %v2566 = vsel %vm2380, %v2564, %v2565
      %v2567 = vrot.slane %v2565, 4
      %v2568 = vrot.slane %v409, 5
      %v2569 = vsel %vm2380, %v2567, %v2568
      %v2570 = vrot.slane %v410, 5
      %v2571 = vrot.slane %v2570, 4
      %v2572 = vrot.slane %v411, 5
      %v2573 = vsel %vm2380, %v2571, %v2572
      %v2574 = vrot.slane %v2572, 4
      %v2575 = vrot.slane %v412, 5
      %v2576 = vsel %vm2380, %v2574, %v2575
      %v2577 = vrot.slane %v413, 5
      %v2578 = vrot.slane %v2577, 4
      %v2579 = vrot.slane %v414, 5
      %v2580 = vsel %vm2380, %v2578, %v2579
      %v2581 = vrot.slane %v2579, 4
      %v2582 = vrot.slane %v415, 5
      %v2583 = vsel %vm2380, %v2581, %v2582
      %v2584 = vrot.slane %v416, 5
      %v2585 = vrot.slane %v2584, 4
      %v2586 = vrot.slane %v417, 5
      %v2587 = vsel %vm2380, %v2585, %v2586
      %v2588 = vrot.slane %v2586, 4
      %v2589 = vrot.slane %v418, 5
      %v2590 = vsel %vm2380, %v2588, %v2589
      %v2591 = vrot.slane %v419, 5
      %v2592 = vrot.slane %v2591, 4
      %v2593 = vrot.slane %v420, 5
      %v2594 = vsel %vm2380, %v2592, %v2593
      %v2595 = vrot.slane %v2593, 4
      %v2596 = vrot.slane %v421, 5
      %v2597 = vsel %vm2380, %v2595, %v2596
      %v2598 = vrot.slane %v422, 5
      %v2599 = vrot.slane %v2598, 4
      %v2600 = vrot.slane %v423, 5
      %v2601 = vsel %vm2380, %v2599, %v2600
      %v2602 = vrot.slane %v2600, 4
      %v2603 = vrot.slane %v424, 5
      %v2604 = vsel %vm2380, %v2602, %v2603
      %v2605 = vrot.slane %v431, 5
      %v2606 = vrot.slane %v2605, 4
      %v2607 = vrot.slane %v432, 5
      %v2608 = vsel %vm2380, %v2606, %v2607
      %v2609 = vrot.slane %v2607, 4
      %v2610 = vrot.slane %v433, 5
      %v2611 = vsel %vm2380, %v2609, %v2610
      %v2612 = vrot.slane %v434, 5
      %v2613 = vrot.slane %v2612, 4
      %v2614 = vrot.slane %v435, 5
      %v2615 = vsel %vm2380, %v2613, %v2614
      %v2616 = vrot.slane %v2614, 4
      %v2617 = vrot.slane %v436, 5
      %v2618 = vsel %vm2380, %v2616, %v2617
      %v2619 = vrot.slane %v437, 5
      %v2620 = vrot.slane %v2619, 4
      %v2621 = vrot.slane %v438, 5
      %v2622 = vsel %vm2380, %v2620, %v2621
      %v2623 = vrot.slane %v2621, 4
      %v2624 = vrot.slane %v439, 5
      %v2625 = vsel %vm2380, %v2623, %v2624
      %v2626 = vrot.slane %v440, 5
      %v2627 = vrot.slane %v2626, 4
      %v2628 = vrot.slane %v441, 5
      %v2629 = vsel %vm2380, %v2627, %v2628
      %v2630 = vrot.slane %v2628, 4
      %v2631 = vrot.slane %v442, 5
      %v2632 = vsel %vm2380, %v2630, %v2631
      %v2633 = vrot.slane %v443, 5
      %v2634 = vrot.slane %v2633, 4
      %v2635 = vrot.slane %v444, 5
      %v2636 = vsel %vm2380, %v2634, %v2635
      %v2637 = vrot.slane %v2635, 4
      %v2638 = vrot.slane %v445, 5
      %v2639 = vsel %vm2380, %v2637, %v2638
      %v2640 = vrot.slane %v446, 5
      %v2641 = vrot.slane %v2640, 4
      %v2642 = vrot.slane %v447, 5
      %v2643 = vsel %vm2380, %v2641, %v2642
      %v2644 = vrot.slane %v2642, 4
      %v2645 = vrot.slane %v448, 5
      %v2646 = vsel %vm2380, %v2644, %v2645
      %v2647 = vrot.slane %v449, 5
      %v2648 = vrot.slane %v2647, 4
      %v2649 = vrot.slane %v450, 5
      %v2650 = vsel %vm2380, %v2648, %v2649
      %v2651 = vrot.slane %v2649, 4
      %v2652 = vrot.slane %v451, 5
      %v2653 = vsel %vm2380, %v2651, %v2652
      %v2654 = vrot.slane %v452, 5
      %v2655 = vrot.slane %v2654, 4
      %v2656 = vrot.slane %v453, 5
      %v2657 = vsel %vm2380, %v2655, %v2656
      %v2658 = vrot.slane %v2656, 4
      %v2659 = vrot.slane %v454, 5
      %v2660 = vsel %vm2380, %v2658, %v2659
      %v2661 = vrot.slane %v455, 5
      %v2662 = vrot.slane %v2661, 4
      %v2663 = vrot.slane %v456, 5
      %v2664 = vsel %vm2380, %v2662, %v2663
      %v2665 = vrot.slane %v2663, 4
      %v2666 = vrot.slane %v457, 5
      %v2667 = vsel %vm2380, %v2665, %v2666
      %v2668 = vrot.slane %v458, 5
      %v2669 = vrot.slane %v2668, 4
      %v2670 = vrot.slane %v459, 5
      %v2671 = vsel %vm2380, %v2669, %v2670
      %v2672 = vrot.slane %v2670, 4
      %v2673 = vrot.slane %v460, 5
      %v2674 = vsel %vm2380, %v2672, %v2673
      %v2675 = vrot.slane %v461, 5
      %v2676 = vrot.slane %v2675, 4
      %v2677 = vrot.slane %v462, 5
      %v2678 = vsel %vm2380, %v2676, %v2677
      %v2679 = vrot.slane %v2677, 4
      %v2680 = vrot.slane %v463, 5
      %v2681 = vsel %vm2380, %v2679, %v2680
      %v2682 = vrot.slane %v464, 5
      %v2683 = vrot.slane %v2682, 4
      %v2684 = vrot.slane %v465, 5
      %v2685 = vsel %vm2380, %v2683, %v2684
      %v2686 = vrot.slane %v2684, 4
      %v2687 = vrot.slane %v466, 5
      %v2688 = vsel %vm2380, %v2686, %v2687
      %v2689 = vrot.slane %v467, 5
      %v2690 = vrot.slane %v2689, 4
      %v2691 = vrot.slane %v468, 5
      %v2692 = vsel %vm2380, %v2690, %v2691
      %v2693 = vrot.slane %v2691, 4
      %v2694 = vrot.slane %v469, 5
      %v2695 = vsel %vm2380, %v2693, %v2694
      %v2696 = vrot.slane %v470, 5
      %v2697 = vrot.slane %v2696, 4
      %v2698 = vrot.slane %v471, 5
      %v2699 = vsel %vm2380, %v2697, %v2698
      %v2700 = vrot.slane %v2698, 4
      %v2701 = vrot.slane %v472, 5
      %v2702 = vsel %vm2380, %v2700, %v2701
      %v2703 = vrot.slane %v473, 5
      %v2704 = vrot.slane %v2703, 4
      %v2705 = vrot.slane %v474, 5
      %v2706 = vsel %vm2380, %v2704, %v2705
      %v2707 = vrot.slane %v2705, 4
      %v2708 = vrot.slane %v475, 5
      %v2709 = vsel %vm2380, %v2707, %v2708
      %v2710 = vrot.slane %v476, 5
      %v2711 = vrot.slane %v2710, 4
      %v2712 = vrot.slane %v477, 5
      %v2713 = vsel %vm2380, %v2711, %v2712
      %v2714 = vrot.slane %v2712, 4
      %v2715 = vrot.slane %v478, 5
      %v2716 = vsel %vm2380, %v2714, %v2715
      %v2717 = vrot.slane %v485, 5
      %v2718 = vrot.slane %v2717, 4
      %v2719 = vrot.slane %v486, 5
      %v2720 = vsel %vm2380, %v2718, %v2719
      %v2721 = vrot.slane %v2719, 4
      %v2722 = vrot.slane %v487, 5
      %v2723 = vsel %vm2380, %v2721, %v2722
      %v2724 = vrot.slane %v488, 5
      %v2725 = vrot.slane %v2724, 4
      %v2726 = vrot.slane %v489, 5
      %v2727 = vsel %vm2380, %v2725, %v2726
      %v2728 = vrot.slane %v2726, 4
      %v2729 = vrot.slane %v490, 5
      %v2730 = vsel %vm2380, %v2728, %v2729
      %v2731 = vrot.slane %v491, 5
      %v2732 = vrot.slane %v2731, 4
      %v2733 = vrot.slane %v492, 5
      %v2734 = vsel %vm2380, %v2732, %v2733
      %v2735 = vrot.slane %v2733, 4
      %v2736 = vrot.slane %v493, 5
      %v2737 = vsel %vm2380, %v2735, %v2736
      %v2738 = vrot.slane %v494, 5
      %v2739 = vrot.slane %v2738, 4
      %v2740 = vrot.slane %v495, 5
      %v2741 = vsel %vm2380, %v2739, %v2740
      %v2742 = vrot.slane %v2740, 4
      %v2743 = vrot.slane %v496, 5
      %v2744 = vsel %vm2380, %v2742, %v2743
      %v2745 = vrot.slane %v497, 5
      %v2746 = vrot.slane %v2745, 4
      %v2747 = vrot.slane %v498, 5
      %v2748 = vsel %vm2380, %v2746, %v2747
      %v2749 = vrot.slane %v2747, 4
      %v2750 = vrot.slane %v499, 5
      %v2751 = vsel %vm2380, %v2749, %v2750
      %v2752 = vrot.slane %v500, 5
      %v2753 = vrot.slane %v2752, 4
      %v2754 = vrot.slane %v501, 5
      %v2755 = vsel %vm2380, %v2753, %v2754
      %v2756 = vrot.slane %v2754, 4
      %v2757 = vrot.slane %v502, 5
      %v2758 = vsel %vm2380, %v2756, %v2757
      %v2759 = vrot.slane %v503, 5
      %v2760 = vrot.slane %v2759, 4
      %v2761 = vrot.slane %v504, 5
      %v2762 = vsel %vm2380, %v2760, %v2761
      %v2763 = vrot.slane %v2761, 4
      %v2764 = vrot.slane %v505, 5
      %v2765 = vsel %vm2380, %v2763, %v2764
      %v2766 = vrot.slane %v506, 5
      %v2767 = vrot.slane %v2766, 4
      %v2768 = vrot.slane %v507, 5
      %v2769 = vsel %vm2380, %v2767, %v2768
      %v2770 = vrot.slane %v2768, 4
      %v2771 = vrot.slane %v508, 5
      %v2772 = vsel %vm2380, %v2770, %v2771
      %v2773 = vrot.slane %v509, 5
      %v2774 = vrot.slane %v2773, 4
      %v2775 = vrot.slane %v510, 5
      %v2776 = vsel %vm2380, %v2774, %v2775
      %v2777 = vrot.slane %v2775, 4
      %v2778 = vrot.slane %v511, 5
      %v2779 = vsel %vm2380, %v2777, %v2778
      %v2780 = vrot.slane %v512, 5
      %v2781 = vrot.slane %v2780, 4
      %v2782 = vrot.slane %v513, 5
      %v2783 = vsel %vm2380, %v2781, %v2782
      %v2784 = vrot.slane %v2782, 4
      %v2785 = vrot.slane %v514, 5
      %v2786 = vsel %vm2380, %v2784, %v2785
      %v2787 = vrot.slane %v515, 5
      %v2788 = vrot.slane %v2787, 4
      %v2789 = vrot.slane %v516, 5
      %v2790 = vsel %vm2380, %v2788, %v2789
      %v2791 = vrot.slane %v2789, 4
      %v2792 = vrot.slane %v517, 5
      %v2793 = vsel %vm2380, %v2791, %v2792
      %v2794 = vrot.slane %v518, 5
      %v2795 = vrot.slane %v2794, 4
      %v2796 = vrot.slane %v519, 5
      %v2797 = vsel %vm2380, %v2795, %v2796
      %v2798 = vrot.slane %v2796, 4
      %v2799 = vrot.slane %v520, 5
      %v2800 = vsel %vm2380, %v2798, %v2799
      %v2801 = vrot.slane %v521, 5
      %v2802 = vrot.slane %v2801, 4
      %v2803 = vrot.slane %v522, 5
      %v2804 = vsel %vm2380, %v2802, %v2803
      %v2805 = vrot.slane %v2803, 4
      %v2806 = vrot.slane %v523, 5
      %v2807 = vsel %vm2380, %v2805, %v2806
      %v2808 = vrot.slane %v524, 5
      %v2809 = vrot.slane %v2808, 4
      %v2810 = vrot.slane %v525, 5
      %v2811 = vsel %vm2380, %v2809, %v2810
      %v2812 = vrot.slane %v2810, 4
      %v2813 = vrot.slane %v526, 5
      %v2814 = vsel %vm2380, %v2812, %v2813
      %v2815 = vrot.slane %v527, 5
      %v2816 = vrot.slane %v2815, 4
      %v2817 = vrot.slane %v528, 5
      %v2818 = vsel %vm2380, %v2816, %v2817
      %v2819 = vrot.slane %v2817, 4
      %v2820 = vrot.slane %v529, 5
      %v2821 = vsel %vm2380, %v2819, %v2820
      %v2822 = vrot.slane %v530, 5
      %v2823 = vrot.slane %v2822, 4
      %v2824 = vrot.slane %v531, 5
      %v2825 = vsel %vm2380, %v2823, %v2824
      %v2826 = vrot.slane %v2824, 4
      %v2827 = vrot.slane %v532, 5
      %v2828 = vsel %vm2380, %v2826, %v2827
      %v2830 = vshrl.u32 %v371, 16
      %v2832 = vrot.slane %v2830, 4
      %v2833 = vshll.u32 %v371, 16
      %v2835 = vrot.slane %v2833, 5
      %v2836 = vor.u32 %v2832, %v2835
      %v2837 = vrot.slane %v2836, 4
      %v2839 = vshll.u32 %v372, 16
      %v2841 = vrot.slane %v2839, 5
      %v2842 = vsel %vm649, %v2837, %v2841
      %v2843 = vshrl.u32 %v372, 16
      %v2845 = vrot.slane %v2843, 4
      %v2846 = vor.u32 %v2845, %v2841
      %v2847 = vrot.slane %v2846, 4
      %v2849 = vshll.u32 %v373, 16
      %v2851 = vrot.slane %v2849, 5
      %v2852 = vsel %vm649, %v2847, %v2851
      %v2854 = vshrl.u32 %v425, 16
      %v2856 = vrot.slane %v2854, 4
      %v2857 = vshll.u32 %v425, 16
      %v2859 = vrot.slane %v2857, 5
      %v2860 = vor.u32 %v2856, %v2859
      %v2861 = vrot.slane %v2860, 4
      %v2863 = vshll.u32 %v426, 16
      %v2865 = vrot.slane %v2863, 5
      %v2866 = vsel %vm649, %v2861, %v2865
      %v2867 = vshrl.u32 %v426, 16
      %v2869 = vrot.slane %v2867, 4
      %v2870 = vor.u32 %v2869, %v2865
      %v2871 = vrot.slane %v2870, 4
      %v2873 = vshll.u32 %v427, 16
      %v2875 = vrot.slane %v2873, 5
      %v2876 = vsel %vm649, %v2871, %v2875
      %v2878 = vshrl.u32 %v479, 16
      %v2880 = vrot.slane %v2878, 4
      %v2881 = vshll.u32 %v479, 16
      %v2883 = vrot.slane %v2881, 5
      %v2884 = vor.u32 %v2880, %v2883
      %v2885 = vrot.slane %v2884, 4
      %v2887 = vshll.u32 %v480, 16
      %v2889 = vrot.slane %v2887, 5
      %v2890 = vsel %vm649, %v2885, %v2889
      %v2891 = vshrl.u32 %v480, 16
      %v2893 = vrot.slane %v2891, 4
      %v2894 = vor.u32 %v2893, %v2889
      %v2895 = vrot.slane %v2894, 4
      %v2897 = vshll.u32 %v481, 16
      %v2899 = vrot.slane %v2897, 5
      %v2900 = vsel %vm649, %v2895, %v2899
      %v2902 = vshrl.u32 %v533, 16
      %v2904 = vrot.slane %v2902, 4
      %v2905 = vshll.u32 %v533, 16
      %v2907 = vrot.slane %v2905, 5
      %v2908 = vor.u32 %v2904, %v2907
      %v2909 = vrot.slane %v2908, 4
      %v2911 = vshll.u32 %v534, 16
      %v2913 = vrot.slane %v2911, 5
      %v2914 = vsel %vm649, %v2909, %v2913
      %v2915 = vshrl.u32 %v534, 16
      %v2917 = vrot.slane %v2915, 4
      %v2918 = vor.u32 %v2917, %v2913
      %v2919 = vrot.slane %v2918, 4
      %v2921 = vshll.u32 %v535, 16
      %v2923 = vrot.slane %v2921, 5
      %v2924 = vsel %vm649, %v2919, %v2923
      %v2937 = vrot.slane %v371, 5
      %v2938 = vrot.slane %v2937, 4
      %v2939 = vrot.slane %v372, 5
      %v2940 = vsel %vm2380, %v2938, %v2939
      %v2941 = vrot.slane %v2939, 4
      %v2942 = vrot.slane %v373, 5
      %v2943 = vsel %vm2380, %v2941, %v2942
      %v2944 = vrot.slane %v425, 5
      %v2945 = vrot.slane %v2944, 4
      %v2946 = vrot.slane %v426, 5
      %v2947 = vsel %vm2380, %v2945, %v2946
      %v2948 = vrot.slane %v2946, 4
      %v2949 = vrot.slane %v427, 5
      %v2950 = vsel %vm2380, %v2948, %v2949
      %v2951 = vrot.slane %v479, 5
      %v2952 = vrot.slane %v2951, 4
      %v2953 = vrot.slane %v480, 5
      %v2954 = vsel %vm2380, %v2952, %v2953
      %v2955 = vrot.slane %v2953, 4
      %v2956 = vrot.slane %v481, 5
      %v2957 = vsel %vm2380, %v2955, %v2956
      %v2958 = vrot.slane %v533, 5
      %v2959 = vrot.slane %v2958, 4
      %v2960 = vrot.slane %v534, 5
      %v2961 = vsel %vm2380, %v2959, %v2960
      %v2962 = vrot.slane %v2960, 4
      %v2963 = vrot.slane %v535, 5
      %v2964 = vsel %vm2380, %v2962, %v2963
      %v2966 = vshrl.u32 %v374, 16
      %v2968 = vrot.slane %v2966, 4
      %v2969 = vshll.u32 %v374, 16
      %v2971 = vrot.slane %v2969, 5
      %v2972 = vor.u32 %v2968, %v2971
      %v2973 = vrot.slane %v2972, 4
      %v2975 = vshll.u32 %v375, 16
      %v2977 = vrot.slane %v2975, 5
      %v2978 = vsel %vm649, %v2973, %v2977
      %v2979 = vshrl.u32 %v375, 16
      %v2981 = vrot.slane %v2979, 4
      %v2982 = vor.u32 %v2981, %v2977
      %v2983 = vrot.slane %v2982, 4
      %v2985 = vshll.u32 %v376, 16
      %v2987 = vrot.slane %v2985, 5
      %v2988 = vsel %vm649, %v2983, %v2987
      %v2990 = vshrl.u32 %v428, 16
      %v2992 = vrot.slane %v2990, 4
      %v2993 = vshll.u32 %v428, 16
      %v2995 = vrot.slane %v2993, 5
      %v2996 = vor.u32 %v2992, %v2995
      %v2997 = vrot.slane %v2996, 4
      %v2999 = vshll.u32 %v429, 16
      %v3001 = vrot.slane %v2999, 5
      %v3002 = vsel %vm649, %v2997, %v3001
      %v3003 = vshrl.u32 %v429, 16
      %v3005 = vrot.slane %v3003, 4
      %v3006 = vor.u32 %v3005, %v3001
      %v3007 = vrot.slane %v3006, 4
      %v3009 = vshll.u32 %v430, 16
      %v3011 = vrot.slane %v3009, 5
      %v3012 = vsel %vm649, %v3007, %v3011
      %v3014 = vshrl.u32 %v482, 16
      %v3016 = vrot.slane %v3014, 4
      %v3017 = vshll.u32 %v482, 16
      %v3019 = vrot.slane %v3017, 5
      %v3020 = vor.u32 %v3016, %v3019
      %v3021 = vrot.slane %v3020, 4
      %v3023 = vshll.u32 %v483, 16
      %v3025 = vrot.slane %v3023, 5
      %v3026 = vsel %vm649, %v3021, %v3025
      %v3027 = vshrl.u32 %v483, 16
      %v3029 = vrot.slane %v3027, 4
      %v3030 = vor.u32 %v3029, %v3025
      %v3031 = vrot.slane %v3030, 4
      %v3033 = vshll.u32 %v484, 16
      %v3035 = vrot.slane %v3033, 5
      %v3036 = vsel %vm649, %v3031, %v3035
      %v3038 = vshrl.u32 %v536, 16
      %v3040 = vrot.slane %v3038, 4
      %v3041 = vshll.u32 %v536, 16
      %v3043 = vrot.slane %v3041, 5
      %v3044 = vor.u32 %v3040, %v3043
      %v3045 = vrot.slane %v3044, 4
      %v3047 = vshll.u32 %v537, 16
      %v3049 = vrot.slane %v3047, 5
      %v3050 = vsel %vm649, %v3045, %v3049
      %v3051 = vshrl.u32 %v537, 16
      %v3053 = vrot.slane %v3051, 4
      %v3054 = vor.u32 %v3053, %v3049
      %v3055 = vrot.slane %v3054, 4
      %v3057 = vshll.u32 %v538, 16
      %v3059 = vrot.slane %v3057, 5
      %v3060 = vsel %vm649, %v3055, %v3059
      %v3073 = vrot.slane %v374, 5
      %v3074 = vrot.slane %v3073, 4
      %v3075 = vrot.slane %v375, 5
      %v3076 = vsel %vm2380, %v3074, %v3075
      %v3077 = vrot.slane %v3075, 4
      %v3078 = vrot.slane %v376, 5
      %v3079 = vsel %vm2380, %v3077, %v3078
      %v3080 = vrot.slane %v428, 5
      %v3081 = vrot.slane %v3080, 4
      %v3082 = vrot.slane %v429, 5
      %v3083 = vsel %vm2380, %v3081, %v3082
      %v3084 = vrot.slane %v3082, 4
      %v3085 = vrot.slane %v430, 5
      %v3086 = vsel %vm2380, %v3084, %v3085
      %v3087 = vrot.slane %v482, 5
      %v3088 = vrot.slane %v3087, 4
      %v3089 = vrot.slane %v483, 5
      %v3090 = vsel %vm2380, %v3088, %v3089
      %v3091 = vrot.slane %v3089, 4
      %v3092 = vrot.slane %v484, 5
      %v3093 = vsel %vm2380, %v3091, %v3092
      %v3094 = vrot.slane %v536, 5
      %v3095 = vrot.slane %v3094, 4
      %v3096 = vrot.slane %v537, 5
      %v3097 = vsel %vm2380, %v3095, %v3096
      %v3098 = vrot.slane %v3096, 4
      %v3099 = vrot.slane %v538, 5
      %v3100 = vsel %vm2380, %v3098, %v3099
      %v3102 = vshrl.u32 %v539, 16
      %v3104 = vrot.slane %v3102, 4
      %v3105 = vshll.u32 %v539, 16
      %v3107 = vrot.slane %v3105, 5
      %v3108 = vor.u32 %v3104, %v3107
      %v3109 = vrot.slane %v3108, 4
      %v3111 = vshll.u32 %v540, 16
      %v3113 = vrot.slane %v3111, 5
      %v3114 = vsel %vm649, %v3109, %v3113
      %v3115 = vshrl.u32 %v540, 16
      %v3117 = vrot.slane %v3115, 4
      %v3118 = vor.u32 %v3117, %v3113
      %v3119 = vrot.slane %v3118, 4
      %v3121 = vshll.u32 %v541, 16
      %v3123 = vrot.slane %v3121, 5
      %v3124 = vsel %vm649, %v3119, %v3123
      %v3126 = vshrl.u32 %v542, 16
      %v3128 = vrot.slane %v3126, 4
      %v3129 = vshll.u32 %v542, 16
      %v3131 = vrot.slane %v3129, 5
      %v3132 = vor.u32 %v3128, %v3131
      %v3133 = vrot.slane %v3132, 4
      %v3135 = vshll.u32 %v543, 16
      %v3137 = vrot.slane %v3135, 5
      %v3138 = vsel %vm649, %v3133, %v3137
      %v3139 = vshrl.u32 %v543, 16
      %v3141 = vrot.slane %v3139, 4
      %v3142 = vor.u32 %v3141, %v3137
      %v3143 = vrot.slane %v3142, 4
      %v3145 = vshll.u32 %v544, 16
      %v3147 = vrot.slane %v3145, 5
      %v3148 = vsel %vm649, %v3143, %v3147
      %v3150 = vshrl.u32 %v545, 16
      %v3152 = vrot.slane %v3150, 4
      %v3153 = vshll.u32 %v545, 16
      %v3155 = vrot.slane %v3153, 5
      %v3156 = vor.u32 %v3152, %v3155
      %v3157 = vrot.slane %v3156, 4
      %v3159 = vshll.u32 %v546, 16
      %v3161 = vrot.slane %v3159, 5
      %v3162 = vsel %vm649, %v3157, %v3161
      %v3163 = vshrl.u32 %v546, 16
      %v3165 = vrot.slane %v3163, 4
      %v3166 = vor.u32 %v3165, %v3161
      %v3167 = vrot.slane %v3166, 4
      %v3169 = vshll.u32 %v547, 16
      %v3171 = vrot.slane %v3169, 5
      %v3172 = vsel %vm649, %v3167, %v3171
      %v3174 = vshrl.u32 %v548, 16
      %v3176 = vrot.slane %v3174, 4
      %v3177 = vshll.u32 %v548, 16
      %v3179 = vrot.slane %v3177, 5
      %v3180 = vor.u32 %v3176, %v3179
      %v3181 = vrot.slane %v3180, 4
      %v3183 = vshll.u32 %v549, 16
      %v3185 = vrot.slane %v3183, 5
      %v3186 = vsel %vm649, %v3181, %v3185
      %v3187 = vshrl.u32 %v549, 16
      %v3189 = vrot.slane %v3187, 4
      %v3190 = vor.u32 %v3189, %v3185
      %v3191 = vrot.slane %v3190, 4
      %v3193 = vshll.u32 %v550, 16
      %v3195 = vrot.slane %v3193, 5
      %v3196 = vsel %vm649, %v3191, %v3195
      %v3198 = vshrl.u32 %v551, 16
      %v3200 = vrot.slane %v3198, 4
      %v3201 = vshll.u32 %v551, 16
      %v3203 = vrot.slane %v3201, 5
      %v3204 = vor.u32 %v3200, %v3203
      %v3205 = vrot.slane %v3204, 4
      %v3207 = vshll.u32 %v552, 16
      %v3209 = vrot.slane %v3207, 5
      %v3210 = vsel %vm649, %v3205, %v3209
      %v3211 = vshrl.u32 %v552, 16
      %v3213 = vrot.slane %v3211, 4
      %v3214 = vor.u32 %v3213, %v3209
      %v3215 = vrot.slane %v3214, 4
      %v3217 = vshll.u32 %v553, 16
      %v3219 = vrot.slane %v3217, 5
      %v3220 = vsel %vm649, %v3215, %v3219
      %v3222 = vshrl.u32 %v554, 16
      %v3224 = vrot.slane %v3222, 4
      %v3225 = vshll.u32 %v554, 16
      %v3227 = vrot.slane %v3225, 5
      %v3228 = vor.u32 %v3224, %v3227
      %v3229 = vrot.slane %v3228, 4
      %v3231 = vshll.u32 %v555, 16
      %v3233 = vrot.slane %v3231, 5
      %v3234 = vsel %vm649, %v3229, %v3233
      %v3235 = vshrl.u32 %v555, 16
      %v3237 = vrot.slane %v3235, 4
      %v3238 = vor.u32 %v3237, %v3233
      %v3239 = vrot.slane %v3238, 4
      %v3241 = vshll.u32 %v556, 16
      %v3243 = vrot.slane %v3241, 5
      %v3244 = vsel %vm649, %v3239, %v3243
      %v3246 = vshrl.u32 %v557, 16
      %v3248 = vrot.slane %v3246, 4
      %v3249 = vshll.u32 %v557, 16
      %v3251 = vrot.slane %v3249, 5
      %v3252 = vor.u32 %v3248, %v3251
      %v3253 = vrot.slane %v3252, 4
      %v3255 = vshll.u32 %v558, 16
      %v3257 = vrot.slane %v3255, 5
      %v3258 = vsel %vm649, %v3253, %v3257
      %v3259 = vshrl.u32 %v558, 16
      %v3261 = vrot.slane %v3259, 4
      %v3262 = vor.u32 %v3261, %v3257
      %v3263 = vrot.slane %v3262, 4
      %v3265 = vshll.u32 %v559, 16
      %v3267 = vrot.slane %v3265, 5
      %v3268 = vsel %vm649, %v3263, %v3267
      %v3270 = vshrl.u32 %v560, 16
      %v3272 = vrot.slane %v3270, 4
      %v3273 = vshll.u32 %v560, 16
      %v3275 = vrot.slane %v3273, 5
      %v3276 = vor.u32 %v3272, %v3275
      %v3277 = vrot.slane %v3276, 4
      %v3279 = vshll.u32 %v561, 16
      %v3281 = vrot.slane %v3279, 5
      %v3282 = vsel %vm649, %v3277, %v3281
      %v3283 = vshrl.u32 %v561, 16
      %v3285 = vrot.slane %v3283, 4
      %v3286 = vor.u32 %v3285, %v3281
      %v3287 = vrot.slane %v3286, 4
      %v3289 = vshll.u32 %v562, 16
      %v3291 = vrot.slane %v3289, 5
      %v3292 = vsel %vm649, %v3287, %v3291
      %v3294 = vshrl.u32 %v563, 16
      %v3296 = vrot.slane %v3294, 4
      %v3297 = vshll.u32 %v563, 16
      %v3299 = vrot.slane %v3297, 5
      %v3300 = vor.u32 %v3296, %v3299
      %v3301 = vrot.slane %v3300, 4
      %v3303 = vshll.u32 %v564, 16
      %v3305 = vrot.slane %v3303, 5
      %v3306 = vsel %vm649, %v3301, %v3305
      %v3307 = vshrl.u32 %v564, 16
      %v3309 = vrot.slane %v3307, 4
      %v3310 = vor.u32 %v3309, %v3305
      %v3311 = vrot.slane %v3310, 4
      %v3313 = vshll.u32 %v565, 16
      %v3315 = vrot.slane %v3313, 5
      %v3316 = vsel %vm649, %v3311, %v3315
      %v3318 = vshrl.u32 %v566, 16
      %v3320 = vrot.slane %v3318, 4
      %v3321 = vshll.u32 %v566, 16
      %v3323 = vrot.slane %v3321, 5
      %v3324 = vor.u32 %v3320, %v3323
      %v3325 = vrot.slane %v3324, 4
      %v3327 = vshll.u32 %v567, 16
      %v3329 = vrot.slane %v3327, 5
      %v3330 = vsel %vm649, %v3325, %v3329
      %v3331 = vshrl.u32 %v567, 16
      %v3333 = vrot.slane %v3331, 4
      %v3334 = vor.u32 %v3333, %v3329
      %v3335 = vrot.slane %v3334, 4
      %v3337 = vshll.u32 %v568, 16
      %v3339 = vrot.slane %v3337, 5
      %v3340 = vsel %vm649, %v3335, %v3339
      %v3342 = vshrl.u32 %v569, 16
      %v3344 = vrot.slane %v3342, 4
      %v3345 = vshll.u32 %v569, 16
      %v3347 = vrot.slane %v3345, 5
      %v3348 = vor.u32 %v3344, %v3347
      %v3349 = vrot.slane %v3348, 4
      %v3351 = vshll.u32 %v570, 16
      %v3353 = vrot.slane %v3351, 5
      %v3354 = vsel %vm649, %v3349, %v3353
      %v3355 = vshrl.u32 %v570, 16
      %v3357 = vrot.slane %v3355, 4
      %v3358 = vor.u32 %v3357, %v3353
      %v3359 = vrot.slane %v3358, 4
      %v3361 = vshll.u32 %v571, 16
      %v3363 = vrot.slane %v3361, 5
      %v3364 = vsel %vm649, %v3359, %v3363
      %v3366 = vshrl.u32 %v572, 16
      %v3368 = vrot.slane %v3366, 4
      %v3369 = vshll.u32 %v572, 16
      %v3371 = vrot.slane %v3369, 5
      %v3372 = vor.u32 %v3368, %v3371
      %v3373 = vrot.slane %v3372, 4
      %v3375 = vshll.u32 %v573, 16
      %v3377 = vrot.slane %v3375, 5
      %v3378 = vsel %vm649, %v3373, %v3377
      %v3379 = vshrl.u32 %v573, 16
      %v3381 = vrot.slane %v3379, 4
      %v3382 = vor.u32 %v3381, %v3377
      %v3383 = vrot.slane %v3382, 4
      %v3385 = vshll.u32 %v574, 16
      %v3387 = vrot.slane %v3385, 5
      %v3388 = vsel %vm649, %v3383, %v3387
      %v3390 = vshrl.u32 %v575, 16
      %v3392 = vrot.slane %v3390, 4
      %v3393 = vshll.u32 %v575, 16
      %v3395 = vrot.slane %v3393, 5
      %v3396 = vor.u32 %v3392, %v3395
      %v3397 = vrot.slane %v3396, 4
      %v3399 = vshll.u32 %v576, 16
      %v3401 = vrot.slane %v3399, 5
      %v3402 = vsel %vm649, %v3397, %v3401
      %v3403 = vshrl.u32 %v576, 16
      %v3405 = vrot.slane %v3403, 4
      %v3406 = vor.u32 %v3405, %v3401
      %v3407 = vrot.slane %v3406, 4
      %v3409 = vshll.u32 %v577, 16
      %v3411 = vrot.slane %v3409, 5
      %v3412 = vsel %vm649, %v3407, %v3411
      %v3414 = vshrl.u32 %v578, 16
      %v3416 = vrot.slane %v3414, 4
      %v3417 = vshll.u32 %v578, 16
      %v3419 = vrot.slane %v3417, 5
      %v3420 = vor.u32 %v3416, %v3419
      %v3421 = vrot.slane %v3420, 4
      %v3423 = vshll.u32 %v579, 16
      %v3425 = vrot.slane %v3423, 5
      %v3426 = vsel %vm649, %v3421, %v3425
      %v3427 = vshrl.u32 %v579, 16
      %v3429 = vrot.slane %v3427, 4
      %v3430 = vor.u32 %v3429, %v3425
      %v3431 = vrot.slane %v3430, 4
      %v3433 = vshll.u32 %v580, 16
      %v3435 = vrot.slane %v3433, 5
      %v3436 = vsel %vm649, %v3431, %v3435
      %v3438 = vshrl.u32 %v581, 16
      %v3440 = vrot.slane %v3438, 4
      %v3441 = vshll.u32 %v581, 16
      %v3443 = vrot.slane %v3441, 5
      %v3444 = vor.u32 %v3440, %v3443
      %v3445 = vrot.slane %v3444, 4
      %v3447 = vshll.u32 %v582, 16
      %v3449 = vrot.slane %v3447, 5
      %v3450 = vsel %vm649, %v3445, %v3449
      %v3451 = vshrl.u32 %v582, 16
      %v3453 = vrot.slane %v3451, 4
      %v3454 = vor.u32 %v3453, %v3449
      %v3455 = vrot.slane %v3454, 4
      %v3457 = vshll.u32 %v583, 16
      %v3459 = vrot.slane %v3457, 5
      %v3460 = vsel %vm649, %v3455, %v3459
      %v3462 = vshrl.u32 %v584, 16
      %v3464 = vrot.slane %v3462, 4
      %v3465 = vshll.u32 %v584, 16
      %v3467 = vrot.slane %v3465, 5
      %v3468 = vor.u32 %v3464, %v3467
      %v3469 = vrot.slane %v3468, 4
      %v3471 = vshll.u32 %v585, 16
      %v3473 = vrot.slane %v3471, 5
      %v3474 = vsel %vm649, %v3469, %v3473
      %v3475 = vshrl.u32 %v585, 16
      %v3477 = vrot.slane %v3475, 4
      %v3478 = vor.u32 %v3477, %v3473
      %v3479 = vrot.slane %v3478, 4
      %v3481 = vshll.u32 %v586, 16
      %v3483 = vrot.slane %v3481, 5
      %v3484 = vsel %vm649, %v3479, %v3483
      %v3533 = vrot.slane %v539, 5
      %v3534 = vrot.slane %v3533, 4
      %v3535 = vrot.slane %v540, 5
      %v3536 = vsel %vm2380, %v3534, %v3535
      %v3537 = vrot.slane %v3535, 4
      %v3538 = vrot.slane %v541, 5
      %v3539 = vsel %vm2380, %v3537, %v3538
      %v3540 = vrot.slane %v542, 5
      %v3541 = vrot.slane %v3540, 4
      %v3542 = vrot.slane %v543, 5
      %v3543 = vsel %vm2380, %v3541, %v3542
      %v3544 = vrot.slane %v3542, 4
      %v3545 = vrot.slane %v544, 5
      %v3546 = vsel %vm2380, %v3544, %v3545
      %v3547 = vrot.slane %v545, 5
      %v3548 = vrot.slane %v3547, 4
      %v3549 = vrot.slane %v546, 5
      %v3550 = vsel %vm2380, %v3548, %v3549
      %v3551 = vrot.slane %v3549, 4
      %v3552 = vrot.slane %v547, 5
      %v3553 = vsel %vm2380, %v3551, %v3552
      %v3554 = vrot.slane %v548, 5
      %v3555 = vrot.slane %v3554, 4
      %v3556 = vrot.slane %v549, 5
      %v3557 = vsel %vm2380, %v3555, %v3556
      %v3558 = vrot.slane %v3556, 4
      %v3559 = vrot.slane %v550, 5
      %v3560 = vsel %vm2380, %v3558, %v3559
      %v3561 = vrot.slane %v551, 5
      %v3562 = vrot.slane %v3561, 4
      %v3563 = vrot.slane %v552, 5
      %v3564 = vsel %vm2380, %v3562, %v3563
      %v3565 = vrot.slane %v3563, 4
      %v3566 = vrot.slane %v553, 5
      %v3567 = vsel %vm2380, %v3565, %v3566
      %v3568 = vrot.slane %v554, 5
      %v3569 = vrot.slane %v3568, 4
      %v3570 = vrot.slane %v555, 5
      %v3571 = vsel %vm2380, %v3569, %v3570
      %v3572 = vrot.slane %v3570, 4
      %v3573 = vrot.slane %v556, 5
      %v3574 = vsel %vm2380, %v3572, %v3573
      %v3575 = vrot.slane %v557, 5
      %v3576 = vrot.slane %v3575, 4
      %v3577 = vrot.slane %v558, 5
      %v3578 = vsel %vm2380, %v3576, %v3577
      %v3579 = vrot.slane %v3577, 4
      %v3580 = vrot.slane %v559, 5
      %v3581 = vsel %vm2380, %v3579, %v3580
      %v3582 = vrot.slane %v560, 5
      %v3583 = vrot.slane %v3582, 4
      %v3584 = vrot.slane %v561, 5
      %v3585 = vsel %vm2380, %v3583, %v3584
      %v3586 = vrot.slane %v3584, 4
      %v3587 = vrot.slane %v562, 5
      %v3588 = vsel %vm2380, %v3586, %v3587
      %v3589 = vrot.slane %v563, 5
      %v3590 = vrot.slane %v3589, 4
      %v3591 = vrot.slane %v564, 5
      %v3592 = vsel %vm2380, %v3590, %v3591
      %v3593 = vrot.slane %v3591, 4
      %v3594 = vrot.slane %v565, 5
      %v3595 = vsel %vm2380, %v3593, %v3594
      %v3596 = vrot.slane %v566, 5
      %v3597 = vrot.slane %v3596, 4
      %v3598 = vrot.slane %v567, 5
      %v3599 = vsel %vm2380, %v3597, %v3598
      %v3600 = vrot.slane %v3598, 4
      %v3601 = vrot.slane %v568, 5
      %v3602 = vsel %vm2380, %v3600, %v3601
      %v3603 = vrot.slane %v569, 5
      %v3604 = vrot.slane %v3603, 4
      %v3605 = vrot.slane %v570, 5
      %v3606 = vsel %vm2380, %v3604, %v3605
      %v3607 = vrot.slane %v3605, 4
      %v3608 = vrot.slane %v571, 5
      %v3609 = vsel %vm2380, %v3607, %v3608
      %v3610 = vrot.slane %v572, 5
      %v3611 = vrot.slane %v3610, 4
      %v3612 = vrot.slane %v573, 5
      %v3613 = vsel %vm2380, %v3611, %v3612
      %v3614 = vrot.slane %v3612, 4
      %v3615 = vrot.slane %v574, 5
      %v3616 = vsel %vm2380, %v3614, %v3615
      %v3617 = vrot.slane %v575, 5
      %v3618 = vrot.slane %v3617, 4
      %v3619 = vrot.slane %v576, 5
      %v3620 = vsel %vm2380, %v3618, %v3619
      %v3621 = vrot.slane %v3619, 4
      %v3622 = vrot.slane %v577, 5
      %v3623 = vsel %vm2380, %v3621, %v3622
      %v3624 = vrot.slane %v578, 5
      %v3625 = vrot.slane %v3624, 4
      %v3626 = vrot.slane %v579, 5
      %v3627 = vsel %vm2380, %v3625, %v3626
      %v3628 = vrot.slane %v3626, 4
      %v3629 = vrot.slane %v580, 5
      %v3630 = vsel %vm2380, %v3628, %v3629
      %v3631 = vrot.slane %v581, 5
      %v3632 = vrot.slane %v3631, 4
      %v3633 = vrot.slane %v582, 5
      %v3634 = vsel %vm2380, %v3632, %v3633
      %v3635 = vrot.slane %v3633, 4
      %v3636 = vrot.slane %v583, 5
      %v3637 = vsel %vm2380, %v3635, %v3636
      %v3638 = vrot.slane %v584, 5
      %v3639 = vrot.slane %v3638, 4
      %v3640 = vrot.slane %v585, 5
      %v3641 = vsel %vm2380, %v3639, %v3640
      %v3642 = vrot.slane %v3640, 4
      %v3643 = vrot.slane %v586, 5
      %v3644 = vsel %vm2380, %v3642, %v3643
      %v3646 = vshrl.u32 %v587, 16
      %v3648 = vrot.slane %v3646, 4
      %v3649 = vshll.u32 %v587, 16
      %v3651 = vrot.slane %v3649, 5
      %v3652 = vor.u32 %v3648, %v3651
      %v3653 = vrot.slane %v3652, 4
      %v3655 = vshll.u32 %v588, 16
      %v3657 = vrot.slane %v3655, 5
      %v3658 = vsel %vm649, %v3653, %v3657
      %v3659 = vshrl.u32 %v588, 16
      %v3661 = vrot.slane %v3659, 4
      %v3662 = vor.u32 %v3661, %v3657
      %v3663 = vrot.slane %v3662, 4
      %v3665 = vshll.u32 %v589, 16
      %v3667 = vrot.slane %v3665, 5
      %v3668 = vsel %vm649, %v3663, %v3667
      %v3672 = vrot.slane %v587, 5
      %v3673 = vrot.slane %v3672, 4
      %v3674 = vrot.slane %v588, 5
      %v3675 = vsel %vm2380, %v3673, %v3674
      %v3676 = vrot.slane %v3674, 4
      %v3677 = vrot.slane %v589, 5
      %v3678 = vsel %vm2380, %v3676, %v3677
      %v3680 = vshrl.u32 %v590, 16
      %v3682 = vrot.slane %v3680, 4
      %v3683 = vshll.u32 %v590, 16
      %v3685 = vrot.slane %v3683, 5
      %v3686 = vor.u32 %v3682, %v3685
      %v3687 = vrot.slane %v3686, 4
      %v3689 = vshll.u32 %v591, 16
      %v3691 = vrot.slane %v3689, 5
      %v3692 = vsel %vm649, %v3687, %v3691
      %v3693 = vshrl.u32 %v591, 16
      %v3695 = vrot.slane %v3693, 4
      %v3696 = vor.u32 %v3695, %v3691
      %v3697 = vrot.slane %v3696, 4
      %v3699 = vshll.u32 %v592, 16
      %v3701 = vrot.slane %v3699, 5
      %v3702 = vsel %vm649, %v3697, %v3701
      %v3706 = vrot.slane %v590, 5
      %v3707 = vrot.slane %v3706, 4
      %v3708 = vrot.slane %v591, 5
      %v3709 = vsel %vm2380, %v3707, %v3708
      %v3710 = vrot.slane %v3708, 4
      %v3711 = vrot.slane %v592, 5
      %v3712 = vsel %vm2380, %v3710, %v3711
      %v3714 = vshrl.u32 %v593, 16
      %v3716 = vrot.slane %v3714, 4
      %v3717 = vshll.u32 %v593, 16
      %v3719 = vrot.slane %v3717, 5
      %v3720 = vor.u32 %v3716, %v3719
      %v3721 = vrot.slane %v3720, 4
      %v3723 = vshll.u32 %v594, 16
      %v3725 = vrot.slane %v3723, 5
      %v3726 = vsel %vm649, %v3721, %v3725
      %v3727 = vshrl.u32 %v594, 16
      %v3729 = vrot.slane %v3727, 4
      %v3730 = vor.u32 %v3729, %v3725
      %v3731 = vrot.slane %v3730, 4
      %v3733 = vshll.u32 %v595, 16
      %v3735 = vrot.slane %v3733, 5
      %v3736 = vsel %vm649, %v3731, %v3735
      %v3738 = vshrl.u32 %v596, 16
      %v3740 = vrot.slane %v3738, 4
      %v3741 = vshll.u32 %v596, 16
      %v3743 = vrot.slane %v3741, 5
      %v3744 = vor.u32 %v3740, %v3743
      %v3745 = vrot.slane %v3744, 4
      %v3747 = vshll.u32 %v597, 16
      %v3749 = vrot.slane %v3747, 5
      %v3750 = vsel %vm649, %v3745, %v3749
      %v3751 = vshrl.u32 %v597, 16
      %v3753 = vrot.slane %v3751, 4
      %v3754 = vor.u32 %v3753, %v3749
      %v3755 = vrot.slane %v3754, 4
      %v3757 = vshll.u32 %v598, 16
      %v3759 = vrot.slane %v3757, 5
      %v3760 = vsel %vm649, %v3755, %v3759
      %v3762 = vshrl.u32 %v599, 16
      %v3764 = vrot.slane %v3762, 4
      %v3765 = vshll.u32 %v599, 16
      %v3767 = vrot.slane %v3765, 5
      %v3768 = vor.u32 %v3764, %v3767
      %v3769 = vrot.slane %v3768, 4
      %v3771 = vshll.u32 %v600, 16
      %v3773 = vrot.slane %v3771, 5
      %v3774 = vsel %vm649, %v3769, %v3773
      %v3775 = vshrl.u32 %v600, 16
      %v3777 = vrot.slane %v3775, 4
      %v3778 = vor.u32 %v3777, %v3773
      %v3779 = vrot.slane %v3778, 4
      %v3781 = vshll.u32 %v601, 16
      %v3783 = vrot.slane %v3781, 5
      %v3784 = vsel %vm649, %v3779, %v3783
      %v3786 = vshrl.u32 %v602, 16
      %v3788 = vrot.slane %v3786, 4
      %v3789 = vshll.u32 %v602, 16
      %v3791 = vrot.slane %v3789, 5
      %v3792 = vor.u32 %v3788, %v3791
      %v3793 = vrot.slane %v3792, 4
      %v3795 = vshll.u32 %v603, 16
      %v3797 = vrot.slane %v3795, 5
      %v3798 = vsel %vm649, %v3793, %v3797
      %v3799 = vshrl.u32 %v603, 16
      %v3801 = vrot.slane %v3799, 4
      %v3802 = vor.u32 %v3801, %v3797
      %v3803 = vrot.slane %v3802, 4
      %v3805 = vshll.u32 %v604, 16
      %v3807 = vrot.slane %v3805, 5
      %v3808 = vsel %vm649, %v3803, %v3807
      %v3810 = vshrl.u32 %v605, 16
      %v3812 = vrot.slane %v3810, 4
      %v3813 = vshll.u32 %v605, 16
      %v3815 = vrot.slane %v3813, 5
      %v3816 = vor.u32 %v3812, %v3815
      %v3817 = vrot.slane %v3816, 4
      %v3819 = vshll.u32 %v606, 16
      %v3821 = vrot.slane %v3819, 5
      %v3822 = vsel %vm649, %v3817, %v3821
      %v3823 = vshrl.u32 %v606, 16
      %v3825 = vrot.slane %v3823, 4
      %v3826 = vor.u32 %v3825, %v3821
      %v3827 = vrot.slane %v3826, 4
      %v3829 = vshll.u32 %v607, 16
      %v3831 = vrot.slane %v3829, 5
      %v3832 = vsel %vm649, %v3827, %v3831
      %v3834 = vshrl.u32 %v608, 16
      %v3836 = vrot.slane %v3834, 4
      %v3837 = vshll.u32 %v608, 16
      %v3839 = vrot.slane %v3837, 5
      %v3840 = vor.u32 %v3836, %v3839
      %v3841 = vrot.slane %v3840, 4
      %v3843 = vshll.u32 %v609, 16
      %v3845 = vrot.slane %v3843, 5
      %v3846 = vsel %vm649, %v3841, %v3845
      %v3847 = vshrl.u32 %v609, 16
      %v3849 = vrot.slane %v3847, 4
      %v3850 = vor.u32 %v3849, %v3845
      %v3851 = vrot.slane %v3850, 4
      %v3853 = vshll.u32 %v610, 16
      %v3855 = vrot.slane %v3853, 5
      %v3856 = vsel %vm649, %v3851, %v3855
      %v3858 = vshrl.u32 %v611, 16
      %v3860 = vrot.slane %v3858, 4
      %v3861 = vshll.u32 %v611, 16
      %v3863 = vrot.slane %v3861, 5
      %v3864 = vor.u32 %v3860, %v3863
      %v3865 = vrot.slane %v3864, 4
      %v3867 = vshll.u32 %v612, 16
      %v3869 = vrot.slane %v3867, 5
      %v3870 = vsel %vm649, %v3865, %v3869
      %v3871 = vshrl.u32 %v612, 16
      %v3873 = vrot.slane %v3871, 4
      %v3874 = vor.u32 %v3873, %v3869
      %v3875 = vrot.slane %v3874, 4
      %v3877 = vshll.u32 %v613, 16
      %v3879 = vrot.slane %v3877, 5
      %v3880 = vsel %vm649, %v3875, %v3879
      %v3882 = vshrl.u32 %v614, 16
      %v3884 = vrot.slane %v3882, 4
      %v3885 = vshll.u32 %v614, 16
      %v3887 = vrot.slane %v3885, 5
      %v3888 = vor.u32 %v3884, %v3887
      %v3889 = vrot.slane %v3888, 4
      %v3891 = vshll.u32 %v615, 16
      %v3893 = vrot.slane %v3891, 5
      %v3894 = vsel %vm649, %v3889, %v3893
      %v3895 = vshrl.u32 %v615, 16
      %v3897 = vrot.slane %v3895, 4
      %v3898 = vor.u32 %v3897, %v3893
      %v3899 = vrot.slane %v3898, 4
      %v3901 = vshll.u32 %v616, 16
      %v3903 = vrot.slane %v3901, 5
      %v3904 = vsel %vm649, %v3899, %v3903
      %v3906 = vshrl.u32 %v617, 16
      %v3908 = vrot.slane %v3906, 4
      %v3909 = vshll.u32 %v617, 16
      %v3911 = vrot.slane %v3909, 5
      %v3912 = vor.u32 %v3908, %v3911
      %v3913 = vrot.slane %v3912, 4
      %v3915 = vshll.u32 %v618, 16
      %v3917 = vrot.slane %v3915, 5
      %v3918 = vsel %vm649, %v3913, %v3917
      %v3919 = vshrl.u32 %v618, 16
      %v3921 = vrot.slane %v3919, 4
      %v3922 = vor.u32 %v3921, %v3917
      %v3923 = vrot.slane %v3922, 4
      %v3925 = vshll.u32 %v619, 16
      %v3927 = vrot.slane %v3925, 5
      %v3928 = vsel %vm649, %v3923, %v3927
      %v3930 = vshrl.u32 %v620, 16
      %v3932 = vrot.slane %v3930, 4
      %v3933 = vshll.u32 %v620, 16
      %v3935 = vrot.slane %v3933, 5
      %v3936 = vor.u32 %v3932, %v3935
      %v3937 = vrot.slane %v3936, 4
      %v3939 = vshll.u32 %v621, 16
      %v3941 = vrot.slane %v3939, 5
      %v3942 = vsel %vm649, %v3937, %v3941
      %v3943 = vshrl.u32 %v621, 16
      %v3945 = vrot.slane %v3943, 4
      %v3946 = vor.u32 %v3945, %v3941
      %v3947 = vrot.slane %v3946, 4
      %v3949 = vshll.u32 %v622, 16
      %v3951 = vrot.slane %v3949, 5
      %v3952 = vsel %vm649, %v3947, %v3951
      %v3954 = vshrl.u32 %v623, 16
      %v3956 = vrot.slane %v3954, 4
      %v3957 = vshll.u32 %v623, 16
      %v3959 = vrot.slane %v3957, 5
      %v3960 = vor.u32 %v3956, %v3959
      %v3961 = vrot.slane %v3960, 4
      %v3963 = vshll.u32 %v624, 16
      %v3965 = vrot.slane %v3963, 5
      %v3966 = vsel %vm649, %v3961, %v3965
      %v3967 = vshrl.u32 %v624, 16
      %v3969 = vrot.slane %v3967, 4
      %v3970 = vor.u32 %v3969, %v3965
      %v3971 = vrot.slane %v3970, 4
      %v3973 = vshll.u32 %v625, 16
      %v3975 = vrot.slane %v3973, 5
      %v3976 = vsel %vm649, %v3971, %v3975
      %v3978 = vshrl.u32 %v626, 16
      %v3980 = vrot.slane %v3978, 4
      %v3981 = vshll.u32 %v626, 16
      %v3983 = vrot.slane %v3981, 5
      %v3984 = vor.u32 %v3980, %v3983
      %v3985 = vrot.slane %v3984, 4
      %v3987 = vshll.u32 %v627, 16
      %v3989 = vrot.slane %v3987, 5
      %v3990 = vsel %vm649, %v3985, %v3989
      %v3991 = vshrl.u32 %v627, 16
      %v3993 = vrot.slane %v3991, 4
      %v3994 = vor.u32 %v3993, %v3989
      %v3995 = vrot.slane %v3994, 4
      %v3997 = vshll.u32 %v628, 16
      %v3999 = vrot.slane %v3997, 5
      %v4000 = vsel %vm649, %v3995, %v3999
      %v4002 = vshrl.u32 %v629, 16
      %v4004 = vrot.slane %v4002, 4
      %v4005 = vshll.u32 %v629, 16
      %v4007 = vrot.slane %v4005, 5
      %v4008 = vor.u32 %v4004, %v4007
      %v4009 = vrot.slane %v4008, 4
      %v4011 = vshll.u32 %v630, 16
      %v4013 = vrot.slane %v4011, 5
      %v4014 = vsel %vm649, %v4009, %v4013
      %v4015 = vshrl.u32 %v630, 16
      %v4017 = vrot.slane %v4015, 4
      %v4018 = vor.u32 %v4017, %v4013
      %v4019 = vrot.slane %v4018, 4
      %v4021 = vshll.u32 %v631, 16
      %v4023 = vrot.slane %v4021, 5
      %v4024 = vsel %vm649, %v4019, %v4023
      %v4026 = vshrl.u32 %v632, 16
      %v4028 = vrot.slane %v4026, 4
      %v4029 = vshll.u32 %v632, 16
      %v4031 = vrot.slane %v4029, 5
      %v4032 = vor.u32 %v4028, %v4031
      %v4033 = vrot.slane %v4032, 4
      %v4035 = vshll.u32 %v633, 16
      %v4037 = vrot.slane %v4035, 5
      %v4038 = vsel %vm649, %v4033, %v4037
      %v4039 = vshrl.u32 %v633, 16
      %v4041 = vrot.slane %v4039, 4
      %v4042 = vor.u32 %v4041, %v4037
      %v4043 = vrot.slane %v4042, 4
      %v4045 = vshll.u32 %v634, 16
      %v4047 = vrot.slane %v4045, 5
      %v4048 = vsel %vm649, %v4043, %v4047
      %v4050 = vshrl.u32 %v635, 16
      %v4052 = vrot.slane %v4050, 4
      %v4053 = vshll.u32 %v635, 16
      %v4055 = vrot.slane %v4053, 5
      %v4056 = vor.u32 %v4052, %v4055
      %v4057 = vrot.slane %v4056, 4
      %v4059 = vshll.u32 %v636, 16
      %v4061 = vrot.slane %v4059, 5
      %v4062 = vsel %vm649, %v4057, %v4061
      %v4063 = vshrl.u32 %v636, 16
      %v4065 = vrot.slane %v4063, 4
      %v4066 = vor.u32 %v4065, %v4061
      %v4067 = vrot.slane %v4066, 4
      %v4069 = vshll.u32 %v637, 16
      %v4071 = vrot.slane %v4069, 5
      %v4072 = vsel %vm649, %v4067, %v4071
      %v4074 = vshrl.u32 %v638, 16
      %v4076 = vrot.slane %v4074, 4
      %v4077 = vshll.u32 %v638, 16
      %v4079 = vrot.slane %v4077, 5
      %v4080 = vor.u32 %v4076, %v4079
      %v4081 = vrot.slane %v4080, 4
      %v4083 = vshll.u32 %v639, 16
      %v4085 = vrot.slane %v4083, 5
      %v4086 = vsel %vm649, %v4081, %v4085
      %v4087 = vshrl.u32 %v639, 16
      %v4089 = vrot.slane %v4087, 4
      %v4090 = vor.u32 %v4089, %v4085
      %v4091 = vrot.slane %v4090, 4
      %v4093 = vshll.u32 %v640, 16
      %v4095 = vrot.slane %v4093, 5
      %v4096 = vsel %vm649, %v4091, %v4095
      %v4145 = vrot.slane %v593, 5
      %v4146 = vrot.slane %v4145, 4
      %v4147 = vrot.slane %v594, 5
      %v4148 = vsel %vm2380, %v4146, %v4147
      %v4149 = vrot.slane %v4147, 4
      %v4150 = vrot.slane %v595, 5
      %v4151 = vsel %vm2380, %v4149, %v4150
      %v4152 = vrot.slane %v596, 5
      %v4153 = vrot.slane %v4152, 4
      %v4154 = vrot.slane %v597, 5
      %v4155 = vsel %vm2380, %v4153, %v4154
      %v4156 = vrot.slane %v4154, 4
      %v4157 = vrot.slane %v598, 5
      %v4158 = vsel %vm2380, %v4156, %v4157
      %v4159 = vrot.slane %v599, 5
      %v4160 = vrot.slane %v4159, 4
      %v4161 = vrot.slane %v600, 5
      %v4162 = vsel %vm2380, %v4160, %v4161
      %v4163 = vrot.slane %v4161, 4
      %v4164 = vrot.slane %v601, 5
      %v4165 = vsel %vm2380, %v4163, %v4164
      %v4166 = vrot.slane %v602, 5
      %v4167 = vrot.slane %v4166, 4
      %v4168 = vrot.slane %v603, 5
      %v4169 = vsel %vm2380, %v4167, %v4168
      %v4170 = vrot.slane %v4168, 4
      %v4171 = vrot.slane %v604, 5
      %v4172 = vsel %vm2380, %v4170, %v4171
      %v4173 = vrot.slane %v605, 5
      %v4174 = vrot.slane %v4173, 4
      %v4175 = vrot.slane %v606, 5
      %v4176 = vsel %vm2380, %v4174, %v4175
      %v4177 = vrot.slane %v4175, 4
      %v4178 = vrot.slane %v607, 5
      %v4179 = vsel %vm2380, %v4177, %v4178
      %v4180 = vrot.slane %v608, 5
      %v4181 = vrot.slane %v4180, 4
      %v4182 = vrot.slane %v609, 5
      %v4183 = vsel %vm2380, %v4181, %v4182
      %v4184 = vrot.slane %v4182, 4
      %v4185 = vrot.slane %v610, 5
      %v4186 = vsel %vm2380, %v4184, %v4185
      %v4187 = vrot.slane %v611, 5
      %v4188 = vrot.slane %v4187, 4
      %v4189 = vrot.slane %v612, 5
      %v4190 = vsel %vm2380, %v4188, %v4189
      %v4191 = vrot.slane %v4189, 4
      %v4192 = vrot.slane %v613, 5
      %v4193 = vsel %vm2380, %v4191, %v4192
      %v4194 = vrot.slane %v614, 5
      %v4195 = vrot.slane %v4194, 4
      %v4196 = vrot.slane %v615, 5
      %v4197 = vsel %vm2380, %v4195, %v4196
      %v4198 = vrot.slane %v4196, 4
      %v4199 = vrot.slane %v616, 5
      %v4200 = vsel %vm2380, %v4198, %v4199
      %v4201 = vrot.slane %v617, 5
      %v4202 = vrot.slane %v4201, 4
      %v4203 = vrot.slane %v618, 5
      %v4204 = vsel %vm2380, %v4202, %v4203
      %v4205 = vrot.slane %v4203, 4
      %v4206 = vrot.slane %v619, 5
      %v4207 = vsel %vm2380, %v4205, %v4206
      %v4208 = vrot.slane %v620, 5
      %v4209 = vrot.slane %v4208, 4
      %v4210 = vrot.slane %v621, 5
      %v4211 = vsel %vm2380, %v4209, %v4210
      %v4212 = vrot.slane %v4210, 4
      %v4213 = vrot.slane %v622, 5
      %v4214 = vsel %vm2380, %v4212, %v4213
      %v4215 = vrot.slane %v623, 5
      %v4216 = vrot.slane %v4215, 4
      %v4217 = vrot.slane %v624, 5
      %v4218 = vsel %vm2380, %v4216, %v4217
      %v4219 = vrot.slane %v4217, 4
      %v4220 = vrot.slane %v625, 5
      %v4221 = vsel %vm2380, %v4219, %v4220
      %v4222 = vrot.slane %v626, 5
      %v4223 = vrot.slane %v4222, 4
      %v4224 = vrot.slane %v627, 5
      %v4225 = vsel %vm2380, %v4223, %v4224
      %v4226 = vrot.slane %v4224, 4
      %v4227 = vrot.slane %v628, 5
      %v4228 = vsel %vm2380, %v4226, %v4227
      %v4229 = vrot.slane %v629, 5
      %v4230 = vrot.slane %v4229, 4
      %v4231 = vrot.slane %v630, 5
      %v4232 = vsel %vm2380, %v4230, %v4231
      %v4233 = vrot.slane %v4231, 4
      %v4234 = vrot.slane %v631, 5
      %v4235 = vsel %vm2380, %v4233, %v4234
      %v4236 = vrot.slane %v632, 5
      %v4237 = vrot.slane %v4236, 4
      %v4238 = vrot.slane %v633, 5
      %v4239 = vsel %vm2380, %v4237, %v4238
      %v4240 = vrot.slane %v4238, 4
      %v4241 = vrot.slane %v634, 5
      %v4242 = vsel %vm2380, %v4240, %v4241
      %v4243 = vrot.slane %v635, 5
      %v4244 = vrot.slane %v4243, 4
      %v4245 = vrot.slane %v636, 5
      %v4246 = vsel %vm2380, %v4244, %v4245
      %v4247 = vrot.slane %v4245, 4
      %v4248 = vrot.slane %v637, 5
      %v4249 = vsel %vm2380, %v4247, %v4248
      %v4250 = vrot.slane %v638, 5
      %v4251 = vrot.slane %v4250, 4
      %v4252 = vrot.slane %v639, 5
      %v4253 = vsel %vm2380, %v4251, %v4252
      %v4254 = vrot.slane %v4252, 4
      %v4255 = vrot.slane %v640, 5
      %v4256 = vsel %vm2380, %v4254, %v4255
      %v4258 = vshrl.u32 %v641, 16
      %v4260 = vrot.slane %v4258, 4
      %v4261 = vshll.u32 %v641, 16
      %v4263 = vrot.slane %v4261, 5
      %v4264 = vor.u32 %v4260, %v4263
      %v4265 = vrot.slane %v4264, 4
      %v4267 = vshll.u32 %v642, 16
      %v4269 = vrot.slane %v4267, 5
      %v4270 = vsel %vm649, %v4265, %v4269
      %v4271 = vshrl.u32 %v642, 16
      %v4273 = vrot.slane %v4271, 4
      %v4274 = vor.u32 %v4273, %v4269
      %v4275 = vrot.slane %v4274, 4
      %v4277 = vshll.u32 %v643, 16
      %v4279 = vrot.slane %v4277, 5
      %v4280 = vsel %vm649, %v4275, %v4279
      %v4284 = vrot.slane %v641, 5
      %v4285 = vrot.slane %v4284, 4
      %v4286 = vrot.slane %v642, 5
      %v4287 = vsel %vm2380, %v4285, %v4286
      %v4288 = vrot.slane %v4286, 4
      %v4289 = vrot.slane %v643, 5
      %v4290 = vsel %vm2380, %v4288, %v4289
      %v4292 = vshrl.u32 %v644, 16
      %v4294 = vrot.slane %v4292, 4
      %v4295 = vshll.u32 %v644, 16
      %v4297 = vrot.slane %v4295, 5
      %v4298 = vor.u32 %v4294, %v4297
      %v4299 = vrot.slane %v4298, 4
      %v4301 = vshll.u32 %v645, 16
      %v4303 = vrot.slane %v4301, 5
      %v4304 = vsel %vm649, %v4299, %v4303
      %v4305 = vshrl.u32 %v645, 16
      %v4307 = vrot.slane %v4305, 4
      %v4308 = vor.u32 %v4307, %v4303
      %v4309 = vrot.slane %v4308, 4
      %v4311 = vshll.u32 %v646, 16
      %v4313 = vrot.slane %v4311, 5
      %v4314 = vsel %vm649, %v4309, %v4313
      %v4318 = vrot.slane %v644, 5
      %v4319 = vrot.slane %v4318, 4
      %v4320 = vrot.slane %v645, 5
      %v4321 = vsel %vm2380, %v4319, %v4320
      %v4322 = vrot.slane %v4320, 4
      %v4323 = vrot.slane %v646, 5
      %v4324 = vsel %vm2380, %v4322, %v4323
      %v4325 = vunpack.c.l.b16 %v323
      %v4326 = vunpack.c.l.b16 %v324
      %v4327 = vunpack.c.l.b16 %v326
      %v4328 = vunpack.c.l.b16 %v327
      %v4329 = vunpack.c.l.b16 %v329
      %v4330 = vunpack.c.l.b16 %v330
      %v4331 = vunpack.c.l.b16 %v332
      %v4332 = vunpack.c.l.b16 %v333
      %v4333 = vunpack.c.l.b16 %v335
      %v4334 = vunpack.c.l.b16 %v336
      %v4335 = vunpack.c.l.b16 %v338
      %v4336 = vunpack.c.l.b16 %v339
      %v4337 = vunpack.c.l.b16 %v341
      %v4338 = vunpack.c.l.b16 %v342
      %v4339 = vunpack.c.l.b16 %v344
      %v4340 = vunpack.c.l.b16 %v345
      %v4341 = vunpack.c.l.b16 %v347
      %v4342 = vunpack.c.l.b16 %v348
      %v4343 = vunpack.c.l.b16 %v350
      %v4344 = vunpack.c.l.b16 %v351
      %v4345 = vunpack.c.l.b16 %v353
      %v4346 = vunpack.c.l.b16 %v354
      %v4347 = vunpack.c.l.b16 %v356
      %v4348 = vunpack.c.l.b16 %v357
      %v4349 = vunpack.c.l.b16 %v359
      %v4350 = vunpack.c.l.b16 %v360
      %v4351 = vunpack.c.l.b16 %v362
      %v4352 = vunpack.c.l.b16 %v363
      %v4353 = vunpack.c.l.b16 %v365
      %v4354 = vunpack.c.l.b16 %v366
      %v4355 = vunpack.c.l.b16 %v368
      %v4356 = vunpack.c.l.b16 %v369
      %v4357 = vunpack.c.l.b16 %v377
      %v4358 = vunpack.c.l.b16 %v378
      %v4359 = vunpack.c.l.b16 %v380
      %v4360 = vunpack.c.l.b16 %v381
      %v4361 = vunpack.c.l.b16 %v383
      %v4362 = vunpack.c.l.b16 %v384
      %v4363 = vunpack.c.l.b16 %v386
      %v4364 = vunpack.c.l.b16 %v387
      %v4365 = vunpack.c.l.b16 %v389
      %v4366 = vunpack.c.l.b16 %v390
      %v4367 = vunpack.c.l.b16 %v392
      %v4368 = vunpack.c.l.b16 %v393
      %v4369 = vunpack.c.l.b16 %v395
      %v4370 = vunpack.c.l.b16 %v396
      %v4371 = vunpack.c.l.b16 %v398
      %v4372 = vunpack.c.l.b16 %v399
      %v4373 = vunpack.c.l.b16 %v401
      %v4374 = vunpack.c.l.b16 %v402
      %v4375 = vunpack.c.l.b16 %v404
      %v4376 = vunpack.c.l.b16 %v405
      %v4377 = vunpack.c.l.b16 %v407
      %v4378 = vunpack.c.l.b16 %v408
      %v4379 = vunpack.c.l.b16 %v410
      %v4380 = vunpack.c.l.b16 %v411
      %v4381 = vunpack.c.l.b16 %v413
      %v4382 = vunpack.c.l.b16 %v414
      %v4383 = vunpack.c.l.b16 %v416
      %v4384 = vunpack.c.l.b16 %v417
      %v4385 = vunpack.c.l.b16 %v419
      %v4386 = vunpack.c.l.b16 %v420
      %v4387 = vunpack.c.l.b16 %v422
      %v4388 = vunpack.c.l.b16 %v423
      %v4389 = vunpack.c.l.b16 %v431
      %v4390 = vunpack.c.l.b16 %v432
      %v4391 = vunpack.c.l.b16 %v434
      %v4392 = vunpack.c.l.b16 %v435
      %v4393 = vunpack.c.l.b16 %v437
      %v4394 = vunpack.c.l.b16 %v438
      %v4395 = vunpack.c.l.b16 %v440
      %v4396 = vunpack.c.l.b16 %v441
      %v4397 = vunpack.c.l.b16 %v443
      %v4398 = vunpack.c.l.b16 %v444
      %v4399 = vunpack.c.l.b16 %v446
      %v4400 = vunpack.c.l.b16 %v447
      %v4401 = vunpack.c.l.b16 %v449
      %v4402 = vunpack.c.l.b16 %v450
      %v4403 = vunpack.c.l.b16 %v452
      %v4404 = vunpack.c.l.b16 %v453
      %v4405 = vunpack.c.l.b16 %v455
      %v4406 = vunpack.c.l.b16 %v456
      %v4407 = vunpack.c.l.b16 %v458
      %v4408 = vunpack.c.l.b16 %v459
      %v4409 = vunpack.c.l.b16 %v461
      %v4410 = vunpack.c.l.b16 %v462
      %v4411 = vunpack.c.l.b16 %v464
      %v4412 = vunpack.c.l.b16 %v465
      %v4413 = vunpack.c.l.b16 %v467
      %v4414 = vunpack.c.l.b16 %v468
      %v4415 = vunpack.c.l.b16 %v470
      %v4416 = vunpack.c.l.b16 %v471
      %v4417 = vunpack.c.l.b16 %v473
      %v4418 = vunpack.c.l.b16 %v474
      %v4419 = vunpack.c.l.b16 %v476
      %v4420 = vunpack.c.l.b16 %v477
      %v4421 = vunpack.c.l.b16 %v485
      %v4422 = vunpack.c.l.b16 %v486
      %v4423 = vunpack.c.l.b16 %v488
      %v4424 = vunpack.c.l.b16 %v489
      %v4425 = vunpack.c.l.b16 %v491
      %v4426 = vunpack.c.l.b16 %v492
      %v4427 = vunpack.c.l.b16 %v494
      %v4428 = vunpack.c.l.b16 %v495
      %v4429 = vunpack.c.l.b16 %v497
      %v4430 = vunpack.c.l.b16 %v498
      %v4431 = vunpack.c.l.b16 %v500
      %v4432 = vunpack.c.l.b16 %v501
      %v4433 = vunpack.c.l.b16 %v503
      %v4434 = vunpack.c.l.b16 %v504
      %v4435 = vunpack.c.l.b16 %v506
      %v4436 = vunpack.c.l.b16 %v507
      %v4437 = vunpack.c.l.b16 %v509
      %v4438 = vunpack.c.l.b16 %v510
      %v4439 = vunpack.c.l.b16 %v512
      %v4440 = vunpack.c.l.b16 %v513
      %v4441 = vunpack.c.l.b16 %v515
      %v4442 = vunpack.c.l.b16 %v516
      %v4443 = vunpack.c.l.b16 %v518
      %v4444 = vunpack.c.l.b16 %v519
      %v4445 = vunpack.c.l.b16 %v521
      %v4446 = vunpack.c.l.b16 %v522
      %v4447 = vunpack.c.l.b16 %v524
      %v4448 = vunpack.c.l.b16 %v525
      %v4449 = vunpack.c.l.b16 %v527
      %v4450 = vunpack.c.l.b16 %v528
      %v4451 = vunpack.c.l.b16 %v530
      %v4452 = vunpack.c.l.b16 %v531
      %v4453 = vpack.c.b16 %v4326, %v4325
      %v4454 = vpack.c.b16 %v4328, %v4327
      %v4455 = vpack.c.b16 %v4330, %v4329
      %v4456 = vpack.c.b16 %v4332, %v4331
      %v4457 = vpack.c.b16 %v4334, %v4333
      %v4458 = vpack.c.b16 %v4336, %v4335
      %v4459 = vpack.c.b16 %v4338, %v4337
      %v4460 = vpack.c.b16 %v4340, %v4339
      %v4461 = vpack.c.b16 %v4342, %v4341
      %v4462 = vpack.c.b16 %v4344, %v4343
      %v4463 = vpack.c.b16 %v4346, %v4345
      %v4464 = vpack.c.b16 %v4348, %v4347
      %v4465 = vpack.c.b16 %v4350, %v4349
      %v4466 = vpack.c.b16 %v4352, %v4351
      %v4467 = vpack.c.b16 %v4354, %v4353
      %v4468 = vpack.c.b16 %v4356, %v4355
      %v4469 = vpack.c.b16 %v4358, %v4357
      %v4470 = vpack.c.b16 %v4360, %v4359
      %v4471 = vpack.c.b16 %v4362, %v4361
      %v4472 = vpack.c.b16 %v4364, %v4363
      %v4473 = vpack.c.b16 %v4366, %v4365
      %v4474 = vpack.c.b16 %v4368, %v4367
      %v4475 = vpack.c.b16 %v4370, %v4369
      %v4476 = vpack.c.b16 %v4372, %v4371
      %v4477 = vpack.c.b16 %v4374, %v4373
      %v4478 = vpack.c.b16 %v4376, %v4375
      %v4479 = vpack.c.b16 %v4378, %v4377
      %v4480 = vpack.c.b16 %v4380, %v4379
      %v4481 = vpack.c.b16 %v4382, %v4381
      %v4482 = vpack.c.b16 %v4384, %v4383
      %v4483 = vpack.c.b16 %v4386, %v4385
      %v4484 = vpack.c.b16 %v4388, %v4387
      %v4485 = vpack.c.b16 %v4390, %v4389
      %v4486 = vpack.c.b16 %v4392, %v4391
      %v4487 = vpack.c.b16 %v4394, %v4393
      %v4488 = vpack.c.b16 %v4396, %v4395
      %v4489 = vpack.c.b16 %v4398, %v4397
      %v4490 = vpack.c.b16 %v4400, %v4399
      %v4491 = vpack.c.b16 %v4402, %v4401
      %v4492 = vpack.c.b16 %v4404, %v4403
      %v4493 = vpack.c.b16 %v4406, %v4405
      %v4494 = vpack.c.b16 %v4408, %v4407
      %v4495 = vpack.c.b16 %v4410, %v4409
      %v4496 = vpack.c.b16 %v4412, %v4411
      %v4497 = vpack.c.b16 %v4414, %v4413
      %v4498 = vpack.c.b16 %v4416, %v4415
      %v4499 = vpack.c.b16 %v4418, %v4417
      %v4500 = vpack.c.b16 %v4420, %v4419
      %v4501 = vpack.c.b16 %v4422, %v4421
      %v4502 = vpack.c.b16 %v4424, %v4423
      %v4503 = vpack.c.b16 %v4426, %v4425
      %v4504 = vpack.c.b16 %v4428, %v4427
      %v4505 = vpack.c.b16 %v4430, %v4429
      %v4506 = vpack.c.b16 %v4432, %v4431
      %v4507 = vpack.c.b16 %v4434, %v4433
      %v4508 = vpack.c.b16 %v4436, %v4435
      %v4509 = vpack.c.b16 %v4438, %v4437
      %v4510 = vpack.c.b16 %v4440, %v4439
      %v4511 = vpack.c.b16 %v4442, %v4441
      %v4512 = vpack.c.b16 %v4444, %v4443
      %v4513 = vpack.c.b16 %v4446, %v4445
      %v4514 = vpack.c.b16 %v4448, %v4447
      %v4515 = vpack.c.b16 %v4450, %v4449
      %v4516 = vpack.c.b16 %v4452, %v4451
      %v4517 = vunpack.c.l.b16 %v663
      %v4518 = vunpack.c.l.b16 %v673
      %v4519 = vunpack.c.l.b16 %v687
      %v4520 = vunpack.c.l.b16 %v697
      %v4521 = vunpack.c.l.b16 %v711
      %v4522 = vunpack.c.l.b16 %v721
      %v4523 = vunpack.c.l.b16 %v735
      %v4524 = vunpack.c.l.b16 %v745
      %v4525 = vunpack.c.l.b16 %v759
      %v4526 = vunpack.c.l.b16 %v769
      %v4527 = vunpack.c.l.b16 %v783
      %v4528 = vunpack.c.l.b16 %v793
      %v4529 = vunpack.c.l.b16 %v807
      %v4530 = vunpack.c.l.b16 %v817
      %v4531 = vunpack.c.l.b16 %v831
      %v4532 = vunpack.c.l.b16 %v841
      %v4533 = vunpack.c.l.b16 %v855
      %v4534 = vunpack.c.l.b16 %v865
      %v4535 = vunpack.c.l.b16 %v879
      %v4536 = vunpack.c.l.b16 %v889
      %v4537 = vunpack.c.l.b16 %v903
      %v4538 = vunpack.c.l.b16 %v913
      %v4539 = vunpack.c.l.b16 %v927
      %v4540 = vunpack.c.l.b16 %v937
      %v4541 = vunpack.c.l.b16 %v951
      %v4542 = vunpack.c.l.b16 %v961
      %v4543 = vunpack.c.l.b16 %v975
      %v4544 = vunpack.c.l.b16 %v985
      %v4545 = vunpack.c.l.b16 %v999
      %v4546 = vunpack.c.l.b16 %v1009
      %v4547 = vunpack.c.l.b16 %v1023
      %v4548 = vunpack.c.l.b16 %v1033
      %v4549 = vunpack.c.l.b16 %v1047
      %v4550 = vunpack.c.l.b16 %v1057
      %v4551 = vunpack.c.l.b16 %v1071
      %v4552 = vunpack.c.l.b16 %v1081
      %v4553 = vunpack.c.l.b16 %v1095
      %v4554 = vunpack.c.l.b16 %v1105
      %v4555 = vunpack.c.l.b16 %v1119
      %v4556 = vunpack.c.l.b16 %v1129
      %v4557 = vunpack.c.l.b16 %v1143
      %v4558 = vunpack.c.l.b16 %v1153
      %v4559 = vunpack.c.l.b16 %v1167
      %v4560 = vunpack.c.l.b16 %v1177
      %v4561 = vunpack.c.l.b16 %v1191
      %v4562 = vunpack.c.l.b16 %v1201
      %v4563 = vunpack.c.l.b16 %v1215
      %v4564 = vunpack.c.l.b16 %v1225
      %v4565 = vunpack.c.l.b16 %v1239
      %v4566 = vunpack.c.l.b16 %v1249
      %v4567 = vunpack.c.l.b16 %v1263
      %v4568 = vunpack.c.l.b16 %v1273
      %v4569 = vunpack.c.l.b16 %v1287
      %v4570 = vunpack.c.l.b16 %v1297
      %v4571 = vunpack.c.l.b16 %v1311
      %v4572 = vunpack.c.l.b16 %v1321
      %v4573 = vunpack.c.l.b16 %v1335
      %v4574 = vunpack.c.l.b16 %v1345
      %v4575 = vunpack.c.l.b16 %v1359
      %v4576 = vunpack.c.l.b16 %v1369
      %v4577 = vunpack.c.l.b16 %v1383
      %v4578 = vunpack.c.l.b16 %v1393
      %v4579 = vunpack.c.l.b16 %v1407
      %v4580 = vunpack.c.l.b16 %v1417
      %v4581 = vunpack.c.l.b16 %v1431
      %v4582 = vunpack.c.l.b16 %v1441
      %v4583 = vunpack.c.l.b16 %v1455
      %v4584 = vunpack.c.l.b16 %v1465
      %v4585 = vunpack.c.l.b16 %v1479
      %v4586 = vunpack.c.l.b16 %v1489
      %v4587 = vunpack.c.l.b16 %v1503
      %v4588 = vunpack.c.l.b16 %v1513
      %v4589 = vunpack.c.l.b16 %v1527
      %v4590 = vunpack.c.l.b16 %v1537
      %v4591 = vunpack.c.l.b16 %v1551
      %v4592 = vunpack.c.l.b16 %v1561
      %v4593 = vunpack.c.l.b16 %v1575
      %v4594 = vunpack.c.l.b16 %v1585
      %v4595 = vunpack.c.l.b16 %v1599
      %v4596 = vunpack.c.l.b16 %v1609
      %v4597 = vunpack.c.l.b16 %v1623
      %v4598 = vunpack.c.l.b16 %v1633
      %v4599 = vunpack.c.l.b16 %v1647
      %v4600 = vunpack.c.l.b16 %v1657
      %v4601 = vunpack.c.l.b16 %v1671
      %v4602 = vunpack.c.l.b16 %v1681
      %v4603 = vunpack.c.l.b16 %v1695
      %v4604 = vunpack.c.l.b16 %v1705
      %v4605 = vunpack.c.l.b16 %v1719
      %v4606 = vunpack.c.l.b16 %v1729
      %v4607 = vunpack.c.l.b16 %v1743
      %v4608 = vunpack.c.l.b16 %v1753
      %v4609 = vunpack.c.l.b16 %v1767
      %v4610 = vunpack.c.l.b16 %v1777
      %v4611 = vunpack.c.l.b16 %v1791
      %v4612 = vunpack.c.l.b16 %v1801
      %v4613 = vunpack.c.l.b16 %v1815
      %v4614 = vunpack.c.l.b16 %v1825
      %v4615 = vunpack.c.l.b16 %v1839
      %v4616 = vunpack.c.l.b16 %v1849
      %v4617 = vunpack.c.l.b16 %v1863
      %v4618 = vunpack.c.l.b16 %v1873
      %v4619 = vunpack.c.l.b16 %v1887
      %v4620 = vunpack.c.l.b16 %v1897
      %v4621 = vunpack.c.l.b16 %v1911
      %v4622 = vunpack.c.l.b16 %v1921
      %v4623 = vunpack.c.l.b16 %v1935
      %v4624 = vunpack.c.l.b16 %v1945
      %v4625 = vunpack.c.l.b16 %v1959
      %v4626 = vunpack.c.l.b16 %v1969
      %v4627 = vunpack.c.l.b16 %v1983
      %v4628 = vunpack.c.l.b16 %v1993
      %v4629 = vunpack.c.l.b16 %v2007
      %v4630 = vunpack.c.l.b16 %v2017
      %v4631 = vunpack.c.l.b16 %v2031
      %v4632 = vunpack.c.l.b16 %v2041
      %v4633 = vunpack.c.l.b16 %v2055
      %v4634 = vunpack.c.l.b16 %v2065
      %v4635 = vunpack.c.l.b16 %v2079
      %v4636 = vunpack.c.l.b16 %v2089
      %v4637 = vunpack.c.l.b16 %v2103
      %v4638 = vunpack.c.l.b16 %v2113
      %v4639 = vunpack.c.l.b16 %v2127
      %v4640 = vunpack.c.l.b16 %v2137
      %v4641 = vunpack.c.l.b16 %v2151
      %v4642 = vunpack.c.l.b16 %v2161
      %v4643 = vunpack.c.l.b16 %v2175
      %v4644 = vunpack.c.l.b16 %v2185
      %v4645 = vpack.c.b16 %v4518, %v4517
      %v4646 = vpack.c.b16 %v4520, %v4519
      %v4647 = vpack.c.b16 %v4522, %v4521
      %v4648 = vpack.c.b16 %v4524, %v4523
      %v4649 = vpack.c.b16 %v4526, %v4525
      %v4650 = vpack.c.b16 %v4528, %v4527
      %v4651 = vpack.c.b16 %v4530, %v4529
      %v4652 = vpack.c.b16 %v4532, %v4531
      %v4653 = vpack.c.b16 %v4534, %v4533
      %v4654 = vpack.c.b16 %v4536, %v4535
      %v4655 = vpack.c.b16 %v4538, %v4537
      %v4656 = vpack.c.b16 %v4540, %v4539
      %v4657 = vpack.c.b16 %v4542, %v4541
      %v4658 = vpack.c.b16 %v4544, %v4543
      %v4659 = vpack.c.b16 %v4546, %v4545
      %v4660 = vpack.c.b16 %v4548, %v4547
      %v4661 = vpack.c.b16 %v4550, %v4549
      %v4662 = vpack.c.b16 %v4552, %v4551
      %v4663 = vpack.c.b16 %v4554, %v4553
      %v4664 = vpack.c.b16 %v4556, %v4555
      %v4665 = vpack.c.b16 %v4558, %v4557
      %v4666 = vpack.c.b16 %v4560, %v4559
      %v4667 = vpack.c.b16 %v4562, %v4561
      %v4668 = vpack.c.b16 %v4564, %v4563
      %v4669 = vpack.c.b16 %v4566, %v4565
      %v4670 = vpack.c.b16 %v4568, %v4567
      %v4671 = vpack.c.b16 %v4570, %v4569
      %v4672 = vpack.c.b16 %v4572, %v4571
      %v4673 = vpack.c.b16 %v4574, %v4573
      %v4674 = vpack.c.b16 %v4576, %v4575
      %v4675 = vpack.c.b16 %v4578, %v4577
      %v4676 = vpack.c.b16 %v4580, %v4579
      %v4677 = vpack.c.b16 %v4582, %v4581
      %v4678 = vpack.c.b16 %v4584, %v4583
      %v4679 = vpack.c.b16 %v4586, %v4585
      %v4680 = vpack.c.b16 %v4588, %v4587
      %v4681 = vpack.c.b16 %v4590, %v4589
      %v4682 = vpack.c.b16 %v4592, %v4591
      %v4683 = vpack.c.b16 %v4594, %v4593
      %v4684 = vpack.c.b16 %v4596, %v4595
      %v4685 = vpack.c.b16 %v4598, %v4597
      %v4686 = vpack.c.b16 %v4600, %v4599
      %v4687 = vpack.c.b16 %v4602, %v4601
      %v4688 = vpack.c.b16 %v4604, %v4603
      %v4689 = vpack.c.b16 %v4606, %v4605
      %v4690 = vpack.c.b16 %v4608, %v4607
      %v4691 = vpack.c.b16 %v4610, %v4609
      %v4692 = vpack.c.b16 %v4612, %v4611
      %v4693 = vpack.c.b16 %v4614, %v4613
      %v4694 = vpack.c.b16 %v4616, %v4615
      %v4695 = vpack.c.b16 %v4618, %v4617
      %v4696 = vpack.c.b16 %v4620, %v4619
      %v4697 = vpack.c.b16 %v4622, %v4621
      %v4698 = vpack.c.b16 %v4624, %v4623
      %v4699 = vpack.c.b16 %v4626, %v4625
      %v4700 = vpack.c.b16 %v4628, %v4627
      %v4701 = vpack.c.b16 %v4630, %v4629
      %v4702 = vpack.c.b16 %v4632, %v4631
      %v4703 = vpack.c.b16 %v4634, %v4633
      %v4704 = vpack.c.b16 %v4636, %v4635
      %v4705 = vpack.c.b16 %v4638, %v4637
      %v4706 = vpack.c.b16 %v4640, %v4639
      %v4707 = vpack.c.b16 %v4642, %v4641
      %v4708 = vpack.c.b16 %v4644, %v4643
      %4709 = vrot.lane.b32.xlu0 %v4645, 4
      %v4710 = vpop.permute.xlu0 %4709
      %4711 = vrot.lane.b32.xlu0 %v4646, 4
      %v4712 = vpop.permute.xlu0 %4711
      %4713 = vrot.lane.b32.xlu0 %v4647, 4
      %v4714 = vpop.permute.xlu0 %4713
      %4715 = vrot.lane.b32.xlu0 %v4648, 4
      %v4716 = vpop.permute.xlu0 %4715
      %4717 = vrot.lane.b32.xlu0 %v4649, 4
      %v4718 = vpop.permute.xlu0 %4717
      %4719 = vrot.lane.b32.xlu0 %v4650, 4
      %v4720 = vpop.permute.xlu0 %4719
      %4721 = vrot.lane.b32.xlu0 %v4651, 4
      %v4722 = vpop.permute.xlu0 %4721
      %4723 = vrot.lane.b32.xlu0 %v4652, 4
      %v4724 = vpop.permute.xlu0 %4723
      %4725 = vrot.lane.b32.xlu0 %v4653, 4
      %v4726 = vpop.permute.xlu0 %4725
      %4727 = vrot.lane.b32.xlu0 %v4654, 4
      %v4728 = vpop.permute.xlu0 %4727
      %4729 = vrot.lane.b32.xlu0 %v4655, 4
      %v4730 = vpop.permute.xlu0 %4729
      %4731 = vrot.lane.b32.xlu0 %v4656, 4
      %v4732 = vpop.permute.xlu0 %4731
      %4733 = vrot.lane.b32.xlu0 %v4657, 4
      %v4734 = vpop.permute.xlu0 %4733
      %4735 = vrot.lane.b32.xlu0 %v4658, 4
      %v4736 = vpop.permute.xlu0 %4735
      %4737 = vrot.lane.b32.xlu0 %v4659, 4
      %v4738 = vpop.permute.xlu0 %4737
      %4739 = vrot.lane.b32.xlu0 %v4660, 4
      %v4740 = vpop.permute.xlu0 %4739
      %4741 = vrot.lane.b32.xlu0 %v4661, 4
      %v4742 = vpop.permute.xlu0 %4741
      %4743 = vrot.lane.b32.xlu0 %v4662, 4
      %v4744 = vpop.permute.xlu0 %4743
      %4745 = vrot.lane.b32.xlu0 %v4663, 4
      %v4746 = vpop.permute.xlu0 %4745
      %4747 = vrot.lane.b32.xlu0 %v4664, 4
      %v4748 = vpop.permute.xlu0 %4747
      %4749 = vrot.lane.b32.xlu0 %v4665, 4
      %v4750 = vpop.permute.xlu0 %4749
      %4751 = vrot.lane.b32.xlu0 %v4666, 4
      %v4752 = vpop.permute.xlu0 %4751
      %4753 = vrot.lane.b32.xlu0 %v4667, 4
      %v4754 = vpop.permute.xlu0 %4753
      %4755 = vrot.lane.b32.xlu0 %v4668, 4
      %v4756 = vpop.permute.xlu0 %4755
      %4757 = vrot.lane.b32.xlu0 %v4669, 4
      %v4758 = vpop.permute.xlu0 %4757
      %4759 = vrot.lane.b32.xlu0 %v4670, 4
      %v4760 = vpop.permute.xlu0 %4759
      %4761 = vrot.lane.b32.xlu0 %v4671, 4
      %v4762 = vpop.permute.xlu0 %4761
      %4763 = vrot.lane.b32.xlu0 %v4672, 4
      %v4764 = vpop.permute.xlu0 %4763
      %4765 = vrot.lane.b32.xlu0 %v4673, 4
      %v4766 = vpop.permute.xlu0 %4765
      %4767 = vrot.lane.b32.xlu0 %v4674, 4
      %v4768 = vpop.permute.xlu0 %4767
      %4769 = vrot.lane.b32.xlu0 %v4675, 4
      %v4770 = vpop.permute.xlu0 %4769
      %4771 = vrot.lane.b32.xlu0 %v4676, 4
      %v4772 = vpop.permute.xlu0 %4771
      %4773 = vrot.lane.b32.xlu0 %v4677, 4
      %v4774 = vpop.permute.xlu0 %4773
      %4775 = vrot.lane.b32.xlu0 %v4678, 4
      %v4776 = vpop.permute.xlu0 %4775
      %4777 = vrot.lane.b32.xlu0 %v4679, 4
      %v4778 = vpop.permute.xlu0 %4777
      %4779 = vrot.lane.b32.xlu0 %v4680, 4
      %v4780 = vpop.permute.xlu0 %4779
      %4781 = vrot.lane.b32.xlu0 %v4681, 4
      %v4782 = vpop.permute.xlu0 %4781
      %4783 = vrot.lane.b32.xlu0 %v4682, 4
      %v4784 = vpop.permute.xlu0 %4783
      %4785 = vrot.lane.b32.xlu0 %v4683, 4
      %v4786 = vpop.permute.xlu0 %4785
      %4787 = vrot.lane.b32.xlu0 %v4684, 4
      %v4788 = vpop.permute.xlu0 %4787
      %4789 = vrot.lane.b32.xlu0 %v4685, 4
      %v4790 = vpop.permute.xlu0 %4789
      %4791 = vrot.lane.b32.xlu0 %v4686, 4
      %v4792 = vpop.permute.xlu0 %4791
      %4793 = vrot.lane.b32.xlu0 %v4687, 4
      %v4794 = vpop.permute.xlu0 %4793
      %4795 = vrot.lane.b32.xlu0 %v4688, 4
      %v4796 = vpop.permute.xlu0 %4795
      %4797 = vrot.lane.b32.xlu0 %v4689, 4
      %v4798 = vpop.permute.xlu0 %4797
      %4799 = vrot.lane.b32.xlu0 %v4690, 4
      %v4800 = vpop.permute.xlu0 %4799
      %4801 = vrot.lane.b32.xlu0 %v4691, 4
      %v4802 = vpop.permute.xlu0 %4801
      %4803 = vrot.lane.b32.xlu0 %v4692, 4
      %v4804 = vpop.permute.xlu0 %4803
      %4805 = vrot.lane.b32.xlu0 %v4693, 4
      %v4806 = vpop.permute.xlu0 %4805
      %4807 = vrot.lane.b32.xlu0 %v4694, 4
      %v4808 = vpop.permute.xlu0 %4807
      %4809 = vrot.lane.b32.xlu0 %v4695, 4
      %v4810 = vpop.permute.xlu0 %4809
      %4811 = vrot.lane.b32.xlu0 %v4696, 4
      %v4812 = vpop.permute.xlu0 %4811
      %4813 = vrot.lane.b32.xlu0 %v4697, 4
      %v4814 = vpop.permute.xlu0 %4813
      %4815 = vrot.lane.b32.xlu0 %v4698, 4
      %v4816 = vpop.permute.xlu0 %4815
      %4817 = vrot.lane.b32.xlu0 %v4699, 4
      %v4818 = vpop.permute.xlu0 %4817
      %4819 = vrot.lane.b32.xlu0 %v4700, 4
      %v4820 = vpop.permute.xlu0 %4819
      %4821 = vrot.lane.b32.xlu0 %v4701, 4
      %v4822 = vpop.permute.xlu0 %4821
      %4823 = vrot.lane.b32.xlu0 %v4702, 4
      %v4824 = vpop.permute.xlu0 %4823
      %4825 = vrot.lane.b32.xlu0 %v4703, 4
      %v4826 = vpop.permute.xlu0 %4825
      %4827 = vrot.lane.b32.xlu0 %v4704, 4
      %v4828 = vpop.permute.xlu0 %4827
      %4829 = vrot.lane.b32.xlu0 %v4705, 4
      %v4830 = vpop.permute.xlu0 %4829
      %4831 = vrot.lane.b32.xlu0 %v4706, 4
      %v4832 = vpop.permute.xlu0 %4831
      %4833 = vrot.lane.b32.xlu0 %v4707, 4
      %v4834 = vpop.permute.xlu0 %4833
      %4835 = vrot.lane.b32.xlu0 %v4708, 4
      %v4836 = vpop.permute.xlu0 %4835
      %v4837 = vunpack.c.l.b16 %v2384
      %v4838 = vunpack.c.l.b16 %v2387
      %v4839 = vunpack.c.l.b16 %v2391
      %v4840 = vunpack.c.l.b16 %v2394
      %v4841 = vunpack.c.l.b16 %v2398
      %v4842 = vunpack.c.l.b16 %v2401
      %v4843 = vunpack.c.l.b16 %v2405
      %v4844 = vunpack.c.l.b16 %v2408
      %v4845 = vunpack.c.l.b16 %v2412
      %v4846 = vunpack.c.l.b16 %v2415
      %v4847 = vunpack.c.l.b16 %v2419
      %v4848 = vunpack.c.l.b16 %v2422
      %v4849 = vunpack.c.l.b16 %v2426
      %v4850 = vunpack.c.l.b16 %v2429
      %v4851 = vunpack.c.l.b16 %v2433
      %v4852 = vunpack.c.l.b16 %v2436
      %v4853 = vunpack.c.l.b16 %v2440
      %v4854 = vunpack.c.l.b16 %v2443
      %v4855 = vunpack.c.l.b16 %v2447
      %v4856 = vunpack.c.l.b16 %v2450
      %v4857 = vunpack.c.l.b16 %v2454
      %v4858 = vunpack.c.l.b16 %v2457
      %v4859 = vunpack.c.l.b16 %v2461
      %v4860 = vunpack.c.l.b16 %v2464
      %v4861 = vunpack.c.l.b16 %v2468
      %v4862 = vunpack.c.l.b16 %v2471
      %v4863 = vunpack.c.l.b16 %v2475
      %v4864 = vunpack.c.l.b16 %v2478
      %v4865 = vunpack.c.l.b16 %v2482
      %v4866 = vunpack.c.l.b16 %v2485
      %v4867 = vunpack.c.l.b16 %v2489
      %v4868 = vunpack.c.l.b16 %v2492
      %v4869 = vunpack.c.l.b16 %v2496
      %v4870 = vunpack.c.l.b16 %v2499
      %v4871 = vunpack.c.l.b16 %v2503
      %v4872 = vunpack.c.l.b16 %v2506
      %v4873 = vunpack.c.l.b16 %v2510
      %v4874 = vunpack.c.l.b16 %v2513
      %v4875 = vunpack.c.l.b16 %v2517
      %v4876 = vunpack.c.l.b16 %v2520
      %v4877 = vunpack.c.l.b16 %v2524
      %v4878 = vunpack.c.l.b16 %v2527
      %v4879 = vunpack.c.l.b16 %v2531
      %v4880 = vunpack.c.l.b16 %v2534
      %v4881 = vunpack.c.l.b16 %v2538
      %v4882 = vunpack.c.l.b16 %v2541
      %v4883 = vunpack.c.l.b16 %v2545
      %v4884 = vunpack.c.l.b16 %v2548
      %v4885 = vunpack.c.l.b16 %v2552
      %v4886 = vunpack.c.l.b16 %v2555
      %v4887 = vunpack.c.l.b16 %v2559
      %v4888 = vunpack.c.l.b16 %v2562
      %v4889 = vunpack.c.l.b16 %v2566
      %v4890 = vunpack.c.l.b16 %v2569
      %v4891 = vunpack.c.l.b16 %v2573
      %v4892 = vunpack.c.l.b16 %v2576
      %v4893 = vunpack.c.l.b16 %v2580
      %v4894 = vunpack.c.l.b16 %v2583
      %v4895 = vunpack.c.l.b16 %v2587
      %v4896 = vunpack.c.l.b16 %v2590
      %v4897 = vunpack.c.l.b16 %v2594
      %v4898 = vunpack.c.l.b16 %v2597
      %v4899 = vunpack.c.l.b16 %v2601
      %v4900 = vunpack.c.l.b16 %v2604
      %v4901 = vunpack.c.l.b16 %v2608
      %v4902 = vunpack.c.l.b16 %v2611
      %v4903 = vunpack.c.l.b16 %v2615
      %v4904 = vunpack.c.l.b16 %v2618
      %v4905 = vunpack.c.l.b16 %v2622
      %v4906 = vunpack.c.l.b16 %v2625
      %v4907 = vunpack.c.l.b16 %v2629
      %v4908 = vunpack.c.l.b16 %v2632
      %v4909 = vunpack.c.l.b16 %v2636
      %v4910 = vunpack.c.l.b16 %v2639
      %v4911 = vunpack.c.l.b16 %v2643
      %v4912 = vunpack.c.l.b16 %v2646
      %v4913 = vunpack.c.l.b16 %v2650
      %v4914 = vunpack.c.l.b16 %v2653
      %v4915 = vunpack.c.l.b16 %v2657
      %v4916 = vunpack.c.l.b16 %v2660
      %v4917 = vunpack.c.l.b16 %v2664
      %v4918 = vunpack.c.l.b16 %v2667
      %v4919 = vunpack.c.l.b16 %v2671
      %v4920 = vunpack.c.l.b16 %v2674
      %v4921 = vunpack.c.l.b16 %v2678
      %v4922 = vunpack.c.l.b16 %v2681
      %v4923 = vunpack.c.l.b16 %v2685
      %v4924 = vunpack.c.l.b16 %v2688
      %v4925 = vunpack.c.l.b16 %v2692
      %v4926 = vunpack.c.l.b16 %v2695
      %v4927 = vunpack.c.l.b16 %v2699
      %v4928 = vunpack.c.l.b16 %v2702
      %v4929 = vunpack.c.l.b16 %v2706
      %v4930 = vunpack.c.l.b16 %v2709
      %v4931 = vunpack.c.l.b16 %v2713
      %v4932 = vunpack.c.l.b16 %v2716
      %v4933 = vunpack.c.l.b16 %v2720
      %v4934 = vunpack.c.l.b16 %v2723
      %v4935 = vunpack.c.l.b16 %v2727
      %v4936 = vunpack.c.l.b16 %v2730
      %v4937 = vunpack.c.l.b16 %v2734
      %v4938 = vunpack.c.l.b16 %v2737
      %v4939 = vunpack.c.l.b16 %v2741
      %v4940 = vunpack.c.l.b16 %v2744
      %v4941 = vunpack.c.l.b16 %v2748
      %v4942 = vunpack.c.l.b16 %v2751
      %v4943 = vunpack.c.l.b16 %v2755
      %v4944 = vunpack.c.l.b16 %v2758
      %v4945 = vunpack.c.l.b16 %v2762
      %v4946 = vunpack.c.l.b16 %v2765
      %v4947 = vunpack.c.l.b16 %v2769
      %v4948 = vunpack.c.l.b16 %v2772
      %v4949 = vunpack.c.l.b16 %v2776
      %v4950 = vunpack.c.l.b16 %v2779
      %v4951 = vunpack.c.l.b16 %v2783
      %v4952 = vunpack.c.l.b16 %v2786
      %v4953 = vunpack.c.l.b16 %v2790
      %v4954 = vunpack.c.l.b16 %v2793
      %v4955 = vunpack.c.l.b16 %v2797
      %v4956 = vunpack.c.l.b16 %v2800
      %v4957 = vunpack.c.l.b16 %v2804
      %v4958 = vunpack.c.l.b16 %v2807
      %v4959 = vunpack.c.l.b16 %v2811
      %v4960 = vunpack.c.l.b16 %v2814
      %v4961 = vunpack.c.l.b16 %v2818
      %v4962 = vunpack.c.l.b16 %v2821
      %v4963 = vunpack.c.l.b16 %v2825
      %v4964 = vunpack.c.l.b16 %v2828
      %v4965 = vpack.c.b16 %v4838, %v4837
      %v4966 = vpack.c.b16 %v4840, %v4839
      %v4967 = vpack.c.b16 %v4842, %v4841
      %v4968 = vpack.c.b16 %v4844, %v4843
      %v4969 = vpack.c.b16 %v4846, %v4845
      %v4970 = vpack.c.b16 %v4848, %v4847
      %v4971 = vpack.c.b16 %v4850, %v4849
      %v4972 = vpack.c.b16 %v4852, %v4851
      %v4973 = vpack.c.b16 %v4854, %v4853
      %v4974 = vpack.c.b16 %v4856, %v4855
      %v4975 = vpack.c.b16 %v4858, %v4857
      %v4976 = vpack.c.b16 %v4860, %v4859
      %v4977 = vpack.c.b16 %v4862, %v4861
      %v4978 = vpack.c.b16 %v4864, %v4863
      %v4979 = vpack.c.b16 %v4866, %v4865
      %v4980 = vpack.c.b16 %v4868, %v4867
      %v4981 = vpack.c.b16 %v4870, %v4869
      %v4982 = vpack.c.b16 %v4872, %v4871
      %v4983 = vpack.c.b16 %v4874, %v4873
      %v4984 = vpack.c.b16 %v4876, %v4875
      %v4985 = vpack.c.b16 %v4878, %v4877
      %v4986 = vpack.c.b16 %v4880, %v4879
      %v4987 = vpack.c.b16 %v4882, %v4881
      %v4988 = vpack.c.b16 %v4884, %v4883
      %v4989 = vpack.c.b16 %v4886, %v4885
      %v4990 = vpack.c.b16 %v4888, %v4887
      %v4991 = vpack.c.b16 %v4890, %v4889
      %v4992 = vpack.c.b16 %v4892, %v4891
      %v4993 = vpack.c.b16 %v4894, %v4893
      %v4994 = vpack.c.b16 %v4896, %v4895
      %v4995 = vpack.c.b16 %v4898, %v4897
      %v4996 = vpack.c.b16 %v4900, %v4899
      %v4997 = vpack.c.b16 %v4902, %v4901
      %v4998 = vpack.c.b16 %v4904, %v4903
      %v4999 = vpack.c.b16 %v4906, %v4905
      %v5000 = vpack.c.b16 %v4908, %v4907
      %v5001 = vpack.c.b16 %v4910, %v4909
      %v5002 = vpack.c.b16 %v4912, %v4911
      %v5003 = vpack.c.b16 %v4914, %v4913
      %v5004 = vpack.c.b16 %v4916, %v4915
      %v5005 = vpack.c.b16 %v4918, %v4917
      %v5006 = vpack.c.b16 %v4920, %v4919
      %v5007 = vpack.c.b16 %v4922, %v4921
      %v5008 = vpack.c.b16 %v4924, %v4923
      %v5009 = vpack.c.b16 %v4926, %v4925
      %v5010 = vpack.c.b16 %v4928, %v4927
      %v5011 = vpack.c.b16 %v4930, %v4929
      %v5012 = vpack.c.b16 %v4932, %v4931
      %v5013 = vpack.c.b16 %v4934, %v4933
      %v5014 = vpack.c.b16 %v4936, %v4935
      %v5015 = vpack.c.b16 %v4938, %v4937
      %v5016 = vpack.c.b16 %v4940, %v4939
      %v5017 = vpack.c.b16 %v4942, %v4941
      %v5018 = vpack.c.b16 %v4944, %v4943
      %v5019 = vpack.c.b16 %v4946, %v4945
      %v5020 = vpack.c.b16 %v4948, %v4947
      %v5021 = vpack.c.b16 %v4950, %v4949
      %v5022 = vpack.c.b16 %v4952, %v4951
      %v5023 = vpack.c.b16 %v4954, %v4953
      %v5024 = vpack.c.b16 %v4956, %v4955
      %v5025 = vpack.c.b16 %v4958, %v4957
      %v5026 = vpack.c.b16 %v4960, %v4959
      %v5027 = vpack.c.b16 %v4962, %v4961
      %v5028 = vpack.c.b16 %v4964, %v4963
      %5029 = vrot.lane.b32.xlu0 %v4965, 8
      %v5030 = vpop.permute.xlu0 %5029
      %5031 = vrot.lane.b32.xlu0 %v4966, 8
      %v5032 = vpop.permute.xlu0 %5031
      %5033 = vrot.lane.b32.xlu0 %v4967, 8
      %v5034 = vpop.permute.xlu0 %5033
      %5035 = vrot.lane.b32.xlu0 %v4968, 8
      %v5036 = vpop.permute.xlu0 %5035
      %5037 = vrot.lane.b32.xlu0 %v4969, 8
      %v5038 = vpop.permute.xlu0 %5037
      %5039 = vrot.lane.b32.xlu0 %v4970, 8
      %v5040 = vpop.permute.xlu0 %5039
      %5041 = vrot.lane.b32.xlu0 %v4971, 8
      %v5042 = vpop.permute.xlu0 %5041
      %5043 = vrot.lane.b32.xlu0 %v4972, 8
      %v5044 = vpop.permute.xlu0 %5043
      %5045 = vrot.lane.b32.xlu0 %v4973, 8
      %v5046 = vpop.permute.xlu0 %5045
      %5047 = vrot.lane.b32.xlu0 %v4974, 8
      %v5048 = vpop.permute.xlu0 %5047
      %5049 = vrot.lane.b32.xlu0 %v4975, 8
      %v5050 = vpop.permute.xlu0 %5049
      %5051 = vrot.lane.b32.xlu0 %v4976, 8
      %v5052 = vpop.permute.xlu0 %5051
      %5053 = vrot.lane.b32.xlu0 %v4977, 8
      %v5054 = vpop.permute.xlu0 %5053
      %5055 = vrot.lane.b32.xlu0 %v4978, 8
      %v5056 = vpop.permute.xlu0 %5055
      %5057 = vrot.lane.b32.xlu0 %v4979, 8
      %v5058 = vpop.permute.xlu0 %5057
      %5059 = vrot.lane.b32.xlu0 %v4980, 8
      %v5060 = vpop.permute.xlu0 %5059
      %5061 = vrot.lane.b32.xlu0 %v4981, 8
      %v5062 = vpop.permute.xlu0 %5061
      %5063 = vrot.lane.b32.xlu0 %v4982, 8
      %v5064 = vpop.permute.xlu0 %5063
      %5065 = vrot.lane.b32.xlu0 %v4983, 8
      %v5066 = vpop.permute.xlu0 %5065
      %5067 = vrot.lane.b32.xlu0 %v4984, 8
      %v5068 = vpop.permute.xlu0 %5067
      %5069 = vrot.lane.b32.xlu0 %v4985, 8
      %v5070 = vpop.permute.xlu0 %5069
      %5071 = vrot.lane.b32.xlu0 %v4986, 8
      %v5072 = vpop.permute.xlu0 %5071
      %5073 = vrot.lane.b32.xlu0 %v4987, 8
      %v5074 = vpop.permute.xlu0 %5073
      %5075 = vrot.lane.b32.xlu0 %v4988, 8
      %v5076 = vpop.permute.xlu0 %5075
      %5077 = vrot.lane.b32.xlu0 %v4989, 8
      %v5078 = vpop.permute.xlu0 %5077
      %5079 = vrot.lane.b32.xlu0 %v4990, 8
      %v5080 = vpop.permute.xlu0 %5079
      %5081 = vrot.lane.b32.xlu0 %v4991, 8
      %v5082 = vpop.permute.xlu0 %5081
      %5083 = vrot.lane.b32.xlu0 %v4992, 8
      %v5084 = vpop.permute.xlu0 %5083
      %5085 = vrot.lane.b32.xlu0 %v4993, 8
      %v5086 = vpop.permute.xlu0 %5085
      %5087 = vrot.lane.b32.xlu0 %v4994, 8
      %v5088 = vpop.permute.xlu0 %5087
      %5089 = vrot.lane.b32.xlu0 %v4995, 8
      %v5090 = vpop.permute.xlu0 %5089
      %5091 = vrot.lane.b32.xlu0 %v4996, 8
      %v5092 = vpop.permute.xlu0 %5091
      %5093 = vrot.lane.b32.xlu0 %v4997, 8
      %v5094 = vpop.permute.xlu0 %5093
      %5095 = vrot.lane.b32.xlu0 %v4998, 8
      %v5096 = vpop.permute.xlu0 %5095
      %5097 = vrot.lane.b32.xlu0 %v4999, 8
      %v5098 = vpop.permute.xlu0 %5097
      %5099 = vrot.lane.b32.xlu0 %v5000, 8
      %v5100 = vpop.permute.xlu0 %5099
      %5101 = vrot.lane.b32.xlu0 %v5001, 8
      %v5102 = vpop.permute.xlu0 %5101
      %5103 = vrot.lane.b32.xlu0 %v5002, 8
      %v5104 = vpop.permute.xlu0 %5103
      %5105 = vrot.lane.b32.xlu0 %v5003, 8
      %v5106 = vpop.permute.xlu0 %5105
      %5107 = vrot.lane.b32.xlu0 %v5004, 8
      %v5108 = vpop.permute.xlu0 %5107
      %5109 = vrot.lane.b32.xlu0 %v5005, 8
      %v5110 = vpop.permute.xlu0 %5109
      %5111 = vrot.lane.b32.xlu0 %v5006, 8
      %v5112 = vpop.permute.xlu0 %5111
      %5113 = vrot.lane.b32.xlu0 %v5007, 8
      %v5114 = vpop.permute.xlu0 %5113
      %5115 = vrot.lane.b32.xlu0 %v5008, 8
      %v5116 = vpop.permute.xlu0 %5115
      %5117 = vrot.lane.b32.xlu0 %v5009, 8
      %v5118 = vpop.permute.xlu0 %5117
      %5119 = vrot.lane.b32.xlu0 %v5010, 8
      %v5120 = vpop.permute.xlu0 %5119
      %5121 = vrot.lane.b32.xlu0 %v5011, 8
      %v5122 = vpop.permute.xlu0 %5121
      %5123 = vrot.lane.b32.xlu0 %v5012, 8
      %v5124 = vpop.permute.xlu0 %5123
      %5125 = vrot.lane.b32.xlu0 %v5013, 8
      %v5126 = vpop.permute.xlu0 %5125
      %5127 = vrot.lane.b32.xlu0 %v5014, 8
      %v5128 = vpop.permute.xlu0 %5127
      %5129 = vrot.lane.b32.xlu0 %v5015, 8
      %v5130 = vpop.permute.xlu0 %5129
      %5131 = vrot.lane.b32.xlu0 %v5016, 8
      %v5132 = vpop.permute.xlu0 %5131
      %5133 = vrot.lane.b32.xlu0 %v5017, 8
      %v5134 = vpop.permute.xlu0 %5133
      %5135 = vrot.lane.b32.xlu0 %v5018, 8
      %v5136 = vpop.permute.xlu0 %5135
      %5137 = vrot.lane.b32.xlu0 %v5019, 8
      %v5138 = vpop.permute.xlu0 %5137
      %5139 = vrot.lane.b32.xlu0 %v5020, 8
      %v5140 = vpop.permute.xlu0 %5139
      %5141 = vrot.lane.b32.xlu0 %v5021, 8
      %v5142 = vpop.permute.xlu0 %5141
      %5143 = vrot.lane.b32.xlu0 %v5022, 8
      %v5144 = vpop.permute.xlu0 %5143
      %5145 = vrot.lane.b32.xlu0 %v5023, 8
      %v5146 = vpop.permute.xlu0 %5145
      %5147 = vrot.lane.b32.xlu0 %v5024, 8
      %v5148 = vpop.permute.xlu0 %5147
      %5149 = vrot.lane.b32.xlu0 %v5025, 8
      %v5150 = vpop.permute.xlu0 %5149
      %5151 = vrot.lane.b32.xlu0 %v5026, 8
      %v5152 = vpop.permute.xlu0 %5151
      %5153 = vrot.lane.b32.xlu0 %v5027, 8
      %v5154 = vpop.permute.xlu0 %5153
      %5155 = vrot.lane.b32.xlu0 %v5028, 8
      %v5156 = vpop.permute.xlu0 %5155
      %v5157 = vunpack.c.l.b16 %v371
      %v5158 = vunpack.c.l.b16 %v372
      %v5159 = vunpack.c.l.b16 %v425
      %v5160 = vunpack.c.l.b16 %v426
      %v5161 = vunpack.c.l.b16 %v479
      %v5162 = vunpack.c.l.b16 %v480
      %v5163 = vunpack.c.l.b16 %v533
      %v5164 = vunpack.c.l.b16 %v534
      %v5165 = vpack.c.b16 %v5158, %v5157
      %v5166 = vpack.c.b16 %v5160, %v5159
      %v5167 = vpack.c.b16 %v5162, %v5161
      %v5168 = vpack.c.b16 %v5164, %v5163
      %5169 = vrot.lane.b32.xlu0 %v4454, 12
      %v5170 = vpop.permute.xlu0 %5169
      %5171 = vrot.lane.b32.xlu0 %v4455, 12
      %v5172 = vpop.permute.xlu0 %5171
      %5173 = vrot.lane.b32.xlu0 %v4456, 12
      %v5174 = vpop.permute.xlu0 %5173
      %5175 = vrot.lane.b32.xlu0 %v4457, 12
      %v5176 = vpop.permute.xlu0 %5175
      %5177 = vrot.lane.b32.xlu0 %v4458, 12
      %v5178 = vpop.permute.xlu0 %5177
      %5179 = vrot.lane.b32.xlu0 %v4459, 12
      %v5180 = vpop.permute.xlu0 %5179
      %5181 = vrot.lane.b32.xlu0 %v4460, 12
      %v5182 = vpop.permute.xlu0 %5181
      %5183 = vrot.lane.b32.xlu0 %v4461, 12
      %v5184 = vpop.permute.xlu0 %5183
      %5185 = vrot.lane.b32.xlu0 %v4462, 12
      %v5186 = vpop.permute.xlu0 %5185
      %5187 = vrot.lane.b32.xlu0 %v4463, 12
      %v5188 = vpop.permute.xlu0 %5187
      %5189 = vrot.lane.b32.xlu0 %v4464, 12
      %v5190 = vpop.permute.xlu0 %5189
      %5191 = vrot.lane.b32.xlu0 %v4465, 12
      %v5192 = vpop.permute.xlu0 %5191
      %5193 = vrot.lane.b32.xlu0 %v4466, 12
      %v5194 = vpop.permute.xlu0 %5193
      %5195 = vrot.lane.b32.xlu0 %v4467, 12
      %v5196 = vpop.permute.xlu0 %5195
      %5197 = vrot.lane.b32.xlu0 %v4468, 12
      %v5198 = vpop.permute.xlu0 %5197
      %5199 = vrot.lane.b32.xlu0 %v5165, 12
      %v5200 = vpop.permute.xlu0 %5199
      %5201 = vrot.lane.b32.xlu0 %v4470, 12
      %v5202 = vpop.permute.xlu0 %5201
      %5203 = vrot.lane.b32.xlu0 %v4471, 12
      %v5204 = vpop.permute.xlu0 %5203
      %5205 = vrot.lane.b32.xlu0 %v4472, 12
      %v5206 = vpop.permute.xlu0 %5205
      %5207 = vrot.lane.b32.xlu0 %v4473, 12
      %v5208 = vpop.permute.xlu0 %5207
      %5209 = vrot.lane.b32.xlu0 %v4474, 12
      %v5210 = vpop.permute.xlu0 %5209
      %5211 = vrot.lane.b32.xlu0 %v4475, 12
      %v5212 = vpop.permute.xlu0 %5211
      %5213 = vrot.lane.b32.xlu0 %v4476, 12
      %v5214 = vpop.permute.xlu0 %5213
      %5215 = vrot.lane.b32.xlu0 %v4477, 12
      %v5216 = vpop.permute.xlu0 %5215
      %5217 = vrot.lane.b32.xlu0 %v4478, 12
      %v5218 = vpop.permute.xlu0 %5217
      %5219 = vrot.lane.b32.xlu0 %v4479, 12
      %v5220 = vpop.permute.xlu0 %5219
      %5221 = vrot.lane.b32.xlu0 %v4480, 12
      %v5222 = vpop.permute.xlu0 %5221
      %5223 = vrot.lane.b32.xlu0 %v4481, 12
      %v5224 = vpop.permute.xlu0 %5223
      %5225 = vrot.lane.b32.xlu0 %v4482, 12
      %v5226 = vpop.permute.xlu0 %5225
      %5227 = vrot.lane.b32.xlu0 %v4483, 12
      %v5228 = vpop.permute.xlu0 %5227
      %5229 = vrot.lane.b32.xlu0 %v4484, 12
      %v5230 = vpop.permute.xlu0 %5229
      %5231 = vrot.lane.b32.xlu0 %v5166, 12
      %v5232 = vpop.permute.xlu0 %5231
      %5233 = vrot.lane.b32.xlu0 %v4486, 12
      %v5234 = vpop.permute.xlu0 %5233
      %5235 = vrot.lane.b32.xlu0 %v4487, 12
      %v5236 = vpop.permute.xlu0 %5235
      %5237 = vrot.lane.b32.xlu0 %v4488, 12
      %v5238 = vpop.permute.xlu0 %5237
      %5239 = vrot.lane.b32.xlu0 %v4489, 12
      %v5240 = vpop.permute.xlu0 %5239
      %5241 = vrot.lane.b32.xlu0 %v4490, 12
      %v5242 = vpop.permute.xlu0 %5241
      %5243 = vrot.lane.b32.xlu0 %v4491, 12
      %v5244 = vpop.permute.xlu0 %5243
      %5245 = vrot.lane.b32.xlu0 %v4492, 12
      %v5246 = vpop.permute.xlu0 %5245
      %5247 = vrot.lane.b32.xlu0 %v4493, 12
      %v5248 = vpop.permute.xlu0 %5247
      %5249 = vrot.lane.b32.xlu0 %v4494, 12
      %v5250 = vpop.permute.xlu0 %5249
      %5251 = vrot.lane.b32.xlu0 %v4495, 12
      %v5252 = vpop.permute.xlu0 %5251
      %5253 = vrot.lane.b32.xlu0 %v4496, 12
      %v5254 = vpop.permute.xlu0 %5253
      %5255 = vrot.lane.b32.xlu0 %v4497, 12
      %v5256 = vpop.permute.xlu0 %5255
      %5257 = vrot.lane.b32.xlu0 %v4498, 12
      %v5258 = vpop.permute.xlu0 %5257
      %5259 = vrot.lane.b32.xlu0 %v4499, 12
      %v5260 = vpop.permute.xlu0 %5259
      %5261 = vrot.lane.b32.xlu0 %v4500, 12
      %v5262 = vpop.permute.xlu0 %5261
      %5263 = vrot.lane.b32.xlu0 %v5167, 12
      %v5264 = vpop.permute.xlu0 %5263
      %5265 = vrot.lane.b32.xlu0 %v4502, 12
      %v5266 = vpop.permute.xlu0 %5265
      %5267 = vrot.lane.b32.xlu0 %v4503, 12
      %v5268 = vpop.permute.xlu0 %5267
      %5269 = vrot.lane.b32.xlu0 %v4504, 12
      %v5270 = vpop.permute.xlu0 %5269
      %5271 = vrot.lane.b32.xlu0 %v4505, 12
      %v5272 = vpop.permute.xlu0 %5271
      %5273 = vrot.lane.b32.xlu0 %v4506, 12
      %v5274 = vpop.permute.xlu0 %5273
      %5275 = vrot.lane.b32.xlu0 %v4507, 12
      %v5276 = vpop.permute.xlu0 %5275
      %5277 = vrot.lane.b32.xlu0 %v4508, 12
      %v5278 = vpop.permute.xlu0 %5277
      %5279 = vrot.lane.b32.xlu0 %v4509, 12
      %v5280 = vpop.permute.xlu0 %5279
      %5281 = vrot.lane.b32.xlu0 %v4510, 12
      %v5282 = vpop.permute.xlu0 %5281
      %5283 = vrot.lane.b32.xlu0 %v4511, 12
      %v5284 = vpop.permute.xlu0 %5283
      %5285 = vrot.lane.b32.xlu0 %v4512, 12
      %v5286 = vpop.permute.xlu0 %5285
      %5287 = vrot.lane.b32.xlu0 %v4513, 12
      %v5288 = vpop.permute.xlu0 %5287
      %5289 = vrot.lane.b32.xlu0 %v4514, 12
      %v5290 = vpop.permute.xlu0 %5289
      %5291 = vrot.lane.b32.xlu0 %v4515, 12
      %v5292 = vpop.permute.xlu0 %5291
      %5293 = vrot.lane.b32.xlu0 %v4516, 12
      %v5294 = vpop.permute.xlu0 %5293
      %5295 = vrot.lane.b32.xlu0 %v5168, 12
      %v5296 = vpop.permute.xlu0 %5295
      %v5297 = vunpack.c.l.b16 %v2842
      %v5298 = vunpack.c.l.b16 %v2852
      %v5299 = vunpack.c.l.b16 %v2866
      %v5300 = vunpack.c.l.b16 %v2876
      %v5301 = vunpack.c.l.b16 %v2890
      %v5302 = vunpack.c.l.b16 %v2900
      %v5303 = vunpack.c.l.b16 %v2914
      %v5304 = vunpack.c.l.b16 %v2924
      %v5305 = vpack.c.b16 %v5298, %v5297
      %v5306 = vpack.c.b16 %v5300, %v5299
      %v5307 = vpack.c.b16 %v5302, %v5301
      %v5308 = vpack.c.b16 %v5304, %v5303
      %5309 = vrot.lane.b32.xlu0 %v4646, 16
      %v5310 = vpop.permute.xlu0 %5309
      %5311 = vrot.lane.b32.xlu0 %v4647, 16
      %v5312 = vpop.permute.xlu0 %5311
      %5313 = vrot.lane.b32.xlu0 %v4648, 16
      %v5314 = vpop.permute.xlu0 %5313
      %5315 = vrot.lane.b32.xlu0 %v4649, 16
      %v5316 = vpop.permute.xlu0 %5315
      %5317 = vrot.lane.b32.xlu0 %v4650, 16
      %v5318 = vpop.permute.xlu0 %5317
      %5319 = vrot.lane.b32.xlu0 %v4651, 16
      %v5320 = vpop.permute.xlu0 %5319
      %5321 = vrot.lane.b32.xlu0 %v4652, 16
      %v5322 = vpop.permute.xlu0 %5321
      %5323 = vrot.lane.b32.xlu0 %v4653, 16
      %v5324 = vpop.permute.xlu0 %5323
      %5325 = vrot.lane.b32.xlu0 %v4654, 16
      %v5326 = vpop.permute.xlu0 %5325
      %5327 = vrot.lane.b32.xlu0 %v4655, 16
      %v5328 = vpop.permute.xlu0 %5327
      %5329 = vrot.lane.b32.xlu0 %v4656, 16
      %v5330 = vpop.permute.xlu0 %5329
      %5331 = vrot.lane.b32.xlu0 %v4657, 16
      %v5332 = vpop.permute.xlu0 %5331
      %5333 = vrot.lane.b32.xlu0 %v4658, 16
      %v5334 = vpop.permute.xlu0 %5333
      %5335 = vrot.lane.b32.xlu0 %v4659, 16
      %v5336 = vpop.permute.xlu0 %5335
      %5337 = vrot.lane.b32.xlu0 %v4660, 16
      %v5338 = vpop.permute.xlu0 %5337
      %5339 = vrot.lane.b32.xlu0 %v5305, 16
      %v5340 = vpop.permute.xlu0 %5339
      %5341 = vrot.lane.b32.xlu0 %v4662, 16
      %v5342 = vpop.permute.xlu0 %5341
      %5343 = vrot.lane.b32.xlu0 %v4663, 16
      %v5344 = vpop.permute.xlu0 %5343
      %5345 = vrot.lane.b32.xlu0 %v4664, 16
      %v5346 = vpop.permute.xlu0 %5345
      %5347 = vrot.lane.b32.xlu0 %v4665, 16
      %v5348 = vpop.permute.xlu0 %5347
      %5349 = vrot.lane.b32.xlu0 %v4666, 16
      %v5350 = vpop.permute.xlu0 %5349
      %5351 = vrot.lane.b32.xlu0 %v4667, 16
      %v5352 = vpop.permute.xlu0 %5351
      %5353 = vrot.lane.b32.xlu0 %v4668, 16
      %v5354 = vpop.permute.xlu0 %5353
      %5355 = vrot.lane.b32.xlu0 %v4669, 16
      %v5356 = vpop.permute.xlu0 %5355
      %5357 = vrot.lane.b32.xlu0 %v4670, 16
      %v5358 = vpop.permute.xlu0 %5357
      %5359 = vrot.lane.b32.xlu0 %v4671, 16
      %v5360 = vpop.permute.xlu0 %5359
      %5361 = vrot.lane.b32.xlu0 %v4672, 16
      %v5362 = vpop.permute.xlu0 %5361
      %5363 = vrot.lane.b32.xlu0 %v4673, 16
      %v5364 = vpop.permute.xlu0 %5363
      %5365 = vrot.lane.b32.xlu0 %v4674, 16
      %v5366 = vpop.permute.xlu0 %5365
      %5367 = vrot.lane.b32.xlu0 %v4675, 16
      %v5368 = vpop.permute.xlu0 %5367
      %5369 = vrot.lane.b32.xlu0 %v4676, 16
      %v5370 = vpop.permute.xlu0 %5369
      %5371 = vrot.lane.b32.xlu0 %v5306, 16
      %v5372 = vpop.permute.xlu0 %5371
      %5373 = vrot.lane.b32.xlu0 %v4678, 16
      %v5374 = vpop.permute.xlu0 %5373
      %5375 = vrot.lane.b32.xlu0 %v4679, 16
      %v5376 = vpop.permute.xlu0 %5375
      %5377 = vrot.lane.b32.xlu0 %v4680, 16
      %v5378 = vpop.permute.xlu0 %5377
      %5379 = vrot.lane.b32.xlu0 %v4681, 16
      %v5380 = vpop.permute.xlu0 %5379
      %5381 = vrot.lane.b32.xlu0 %v4682, 16
      %v5382 = vpop.permute.xlu0 %5381
      %5383 = vrot.lane.b32.xlu0 %v4683, 16
      %v5384 = vpop.permute.xlu0 %5383
      %5385 = vrot.lane.b32.xlu0 %v4684, 16
      %v5386 = vpop.permute.xlu0 %5385
      %5387 = vrot.lane.b32.xlu0 %v4685, 16
      %v5388 = vpop.permute.xlu0 %5387
      %5389 = vrot.lane.b32.xlu0 %v4686, 16
      %v5390 = vpop.permute.xlu0 %5389
      %5391 = vrot.lane.b32.xlu0 %v4687, 16
      %v5392 = vpop.permute.xlu0 %5391
      %5393 = vrot.lane.b32.xlu0 %v4688, 16
      %v5394 = vpop.permute.xlu0 %5393
      %5395 = vrot.lane.b32.xlu0 %v4689, 16
      %v5396 = vpop.permute.xlu0 %5395
      %5397 = vrot.lane.b32.xlu0 %v4690, 16
      %v5398 = vpop.permute.xlu0 %5397
      %5399 = vrot.lane.b32.xlu0 %v4691, 16
      %v5400 = vpop.permute.xlu0 %5399
      %5401 = vrot.lane.b32.xlu0 %v4692, 16
      %v5402 = vpop.permute.xlu0 %5401
      %5403 = vrot.lane.b32.xlu0 %v5307, 16
      %v5404 = vpop.permute.xlu0 %5403
      %5405 = vrot.lane.b32.xlu0 %v4694, 16
      %v5406 = vpop.permute.xlu0 %5405
      %5407 = vrot.lane.b32.xlu0 %v4695, 16
      %v5408 = vpop.permute.xlu0 %5407
      %5409 = vrot.lane.b32.xlu0 %v4696, 16
      %v5410 = vpop.permute.xlu0 %5409
      %5411 = vrot.lane.b32.xlu0 %v4697, 16
      %v5412 = vpop.permute.xlu0 %5411
      %5413 = vrot.lane.b32.xlu0 %v4698, 16
      %v5414 = vpop.permute.xlu0 %5413
      %5415 = vrot.lane.b32.xlu0 %v4699, 16
      %v5416 = vpop.permute.xlu0 %5415
      %5417 = vrot.lane.b32.xlu0 %v4700, 16
      %v5418 = vpop.permute.xlu0 %5417
      %5419 = vrot.lane.b32.xlu0 %v4701, 16
      %v5420 = vpop.permute.xlu0 %5419
      %5421 = vrot.lane.b32.xlu0 %v4702, 16
      %v5422 = vpop.permute.xlu0 %5421
      %5423 = vrot.lane.b32.xlu0 %v4703, 16
      %v5424 = vpop.permute.xlu0 %5423
      %5425 = vrot.lane.b32.xlu0 %v4704, 16
      %v5426 = vpop.permute.xlu0 %5425
      %5427 = vrot.lane.b32.xlu0 %v4705, 16
      %v5428 = vpop.permute.xlu0 %5427
      %5429 = vrot.lane.b32.xlu0 %v4706, 16
      %v5430 = vpop.permute.xlu0 %5429
      %5431 = vrot.lane.b32.xlu0 %v4707, 16
      %v5432 = vpop.permute.xlu0 %5431
      %5433 = vrot.lane.b32.xlu0 %v4708, 16
      %v5434 = vpop.permute.xlu0 %5433
      %5435 = vrot.lane.b32.xlu0 %v5308, 16
      %v5436 = vpop.permute.xlu0 %5435
      %v5437 = vunpack.c.l.b16 %v2940
      %v5438 = vunpack.c.l.b16 %v2943
      %v5439 = vunpack.c.l.b16 %v2947
      %v5440 = vunpack.c.l.b16 %v2950
      %v5441 = vunpack.c.l.b16 %v2954
      %v5442 = vunpack.c.l.b16 %v2957
      %v5443 = vunpack.c.l.b16 %v2961
      %v5444 = vunpack.c.l.b16 %v2964
      %v5445 = vpack.c.b16 %v5438, %v5437
      %v5446 = vpack.c.b16 %v5440, %v5439
      %v5447 = vpack.c.b16 %v5442, %v5441
      %v5448 = vpack.c.b16 %v5444, %v5443
      %5449 = vrot.lane.b32.xlu0 %v4966, 20
      %v5450 = vpop.permute.xlu0 %5449
      %5451 = vrot.lane.b32.xlu0 %v4967, 20
      %v5452 = vpop.permute.xlu0 %5451
      %5453 = vrot.lane.b32.xlu0 %v4968, 20
      %v5454 = vpop.permute.xlu0 %5453
      %5455 = vrot.lane.b32.xlu0 %v4969, 20
      %v5456 = vpop.permute.xlu0 %5455
      %5457 = vrot.lane.b32.xlu0 %v4970, 20
      %v5458 = vpop.permute.xlu0 %5457
      %5459 = vrot.lane.b32.xlu0 %v4971, 20
      %v5460 = vpop.permute.xlu0 %5459
      %5461 = vrot.lane.b32.xlu0 %v4972, 20
      %v5462 = vpop.permute.xlu0 %5461
      %5463 = vrot.lane.b32.xlu0 %v4973, 20
      %v5464 = vpop.permute.xlu0 %5463
      %5465 = vrot.lane.b32.xlu0 %v4974, 20
      %v5466 = vpop.permute.xlu0 %5465
      %5467 = vrot.lane.b32.xlu0 %v4975, 20
      %v5468 = vpop.permute.xlu0 %5467
      %5469 = vrot.lane.b32.xlu0 %v4976, 20
      %v5470 = vpop.permute.xlu0 %5469
      %5471 = vrot.lane.b32.xlu0 %v4977, 20
      %v5472 = vpop.permute.xlu0 %5471
      %5473 = vrot.lane.b32.xlu0 %v4978, 20
      %v5474 = vpop.permute.xlu0 %5473
      %5475 = vrot.lane.b32.xlu0 %v4979, 20
      %v5476 = vpop.permute.xlu0 %5475
      %5477 = vrot.lane.b32.xlu0 %v4980, 20
      %v5478 = vpop.permute.xlu0 %5477
      %5479 = vrot.lane.b32.xlu0 %v5445, 20
      %v5480 = vpop.permute.xlu0 %5479
      %5481 = vrot.lane.b32.xlu0 %v4982, 20
      %v5482 = vpop.permute.xlu0 %5481
      %5483 = vrot.lane.b32.xlu0 %v4983, 20
      %v5484 = vpop.permute.xlu0 %5483
      %5485 = vrot.lane.b32.xlu0 %v4984, 20
      %v5486 = vpop.permute.xlu0 %5485
      %5487 = vrot.lane.b32.xlu0 %v4985, 20
      %v5488 = vpop.permute.xlu0 %5487
      %5489 = vrot.lane.b32.xlu0 %v4986, 20
      %v5490 = vpop.permute.xlu0 %5489
      %5491 = vrot.lane.b32.xlu0 %v4987, 20
      %v5492 = vpop.permute.xlu0 %5491
      %5493 = vrot.lane.b32.xlu0 %v4988, 20
      %v5494 = vpop.permute.xlu0 %5493
      %5495 = vrot.lane.b32.xlu0 %v4989, 20
      %v5496 = vpop.permute.xlu0 %5495
      %5497 = vrot.lane.b32.xlu0 %v4990, 20
      %v5498 = vpop.permute.xlu0 %5497
      %5499 = vrot.lane.b32.xlu0 %v4991, 20
      %v5500 = vpop.permute.xlu0 %5499
      %5501 = vrot.lane.b32.xlu0 %v4992, 20
      %v5502 = vpop.permute.xlu0 %5501
      %5503 = vrot.lane.b32.xlu0 %v4993, 20
      %v5504 = vpop.permute.xlu0 %5503
      %5505 = vrot.lane.b32.xlu0 %v4994, 20
      %v5506 = vpop.permute.xlu0 %5505
      %5507 = vrot.lane.b32.xlu0 %v4995, 20
      %v5508 = vpop.permute.xlu0 %5507
      %5509 = vrot.lane.b32.xlu0 %v4996, 20
      %v5510 = vpop.permute.xlu0 %5509
      %5511 = vrot.lane.b32.xlu0 %v5446, 20
      %v5512 = vpop.permute.xlu0 %5511
      %5513 = vrot.lane.b32.xlu0 %v4998, 20
      %v5514 = vpop.permute.xlu0 %5513
      %5515 = vrot.lane.b32.xlu0 %v4999, 20
      %v5516 = vpop.permute.xlu0 %5515
      %5517 = vrot.lane.b32.xlu0 %v5000, 20
      %v5518 = vpop.permute.xlu0 %5517
      %5519 = vrot.lane.b32.xlu0 %v5001, 20
      %v5520 = vpop.permute.xlu0 %5519
      %5521 = vrot.lane.b32.xlu0 %v5002, 20
      %v5522 = vpop.permute.xlu0 %5521
      %5523 = vrot.lane.b32.xlu0 %v5003, 20
      %v5524 = vpop.permute.xlu0 %5523
      %5525 = vrot.lane.b32.xlu0 %v5004, 20
      %v5526 = vpop.permute.xlu0 %5525
      %5527 = vrot.lane.b32.xlu0 %v5005, 20
      %v5528 = vpop.permute.xlu0 %5527
      %5529 = vrot.lane.b32.xlu0 %v5006, 20
      %v5530 = vpop.permute.xlu0 %5529
      %5531 = vrot.lane.b32.xlu0 %v5007, 20
      %v5532 = vpop.permute.xlu0 %5531
      %5533 = vrot.lane.b32.xlu0 %v5008, 20
      %v5534 = vpop.permute.xlu0 %5533
      %5535 = vrot.lane.b32.xlu0 %v5009, 20
      %v5536 = vpop.permute.xlu0 %5535
      %5537 = vrot.lane.b32.xlu0 %v5010, 20
      %v5538 = vpop.permute.xlu0 %5537
      %5539 = vrot.lane.b32.xlu0 %v5011, 20
      %v5540 = vpop.permute.xlu0 %5539
      %5541 = vrot.lane.b32.xlu0 %v5012, 20
      %v5542 = vpop.permute.xlu0 %5541
      %5543 = vrot.lane.b32.xlu0 %v5447, 20
      %v5544 = vpop.permute.xlu0 %5543
      %5545 = vrot.lane.b32.xlu0 %v5014, 20
      %v5546 = vpop.permute.xlu0 %5545
      %5547 = vrot.lane.b32.xlu0 %v5015, 20
      %v5548 = vpop.permute.xlu0 %5547
      %5549 = vrot.lane.b32.xlu0 %v5016, 20
      %v5550 = vpop.permute.xlu0 %5549
      %5551 = vrot.lane.b32.xlu0 %v5017, 20
      %v5552 = vpop.permute.xlu0 %5551
      %5553 = vrot.lane.b32.xlu0 %v5018, 20
      %v5554 = vpop.permute.xlu0 %5553
      %5555 = vrot.lane.b32.xlu0 %v5019, 20
      %v5556 = vpop.permute.xlu0 %5555
      %5557 = vrot.lane.b32.xlu0 %v5020, 20
      %v5558 = vpop.permute.xlu0 %5557
      %5559 = vrot.lane.b32.xlu0 %v5021, 20
      %v5560 = vpop.permute.xlu0 %5559
      %5561 = vrot.lane.b32.xlu0 %v5022, 20
      %v5562 = vpop.permute.xlu0 %5561
      %5563 = vrot.lane.b32.xlu0 %v5023, 20
      %v5564 = vpop.permute.xlu0 %5563
      %5565 = vrot.lane.b32.xlu0 %v5024, 20
      %v5566 = vpop.permute.xlu0 %5565
      %5567 = vrot.lane.b32.xlu0 %v5025, 20
      %v5568 = vpop.permute.xlu0 %5567
      %5569 = vrot.lane.b32.xlu0 %v5026, 20
      %v5570 = vpop.permute.xlu0 %5569
      %5571 = vrot.lane.b32.xlu0 %v5027, 20
      %v5572 = vpop.permute.xlu0 %5571
      %5573 = vrot.lane.b32.xlu0 %v5028, 20
      %v5574 = vpop.permute.xlu0 %5573
      %5575 = vrot.lane.b32.xlu0 %v5448, 20
      %v5576 = vpop.permute.xlu0 %5575
      %v5577 = vunpack.c.l.b16 %v374
      %v5578 = vunpack.c.l.b16 %v375
      %v5579 = vunpack.c.l.b16 %v428
      %v5580 = vunpack.c.l.b16 %v429
      %v5581 = vunpack.c.l.b16 %v482
      %v5582 = vunpack.c.l.b16 %v483
      %v5583 = vunpack.c.l.b16 %v536
      %v5584 = vunpack.c.l.b16 %v537
      %v5585 = vpack.c.b16 %v5578, %v5577
      %v5586 = vpack.c.b16 %v5580, %v5579
      %v5587 = vpack.c.b16 %v5582, %v5581
      %v5588 = vpack.c.b16 %v5584, %v5583
      %5589 = vrot.lane.b32.xlu0 %v4455, 24
      %v5590 = vpop.permute.xlu0 %5589
      %5591 = vrot.lane.b32.xlu0 %v4456, 24
      %v5592 = vpop.permute.xlu0 %5591
      %5593 = vrot.lane.b32.xlu0 %v4457, 24
      %v5594 = vpop.permute.xlu0 %5593
      %5595 = vrot.lane.b32.xlu0 %v4458, 24
      %v5596 = vpop.permute.xlu0 %5595
      %5597 = vrot.lane.b32.xlu0 %v4459, 24
      %v5598 = vpop.permute.xlu0 %5597
      %5599 = vrot.lane.b32.xlu0 %v4460, 24
      %v5600 = vpop.permute.xlu0 %5599
      %5601 = vrot.lane.b32.xlu0 %v4461, 24
      %v5602 = vpop.permute.xlu0 %5601
      %5603 = vrot.lane.b32.xlu0 %v4462, 24
      %v5604 = vpop.permute.xlu0 %5603
      %5605 = vrot.lane.b32.xlu0 %v4463, 24
      %v5606 = vpop.permute.xlu0 %5605
      %5607 = vrot.lane.b32.xlu0 %v4464, 24
      %v5608 = vpop.permute.xlu0 %5607
      %5609 = vrot.lane.b32.xlu0 %v4465, 24
      %v5610 = vpop.permute.xlu0 %5609
      %5611 = vrot.lane.b32.xlu0 %v4466, 24
      %v5612 = vpop.permute.xlu0 %5611
      %5613 = vrot.lane.b32.xlu0 %v4467, 24
      %v5614 = vpop.permute.xlu0 %5613
      %5615 = vrot.lane.b32.xlu0 %v4468, 24
      %v5616 = vpop.permute.xlu0 %5615
      %5617 = vrot.lane.b32.xlu0 %v5165, 24
      %v5618 = vpop.permute.xlu0 %5617
      %5619 = vrot.lane.b32.xlu0 %v5585, 24
      %v5620 = vpop.permute.xlu0 %5619
      %5621 = vrot.lane.b32.xlu0 %v4471, 24
      %v5622 = vpop.permute.xlu0 %5621
      %5623 = vrot.lane.b32.xlu0 %v4472, 24
      %v5624 = vpop.permute.xlu0 %5623
      %5625 = vrot.lane.b32.xlu0 %v4473, 24
      %v5626 = vpop.permute.xlu0 %5625
      %5627 = vrot.lane.b32.xlu0 %v4474, 24
      %v5628 = vpop.permute.xlu0 %5627
      %5629 = vrot.lane.b32.xlu0 %v4475, 24
      %v5630 = vpop.permute.xlu0 %5629
      %5631 = vrot.lane.b32.xlu0 %v4476, 24
      %v5632 = vpop.permute.xlu0 %5631
      %5633 = vrot.lane.b32.xlu0 %v4477, 24
      %v5634 = vpop.permute.xlu0 %5633
      %5635 = vrot.lane.b32.xlu0 %v4478, 24
      %v5636 = vpop.permute.xlu0 %5635
      %5637 = vrot.lane.b32.xlu0 %v4479, 24
      %v5638 = vpop.permute.xlu0 %5637
      %5639 = vrot.lane.b32.xlu0 %v4480, 24
      %v5640 = vpop.permute.xlu0 %5639
      %5641 = vrot.lane.b32.xlu0 %v4481, 24
      %v5642 = vpop.permute.xlu0 %5641
      %5643 = vrot.lane.b32.xlu0 %v4482, 24
      %v5644 = vpop.permute.xlu0 %5643
      %5645 = vrot.lane.b32.xlu0 %v4483, 24
      %v5646 = vpop.permute.xlu0 %5645
      %5647 = vrot.lane.b32.xlu0 %v4484, 24
      %v5648 = vpop.permute.xlu0 %5647
      %5649 = vrot.lane.b32.xlu0 %v5166, 24
      %v5650 = vpop.permute.xlu0 %5649
      %5651 = vrot.lane.b32.xlu0 %v5586, 24
      %v5652 = vpop.permute.xlu0 %5651
      %5653 = vrot.lane.b32.xlu0 %v4487, 24
      %v5654 = vpop.permute.xlu0 %5653
      %5655 = vrot.lane.b32.xlu0 %v4488, 24
      %v5656 = vpop.permute.xlu0 %5655
      %5657 = vrot.lane.b32.xlu0 %v4489, 24
      %v5658 = vpop.permute.xlu0 %5657
      %5659 = vrot.lane.b32.xlu0 %v4490, 24
      %v5660 = vpop.permute.xlu0 %5659
      %5661 = vrot.lane.b32.xlu0 %v4491, 24
      %v5662 = vpop.permute.xlu0 %5661
      %5663 = vrot.lane.b32.xlu0 %v4492, 24
      %v5664 = vpop.permute.xlu0 %5663
      %5665 = vrot.lane.b32.xlu0 %v4493, 24
      %v5666 = vpop.permute.xlu0 %5665
      %5667 = vrot.lane.b32.xlu0 %v4494, 24
      %v5668 = vpop.permute.xlu0 %5667
      %5669 = vrot.lane.b32.xlu0 %v4495, 24
      %v5670 = vpop.permute.xlu0 %5669
      %5671 = vrot.lane.b32.xlu0 %v4496, 24
      %v5672 = vpop.permute.xlu0 %5671
      %5673 = vrot.lane.b32.xlu0 %v4497, 24
      %v5674 = vpop.permute.xlu0 %5673
      %5675 = vrot.lane.b32.xlu0 %v4498, 24
      %v5676 = vpop.permute.xlu0 %5675
      %5677 = vrot.lane.b32.xlu0 %v4499, 24
      %v5678 = vpop.permute.xlu0 %5677
      %5679 = vrot.lane.b32.xlu0 %v4500, 24
      %v5680 = vpop.permute.xlu0 %5679
      %5681 = vrot.lane.b32.xlu0 %v5167, 24
      %v5682 = vpop.permute.xlu0 %5681
      %5683 = vrot.lane.b32.xlu0 %v5587, 24
      %v5684 = vpop.permute.xlu0 %5683
      %5685 = vrot.lane.b32.xlu0 %v4503, 24
      %v5686 = vpop.permute.xlu0 %5685
      %5687 = vrot.lane.b32.xlu0 %v4504, 24
      %v5688 = vpop.permute.xlu0 %5687
      %5689 = vrot.lane.b32.xlu0 %v4505, 24
      %v5690 = vpop.permute.xlu0 %5689
      %5691 = vrot.lane.b32.xlu0 %v4506, 24
      %v5692 = vpop.permute.xlu0 %5691
      %5693 = vrot.lane.b32.xlu0 %v4507, 24
      %v5694 = vpop.permute.xlu0 %5693
      %5695 = vrot.lane.b32.xlu0 %v4508, 24
      %v5696 = vpop.permute.xlu0 %5695
      %5697 = vrot.lane.b32.xlu0 %v4509, 24
      %v5698 = vpop.permute.xlu0 %5697
      %5699 = vrot.lane.b32.xlu0 %v4510, 24
      %v5700 = vpop.permute.xlu0 %5699
      %5701 = vrot.lane.b32.xlu0 %v4511, 24
      %v5702 = vpop.permute.xlu0 %5701
      %5703 = vrot.lane.b32.xlu0 %v4512, 24
      %v5704 = vpop.permute.xlu0 %5703
      %5705 = vrot.lane.b32.xlu0 %v4513, 24
      %v5706 = vpop.permute.xlu0 %5705
      %5707 = vrot.lane.b32.xlu0 %v4514, 24
      %v5708 = vpop.permute.xlu0 %5707
      %5709 = vrot.lane.b32.xlu0 %v4515, 24
      %v5710 = vpop.permute.xlu0 %5709
      %5711 = vrot.lane.b32.xlu0 %v4516, 24
      %v5712 = vpop.permute.xlu0 %5711
      %5713 = vrot.lane.b32.xlu0 %v5168, 24
      %v5714 = vpop.permute.xlu0 %5713
      %5715 = vrot.lane.b32.xlu0 %v5588, 24
      %v5716 = vpop.permute.xlu0 %5715
      %v5717 = vunpack.c.l.b16 %v2978
      %v5718 = vunpack.c.l.b16 %v2988
      %v5719 = vunpack.c.l.b16 %v3002
      %v5720 = vunpack.c.l.b16 %v3012
      %v5721 = vunpack.c.l.b16 %v3026
      %v5722 = vunpack.c.l.b16 %v3036
      %v5723 = vunpack.c.l.b16 %v3050
      %v5724 = vunpack.c.l.b16 %v3060
      %v5725 = vpack.c.b16 %v5718, %v5717
      %v5726 = vpack.c.b16 %v5720, %v5719
      %v5727 = vpack.c.b16 %v5722, %v5721
      %v5728 = vpack.c.b16 %v5724, %v5723
      %5729 = vrot.lane.b32.xlu0 %v4647, 28
      %v5730 = vpop.permute.xlu0 %5729
      %5731 = vrot.lane.b32.xlu0 %v4648, 28
      %v5732 = vpop.permute.xlu0 %5731
      %5733 = vrot.lane.b32.xlu0 %v4649, 28
      %v5734 = vpop.permute.xlu0 %5733
      %5735 = vrot.lane.b32.xlu0 %v4650, 28
      %v5736 = vpop.permute.xlu0 %5735
      %5737 = vrot.lane.b32.xlu0 %v4651, 28
      %v5738 = vpop.permute.xlu0 %5737
      %5739 = vrot.lane.b32.xlu0 %v4652, 28
      %v5740 = vpop.permute.xlu0 %5739
      %5741 = vrot.lane.b32.xlu0 %v4653, 28
      %v5742 = vpop.permute.xlu0 %5741
      %5743 = vrot.lane.b32.xlu0 %v4654, 28
      %v5744 = vpop.permute.xlu0 %5743
      %5745 = vrot.lane.b32.xlu0 %v4655, 28
      %v5746 = vpop.permute.xlu0 %5745
      %5747 = vrot.lane.b32.xlu0 %v4656, 28
      %v5748 = vpop.permute.xlu0 %5747
      %5749 = vrot.lane.b32.xlu0 %v4657, 28
      %v5750 = vpop.permute.xlu0 %5749
      %5751 = vrot.lane.b32.xlu0 %v4658, 28
      %v5752 = vpop.permute.xlu0 %5751
      %5753 = vrot.lane.b32.xlu0 %v4659, 28
      %v5754 = vpop.permute.xlu0 %5753
      %5755 = vrot.lane.b32.xlu0 %v4660, 28
      %v5756 = vpop.permute.xlu0 %5755
      %5757 = vrot.lane.b32.xlu0 %v5305, 28
      %v5758 = vpop.permute.xlu0 %5757
      %5759 = vrot.lane.b32.xlu0 %v5725, 28
      %v5760 = vpop.permute.xlu0 %5759
      %5761 = vrot.lane.b32.xlu0 %v4663, 28
      %v5762 = vpop.permute.xlu0 %5761
      %5763 = vrot.lane.b32.xlu0 %v4664, 28
      %v5764 = vpop.permute.xlu0 %5763
      %5765 = vrot.lane.b32.xlu0 %v4665, 28
      %v5766 = vpop.permute.xlu0 %5765
      %5767 = vrot.lane.b32.xlu0 %v4666, 28
      %v5768 = vpop.permute.xlu0 %5767
      %5769 = vrot.lane.b32.xlu0 %v4667, 28
      %v5770 = vpop.permute.xlu0 %5769
      %5771 = vrot.lane.b32.xlu0 %v4668, 28
      %v5772 = vpop.permute.xlu0 %5771
      %5773 = vrot.lane.b32.xlu0 %v4669, 28
      %v5774 = vpop.permute.xlu0 %5773
      %5775 = vrot.lane.b32.xlu0 %v4670, 28
      %v5776 = vpop.permute.xlu0 %5775
      %5777 = vrot.lane.b32.xlu0 %v4671, 28
      %v5778 = vpop.permute.xlu0 %5777
      %5779 = vrot.lane.b32.xlu0 %v4672, 28
      %v5780 = vpop.permute.xlu0 %5779
      %5781 = vrot.lane.b32.xlu0 %v4673, 28
      %v5782 = vpop.permute.xlu0 %5781
      %5783 = vrot.lane.b32.xlu0 %v4674, 28
      %v5784 = vpop.permute.xlu0 %5783
      %5785 = vrot.lane.b32.xlu0 %v4675, 28
      %v5786 = vpop.permute.xlu0 %5785
      %5787 = vrot.lane.b32.xlu0 %v4676, 28
      %v5788 = vpop.permute.xlu0 %5787
      %5789 = vrot.lane.b32.xlu0 %v5306, 28
      %v5790 = vpop.permute.xlu0 %5789
      %5791 = vrot.lane.b32.xlu0 %v5726, 28
      %v5792 = vpop.permute.xlu0 %5791
      %5793 = vrot.lane.b32.xlu0 %v4679, 28
      %v5794 = vpop.permute.xlu0 %5793
      %5795 = vrot.lane.b32.xlu0 %v4680, 28
      %v5796 = vpop.permute.xlu0 %5795
      %5797 = vrot.lane.b32.xlu0 %v4681, 28
      %v5798 = vpop.permute.xlu0 %5797
      %5799 = vrot.lane.b32.xlu0 %v4682, 28
      %v5800 = vpop.permute.xlu0 %5799
      %5801 = vrot.lane.b32.xlu0 %v4683, 28
      %v5802 = vpop.permute.xlu0 %5801
      %5803 = vrot.lane.b32.xlu0 %v4684, 28
      %v5804 = vpop.permute.xlu0 %5803
      %5805 = vrot.lane.b32.xlu0 %v4685, 28
      %v5806 = vpop.permute.xlu0 %5805
      %5807 = vrot.lane.b32.xlu0 %v4686, 28
      %v5808 = vpop.permute.xlu0 %5807
      %5809 = vrot.lane.b32.xlu0 %v4687, 28
      %v5810 = vpop.permute.xlu0 %5809
      %5811 = vrot.lane.b32.xlu0 %v4688, 28
      %v5812 = vpop.permute.xlu0 %5811
      %5813 = vrot.lane.b32.xlu0 %v4689, 28
      %v5814 = vpop.permute.xlu0 %5813
      %5815 = vrot.lane.b32.xlu0 %v4690, 28
      %v5816 = vpop.permute.xlu0 %5815
      %5817 = vrot.lane.b32.xlu0 %v4691, 28
      %v5818 = vpop.permute.xlu0 %5817
      %5819 = vrot.lane.b32.xlu0 %v4692, 28
      %v5820 = vpop.permute.xlu0 %5819
      %5821 = vrot.lane.b32.xlu0 %v5307, 28
      %v5822 = vpop.permute.xlu0 %5821
      %5823 = vrot.lane.b32.xlu0 %v5727, 28
      %v5824 = vpop.permute.xlu0 %5823
      %5825 = vrot.lane.b32.xlu0 %v4695, 28
      %v5826 = vpop.permute.xlu0 %5825
      %5827 = vrot.lane.b32.xlu0 %v4696, 28
      %v5828 = vpop.permute.xlu0 %5827
      %5829 = vrot.lane.b32.xlu0 %v4697, 28
      %v5830 = vpop.permute.xlu0 %5829
      %5831 = vrot.lane.b32.xlu0 %v4698, 28
      %v5832 = vpop.permute.xlu0 %5831
      %5833 = vrot.lane.b32.xlu0 %v4699, 28
      %v5834 = vpop.permute.xlu0 %5833
      %5835 = vrot.lane.b32.xlu0 %v4700, 28
      %v5836 = vpop.permute.xlu0 %5835
      %5837 = vrot.lane.b32.xlu0 %v4701, 28
      %v5838 = vpop.permute.xlu0 %5837
      %5839 = vrot.lane.b32.xlu0 %v4702, 28
      %v5840 = vpop.permute.xlu0 %5839
      %5841 = vrot.lane.b32.xlu0 %v4703, 28
      %v5842 = vpop.permute.xlu0 %5841
      %5843 = vrot.lane.b32.xlu0 %v4704, 28
      %v5844 = vpop.permute.xlu0 %5843
      %5845 = vrot.lane.b32.xlu0 %v4705, 28
      %v5846 = vpop.permute.xlu0 %5845
      %5847 = vrot.lane.b32.xlu0 %v4706, 28
      %v5848 = vpop.permute.xlu0 %5847
      %5849 = vrot.lane.b32.xlu0 %v4707, 28
      %v5850 = vpop.permute.xlu0 %5849
      %5851 = vrot.lane.b32.xlu0 %v4708, 28
      %v5852 = vpop.permute.xlu0 %5851
      %5853 = vrot.lane.b32.xlu0 %v5308, 28
      %v5854 = vpop.permute.xlu0 %5853
      %5855 = vrot.lane.b32.xlu0 %v5728, 28
      %v5856 = vpop.permute.xlu0 %5855
      %v5857 = vunpack.c.l.b16 %v3076
      %v5858 = vunpack.c.l.b16 %v3079
      %v5859 = vunpack.c.l.b16 %v3083
      %v5860 = vunpack.c.l.b16 %v3086
      %v5861 = vunpack.c.l.b16 %v3090
      %v5862 = vunpack.c.l.b16 %v3093
      %v5863 = vunpack.c.l.b16 %v3097
      %v5864 = vunpack.c.l.b16 %v3100
      %v5865 = vpack.c.b16 %v5858, %v5857
      %v5866 = vpack.c.b16 %v5860, %v5859
      %v5867 = vpack.c.b16 %v5862, %v5861
      %v5868 = vpack.c.b16 %v5864, %v5863
      %5869 = vrot.lane.b32.xlu0 %v4967, 32
      %v5870 = vpop.permute.xlu0 %5869
      %5871 = vrot.lane.b32.xlu0 %v4968, 32
      %v5872 = vpop.permute.xlu0 %5871
      %5873 = vrot.lane.b32.xlu0 %v4969, 32
      %v5874 = vpop.permute.xlu0 %5873
      %5875 = vrot.lane.b32.xlu0 %v4970, 32
      %v5876 = vpop.permute.xlu0 %5875
      %5877 = vrot.lane.b32.xlu0 %v4971, 32
      %v5878 = vpop.permute.xlu0 %5877
      %5879 = vrot.lane.b32.xlu0 %v4972, 32
      %v5880 = vpop.permute.xlu0 %5879
      %5881 = vrot.lane.b32.xlu0 %v4973, 32
      %v5882 = vpop.permute.xlu0 %5881
      %5883 = vrot.lane.b32.xlu0 %v4974, 32
      %v5884 = vpop.permute.xlu0 %5883
      %5885 = vrot.lane.b32.xlu0 %v4975, 32
      %v5886 = vpop.permute.xlu0 %5885
      %5887 = vrot.lane.b32.xlu0 %v4976, 32
      %v5888 = vpop.permute.xlu0 %5887
      %5889 = vrot.lane.b32.xlu0 %v4977, 32
      %v5890 = vpop.permute.xlu0 %5889
      %5891 = vrot.lane.b32.xlu0 %v4978, 32
      %v5892 = vpop.permute.xlu0 %5891
      %5893 = vrot.lane.b32.xlu0 %v4979, 32
      %v5894 = vpop.permute.xlu0 %5893
      %5895 = vrot.lane.b32.xlu0 %v4980, 32
      %v5896 = vpop.permute.xlu0 %5895
      %5897 = vrot.lane.b32.xlu0 %v5445, 32
      %v5898 = vpop.permute.xlu0 %5897
      %5899 = vrot.lane.b32.xlu0 %v5865, 32
      %v5900 = vpop.permute.xlu0 %5899
      %5901 = vrot.lane.b32.xlu0 %v4983, 32
      %v5902 = vpop.permute.xlu0 %5901
      %5903 = vrot.lane.b32.xlu0 %v4984, 32
      %v5904 = vpop.permute.xlu0 %5903
      %5905 = vrot.lane.b32.xlu0 %v4985, 32
      %v5906 = vpop.permute.xlu0 %5905
      %5907 = vrot.lane.b32.xlu0 %v4986, 32
      %v5908 = vpop.permute.xlu0 %5907
      %5909 = vrot.lane.b32.xlu0 %v4987, 32
      %v5910 = vpop.permute.xlu0 %5909
      %5911 = vrot.lane.b32.xlu0 %v4988, 32
      %v5912 = vpop.permute.xlu0 %5911
      %5913 = vrot.lane.b32.xlu0 %v4989, 32
      %v5914 = vpop.permute.xlu0 %5913
      %5915 = vrot.lane.b32.xlu0 %v4990, 32
      %v5916 = vpop.permute.xlu0 %5915
      %5917 = vrot.lane.b32.xlu0 %v4991, 32
      %v5918 = vpop.permute.xlu0 %5917
      %5919 = vrot.lane.b32.xlu0 %v4992, 32
      %v5920 = vpop.permute.xlu0 %5919
      %5921 = vrot.lane.b32.xlu0 %v4993, 32
      %v5922 = vpop.permute.xlu0 %5921
      %5923 = vrot.lane.b32.xlu0 %v4994, 32
      %v5924 = vpop.permute.xlu0 %5923
      %5925 = vrot.lane.b32.xlu0 %v4995, 32
      %v5926 = vpop.permute.xlu0 %5925
      %5927 = vrot.lane.b32.xlu0 %v4996, 32
      %v5928 = vpop.permute.xlu0 %5927
      %5929 = vrot.lane.b32.xlu0 %v5446, 32
      %v5930 = vpop.permute.xlu0 %5929
      %5931 = vrot.lane.b32.xlu0 %v5866, 32
      %v5932 = vpop.permute.xlu0 %5931
      %5933 = vrot.lane.b32.xlu0 %v4999, 32
      %v5934 = vpop.permute.xlu0 %5933
      %5935 = vrot.lane.b32.xlu0 %v5000, 32
      %v5936 = vpop.permute.xlu0 %5935
      %5937 = vrot.lane.b32.xlu0 %v5001, 32
      %v5938 = vpop.permute.xlu0 %5937
      %5939 = vrot.lane.b32.xlu0 %v5002, 32
      %v5940 = vpop.permute.xlu0 %5939
      %5941 = vrot.lane.b32.xlu0 %v5003, 32
      %v5942 = vpop.permute.xlu0 %5941
      %5943 = vrot.lane.b32.xlu0 %v5004, 32
      %v5944 = vpop.permute.xlu0 %5943
      %5945 = vrot.lane.b32.xlu0 %v5005, 32
      %v5946 = vpop.permute.xlu0 %5945
      %5947 = vrot.lane.b32.xlu0 %v5006, 32
      %v5948 = vpop.permute.xlu0 %5947
      %5949 = vrot.lane.b32.xlu0 %v5007, 32
      %v5950 = vpop.permute.xlu0 %5949
      %5951 = vrot.lane.b32.xlu0 %v5008, 32
      %v5952 = vpop.permute.xlu0 %5951
      %5953 = vrot.lane.b32.xlu0 %v5009, 32
      %v5954 = vpop.permute.xlu0 %5953
      %5955 = vrot.lane.b32.xlu0 %v5010, 32
      %v5956 = vpop.permute.xlu0 %5955
      %5957 = vrot.lane.b32.xlu0 %v5011, 32
      %v5958 = vpop.permute.xlu0 %5957
      %5959 = vrot.lane.b32.xlu0 %v5012, 32
      %v5960 = vpop.permute.xlu0 %5959
      %5961 = vrot.lane.b32.xlu0 %v5447, 32
      %v5962 = vpop.permute.xlu0 %5961
      %5963 = vrot.lane.b32.xlu0 %v5867, 32
      %v5964 = vpop.permute.xlu0 %5963
      %5965 = vrot.lane.b32.xlu0 %v5015, 32
      %v5966 = vpop.permute.xlu0 %5965
      %5967 = vrot.lane.b32.xlu0 %v5016, 32
      %v5968 = vpop.permute.xlu0 %5967
      %5969 = vrot.lane.b32.xlu0 %v5017, 32
      %v5970 = vpop.permute.xlu0 %5969
      %5971 = vrot.lane.b32.xlu0 %v5018, 32
      %v5972 = vpop.permute.xlu0 %5971
      %5973 = vrot.lane.b32.xlu0 %v5019, 32
      %v5974 = vpop.permute.xlu0 %5973
      %5975 = vrot.lane.b32.xlu0 %v5020, 32
      %v5976 = vpop.permute.xlu0 %5975
      %5977 = vrot.lane.b32.xlu0 %v5021, 32
      %v5978 = vpop.permute.xlu0 %5977
      %5979 = vrot.lane.b32.xlu0 %v5022, 32
      %v5980 = vpop.permute.xlu0 %5979
      %5981 = vrot.lane.b32.xlu0 %v5023, 32
      %v5982 = vpop.permute.xlu0 %5981
      %5983 = vrot.lane.b32.xlu0 %v5024, 32
      %v5984 = vpop.permute.xlu0 %5983
      %5985 = vrot.lane.b32.xlu0 %v5025, 32
      %v5986 = vpop.permute.xlu0 %5985
      %5987 = vrot.lane.b32.xlu0 %v5026, 32
      %v5988 = vpop.permute.xlu0 %5987
      %5989 = vrot.lane.b32.xlu0 %v5027, 32
      %v5990 = vpop.permute.xlu0 %5989
      %5991 = vrot.lane.b32.xlu0 %v5028, 32
      %v5992 = vpop.permute.xlu0 %5991
      %5993 = vrot.lane.b32.xlu0 %v5448, 32
      %v5994 = vpop.permute.xlu0 %5993
      %5995 = vrot.lane.b32.xlu0 %v5868, 32
      %v5996 = vpop.permute.xlu0 %5995
      %v5997 = vunpack.c.l.b16 %v539
      %v5998 = vunpack.c.l.b16 %v540
      %v5999 = vunpack.c.l.b16 %v542
      %v6000 = vunpack.c.l.b16 %v543
      %v6001 = vunpack.c.l.b16 %v545
      %v6002 = vunpack.c.l.b16 %v546
      %v6003 = vunpack.c.l.b16 %v548
      %v6004 = vunpack.c.l.b16 %v549
      %v6005 = vunpack.c.l.b16 %v551
      %v6006 = vunpack.c.l.b16 %v552
      %v6007 = vunpack.c.l.b16 %v554
      %v6008 = vunpack.c.l.b16 %v555
      %v6009 = vunpack.c.l.b16 %v557
      %v6010 = vunpack.c.l.b16 %v558
      %v6011 = vunpack.c.l.b16 %v560
      %v6012 = vunpack.c.l.b16 %v561
      %v6013 = vunpack.c.l.b16 %v563
      %v6014 = vunpack.c.l.b16 %v564
      %v6015 = vunpack.c.l.b16 %v566
      %v6016 = vunpack.c.l.b16 %v567
      %v6017 = vunpack.c.l.b16 %v569
      %v6018 = vunpack.c.l.b16 %v570
      %v6019 = vunpack.c.l.b16 %v572
      %v6020 = vunpack.c.l.b16 %v573
      %v6021 = vunpack.c.l.b16 %v575
      %v6022 = vunpack.c.l.b16 %v576
      %v6023 = vunpack.c.l.b16 %v578
      %v6024 = vunpack.c.l.b16 %v579
      %v6025 = vunpack.c.l.b16 %v581
      %v6026 = vunpack.c.l.b16 %v582
      %v6027 = vunpack.c.l.b16 %v584
      %v6028 = vunpack.c.l.b16 %v585
      %v6029 = vpack.c.b16 %v5998, %v5997
      %v6030 = vpack.c.b16 %v6000, %v5999
      %v6031 = vpack.c.b16 %v6002, %v6001
      %v6032 = vpack.c.b16 %v6004, %v6003
      %v6033 = vpack.c.b16 %v6006, %v6005
      %v6034 = vpack.c.b16 %v6008, %v6007
      %v6035 = vpack.c.b16 %v6010, %v6009
      %v6036 = vpack.c.b16 %v6012, %v6011
      %v6037 = vpack.c.b16 %v6014, %v6013
      %v6038 = vpack.c.b16 %v6016, %v6015
      %v6039 = vpack.c.b16 %v6018, %v6017
      %v6040 = vpack.c.b16 %v6020, %v6019
      %v6041 = vpack.c.b16 %v6022, %v6021
      %v6042 = vpack.c.b16 %v6024, %v6023
      %v6043 = vpack.c.b16 %v6026, %v6025
      %v6044 = vpack.c.b16 %v6028, %v6027
      %6045 = vrot.lane.b32.xlu0 %v4469, 36
      %v6046 = vpop.permute.xlu0 %6045
      %6047 = vrot.lane.b32.xlu0 %v4470, 36
      %v6048 = vpop.permute.xlu0 %6047
      %6049 = vrot.lane.b32.xlu0 %v4471, 36
      %v6050 = vpop.permute.xlu0 %6049
      %6051 = vrot.lane.b32.xlu0 %v4472, 36
      %v6052 = vpop.permute.xlu0 %6051
      %6053 = vrot.lane.b32.xlu0 %v4473, 36
      %v6054 = vpop.permute.xlu0 %6053
      %6055 = vrot.lane.b32.xlu0 %v4474, 36
      %v6056 = vpop.permute.xlu0 %6055
      %6057 = vrot.lane.b32.xlu0 %v4475, 36
      %v6058 = vpop.permute.xlu0 %6057
      %6059 = vrot.lane.b32.xlu0 %v4476, 36
      %v6060 = vpop.permute.xlu0 %6059
      %6061 = vrot.lane.b32.xlu0 %v4477, 36
      %v6062 = vpop.permute.xlu0 %6061
      %6063 = vrot.lane.b32.xlu0 %v4478, 36
      %v6064 = vpop.permute.xlu0 %6063
      %6065 = vrot.lane.b32.xlu0 %v4479, 36
      %v6066 = vpop.permute.xlu0 %6065
      %6067 = vrot.lane.b32.xlu0 %v4480, 36
      %v6068 = vpop.permute.xlu0 %6067
      %6069 = vrot.lane.b32.xlu0 %v4481, 36
      %v6070 = vpop.permute.xlu0 %6069
      %6071 = vrot.lane.b32.xlu0 %v4482, 36
      %v6072 = vpop.permute.xlu0 %6071
      %6073 = vrot.lane.b32.xlu0 %v4483, 36
      %v6074 = vpop.permute.xlu0 %6073
      %6075 = vrot.lane.b32.xlu0 %v4484, 36
      %v6076 = vpop.permute.xlu0 %6075
      %6077 = vrot.lane.b32.xlu0 %v4485, 36
      %v6078 = vpop.permute.xlu0 %6077
      %6079 = vrot.lane.b32.xlu0 %v4486, 36
      %v6080 = vpop.permute.xlu0 %6079
      %6081 = vrot.lane.b32.xlu0 %v4487, 36
      %v6082 = vpop.permute.xlu0 %6081
      %6083 = vrot.lane.b32.xlu0 %v4488, 36
      %v6084 = vpop.permute.xlu0 %6083
      %6085 = vrot.lane.b32.xlu0 %v4489, 36
      %v6086 = vpop.permute.xlu0 %6085
      %6087 = vrot.lane.b32.xlu0 %v4490, 36
      %v6088 = vpop.permute.xlu0 %6087
      %6089 = vrot.lane.b32.xlu0 %v4491, 36
      %v6090 = vpop.permute.xlu0 %6089
      %6091 = vrot.lane.b32.xlu0 %v4492, 36
      %v6092 = vpop.permute.xlu0 %6091
      %6093 = vrot.lane.b32.xlu0 %v4493, 36
      %v6094 = vpop.permute.xlu0 %6093
      %6095 = vrot.lane.b32.xlu0 %v4494, 36
      %v6096 = vpop.permute.xlu0 %6095
      %6097 = vrot.lane.b32.xlu0 %v4495, 36
      %v6098 = vpop.permute.xlu0 %6097
      %6099 = vrot.lane.b32.xlu0 %v4496, 36
      %v6100 = vpop.permute.xlu0 %6099
      %6101 = vrot.lane.b32.xlu0 %v4497, 36
      %v6102 = vpop.permute.xlu0 %6101
      %6103 = vrot.lane.b32.xlu0 %v4498, 36
      %v6104 = vpop.permute.xlu0 %6103
      %6105 = vrot.lane.b32.xlu0 %v4499, 36
      %v6106 = vpop.permute.xlu0 %6105
      %6107 = vrot.lane.b32.xlu0 %v4500, 36
      %v6108 = vpop.permute.xlu0 %6107
      %6109 = vrot.lane.b32.xlu0 %v4501, 36
      %v6110 = vpop.permute.xlu0 %6109
      %6111 = vrot.lane.b32.xlu0 %v4502, 36
      %v6112 = vpop.permute.xlu0 %6111
      %6113 = vrot.lane.b32.xlu0 %v4503, 36
      %v6114 = vpop.permute.xlu0 %6113
      %6115 = vrot.lane.b32.xlu0 %v4504, 36
      %v6116 = vpop.permute.xlu0 %6115
      %6117 = vrot.lane.b32.xlu0 %v4505, 36
      %v6118 = vpop.permute.xlu0 %6117
      %6119 = vrot.lane.b32.xlu0 %v4506, 36
      %v6120 = vpop.permute.xlu0 %6119
      %6121 = vrot.lane.b32.xlu0 %v4507, 36
      %v6122 = vpop.permute.xlu0 %6121
      %6123 = vrot.lane.b32.xlu0 %v4508, 36
      %v6124 = vpop.permute.xlu0 %6123
      %6125 = vrot.lane.b32.xlu0 %v4509, 36
      %v6126 = vpop.permute.xlu0 %6125
      %6127 = vrot.lane.b32.xlu0 %v4510, 36
      %v6128 = vpop.permute.xlu0 %6127
      %6129 = vrot.lane.b32.xlu0 %v4511, 36
      %v6130 = vpop.permute.xlu0 %6129
      %6131 = vrot.lane.b32.xlu0 %v4512, 36
      %v6132 = vpop.permute.xlu0 %6131
      %6133 = vrot.lane.b32.xlu0 %v4513, 36
      %v6134 = vpop.permute.xlu0 %6133
      %6135 = vrot.lane.b32.xlu0 %v4514, 36
      %v6136 = vpop.permute.xlu0 %6135
      %6137 = vrot.lane.b32.xlu0 %v4515, 36
      %v6138 = vpop.permute.xlu0 %6137
      %6139 = vrot.lane.b32.xlu0 %v4516, 36
      %v6140 = vpop.permute.xlu0 %6139
      %6141 = vrot.lane.b32.xlu0 %v6029, 36
      %v6142 = vpop.permute.xlu0 %6141
      %6143 = vrot.lane.b32.xlu0 %v6030, 36
      %v6144 = vpop.permute.xlu0 %6143
      %6145 = vrot.lane.b32.xlu0 %v6031, 36
      %v6146 = vpop.permute.xlu0 %6145
      %6147 = vrot.lane.b32.xlu0 %v6032, 36
      %v6148 = vpop.permute.xlu0 %6147
      %6149 = vrot.lane.b32.xlu0 %v6033, 36
      %v6150 = vpop.permute.xlu0 %6149
      %6151 = vrot.lane.b32.xlu0 %v6034, 36
      %v6152 = vpop.permute.xlu0 %6151
      %6153 = vrot.lane.b32.xlu0 %v6035, 36
      %v6154 = vpop.permute.xlu0 %6153
      %6155 = vrot.lane.b32.xlu0 %v6036, 36
      %v6156 = vpop.permute.xlu0 %6155
      %6157 = vrot.lane.b32.xlu0 %v6037, 36
      %v6158 = vpop.permute.xlu0 %6157
      %6159 = vrot.lane.b32.xlu0 %v6038, 36
      %v6160 = vpop.permute.xlu0 %6159
      %6161 = vrot.lane.b32.xlu0 %v6039, 36
      %v6162 = vpop.permute.xlu0 %6161
      %6163 = vrot.lane.b32.xlu0 %v6040, 36
      %v6164 = vpop.permute.xlu0 %6163
      %6165 = vrot.lane.b32.xlu0 %v6041, 36
      %v6166 = vpop.permute.xlu0 %6165
      %6167 = vrot.lane.b32.xlu0 %v6042, 36
      %v6168 = vpop.permute.xlu0 %6167
      %6169 = vrot.lane.b32.xlu0 %v6043, 36
      %v6170 = vpop.permute.xlu0 %6169
      %6171 = vrot.lane.b32.xlu0 %v6044, 36
      %v6172 = vpop.permute.xlu0 %6171
      %v6173 = vunpack.c.l.b16 %v3114
      %v6174 = vunpack.c.l.b16 %v3124
      %v6175 = vunpack.c.l.b16 %v3138
      %v6176 = vunpack.c.l.b16 %v3148
      %v6177 = vunpack.c.l.b16 %v3162
      %v6178 = vunpack.c.l.b16 %v3172
      %v6179 = vunpack.c.l.b16 %v3186
      %v6180 = vunpack.c.l.b16 %v3196
      %v6181 = vunpack.c.l.b16 %v3210
      %v6182 = vunpack.c.l.b16 %v3220
      %v6183 = vunpack.c.l.b16 %v3234
      %v6184 = vunpack.c.l.b16 %v3244
      %v6185 = vunpack.c.l.b16 %v3258
      %v6186 = vunpack.c.l.b16 %v3268
      %v6187 = vunpack.c.l.b16 %v3282
      %v6188 = vunpack.c.l.b16 %v3292
      %v6189 = vunpack.c.l.b16 %v3306
      %v6190 = vunpack.c.l.b16 %v3316
      %v6191 = vunpack.c.l.b16 %v3330
      %v6192 = vunpack.c.l.b16 %v3340
      %v6193 = vunpack.c.l.b16 %v3354
      %v6194 = vunpack.c.l.b16 %v3364
      %v6195 = vunpack.c.l.b16 %v3378
      %v6196 = vunpack.c.l.b16 %v3388
      %v6197 = vunpack.c.l.b16 %v3402
      %v6198 = vunpack.c.l.b16 %v3412
      %v6199 = vunpack.c.l.b16 %v3426
      %v6200 = vunpack.c.l.b16 %v3436
      %v6201 = vunpack.c.l.b16 %v3450
      %v6202 = vunpack.c.l.b16 %v3460
      %v6203 = vunpack.c.l.b16 %v3474
      %v6204 = vunpack.c.l.b16 %v3484
      %v6205 = vpack.c.b16 %v6174, %v6173
      %v6206 = vpack.c.b16 %v6176, %v6175
      %v6207 = vpack.c.b16 %v6178, %v6177
      %v6208 = vpack.c.b16 %v6180, %v6179
      %v6209 = vpack.c.b16 %v6182, %v6181
      %v6210 = vpack.c.b16 %v6184, %v6183
      %v6211 = vpack.c.b16 %v6186, %v6185
      %v6212 = vpack.c.b16 %v6188, %v6187
      %v6213 = vpack.c.b16 %v6190, %v6189
      %v6214 = vpack.c.b16 %v6192, %v6191
      %v6215 = vpack.c.b16 %v6194, %v6193
      %v6216 = vpack.c.b16 %v6196, %v6195
      %v6217 = vpack.c.b16 %v6198, %v6197
      %v6218 = vpack.c.b16 %v6200, %v6199
      %v6219 = vpack.c.b16 %v6202, %v6201
      %v6220 = vpack.c.b16 %v6204, %v6203
      %6221 = vrot.lane.b32.xlu0 %v4661, 40
      %v6222 = vpop.permute.xlu0 %6221
      %6223 = vrot.lane.b32.xlu0 %v4662, 40
      %v6224 = vpop.permute.xlu0 %6223
      %6225 = vrot.lane.b32.xlu0 %v4663, 40
      %v6226 = vpop.permute.xlu0 %6225
      %6227 = vrot.lane.b32.xlu0 %v4664, 40
      %v6228 = vpop.permute.xlu0 %6227
      %6229 = vrot.lane.b32.xlu0 %v4665, 40
      %v6230 = vpop.permute.xlu0 %6229
      %6231 = vrot.lane.b32.xlu0 %v4666, 40
      %v6232 = vpop.permute.xlu0 %6231
      %6233 = vrot.lane.b32.xlu0 %v4667, 40
      %v6234 = vpop.permute.xlu0 %6233
      %6235 = vrot.lane.b32.xlu0 %v4668, 40
      %v6236 = vpop.permute.xlu0 %6235
      %6237 = vrot.lane.b32.xlu0 %v4669, 40
      %v6238 = vpop.permute.xlu0 %6237
      %6239 = vrot.lane.b32.xlu0 %v4670, 40
      %v6240 = vpop.permute.xlu0 %6239
      %6241 = vrot.lane.b32.xlu0 %v4671, 40
      %v6242 = vpop.permute.xlu0 %6241
      %6243 = vrot.lane.b32.xlu0 %v4672, 40
      %v6244 = vpop.permute.xlu0 %6243
      %6245 = vrot.lane.b32.xlu0 %v4673, 40
      %v6246 = vpop.permute.xlu0 %6245
      %6247 = vrot.lane.b32.xlu0 %v4674, 40
      %v6248 = vpop.permute.xlu0 %6247
      %6249 = vrot.lane.b32.xlu0 %v4675, 40
      %v6250 = vpop.permute.xlu0 %6249
      %6251 = vrot.lane.b32.xlu0 %v4676, 40
      %v6252 = vpop.permute.xlu0 %6251
      %6253 = vrot.lane.b32.xlu0 %v4677, 40
      %v6254 = vpop.permute.xlu0 %6253
      %6255 = vrot.lane.b32.xlu0 %v4678, 40
      %v6256 = vpop.permute.xlu0 %6255
      %6257 = vrot.lane.b32.xlu0 %v4679, 40
      %v6258 = vpop.permute.xlu0 %6257
      %6259 = vrot.lane.b32.xlu0 %v4680, 40
      %v6260 = vpop.permute.xlu0 %6259
      %6261 = vrot.lane.b32.xlu0 %v4681, 40
      %v6262 = vpop.permute.xlu0 %6261
      %6263 = vrot.lane.b32.xlu0 %v4682, 40
      %v6264 = vpop.permute.xlu0 %6263
      %6265 = vrot.lane.b32.xlu0 %v4683, 40
      %v6266 = vpop.permute.xlu0 %6265
      %6267 = vrot.lane.b32.xlu0 %v4684, 40
      %v6268 = vpop.permute.xlu0 %6267
      %6269 = vrot.lane.b32.xlu0 %v4685, 40
      %v6270 = vpop.permute.xlu0 %6269
      %6271 = vrot.lane.b32.xlu0 %v4686, 40
      %v6272 = vpop.permute.xlu0 %6271
      %6273 = vrot.lane.b32.xlu0 %v4687, 40
      %v6274 = vpop.permute.xlu0 %6273
      %6275 = vrot.lane.b32.xlu0 %v4688, 40
      %v6276 = vpop.permute.xlu0 %6275
      %6277 = vrot.lane.b32.xlu0 %v4689, 40
      %v6278 = vpop.permute.xlu0 %6277
      %6279 = vrot.lane.b32.xlu0 %v4690, 40
      %v6280 = vpop.permute.xlu0 %6279
      %6281 = vrot.lane.b32.xlu0 %v4691, 40
      %v6282 = vpop.permute.xlu0 %6281
      %6283 = vrot.lane.b32.xlu0 %v4692, 40
      %v6284 = vpop.permute.xlu0 %6283
      %6285 = vrot.lane.b32.xlu0 %v4693, 40
      %v6286 = vpop.permute.xlu0 %6285
      %6287 = vrot.lane.b32.xlu0 %v4694, 40
      %v6288 = vpop.permute.xlu0 %6287
      %6289 = vrot.lane.b32.xlu0 %v4695, 40
      %v6290 = vpop.permute.xlu0 %6289
      %6291 = vrot.lane.b32.xlu0 %v4696, 40
      %v6292 = vpop.permute.xlu0 %6291
      %6293 = vrot.lane.b32.xlu0 %v4697, 40
      %v6294 = vpop.permute.xlu0 %6293
      %6295 = vrot.lane.b32.xlu0 %v4698, 40
      %v6296 = vpop.permute.xlu0 %6295
      %6297 = vrot.lane.b32.xlu0 %v4699, 40
      %v6298 = vpop.permute.xlu0 %6297
      %6299 = vrot.lane.b32.xlu0 %v4700, 40
      %v6300 = vpop.permute.xlu0 %6299
      %6301 = vrot.lane.b32.xlu0 %v4701, 40
      %v6302 = vpop.permute.xlu0 %6301
      %6303 = vrot.lane.b32.xlu0 %v4702, 40
      %v6304 = vpop.permute.xlu0 %6303
      %6305 = vrot.lane.b32.xlu0 %v4703, 40
      %v6306 = vpop.permute.xlu0 %6305
      %6307 = vrot.lane.b32.xlu0 %v4704, 40
      %v6308 = vpop.permute.xlu0 %6307
      %6309 = vrot.lane.b32.xlu0 %v4705, 40
      %v6310 = vpop.permute.xlu0 %6309
      %6311 = vrot.lane.b32.xlu0 %v4706, 40
      %v6312 = vpop.permute.xlu0 %6311
      %6313 = vrot.lane.b32.xlu0 %v4707, 40
      %v6314 = vpop.permute.xlu0 %6313
      %6315 = vrot.lane.b32.xlu0 %v4708, 40
      %v6316 = vpop.permute.xlu0 %6315
      %6317 = vrot.lane.b32.xlu0 %v6205, 40
      %v6318 = vpop.permute.xlu0 %6317
      %6319 = vrot.lane.b32.xlu0 %v6206, 40
      %v6320 = vpop.permute.xlu0 %6319
      %6321 = vrot.lane.b32.xlu0 %v6207, 40
      %v6322 = vpop.permute.xlu0 %6321
      %6323 = vrot.lane.b32.xlu0 %v6208, 40
      %v6324 = vpop.permute.xlu0 %6323
      %6325 = vrot.lane.b32.xlu0 %v6209, 40
      %v6326 = vpop.permute.xlu0 %6325
      %6327 = vrot.lane.b32.xlu0 %v6210, 40
      %v6328 = vpop.permute.xlu0 %6327
      %6329 = vrot.lane.b32.xlu0 %v6211, 40
      %v6330 = vpop.permute.xlu0 %6329
      %6331 = vrot.lane.b32.xlu0 %v6212, 40
      %v6332 = vpop.permute.xlu0 %6331
      %6333 = vrot.lane.b32.xlu0 %v6213, 40
      %v6334 = vpop.permute.xlu0 %6333
      %6335 = vrot.lane.b32.xlu0 %v6214, 40
      %v6336 = vpop.permute.xlu0 %6335
      %6337 = vrot.lane.b32.xlu0 %v6215, 40
      %v6338 = vpop.permute.xlu0 %6337
      %6339 = vrot.lane.b32.xlu0 %v6216, 40
      %v6340 = vpop.permute.xlu0 %6339
      %6341 = vrot.lane.b32.xlu0 %v6217, 40
      %v6342 = vpop.permute.xlu0 %6341
      %6343 = vrot.lane.b32.xlu0 %v6218, 40
      %v6344 = vpop.permute.xlu0 %6343
      %6345 = vrot.lane.b32.xlu0 %v6219, 40
      %v6346 = vpop.permute.xlu0 %6345
      %6347 = vrot.lane.b32.xlu0 %v6220, 40
      %v6348 = vpop.permute.xlu0 %6347
      %v6349 = vunpack.c.l.b16 %v3536
      %v6350 = vunpack.c.l.b16 %v3539
      %v6351 = vunpack.c.l.b16 %v3543
      %v6352 = vunpack.c.l.b16 %v3546
      %v6353 = vunpack.c.l.b16 %v3550
      %v6354 = vunpack.c.l.b16 %v3553
      %v6355 = vunpack.c.l.b16 %v3557
      %v6356 = vunpack.c.l.b16 %v3560
      %v6357 = vunpack.c.l.b16 %v3564
      %v6358 = vunpack.c.l.b16 %v3567
      %v6359 = vunpack.c.l.b16 %v3571
      %v6360 = vunpack.c.l.b16 %v3574
      %v6361 = vunpack.c.l.b16 %v3578
      %v6362 = vunpack.c.l.b16 %v3581
      %v6363 = vunpack.c.l.b16 %v3585
      %v6364 = vunpack.c.l.b16 %v3588
      %v6365 = vunpack.c.l.b16 %v3592
      %v6366 = vunpack.c.l.b16 %v3595
      %v6367 = vunpack.c.l.b16 %v3599
      %v6368 = vunpack.c.l.b16 %v3602
      %v6369 = vunpack.c.l.b16 %v3606
      %v6370 = vunpack.c.l.b16 %v3609
      %v6371 = vunpack.c.l.b16 %v3613
      %v6372 = vunpack.c.l.b16 %v3616
      %v6373 = vunpack.c.l.b16 %v3620
      %v6374 = vunpack.c.l.b16 %v3623
      %v6375 = vunpack.c.l.b16 %v3627
      %v6376 = vunpack.c.l.b16 %v3630
      %v6377 = vunpack.c.l.b16 %v3634
      %v6378 = vunpack.c.l.b16 %v3637
      %v6379 = vunpack.c.l.b16 %v3641
      %v6380 = vunpack.c.l.b16 %v3644
      %v6381 = vpack.c.b16 %v6350, %v6349
      %v6382 = vpack.c.b16 %v6352, %v6351
      %v6383 = vpack.c.b16 %v6354, %v6353
      %v6384 = vpack.c.b16 %v6356, %v6355
      %v6385 = vpack.c.b16 %v6358, %v6357
      %v6386 = vpack.c.b16 %v6360, %v6359
      %v6387 = vpack.c.b16 %v6362, %v6361
      %v6388 = vpack.c.b16 %v6364, %v6363
      %v6389 = vpack.c.b16 %v6366, %v6365
      %v6390 = vpack.c.b16 %v6368, %v6367
      %v6391 = vpack.c.b16 %v6370, %v6369
      %v6392 = vpack.c.b16 %v6372, %v6371
      %v6393 = vpack.c.b16 %v6374, %v6373
      %v6394 = vpack.c.b16 %v6376, %v6375
      %v6395 = vpack.c.b16 %v6378, %v6377
      %v6396 = vpack.c.b16 %v6380, %v6379
      %6397 = vrot.lane.b32.xlu0 %v4981, 44
      %v6398 = vpop.permute.xlu0 %6397
      %6399 = vrot.lane.b32.xlu0 %v4982, 44
      %v6400 = vpop.permute.xlu0 %6399
      %6401 = vrot.lane.b32.xlu0 %v4983, 44
      %v6402 = vpop.permute.xlu0 %6401
      %6403 = vrot.lane.b32.xlu0 %v4984, 44
      %v6404 = vpop.permute.xlu0 %6403
      %6405 = vrot.lane.b32.xlu0 %v4985, 44
      %v6406 = vpop.permute.xlu0 %6405
      %6407 = vrot.lane.b32.xlu0 %v4986, 44
      %v6408 = vpop.permute.xlu0 %6407
      %6409 = vrot.lane.b32.xlu0 %v4987, 44
      %v6410 = vpop.permute.xlu0 %6409
      %6411 = vrot.lane.b32.xlu0 %v4988, 44
      %v6412 = vpop.permute.xlu0 %6411
      %6413 = vrot.lane.b32.xlu0 %v4989, 44
      %v6414 = vpop.permute.xlu0 %6413
      %6415 = vrot.lane.b32.xlu0 %v4990, 44
      %v6416 = vpop.permute.xlu0 %6415
      %6417 = vrot.lane.b32.xlu0 %v4991, 44
      %v6418 = vpop.permute.xlu0 %6417
      %6419 = vrot.lane.b32.xlu0 %v4992, 44
      %v6420 = vpop.permute.xlu0 %6419
      %6421 = vrot.lane.b32.xlu0 %v4993, 44
      %v6422 = vpop.permute.xlu0 %6421
      %6423 = vrot.lane.b32.xlu0 %v4994, 44
      %v6424 = vpop.permute.xlu0 %6423
      %6425 = vrot.lane.b32.xlu0 %v4995, 44
      %v6426 = vpop.permute.xlu0 %6425
      %6427 = vrot.lane.b32.xlu0 %v4996, 44
      %v6428 = vpop.permute.xlu0 %6427
      %6429 = vrot.lane.b32.xlu0 %v4997, 44
      %v6430 = vpop.permute.xlu0 %6429
      %6431 = vrot.lane.b32.xlu0 %v4998, 44
      %v6432 = vpop.permute.xlu0 %6431
      %6433 = vrot.lane.b32.xlu0 %v4999, 44
      %v6434 = vpop.permute.xlu0 %6433
      %6435 = vrot.lane.b32.xlu0 %v5000, 44
      %v6436 = vpop.permute.xlu0 %6435
      %6437 = vrot.lane.b32.xlu0 %v5001, 44
      %v6438 = vpop.permute.xlu0 %6437
      %6439 = vrot.lane.b32.xlu0 %v5002, 44
      %v6440 = vpop.permute.xlu0 %6439
      %6441 = vrot.lane.b32.xlu0 %v5003, 44
      %v6442 = vpop.permute.xlu0 %6441
      %6443 = vrot.lane.b32.xlu0 %v5004, 44
      %v6444 = vpop.permute.xlu0 %6443
      %6445 = vrot.lane.b32.xlu0 %v5005, 44
      %v6446 = vpop.permute.xlu0 %6445
      %6447 = vrot.lane.b32.xlu0 %v5006, 44
      %v6448 = vpop.permute.xlu0 %6447
      %6449 = vrot.lane.b32.xlu0 %v5007, 44
      %v6450 = vpop.permute.xlu0 %6449
      %6451 = vrot.lane.b32.xlu0 %v5008, 44
      %v6452 = vpop.permute.xlu0 %6451
      %6453 = vrot.lane.b32.xlu0 %v5009, 44
      %v6454 = vpop.permute.xlu0 %6453
      %6455 = vrot.lane.b32.xlu0 %v5010, 44
      %v6456 = vpop.permute.xlu0 %6455
      %6457 = vrot.lane.b32.xlu0 %v5011, 44
      %v6458 = vpop.permute.xlu0 %6457
      %6459 = vrot.lane.b32.xlu0 %v5012, 44
      %v6460 = vpop.permute.xlu0 %6459
      %6461 = vrot.lane.b32.xlu0 %v5013, 44
      %v6462 = vpop.permute.xlu0 %6461
      %6463 = vrot.lane.b32.xlu0 %v5014, 44
      %v6464 = vpop.permute.xlu0 %6463
      %6465 = vrot.lane.b32.xlu0 %v5015, 44
      %v6466 = vpop.permute.xlu0 %6465
      %6467 = vrot.lane.b32.xlu0 %v5016, 44
      %v6468 = vpop.permute.xlu0 %6467
      %6469 = vrot.lane.b32.xlu0 %v5017, 44
      %v6470 = vpop.permute.xlu0 %6469
      %6471 = vrot.lane.b32.xlu0 %v5018, 44
      %v6472 = vpop.permute.xlu0 %6471
      %6473 = vrot.lane.b32.xlu0 %v5019, 44
      %v6474 = vpop.permute.xlu0 %6473
      %6475 = vrot.lane.b32.xlu0 %v5020, 44
      %v6476 = vpop.permute.xlu0 %6475
      %6477 = vrot.lane.b32.xlu0 %v5021, 44
      %v6478 = vpop.permute.xlu0 %6477
      %6479 = vrot.lane.b32.xlu0 %v5022, 44
      %v6480 = vpop.permute.xlu0 %6479
      %6481 = vrot.lane.b32.xlu0 %v5023, 44
      %v6482 = vpop.permute.xlu0 %6481
      %6483 = vrot.lane.b32.xlu0 %v5024, 44
      %v6484 = vpop.permute.xlu0 %6483
      %6485 = vrot.lane.b32.xlu0 %v5025, 44
      %v6486 = vpop.permute.xlu0 %6485
      %6487 = vrot.lane.b32.xlu0 %v5026, 44
      %v6488 = vpop.permute.xlu0 %6487
      %6489 = vrot.lane.b32.xlu0 %v5027, 44
      %v6490 = vpop.permute.xlu0 %6489
      %6491 = vrot.lane.b32.xlu0 %v5028, 44
      %v6492 = vpop.permute.xlu0 %6491
      %6493 = vrot.lane.b32.xlu0 %v6381, 44
      %v6494 = vpop.permute.xlu0 %6493
      %6495 = vrot.lane.b32.xlu0 %v6382, 44
      %v6496 = vpop.permute.xlu0 %6495
      %6497 = vrot.lane.b32.xlu0 %v6383, 44
      %v6498 = vpop.permute.xlu0 %6497
      %6499 = vrot.lane.b32.xlu0 %v6384, 44
      %v6500 = vpop.permute.xlu0 %6499
      %6501 = vrot.lane.b32.xlu0 %v6385, 44
      %v6502 = vpop.permute.xlu0 %6501
      %6503 = vrot.lane.b32.xlu0 %v6386, 44
      %v6504 = vpop.permute.xlu0 %6503
      %6505 = vrot.lane.b32.xlu0 %v6387, 44
      %v6506 = vpop.permute.xlu0 %6505
      %6507 = vrot.lane.b32.xlu0 %v6388, 44
      %v6508 = vpop.permute.xlu0 %6507
      %6509 = vrot.lane.b32.xlu0 %v6389, 44
      %v6510 = vpop.permute.xlu0 %6509
      %6511 = vrot.lane.b32.xlu0 %v6390, 44
      %v6512 = vpop.permute.xlu0 %6511
      %6513 = vrot.lane.b32.xlu0 %v6391, 44
      %v6514 = vpop.permute.xlu0 %6513
      %6515 = vrot.lane.b32.xlu0 %v6392, 44
      %v6516 = vpop.permute.xlu0 %6515
      %6517 = vrot.lane.b32.xlu0 %v6393, 44
      %v6518 = vpop.permute.xlu0 %6517
      %6519 = vrot.lane.b32.xlu0 %v6394, 44
      %v6520 = vpop.permute.xlu0 %6519
      %6521 = vrot.lane.b32.xlu0 %v6395, 44
      %v6522 = vpop.permute.xlu0 %6521
      %6523 = vrot.lane.b32.xlu0 %v6396, 44
      %v6524 = vpop.permute.xlu0 %6523
      %v6525 = vunpack.c.l.b16 %v587
      %v6526 = vunpack.c.l.b16 %v588
      %v6527 = vpack.c.b16 %v6526, %v6525
      %6528 = vrot.lane.b32.xlu0 %v4470, 48
      %v6529 = vpop.permute.xlu0 %6528
      %6530 = vrot.lane.b32.xlu0 %v4471, 48
      %v6531 = vpop.permute.xlu0 %6530
      %6532 = vrot.lane.b32.xlu0 %v4472, 48
      %v6533 = vpop.permute.xlu0 %6532
      %6534 = vrot.lane.b32.xlu0 %v4473, 48
      %v6535 = vpop.permute.xlu0 %6534
      %6536 = vrot.lane.b32.xlu0 %v4474, 48
      %v6537 = vpop.permute.xlu0 %6536
      %6538 = vrot.lane.b32.xlu0 %v4475, 48
      %v6539 = vpop.permute.xlu0 %6538
      %6540 = vrot.lane.b32.xlu0 %v4476, 48
      %v6541 = vpop.permute.xlu0 %6540
      %6542 = vrot.lane.b32.xlu0 %v4477, 48
      %v6543 = vpop.permute.xlu0 %6542
      %6544 = vrot.lane.b32.xlu0 %v4478, 48
      %v6545 = vpop.permute.xlu0 %6544
      %6546 = vrot.lane.b32.xlu0 %v4479, 48
      %v6547 = vpop.permute.xlu0 %6546
      %6548 = vrot.lane.b32.xlu0 %v4480, 48
      %v6549 = vpop.permute.xlu0 %6548
      %6550 = vrot.lane.b32.xlu0 %v4481, 48
      %v6551 = vpop.permute.xlu0 %6550
      %6552 = vrot.lane.b32.xlu0 %v4482, 48
      %v6553 = vpop.permute.xlu0 %6552
      %6554 = vrot.lane.b32.xlu0 %v4483, 48
      %v6555 = vpop.permute.xlu0 %6554
      %6556 = vrot.lane.b32.xlu0 %v4484, 48
      %v6557 = vpop.permute.xlu0 %6556
      %6558 = vrot.lane.b32.xlu0 %v5166, 48
      %v6559 = vpop.permute.xlu0 %6558
      %6560 = vrot.lane.b32.xlu0 %v4486, 48
      %v6561 = vpop.permute.xlu0 %6560
      %6562 = vrot.lane.b32.xlu0 %v4487, 48
      %v6563 = vpop.permute.xlu0 %6562
      %6564 = vrot.lane.b32.xlu0 %v4488, 48
      %v6565 = vpop.permute.xlu0 %6564
      %6566 = vrot.lane.b32.xlu0 %v4489, 48
      %v6567 = vpop.permute.xlu0 %6566
      %6568 = vrot.lane.b32.xlu0 %v4490, 48
      %v6569 = vpop.permute.xlu0 %6568
      %6570 = vrot.lane.b32.xlu0 %v4491, 48
      %v6571 = vpop.permute.xlu0 %6570
      %6572 = vrot.lane.b32.xlu0 %v4492, 48
      %v6573 = vpop.permute.xlu0 %6572
      %6574 = vrot.lane.b32.xlu0 %v4493, 48
      %v6575 = vpop.permute.xlu0 %6574
      %6576 = vrot.lane.b32.xlu0 %v4494, 48
      %v6577 = vpop.permute.xlu0 %6576
      %6578 = vrot.lane.b32.xlu0 %v4495, 48
      %v6579 = vpop.permute.xlu0 %6578
      %6580 = vrot.lane.b32.xlu0 %v4496, 48
      %v6581 = vpop.permute.xlu0 %6580
      %6582 = vrot.lane.b32.xlu0 %v4497, 48
      %v6583 = vpop.permute.xlu0 %6582
      %6584 = vrot.lane.b32.xlu0 %v4498, 48
      %v6585 = vpop.permute.xlu0 %6584
      %6586 = vrot.lane.b32.xlu0 %v4499, 48
      %v6587 = vpop.permute.xlu0 %6586
      %6588 = vrot.lane.b32.xlu0 %v4500, 48
      %v6589 = vpop.permute.xlu0 %6588
      %6590 = vrot.lane.b32.xlu0 %v5167, 48
      %v6591 = vpop.permute.xlu0 %6590
      %6592 = vrot.lane.b32.xlu0 %v4502, 48
      %v6593 = vpop.permute.xlu0 %6592
      %6594 = vrot.lane.b32.xlu0 %v4503, 48
      %v6595 = vpop.permute.xlu0 %6594
      %6596 = vrot.lane.b32.xlu0 %v4504, 48
      %v6597 = vpop.permute.xlu0 %6596
      %6598 = vrot.lane.b32.xlu0 %v4505, 48
      %v6599 = vpop.permute.xlu0 %6598
      %6600 = vrot.lane.b32.xlu0 %v4506, 48
      %v6601 = vpop.permute.xlu0 %6600
      %6602 = vrot.lane.b32.xlu0 %v4507, 48
      %v6603 = vpop.permute.xlu0 %6602
      %6604 = vrot.lane.b32.xlu0 %v4508, 48
      %v6605 = vpop.permute.xlu0 %6604
      %6606 = vrot.lane.b32.xlu0 %v4509, 48
      %v6607 = vpop.permute.xlu0 %6606
      %6608 = vrot.lane.b32.xlu0 %v4510, 48
      %v6609 = vpop.permute.xlu0 %6608
      %6610 = vrot.lane.b32.xlu0 %v4511, 48
      %v6611 = vpop.permute.xlu0 %6610
      %6612 = vrot.lane.b32.xlu0 %v4512, 48
      %v6613 = vpop.permute.xlu0 %6612
      %6614 = vrot.lane.b32.xlu0 %v4513, 48
      %v6615 = vpop.permute.xlu0 %6614
      %6616 = vrot.lane.b32.xlu0 %v4514, 48
      %v6617 = vpop.permute.xlu0 %6616
      %6618 = vrot.lane.b32.xlu0 %v4515, 48
      %v6619 = vpop.permute.xlu0 %6618
      %6620 = vrot.lane.b32.xlu0 %v4516, 48
      %v6621 = vpop.permute.xlu0 %6620
      %6622 = vrot.lane.b32.xlu0 %v5168, 48
      %v6623 = vpop.permute.xlu0 %6622
      %6624 = vrot.lane.b32.xlu0 %v6030, 48
      %v6625 = vpop.permute.xlu0 %6624
      %6626 = vrot.lane.b32.xlu0 %v6031, 48
      %v6627 = vpop.permute.xlu0 %6626
      %6628 = vrot.lane.b32.xlu0 %v6032, 48
      %v6629 = vpop.permute.xlu0 %6628
      %6630 = vrot.lane.b32.xlu0 %v6033, 48
      %v6631 = vpop.permute.xlu0 %6630
      %6632 = vrot.lane.b32.xlu0 %v6034, 48
      %v6633 = vpop.permute.xlu0 %6632
      %6634 = vrot.lane.b32.xlu0 %v6035, 48
      %v6635 = vpop.permute.xlu0 %6634
      %6636 = vrot.lane.b32.xlu0 %v6036, 48
      %v6637 = vpop.permute.xlu0 %6636
      %6638 = vrot.lane.b32.xlu0 %v6037, 48
      %v6639 = vpop.permute.xlu0 %6638
      %6640 = vrot.lane.b32.xlu0 %v6038, 48
      %v6641 = vpop.permute.xlu0 %6640
      %6642 = vrot.lane.b32.xlu0 %v6039, 48
      %v6643 = vpop.permute.xlu0 %6642
      %6644 = vrot.lane.b32.xlu0 %v6040, 48
      %v6645 = vpop.permute.xlu0 %6644
      %6646 = vrot.lane.b32.xlu0 %v6041, 48
      %v6647 = vpop.permute.xlu0 %6646
      %6648 = vrot.lane.b32.xlu0 %v6042, 48
      %v6649 = vpop.permute.xlu0 %6648
      %6650 = vrot.lane.b32.xlu0 %v6043, 48
      %v6651 = vpop.permute.xlu0 %6650
      %6652 = vrot.lane.b32.xlu0 %v6044, 48
      %v6653 = vpop.permute.xlu0 %6652
      %6654 = vrot.lane.b32.xlu0 %v6527, 48
      %v6655 = vpop.permute.xlu0 %6654
      %v6656 = vunpack.c.l.b16 %v3658
      %v6657 = vunpack.c.l.b16 %v3668
      %v6658 = vpack.c.b16 %v6657, %v6656
      %6659 = vrot.lane.b32.xlu0 %v4662, 52
      %v6660 = vpop.permute.xlu0 %6659
      %6661 = vrot.lane.b32.xlu0 %v4663, 52
      %v6662 = vpop.permute.xlu0 %6661
      %6663 = vrot.lane.b32.xlu0 %v4664, 52
      %v6664 = vpop.permute.xlu0 %6663
      %6665 = vrot.lane.b32.xlu0 %v4665, 52
      %v6666 = vpop.permute.xlu0 %6665
      %6667 = vrot.lane.b32.xlu0 %v4666, 52
      %v6668 = vpop.permute.xlu0 %6667
      %6669 = vrot.lane.b32.xlu0 %v4667, 52
      %v6670 = vpop.permute.xlu0 %6669
      %6671 = vrot.lane.b32.xlu0 %v4668, 52
      %v6672 = vpop.permute.xlu0 %6671
      %6673 = vrot.lane.b32.xlu0 %v4669, 52
      %v6674 = vpop.permute.xlu0 %6673
      %6675 = vrot.lane.b32.xlu0 %v4670, 52
      %v6676 = vpop.permute.xlu0 %6675
      %6677 = vrot.lane.b32.xlu0 %v4671, 52
      %v6678 = vpop.permute.xlu0 %6677
      %6679 = vrot.lane.b32.xlu0 %v4672, 52
      %v6680 = vpop.permute.xlu0 %6679
      %6681 = vrot.lane.b32.xlu0 %v4673, 52
      %v6682 = vpop.permute.xlu0 %6681
      %6683 = vrot.lane.b32.xlu0 %v4674, 52
      %v6684 = vpop.permute.xlu0 %6683
      %6685 = vrot.lane.b32.xlu0 %v4675, 52
      %v6686 = vpop.permute.xlu0 %6685
      %6687 = vrot.lane.b32.xlu0 %v4676, 52
      %v6688 = vpop.permute.xlu0 %6687
      %6689 = vrot.lane.b32.xlu0 %v5306, 52
      %v6690 = vpop.permute.xlu0 %6689
      %6691 = vrot.lane.b32.xlu0 %v4678, 52
      %v6692 = vpop.permute.xlu0 %6691
      %6693 = vrot.lane.b32.xlu0 %v4679, 52
      %v6694 = vpop.permute.xlu0 %6693
      %6695 = vrot.lane.b32.xlu0 %v4680, 52
      %v6696 = vpop.permute.xlu0 %6695
      %6697 = vrot.lane.b32.xlu0 %v4681, 52
      %v6698 = vpop.permute.xlu0 %6697
      %6699 = vrot.lane.b32.xlu0 %v4682, 52
      %v6700 = vpop.permute.xlu0 %6699
      %6701 = vrot.lane.b32.xlu0 %v4683, 52
      %v6702 = vpop.permute.xlu0 %6701
      %6703 = vrot.lane.b32.xlu0 %v4684, 52
      %v6704 = vpop.permute.xlu0 %6703
      %6705 = vrot.lane.b32.xlu0 %v4685, 52
      %v6706 = vpop.permute.xlu0 %6705
      %6707 = vrot.lane.b32.xlu0 %v4686, 52
      %v6708 = vpop.permute.xlu0 %6707
      %6709 = vrot.lane.b32.xlu0 %v4687, 52
      %v6710 = vpop.permute.xlu0 %6709
      %6711 = vrot.lane.b32.xlu0 %v4688, 52
      %v6712 = vpop.permute.xlu0 %6711
      %6713 = vrot.lane.b32.xlu0 %v4689, 52
      %v6714 = vpop.permute.xlu0 %6713
      %6715 = vrot.lane.b32.xlu0 %v4690, 52
      %v6716 = vpop.permute.xlu0 %6715
      %6717 = vrot.lane.b32.xlu0 %v4691, 52
      %v6718 = vpop.permute.xlu0 %6717
      %6719 = vrot.lane.b32.xlu0 %v4692, 52
      %v6720 = vpop.permute.xlu0 %6719
      %6721 = vrot.lane.b32.xlu0 %v5307, 52
      %v6722 = vpop.permute.xlu0 %6721
      %6723 = vrot.lane.b32.xlu0 %v4694, 52
      %v6724 = vpop.permute.xlu0 %6723
      %6725 = vrot.lane.b32.xlu0 %v4695, 52
      %v6726 = vpop.permute.xlu0 %6725
      %6727 = vrot.lane.b32.xlu0 %v4696, 52
      %v6728 = vpop.permute.xlu0 %6727
      %6729 = vrot.lane.b32.xlu0 %v4697, 52
      %v6730 = vpop.permute.xlu0 %6729
      %6731 = vrot.lane.b32.xlu0 %v4698, 52
      %v6732 = vpop.permute.xlu0 %6731
      %6733 = vrot.lane.b32.xlu0 %v4699, 52
      %v6734 = vpop.permute.xlu0 %6733
      %6735 = vrot.lane.b32.xlu0 %v4700, 52
      %v6736 = vpop.permute.xlu0 %6735
      %6737 = vrot.lane.b32.xlu0 %v4701, 52
      %v6738 = vpop.permute.xlu0 %6737
      %6739 = vrot.lane.b32.xlu0 %v4702, 52
      %v6740 = vpop.permute.xlu0 %6739
      %6741 = vrot.lane.b32.xlu0 %v4703, 52
      %v6742 = vpop.permute.xlu0 %6741
      %6743 = vrot.lane.b32.xlu0 %v4704, 52
      %v6744 = vpop.permute.xlu0 %6743
      %6745 = vrot.lane.b32.xlu0 %v4705, 52
      %v6746 = vpop.permute.xlu0 %6745
      %6747 = vrot.lane.b32.xlu0 %v4706, 52
      %v6748 = vpop.permute.xlu0 %6747
      %6749 = vrot.lane.b32.xlu0 %v4707, 52
      %v6750 = vpop.permute.xlu0 %6749
      %6751 = vrot.lane.b32.xlu0 %v4708, 52
      %v6752 = vpop.permute.xlu0 %6751
      %6753 = vrot.lane.b32.xlu0 %v5308, 52
      %v6754 = vpop.permute.xlu0 %6753
      %6755 = vrot.lane.b32.xlu0 %v6206, 52
      %v6756 = vpop.permute.xlu0 %6755
      %6757 = vrot.lane.b32.xlu0 %v6207, 52
      %v6758 = vpop.permute.xlu0 %6757
      %6759 = vrot.lane.b32.xlu0 %v6208, 52
      %v6760 = vpop.permute.xlu0 %6759
      %6761 = vrot.lane.b32.xlu0 %v6209, 52
      %v6762 = vpop.permute.xlu0 %6761
      %6763 = vrot.lane.b32.xlu0 %v6210, 52
      %v6764 = vpop.permute.xlu0 %6763
      %6765 = vrot.lane.b32.xlu0 %v6211, 52
      %v6766 = vpop.permute.xlu0 %6765
      %6767 = vrot.lane.b32.xlu0 %v6212, 52
      %v6768 = vpop.permute.xlu0 %6767
      %6769 = vrot.lane.b32.xlu0 %v6213, 52
      %v6770 = vpop.permute.xlu0 %6769
      %6771 = vrot.lane.b32.xlu0 %v6214, 52
      %v6772 = vpop.permute.xlu0 %6771
      %6773 = vrot.lane.b32.xlu0 %v6215, 52
      %v6774 = vpop.permute.xlu0 %6773
      %6775 = vrot.lane.b32.xlu0 %v6216, 52
      %v6776 = vpop.permute.xlu0 %6775
      %6777 = vrot.lane.b32.xlu0 %v6217, 52
      %v6778 = vpop.permute.xlu0 %6777
      %6779 = vrot.lane.b32.xlu0 %v6218, 52
      %v6780 = vpop.permute.xlu0 %6779
      %6781 = vrot.lane.b32.xlu0 %v6219, 52
      %v6782 = vpop.permute.xlu0 %6781
      %6783 = vrot.lane.b32.xlu0 %v6220, 52
      %v6784 = vpop.permute.xlu0 %6783
      %6785 = vrot.lane.b32.xlu0 %v6658, 52
      %v6786 = vpop.permute.xlu0 %6785
      %v6787 = vunpack.c.l.b16 %v3675
      %v6788 = vunpack.c.l.b16 %v3678
      %v6789 = vpack.c.b16 %v6788, %v6787
      %6790 = vrot.lane.b32.xlu0 %v4982, 56
      %v6791 = vpop.permute.xlu0 %6790
      %6792 = vrot.lane.b32.xlu0 %v4983, 56
      %v6793 = vpop.permute.xlu0 %6792
      %6794 = vrot.lane.b32.xlu0 %v4984, 56
      %v6795 = vpop.permute.xlu0 %6794
      %6796 = vrot.lane.b32.xlu0 %v4985, 56
      %v6797 = vpop.permute.xlu0 %6796
      %6798 = vrot.lane.b32.xlu0 %v4986, 56
      %v6799 = vpop.permute.xlu0 %6798
      %6800 = vrot.lane.b32.xlu0 %v4987, 56
      %v6801 = vpop.permute.xlu0 %6800
      %6802 = vrot.lane.b32.xlu0 %v4988, 56
      %v6803 = vpop.permute.xlu0 %6802
      %6804 = vrot.lane.b32.xlu0 %v4989, 56
      %v6805 = vpop.permute.xlu0 %6804
      %6806 = vrot.lane.b32.xlu0 %v4990, 56
      %v6807 = vpop.permute.xlu0 %6806
      %6808 = vrot.lane.b32.xlu0 %v4991, 56
      %v6809 = vpop.permute.xlu0 %6808
      %6810 = vrot.lane.b32.xlu0 %v4992, 56
      %v6811 = vpop.permute.xlu0 %6810
      %6812 = vrot.lane.b32.xlu0 %v4993, 56
      %v6813 = vpop.permute.xlu0 %6812
      %6814 = vrot.lane.b32.xlu0 %v4994, 56
      %v6815 = vpop.permute.xlu0 %6814
      %6816 = vrot.lane.b32.xlu0 %v4995, 56
      %v6817 = vpop.permute.xlu0 %6816
      %6818 = vrot.lane.b32.xlu0 %v4996, 56
      %v6819 = vpop.permute.xlu0 %6818
      %6820 = vrot.lane.b32.xlu0 %v5446, 56
      %v6821 = vpop.permute.xlu0 %6820
      %6822 = vrot.lane.b32.xlu0 %v4998, 56
      %v6823 = vpop.permute.xlu0 %6822
      %6824 = vrot.lane.b32.xlu0 %v4999, 56
      %v6825 = vpop.permute.xlu0 %6824
      %6826 = vrot.lane.b32.xlu0 %v5000, 56
      %v6827 = vpop.permute.xlu0 %6826
      %6828 = vrot.lane.b32.xlu0 %v5001, 56
      %v6829 = vpop.permute.xlu0 %6828
      %6830 = vrot.lane.b32.xlu0 %v5002, 56
      %v6831 = vpop.permute.xlu0 %6830
      %6832 = vrot.lane.b32.xlu0 %v5003, 56
      %v6833 = vpop.permute.xlu0 %6832
      %6834 = vrot.lane.b32.xlu0 %v5004, 56
      %v6835 = vpop.permute.xlu0 %6834
      %6836 = vrot.lane.b32.xlu0 %v5005, 56
      %v6837 = vpop.permute.xlu0 %6836
      %6838 = vrot.lane.b32.xlu0 %v5006, 56
      %v6839 = vpop.permute.xlu0 %6838
      %6840 = vrot.lane.b32.xlu0 %v5007, 56
      %v6841 = vpop.permute.xlu0 %6840
      %6842 = vrot.lane.b32.xlu0 %v5008, 56
      %v6843 = vpop.permute.xlu0 %6842
      %6844 = vrot.lane.b32.xlu0 %v5009, 56
      %v6845 = vpop.permute.xlu0 %6844
      %6846 = vrot.lane.b32.xlu0 %v5010, 56
      %v6847 = vpop.permute.xlu0 %6846
      %6848 = vrot.lane.b32.xlu0 %v5011, 56
      %v6849 = vpop.permute.xlu0 %6848
      %6850 = vrot.lane.b32.xlu0 %v5012, 56
      %v6851 = vpop.permute.xlu0 %6850
      %6852 = vrot.lane.b32.xlu0 %v5447, 56
      %v6853 = vpop.permute.xlu0 %6852
      %6854 = vrot.lane.b32.xlu0 %v5014, 56
      %v6855 = vpop.permute.xlu0 %6854
      %6856 = vrot.lane.b32.xlu0 %v5015, 56
      %v6857 = vpop.permute.xlu0 %6856
      %6858 = vrot.lane.b32.xlu0 %v5016, 56
      %v6859 = vpop.permute.xlu0 %6858
      %6860 = vrot.lane.b32.xlu0 %v5017, 56
      %v6861 = vpop.permute.xlu0 %6860
      %6862 = vrot.lane.b32.xlu0 %v5018, 56
      %v6863 = vpop.permute.xlu0 %6862
      %6864 = vrot.lane.b32.xlu0 %v5019, 56
      %v6865 = vpop.permute.xlu0 %6864
      %6866 = vrot.lane.b32.xlu0 %v5020, 56
      %v6867 = vpop.permute.xlu0 %6866
      %6868 = vrot.lane.b32.xlu0 %v5021, 56
      %v6869 = vpop.permute.xlu0 %6868
      %6870 = vrot.lane.b32.xlu0 %v5022, 56
      %v6871 = vpop.permute.xlu0 %6870
      %6872 = vrot.lane.b32.xlu0 %v5023, 56
      %v6873 = vpop.permute.xlu0 %6872
      %6874 = vrot.lane.b32.xlu0 %v5024, 56
      %v6875 = vpop.permute.xlu0 %6874
      %6876 = vrot.lane.b32.xlu0 %v5025, 56
      %v6877 = vpop.permute.xlu0 %6876
      %6878 = vrot.lane.b32.xlu0 %v5026, 56
      %v6879 = vpop.permute.xlu0 %6878
      %6880 = vrot.lane.b32.xlu0 %v5027, 56
      %v6881 = vpop.permute.xlu0 %6880
      %6882 = vrot.lane.b32.xlu0 %v5028, 56
      %v6883 = vpop.permute.xlu0 %6882
      %6884 = vrot.lane.b32.xlu0 %v5448, 56
      %v6885 = vpop.permute.xlu0 %6884
      %6886 = vrot.lane.b32.xlu0 %v6382, 56
      %v6887 = vpop.permute.xlu0 %6886
      %6888 = vrot.lane.b32.xlu0 %v6383, 56
      %v6889 = vpop.permute.xlu0 %6888
      %6890 = vrot.lane.b32.xlu0 %v6384, 56
      %v6891 = vpop.permute.xlu0 %6890
      %6892 = vrot.lane.b32.xlu0 %v6385, 56
      %v6893 = vpop.permute.xlu0 %6892
      %6894 = vrot.lane.b32.xlu0 %v6386, 56
      %v6895 = vpop.permute.xlu0 %6894
      %6896 = vrot.lane.b32.xlu0 %v6387, 56
      %v6897 = vpop.permute.xlu0 %6896
      %6898 = vrot.lane.b32.xlu0 %v6388, 56
      %v6899 = vpop.permute.xlu0 %6898
      %6900 = vrot.lane.b32.xlu0 %v6389, 56
      %v6901 = vpop.permute.xlu0 %6900
      %6902 = vrot.lane.b32.xlu0 %v6390, 56
      %v6903 = vpop.permute.xlu0 %6902
      %6904 = vrot.lane.b32.xlu0 %v6391, 56
      %v6905 = vpop.permute.xlu0 %6904
      %6906 = vrot.lane.b32.xlu0 %v6392, 56
      %v6907 = vpop.permute.xlu0 %6906
      %6908 = vrot.lane.b32.xlu0 %v6393, 56
      %v6909 = vpop.permute.xlu0 %6908
      %6910 = vrot.lane.b32.xlu0 %v6394, 56
      %v6911 = vpop.permute.xlu0 %6910
      %6912 = vrot.lane.b32.xlu0 %v6395, 56
      %v6913 = vpop.permute.xlu0 %6912
      %6914 = vrot.lane.b32.xlu0 %v6396, 56
      %v6915 = vpop.permute.xlu0 %6914
      %6916 = vrot.lane.b32.xlu0 %v6789, 56
      %v6917 = vpop.permute.xlu0 %6916
      %v6918 = vunpack.c.l.b16 %v590
      %v6919 = vunpack.c.l.b16 %v591
      %v6920 = vpack.c.b16 %v6919, %v6918
      %6921 = vrot.lane.b32.xlu0 %v4471, 60
      %v6922 = vpop.permute.xlu0 %6921
      %6923 = vrot.lane.b32.xlu0 %v4472, 60
      %v6924 = vpop.permute.xlu0 %6923
      %6925 = vrot.lane.b32.xlu0 %v4473, 60
      %v6926 = vpop.permute.xlu0 %6925
      %6927 = vrot.lane.b32.xlu0 %v4474, 60
      %v6928 = vpop.permute.xlu0 %6927
      %6929 = vrot.lane.b32.xlu0 %v4475, 60
      %v6930 = vpop.permute.xlu0 %6929
      %6931 = vrot.lane.b32.xlu0 %v4476, 60
      %v6932 = vpop.permute.xlu0 %6931
      %6933 = vrot.lane.b32.xlu0 %v4477, 60
      %v6934 = vpop.permute.xlu0 %6933
      %6935 = vrot.lane.b32.xlu0 %v4478, 60
      %v6936 = vpop.permute.xlu0 %6935
      %6937 = vrot.lane.b32.xlu0 %v4479, 60
      %v6938 = vpop.permute.xlu0 %6937
      %6939 = vrot.lane.b32.xlu0 %v4480, 60
      %v6940 = vpop.permute.xlu0 %6939
      %6941 = vrot.lane.b32.xlu0 %v4481, 60
      %v6942 = vpop.permute.xlu0 %6941
      %6943 = vrot.lane.b32.xlu0 %v4482, 60
      %v6944 = vpop.permute.xlu0 %6943
      %6945 = vrot.lane.b32.xlu0 %v4483, 60
      %v6946 = vpop.permute.xlu0 %6945
      %6947 = vrot.lane.b32.xlu0 %v4484, 60
      %v6948 = vpop.permute.xlu0 %6947
      %6949 = vrot.lane.b32.xlu0 %v5166, 60
      %v6950 = vpop.permute.xlu0 %6949
      %6951 = vrot.lane.b32.xlu0 %v5586, 60
      %v6952 = vpop.permute.xlu0 %6951
      %6953 = vrot.lane.b32.xlu0 %v4487, 60
      %v6954 = vpop.permute.xlu0 %6953
      %6955 = vrot.lane.b32.xlu0 %v4488, 60
      %v6956 = vpop.permute.xlu0 %6955
      %6957 = vrot.lane.b32.xlu0 %v4489, 60
      %v6958 = vpop.permute.xlu0 %6957
      %6959 = vrot.lane.b32.xlu0 %v4490, 60
      %v6960 = vpop.permute.xlu0 %6959
      %6961 = vrot.lane.b32.xlu0 %v4491, 60
      %v6962 = vpop.permute.xlu0 %6961
      %6963 = vrot.lane.b32.xlu0 %v4492, 60
      %v6964 = vpop.permute.xlu0 %6963
      %6965 = vrot.lane.b32.xlu0 %v4493, 60
      %v6966 = vpop.permute.xlu0 %6965
      %6967 = vrot.lane.b32.xlu0 %v4494, 60
      %v6968 = vpop.permute.xlu0 %6967
      %6969 = vrot.lane.b32.xlu0 %v4495, 60
      %v6970 = vpop.permute.xlu0 %6969
      %6971 = vrot.lane.b32.xlu0 %v4496, 60
      %v6972 = vpop.permute.xlu0 %6971
      %6973 = vrot.lane.b32.xlu0 %v4497, 60
      %v6974 = vpop.permute.xlu0 %6973
      %6975 = vrot.lane.b32.xlu0 %v4498, 60
      %v6976 = vpop.permute.xlu0 %6975
      %6977 = vrot.lane.b32.xlu0 %v4499, 60
      %v6978 = vpop.permute.xlu0 %6977
      %6979 = vrot.lane.b32.xlu0 %v4500, 60
      %v6980 = vpop.permute.xlu0 %6979
      %6981 = vrot.lane.b32.xlu0 %v5167, 60
      %v6982 = vpop.permute.xlu0 %6981
      %6983 = vrot.lane.b32.xlu0 %v5587, 60
      %v6984 = vpop.permute.xlu0 %6983
      %6985 = vrot.lane.b32.xlu0 %v4503, 60
      %v6986 = vpop.permute.xlu0 %6985
      %6987 = vrot.lane.b32.xlu0 %v4504, 60
      %v6988 = vpop.permute.xlu0 %6987
      %6989 = vrot.lane.b32.xlu0 %v4505, 60
      %v6990 = vpop.permute.xlu0 %6989
      %6991 = vrot.lane.b32.xlu0 %v4506, 60
      %v6992 = vpop.permute.xlu0 %6991
      %6993 = vrot.lane.b32.xlu0 %v4507, 60
      %v6994 = vpop.permute.xlu0 %6993
      %6995 = vrot.lane.b32.xlu0 %v4508, 60
      %v6996 = vpop.permute.xlu0 %6995
      %6997 = vrot.lane.b32.xlu0 %v4509, 60
      %v6998 = vpop.permute.xlu0 %6997
      %6999 = vrot.lane.b32.xlu0 %v4510, 60
      %v7000 = vpop.permute.xlu0 %6999
      %7001 = vrot.lane.b32.xlu0 %v4511, 60
      %v7002 = vpop.permute.xlu0 %7001
      %7003 = vrot.lane.b32.xlu0 %v4512, 60
      %v7004 = vpop.permute.xlu0 %7003
      %7005 = vrot.lane.b32.xlu0 %v4513, 60
      %v7006 = vpop.permute.xlu0 %7005
      %7007 = vrot.lane.b32.xlu0 %v4514, 60
      %v7008 = vpop.permute.xlu0 %7007
      %7009 = vrot.lane.b32.xlu0 %v4515, 60
      %v7010 = vpop.permute.xlu0 %7009
      %7011 = vrot.lane.b32.xlu0 %v4516, 60
      %v7012 = vpop.permute.xlu0 %7011
      %7013 = vrot.lane.b32.xlu0 %v5168, 60
      %v7014 = vpop.permute.xlu0 %7013
      %7015 = vrot.lane.b32.xlu0 %v5588, 60
      %v7016 = vpop.permute.xlu0 %7015
      %7017 = vrot.lane.b32.xlu0 %v6031, 60
      %v7018 = vpop.permute.xlu0 %7017
      %7019 = vrot.lane.b32.xlu0 %v6032, 60
      %v7020 = vpop.permute.xlu0 %7019
      %7021 = vrot.lane.b32.xlu0 %v6033, 60
      %v7022 = vpop.permute.xlu0 %7021
      %7023 = vrot.lane.b32.xlu0 %v6034, 60
      %v7024 = vpop.permute.xlu0 %7023
      %7025 = vrot.lane.b32.xlu0 %v6035, 60
      %v7026 = vpop.permute.xlu0 %7025
      %7027 = vrot.lane.b32.xlu0 %v6036, 60
      %v7028 = vpop.permute.xlu0 %7027
      %7029 = vrot.lane.b32.xlu0 %v6037, 60
      %v7030 = vpop.permute.xlu0 %7029
      %7031 = vrot.lane.b32.xlu0 %v6038, 60
      %v7032 = vpop.permute.xlu0 %7031
      %7033 = vrot.lane.b32.xlu0 %v6039, 60
      %v7034 = vpop.permute.xlu0 %7033
      %7035 = vrot.lane.b32.xlu0 %v6040, 60
      %v7036 = vpop.permute.xlu0 %7035
      %7037 = vrot.lane.b32.xlu0 %v6041, 60
      %v7038 = vpop.permute.xlu0 %7037
      %7039 = vrot.lane.b32.xlu0 %v6042, 60
      %v7040 = vpop.permute.xlu0 %7039
      %7041 = vrot.lane.b32.xlu0 %v6043, 60
      %v7042 = vpop.permute.xlu0 %7041
      %7043 = vrot.lane.b32.xlu0 %v6044, 60
      %v7044 = vpop.permute.xlu0 %7043
      %7045 = vrot.lane.b32.xlu0 %v6527, 60
      %v7046 = vpop.permute.xlu0 %7045
      %7047 = vrot.lane.b32.xlu0 %v6920, 60
      %v7048 = vpop.permute.xlu0 %7047
      %vm7049 = vcmask 31744
      %v7052 = vsel %vm7049, %v4453, %v4710
      %v7055 = vsel %vm7049, %v4454, %v4712
      %v7058 = vsel %vm7049, %v4455, %v4714
      %v7061 = vsel %vm7049, %v4456, %v4716
      %v7064 = vsel %vm7049, %v4457, %v4718
      %v7067 = vsel %vm7049, %v4458, %v4720
      %v7070 = vsel %vm7049, %v4459, %v4722
      %v7073 = vsel %vm7049, %v4460, %v4724
      %v7076 = vsel %vm7049, %v4461, %v4726
      %v7079 = vsel %vm7049, %v4462, %v4728
      %v7082 = vsel %vm7049, %v4463, %v4730
      %v7085 = vsel %vm7049, %v4464, %v4732
      %v7088 = vsel %vm7049, %v4465, %v4734
      %v7091 = vsel %vm7049, %v4466, %v4736
      %v7094 = vsel %vm7049, %v4467, %v4738
      %v7097 = vsel %vm7049, %v4468, %v4740
      %v7100 = vsel %vm7049, %v4469, %v4742
      %v7103 = vsel %vm7049, %v4470, %v4744
      %v7106 = vsel %vm7049, %v4471, %v4746
      %v7109 = vsel %vm7049, %v4472, %v4748
      %v7112 = vsel %vm7049, %v4473, %v4750
      %v7115 = vsel %vm7049, %v4474, %v4752
      %v7118 = vsel %vm7049, %v4475, %v4754
      %v7121 = vsel %vm7049, %v4476, %v4756
      %v7124 = vsel %vm7049, %v4477, %v4758
      %v7127 = vsel %vm7049, %v4478, %v4760
      %v7130 = vsel %vm7049, %v4479, %v4762
      %v7133 = vsel %vm7049, %v4480, %v4764
      %v7136 = vsel %vm7049, %v4481, %v4766
      %v7139 = vsel %vm7049, %v4482, %v4768
      %v7142 = vsel %vm7049, %v4483, %v4770
      %v7145 = vsel %vm7049, %v4484, %v4772
      %v7148 = vsel %vm7049, %v4485, %v4774
      %v7151 = vsel %vm7049, %v4486, %v4776
      %v7154 = vsel %vm7049, %v4487, %v4778
      %v7157 = vsel %vm7049, %v4488, %v4780
      %v7160 = vsel %vm7049, %v4489, %v4782
      %v7163 = vsel %vm7049, %v4490, %v4784
      %v7166 = vsel %vm7049, %v4491, %v4786
      %v7169 = vsel %vm7049, %v4492, %v4788
      %v7172 = vsel %vm7049, %v4493, %v4790
      %v7175 = vsel %vm7049, %v4494, %v4792
      %v7178 = vsel %vm7049, %v4495, %v4794
      %v7181 = vsel %vm7049, %v4496, %v4796
      %v7184 = vsel %vm7049, %v4497, %v4798
      %v7187 = vsel %vm7049, %v4498, %v4800
      %v7190 = vsel %vm7049, %v4499, %v4802
      %v7193 = vsel %vm7049, %v4500, %v4804
      %v7196 = vsel %vm7049, %v4501, %v4806
      %v7199 = vsel %vm7049, %v4502, %v4808
      %v7202 = vsel %vm7049, %v4503, %v4810
      %v7205 = vsel %vm7049, %v4504, %v4812
      %v7208 = vsel %vm7049, %v4505, %v4814
      %v7211 = vsel %vm7049, %v4506, %v4816
      %v7214 = vsel %vm7049, %v4507, %v4818
      %v7217 = vsel %vm7049, %v4508, %v4820
      %v7220 = vsel %vm7049, %v4509, %v4822
      %v7223 = vsel %vm7049, %v4510, %v4824
      %v7226 = vsel %vm7049, %v4511, %v4826
      %v7229 = vsel %vm7049, %v4512, %v4828
      %v7232 = vsel %vm7049, %v4513, %v4830
      %v7235 = vsel %vm7049, %v4514, %v4832
      %v7238 = vsel %vm7049, %v4515, %v4834
      %v7241 = vsel %vm7049, %v4516, %v4836
      %vm7242 = vcmask 64512
      %v7244 = vsel %vm7242, %v7052, %v5030
      %v7246 = vsel %vm7242, %v7055, %v5032
      %v7248 = vsel %vm7242, %v7058, %v5034
      %v7250 = vsel %vm7242, %v7061, %v5036
      %v7252 = vsel %vm7242, %v7064, %v5038
      %v7254 = vsel %vm7242, %v7067, %v5040
      %v7256 = vsel %vm7242, %v7070, %v5042
      %v7258 = vsel %vm7242, %v7073, %v5044
      %v7260 = vsel %vm7242, %v7076, %v5046
      %v7262 = vsel %vm7242, %v7079, %v5048
      %v7264 = vsel %vm7242, %v7082, %v5050
      %v7266 = vsel %vm7242, %v7085, %v5052
      %v7268 = vsel %vm7242, %v7088, %v5054
      %v7270 = vsel %vm7242, %v7091, %v5056
      %v7272 = vsel %vm7242, %v7094, %v5058
      %v7274 = vsel %vm7242, %v7097, %v5060
      %v7276 = vsel %vm7242, %v7100, %v5062
      %v7278 = vsel %vm7242, %v7103, %v5064
      %v7280 = vsel %vm7242, %v7106, %v5066
      %v7282 = vsel %vm7242, %v7109, %v5068
      %v7284 = vsel %vm7242, %v7112, %v5070
      %v7286 = vsel %vm7242, %v7115, %v5072
      %v7288 = vsel %vm7242, %v7118, %v5074
      %v7290 = vsel %vm7242, %v7121, %v5076
      %v7292 = vsel %vm7242, %v7124, %v5078
      %v7294 = vsel %vm7242, %v7127, %v5080
      %v7296 = vsel %vm7242, %v7130, %v5082
      %v7298 = vsel %vm7242, %v7133, %v5084
      %v7300 = vsel %vm7242, %v7136, %v5086
      %v7302 = vsel %vm7242, %v7139, %v5088
      %v7304 = vsel %vm7242, %v7142, %v5090
      %v7306 = vsel %vm7242, %v7145, %v5092
      %v7308 = vsel %vm7242, %v7148, %v5094
      %v7310 = vsel %vm7242, %v7151, %v5096
      %v7312 = vsel %vm7242, %v7154, %v5098
      %v7314 = vsel %vm7242, %v7157, %v5100
      %v7316 = vsel %vm7242, %v7160, %v5102
      %v7318 = vsel %vm7242, %v7163, %v5104
      %v7320 = vsel %vm7242, %v7166, %v5106
      %v7322 = vsel %vm7242, %v7169, %v5108
      %v7324 = vsel %vm7242, %v7172, %v5110
      %v7326 = vsel %vm7242, %v7175, %v5112
      %v7328 = vsel %vm7242, %v7178, %v5114
      %v7330 = vsel %vm7242, %v7181, %v5116
      %v7332 = vsel %vm7242, %v7184, %v5118
      %v7334 = vsel %vm7242, %v7187, %v5120
      %v7336 = vsel %vm7242, %v7190, %v5122
      %v7338 = vsel %vm7242, %v7193, %v5124
      %v7340 = vsel %vm7242, %v7196, %v5126
      %v7342 = vsel %vm7242, %v7199, %v5128
      %v7344 = vsel %vm7242, %v7202, %v5130
      %v7346 = vsel %vm7242, %v7205, %v5132
      %v7348 = vsel %vm7242, %v7208, %v5134
      %v7350 = vsel %vm7242, %v7211, %v5136
      %v7352 = vsel %vm7242, %v7214, %v5138
      %v7354 = vsel %vm7242, %v7217, %v5140
      %v7356 = vsel %vm7242, %v7220, %v5142
      %v7358 = vsel %vm7242, %v7223, %v5144
      %v7360 = vsel %vm7242, %v7226, %v5146
      %v7362 = vsel %vm7242, %v7229, %v5148
      %v7364 = vsel %vm7242, %v7232, %v5150
      %v7366 = vsel %vm7242, %v7235, %v5152
      %v7368 = vsel %vm7242, %v7238, %v5154
      %v7370 = vsel %vm7242, %v7241, %v5156
      %vm7371 = vcmask 97280
      %v7373 = vsel %vm7371, %v7244, %v5170
      %v7375 = vsel %vm7371, %v7246, %v5172
      %v7377 = vsel %vm7371, %v7248, %v5174
      %v7379 = vsel %vm7371, %v7250, %v5176
      %v7381 = vsel %vm7371, %v7252, %v5178
      %v7383 = vsel %vm7371, %v7254, %v5180
      %v7385 = vsel %vm7371, %v7256, %v5182
      %v7387 = vsel %vm7371, %v7258, %v5184
      %v7389 = vsel %vm7371, %v7260, %v5186
      %v7391 = vsel %vm7371, %v7262, %v5188
      %v7393 = vsel %vm7371, %v7264, %v5190
      %v7395 = vsel %vm7371, %v7266, %v5192
      %v7397 = vsel %vm7371, %v7268, %v5194
      %v7399 = vsel %vm7371, %v7270, %v5196
      %v7401 = vsel %vm7371, %v7272, %v5198
      %v7403 = vsel %vm7371, %v7274, %v5200
      %v7405 = vsel %vm7371, %v7276, %v5202
      %v7407 = vsel %vm7371, %v7278, %v5204
      %v7409 = vsel %vm7371, %v7280, %v5206
      %v7411 = vsel %vm7371, %v7282, %v5208
      %v7413 = vsel %vm7371, %v7284, %v5210
      %v7415 = vsel %vm7371, %v7286, %v5212
      %v7417 = vsel %vm7371, %v7288, %v5214
      %v7419 = vsel %vm7371, %v7290, %v5216
      %v7421 = vsel %vm7371, %v7292, %v5218
      %v7423 = vsel %vm7371, %v7294, %v5220
      %v7425 = vsel %vm7371, %v7296, %v5222
      %v7427 = vsel %vm7371, %v7298, %v5224
      %v7429 = vsel %vm7371, %v7300, %v5226
      %v7431 = vsel %vm7371, %v7302, %v5228
      %v7433 = vsel %vm7371, %v7304, %v5230
      %v7435 = vsel %vm7371, %v7306, %v5232
      %v7437 = vsel %vm7371, %v7308, %v5234
      %v7439 = vsel %vm7371, %v7310, %v5236
      %v7441 = vsel %vm7371, %v7312, %v5238
      %v7443 = vsel %vm7371, %v7314, %v5240
      %v7445 = vsel %vm7371, %v7316, %v5242
      %v7447 = vsel %vm7371, %v7318, %v5244
      %v7449 = vsel %vm7371, %v7320, %v5246
      %v7451 = vsel %vm7371, %v7322, %v5248
      %v7453 = vsel %vm7371, %v7324, %v5250
      %v7455 = vsel %vm7371, %v7326, %v5252
      %v7457 = vsel %vm7371, %v7328, %v5254
      %v7459 = vsel %vm7371, %v7330, %v5256
      %v7461 = vsel %vm7371, %v7332, %v5258
      %v7463 = vsel %vm7371, %v7334, %v5260
      %v7465 = vsel %vm7371, %v7336, %v5262
      %v7467 = vsel %vm7371, %v7338, %v5264
      %v7469 = vsel %vm7371, %v7340, %v5266
      %v7471 = vsel %vm7371, %v7342, %v5268
      %v7473 = vsel %vm7371, %v7344, %v5270
      %v7475 = vsel %vm7371, %v7346, %v5272
      %v7477 = vsel %vm7371, %v7348, %v5274
      %v7479 = vsel %vm7371, %v7350, %v5276
      %v7481 = vsel %vm7371, %v7352, %v5278
      %v7483 = vsel %vm7371, %v7354, %v5280
      %v7485 = vsel %vm7371, %v7356, %v5282
      %v7487 = vsel %vm7371, %v7358, %v5284
      %v7489 = vsel %vm7371, %v7360, %v5286
      %v7491 = vsel %vm7371, %v7362, %v5288
      %v7493 = vsel %vm7371, %v7364, %v5290
      %v7495 = vsel %vm7371, %v7366, %v5292
      %v7497 = vsel %vm7371, %v7368, %v5294
      %v7499 = vsel %vm7371, %v7370, %v5296
      %vm7500 = vcmask 130048
      %v7502 = vsel %vm7500, %v7373, %v5310
      %v7504 = vsel %vm7500, %v7375, %v5312
      %v7506 = vsel %vm7500, %v7377, %v5314
      %v7508 = vsel %vm7500, %v7379, %v5316
      %v7510 = vsel %vm7500, %v7381, %v5318
      %v7512 = vsel %vm7500, %v7383, %v5320
      %v7514 = vsel %vm7500, %v7385, %v5322
      %v7516 = vsel %vm7500, %v7387, %v5324
      %v7518 = vsel %vm7500, %v7389, %v5326
      %v7520 = vsel %vm7500, %v7391, %v5328
      %v7522 = vsel %vm7500, %v7393, %v5330
      %v7524 = vsel %vm7500, %v7395, %v5332
      %v7526 = vsel %vm7500, %v7397, %v5334
      %v7528 = vsel %vm7500, %v7399, %v5336
      %v7530 = vsel %vm7500, %v7401, %v5338
      %v7532 = vsel %vm7500, %v7403, %v5340
      %v7534 = vsel %vm7500, %v7405, %v5342
      %v7536 = vsel %vm7500, %v7407, %v5344
      %v7538 = vsel %vm7500, %v7409, %v5346
      %v7540 = vsel %vm7500, %v7411, %v5348
      %v7542 = vsel %vm7500, %v7413, %v5350
      %v7544 = vsel %vm7500, %v7415, %v5352
      %v7546 = vsel %vm7500, %v7417, %v5354
      %v7548 = vsel %vm7500, %v7419, %v5356
      %v7550 = vsel %vm7500, %v7421, %v5358
      %v7552 = vsel %vm7500, %v7423, %v5360
      %v7554 = vsel %vm7500, %v7425, %v5362
      %v7556 = vsel %vm7500, %v7427, %v5364
      %v7558 = vsel %vm7500, %v7429, %v5366
      %v7560 = vsel %vm7500, %v7431, %v5368
      %v7562 = vsel %vm7500, %v7433, %v5370
      %v7564 = vsel %vm7500, %v7435, %v5372
      %v7566 = vsel %vm7500, %v7437, %v5374
      %v7568 = vsel %vm7500, %v7439, %v5376
      %v7570 = vsel %vm7500, %v7441, %v5378
      %v7572 = vsel %vm7500, %v7443, %v5380
      %v7574 = vsel %vm7500, %v7445, %v5382
      %v7576 = vsel %vm7500, %v7447, %v5384
      %v7578 = vsel %vm7500, %v7449, %v5386
      %v7580 = vsel %vm7500, %v7451, %v5388
      %v7582 = vsel %vm7500, %v7453, %v5390
      %v7584 = vsel %vm7500, %v7455, %v5392
      %v7586 = vsel %vm7500, %v7457, %v5394
      %v7588 = vsel %vm7500, %v7459, %v5396
      %v7590 = vsel %vm7500, %v7461, %v5398
      %v7592 = vsel %vm7500, %v7463, %v5400
      %v7594 = vsel %vm7500, %v7465, %v5402
      %v7596 = vsel %vm7500, %v7467, %v5404
      %v7598 = vsel %vm7500, %v7469, %v5406
      %v7600 = vsel %vm7500, %v7471, %v5408
      %v7602 = vsel %vm7500, %v7473, %v5410
      %v7604 = vsel %vm7500, %v7475, %v5412
      %v7606 = vsel %vm7500, %v7477, %v5414
      %v7608 = vsel %vm7500, %v7479, %v5416
      %v7610 = vsel %vm7500, %v7481, %v5418
      %v7612 = vsel %vm7500, %v7483, %v5420
      %v7614 = vsel %vm7500, %v7485, %v5422
      %v7616 = vsel %vm7500, %v7487, %v5424
      %v7618 = vsel %vm7500, %v7489, %v5426
      %v7620 = vsel %vm7500, %v7491, %v5428
      %v7622 = vsel %vm7500, %v7493, %v5430
      %v7624 = vsel %vm7500, %v7495, %v5432
      %v7626 = vsel %vm7500, %v7497, %v5434
      %v7628 = vsel %vm7500, %v7499, %v5436
      %vm7629 = vcmask 162816
      %v7631 = vsel %vm7629, %v7502, %v5450
      %v7633 = vsel %vm7629, %v7504, %v5452
      %v7635 = vsel %vm7629, %v7506, %v5454
      %v7637 = vsel %vm7629, %v7508, %v5456
      %v7639 = vsel %vm7629, %v7510, %v5458
      %v7641 = vsel %vm7629, %v7512, %v5460
      %v7643 = vsel %vm7629, %v7514, %v5462
      %v7645 = vsel %vm7629, %v7516, %v5464
      %v7647 = vsel %vm7629, %v7518, %v5466
      %v7649 = vsel %vm7629, %v7520, %v5468
      %v7651 = vsel %vm7629, %v7522, %v5470
      %v7653 = vsel %vm7629, %v7524, %v5472
      %v7655 = vsel %vm7629, %v7526, %v5474
      %v7657 = vsel %vm7629, %v7528, %v5476
      %v7659 = vsel %vm7629, %v7530, %v5478
      %v7661 = vsel %vm7629, %v7532, %v5480
      %v7663 = vsel %vm7629, %v7534, %v5482
      %v7665 = vsel %vm7629, %v7536, %v5484
      %v7667 = vsel %vm7629, %v7538, %v5486
      %v7669 = vsel %vm7629, %v7540, %v5488
      %v7671 = vsel %vm7629, %v7542, %v5490
      %v7673 = vsel %vm7629, %v7544, %v5492
      %v7675 = vsel %vm7629, %v7546, %v5494
      %v7677 = vsel %vm7629, %v7548, %v5496
      %v7679 = vsel %vm7629, %v7550, %v5498
      %v7681 = vsel %vm7629, %v7552, %v5500
      %v7683 = vsel %vm7629, %v7554, %v5502
      %v7685 = vsel %vm7629, %v7556, %v5504
      %v7687 = vsel %vm7629, %v7558, %v5506
      %v7689 = vsel %vm7629, %v7560, %v5508
      %v7691 = vsel %vm7629, %v7562, %v5510
      %v7693 = vsel %vm7629, %v7564, %v5512
      %v7695 = vsel %vm7629, %v7566, %v5514
      %v7697 = vsel %vm7629, %v7568, %v5516
      %v7699 = vsel %vm7629, %v7570, %v5518
      %v7701 = vsel %vm7629, %v7572, %v5520
      %v7703 = vsel %vm7629, %v7574, %v5522
      %v7705 = vsel %vm7629, %v7576, %v5524
      %v7707 = vsel %vm7629, %v7578, %v5526
      %v7709 = vsel %vm7629, %v7580, %v5528
      %v7711 = vsel %vm7629, %v7582, %v5530
      %v7713 = vsel %vm7629, %v7584, %v5532
      %v7715 = vsel %vm7629, %v7586, %v5534
      %v7717 = vsel %vm7629, %v7588, %v5536
      %v7719 = vsel %vm7629, %v7590, %v5538
      %v7721 = vsel %vm7629, %v7592, %v5540
      %v7723 = vsel %vm7629, %v7594, %v5542
      %v7725 = vsel %vm7629, %v7596, %v5544
      %v7727 = vsel %vm7629, %v7598, %v5546
      %v7729 = vsel %vm7629, %v7600, %v5548
      %v7731 = vsel %vm7629, %v7602, %v5550
      %v7733 = vsel %vm7629, %v7604, %v5552
      %v7735 = vsel %vm7629, %v7606, %v5554
      %v7737 = vsel %vm7629, %v7608, %v5556
      %v7739 = vsel %vm7629, %v7610, %v5558
      %v7741 = vsel %vm7629, %v7612, %v5560
      %v7743 = vsel %vm7629, %v7614, %v5562
      %v7745 = vsel %vm7629, %v7616, %v5564
      %v7747 = vsel %vm7629, %v7618, %v5566
      %v7749 = vsel %vm7629, %v7620, %v5568
      %v7751 = vsel %vm7629, %v7622, %v5570
      %v7753 = vsel %vm7629, %v7624, %v5572
      %v7755 = vsel %vm7629, %v7626, %v5574
      %v7757 = vsel %vm7629, %v7628, %v5576
      %vm7758 = vcmask 195584
      %v7760 = vsel %vm7758, %v7631, %v5590
      %v7762 = vsel %vm7758, %v7633, %v5592
      %v7764 = vsel %vm7758, %v7635, %v5594
      %v7766 = vsel %vm7758, %v7637, %v5596
      %v7768 = vsel %vm7758, %v7639, %v5598
      %v7770 = vsel %vm7758, %v7641, %v5600
      %v7772 = vsel %vm7758, %v7643, %v5602
      %v7774 = vsel %vm7758, %v7645, %v5604
      %v7776 = vsel %vm7758, %v7647, %v5606
      %v7778 = vsel %vm7758, %v7649, %v5608
      %v7780 = vsel %vm7758, %v7651, %v5610
      %v7782 = vsel %vm7758, %v7653, %v5612
      %v7784 = vsel %vm7758, %v7655, %v5614
      %v7786 = vsel %vm7758, %v7657, %v5616
      %v7788 = vsel %vm7758, %v7659, %v5618
      %v7790 = vsel %vm7758, %v7661, %v5620
      %v7792 = vsel %vm7758, %v7663, %v5622
      %v7794 = vsel %vm7758, %v7665, %v5624
      %v7796 = vsel %vm7758, %v7667, %v5626
      %v7798 = vsel %vm7758, %v7669, %v5628
      %v7800 = vsel %vm7758, %v7671, %v5630
      %v7802 = vsel %vm7758, %v7673, %v5632
      %v7804 = vsel %vm7758, %v7675, %v5634
      %v7806 = vsel %vm7758, %v7677, %v5636
      %v7808 = vsel %vm7758, %v7679, %v5638
      %v7810 = vsel %vm7758, %v7681, %v5640
      %v7812 = vsel %vm7758, %v7683, %v5642
      %v7814 = vsel %vm7758, %v7685, %v5644
      %v7816 = vsel %vm7758, %v7687, %v5646
      %v7818 = vsel %vm7758, %v7689, %v5648
      %v7820 = vsel %vm7758, %v7691, %v5650
      %v7822 = vsel %vm7758, %v7693, %v5652
      %v7824 = vsel %vm7758, %v7695, %v5654
      %v7826 = vsel %vm7758, %v7697, %v5656
      %v7828 = vsel %vm7758, %v7699, %v5658
      %v7830 = vsel %vm7758, %v7701, %v5660
      %v7832 = vsel %vm7758, %v7703, %v5662
      %v7834 = vsel %vm7758, %v7705, %v5664
      %v7836 = vsel %vm7758, %v7707, %v5666
      %v7838 = vsel %vm7758, %v7709, %v5668
      %v7840 = vsel %vm7758, %v7711, %v5670
      %v7842 = vsel %vm7758, %v7713, %v5672
      %v7844 = vsel %vm7758, %v7715, %v5674
      %v7846 = vsel %vm7758, %v7717, %v5676
      %v7848 = vsel %vm7758, %v7719, %v5678
      %v7850 = vsel %vm7758, %v7721, %v5680
      %v7852 = vsel %vm7758, %v7723, %v5682
      %v7854 = vsel %vm7758, %v7725, %v5684
      %v7856 = vsel %vm7758, %v7727, %v5686
      %v7858 = vsel %vm7758, %v7729, %v5688
      %v7860 = vsel %vm7758, %v7731, %v5690
      %v7862 = vsel %vm7758, %v7733, %v5692
      %v7864 = vsel %vm7758, %v7735, %v5694
      %v7866 = vsel %vm7758, %v7737, %v5696
      %v7868 = vsel %vm7758, %v7739, %v5698
      %v7870 = vsel %vm7758, %v7741, %v5700
      %v7872 = vsel %vm7758, %v7743, %v5702
      %v7874 = vsel %vm7758, %v7745, %v5704
      %v7876 = vsel %vm7758, %v7747, %v5706
      %v7878 = vsel %vm7758, %v7749, %v5708
      %v7880 = vsel %vm7758, %v7751, %v5710
      %v7882 = vsel %vm7758, %v7753, %v5712
      %v7884 = vsel %vm7758, %v7755, %v5714
      %v7886 = vsel %vm7758, %v7757, %v5716
      %vm7887 = vcmask 228352
      %v7889 = vsel %vm7887, %v7760, %v5730
      %v7891 = vsel %vm7887, %v7762, %v5732
      %v7893 = vsel %vm7887, %v7764, %v5734
      %v7895 = vsel %vm7887, %v7766, %v5736
      %v7897 = vsel %vm7887, %v7768, %v5738
      %v7899 = vsel %vm7887, %v7770, %v5740
      %v7901 = vsel %vm7887, %v7772, %v5742
      %v7903 = vsel %vm7887, %v7774, %v5744
      %v7905 = vsel %vm7887, %v7776, %v5746
      %v7907 = vsel %vm7887, %v7778, %v5748
      %v7909 = vsel %vm7887, %v7780, %v5750
      %v7911 = vsel %vm7887, %v7782, %v5752
      %v7913 = vsel %vm7887, %v7784, %v5754
      %v7915 = vsel %vm7887, %v7786, %v5756
      %v7917 = vsel %vm7887, %v7788, %v5758
      %v7919 = vsel %vm7887, %v7790, %v5760
      %v7921 = vsel %vm7887, %v7792, %v5762
      %v7923 = vsel %vm7887, %v7794, %v5764
      %v7925 = vsel %vm7887, %v7796, %v5766
      %v7927 = vsel %vm7887, %v7798, %v5768
      %v7929 = vsel %vm7887, %v7800, %v5770
      %v7931 = vsel %vm7887, %v7802, %v5772
      %v7933 = vsel %vm7887, %v7804, %v5774
      %v7935 = vsel %vm7887, %v7806, %v5776
      %v7937 = vsel %vm7887, %v7808, %v5778
      %v7939 = vsel %vm7887, %v7810, %v5780
      %v7941 = vsel %vm7887, %v7812, %v5782
      %v7943 = vsel %vm7887, %v7814, %v5784
      %v7945 = vsel %vm7887, %v7816, %v5786
      %v7947 = vsel %vm7887, %v7818, %v5788
      %v7949 = vsel %vm7887, %v7820, %v5790
      %v7951 = vsel %vm7887, %v7822, %v5792
      %v7953 = vsel %vm7887, %v7824, %v5794
      %v7955 = vsel %vm7887, %v7826, %v5796
      %v7957 = vsel %vm7887, %v7828, %v5798
      %v7959 = vsel %vm7887, %v7830, %v5800
      %v7961 = vsel %vm7887, %v7832, %v5802
      %v7963 = vsel %vm7887, %v7834, %v5804
      %v7965 = vsel %vm7887, %v7836, %v5806
      %v7967 = vsel %vm7887, %v7838, %v5808
      %v7969 = vsel %vm7887, %v7840, %v5810
      %v7971 = vsel %vm7887, %v7842, %v5812
      %v7973 = vsel %vm7887, %v7844, %v5814
      %v7975 = vsel %vm7887, %v7846, %v5816
      %v7977 = vsel %vm7887, %v7848, %v5818
      %v7979 = vsel %vm7887, %v7850, %v5820
      %v7981 = vsel %vm7887, %v7852, %v5822
      %v7983 = vsel %vm7887, %v7854, %v5824
      %v7985 = vsel %vm7887, %v7856, %v5826
      %v7987 = vsel %vm7887, %v7858, %v5828
      %v7989 = vsel %vm7887, %v7860, %v5830
      %v7991 = vsel %vm7887, %v7862, %v5832
      %v7993 = vsel %vm7887, %v7864, %v5834
      %v7995 = vsel %vm7887, %v7866, %v5836
      %v7997 = vsel %vm7887, %v7868, %v5838
      %v7999 = vsel %vm7887, %v7870, %v5840
      %v8001 = vsel %vm7887, %v7872, %v5842
      %v8003 = vsel %vm7887, %v7874, %v5844
      %v8005 = vsel %vm7887, %v7876, %v5846
      %v8007 = vsel %vm7887, %v7878, %v5848
      %v8009 = vsel %vm7887, %v7880, %v5850
      %v8011 = vsel %vm7887, %v7882, %v5852
      %v8013 = vsel %vm7887, %v7884, %v5854
      %v8015 = vsel %vm7887, %v7886, %v5856
      %vm8016 = vcmask 261120
      %v8018 = vsel %vm8016, %v7889, %v5870
      %v8020 = vsel %vm8016, %v7891, %v5872
      %v8022 = vsel %vm8016, %v7893, %v5874
      %v8024 = vsel %vm8016, %v7895, %v5876
      %v8026 = vsel %vm8016, %v7897, %v5878
      %v8028 = vsel %vm8016, %v7899, %v5880
      %v8030 = vsel %vm8016, %v7901, %v5882
      %v8032 = vsel %vm8016, %v7903, %v5884
      %v8034 = vsel %vm8016, %v7905, %v5886
      %v8036 = vsel %vm8016, %v7907, %v5888
      %v8038 = vsel %vm8016, %v7909, %v5890
      %v8040 = vsel %vm8016, %v7911, %v5892
      %v8042 = vsel %vm8016, %v7913, %v5894
      %v8044 = vsel %vm8016, %v7915, %v5896
      %v8046 = vsel %vm8016, %v7917, %v5898
      %v8048 = vsel %vm8016, %v7919, %v5900
      %v8050 = vsel %vm8016, %v7921, %v5902
      %v8052 = vsel %vm8016, %v7923, %v5904
      %v8054 = vsel %vm8016, %v7925, %v5906
      %v8056 = vsel %vm8016, %v7927, %v5908
      %v8058 = vsel %vm8016, %v7929, %v5910
      %v8060 = vsel %vm8016, %v7931, %v5912
      %v8062 = vsel %vm8016, %v7933, %v5914
      %v8064 = vsel %vm8016, %v7935, %v5916
      %v8066 = vsel %vm8016, %v7937, %v5918
      %v8068 = vsel %vm8016, %v7939, %v5920
      %v8070 = vsel %vm8016, %v7941, %v5922
      %v8072 = vsel %vm8016, %v7943, %v5924
      %v8074 = vsel %vm8016, %v7945, %v5926
      %v8076 = vsel %vm8016, %v7947, %v5928
      %v8078 = vsel %vm8016, %v7949, %v5930
      %v8080 = vsel %vm8016, %v7951, %v5932
      %v8082 = vsel %vm8016, %v7953, %v5934
      %v8084 = vsel %vm8016, %v7955, %v5936
      %v8086 = vsel %vm8016, %v7957, %v5938
      %v8088 = vsel %vm8016, %v7959, %v5940
      %v8090 = vsel %vm8016, %v7961, %v5942
      %v8092 = vsel %vm8016, %v7963, %v5944
      %v8094 = vsel %vm8016, %v7965, %v5946
      %v8096 = vsel %vm8016, %v7967, %v5948
      %v8098 = vsel %vm8016, %v7969, %v5950
      %v8100 = vsel %vm8016, %v7971, %v5952
      %v8102 = vsel %vm8016, %v7973, %v5954
      %v8104 = vsel %vm8016, %v7975, %v5956
      %v8106 = vsel %vm8016, %v7977, %v5958
      %v8108 = vsel %vm8016, %v7979, %v5960
      %v8110 = vsel %vm8016, %v7981, %v5962
      %v8112 = vsel %vm8016, %v7983, %v5964
      %v8114 = vsel %vm8016, %v7985, %v5966
      %v8116 = vsel %vm8016, %v7987, %v5968
      %v8118 = vsel %vm8016, %v7989, %v5970
      %v8120 = vsel %vm8016, %v7991, %v5972
      %v8122 = vsel %vm8016, %v7993, %v5974
      %v8124 = vsel %vm8016, %v7995, %v5976
      %v8126 = vsel %vm8016, %v7997, %v5978
      %v8128 = vsel %vm8016, %v7999, %v5980
      %v8130 = vsel %vm8016, %v8001, %v5982
      %v8132 = vsel %vm8016, %v8003, %v5984
      %v8134 = vsel %vm8016, %v8005, %v5986
      %v8136 = vsel %vm8016, %v8007, %v5988
      %v8138 = vsel %vm8016, %v8009, %v5990
      %v8140 = vsel %vm8016, %v8011, %v5992
      %v8142 = vsel %vm8016, %v8013, %v5994
      %v8144 = vsel %vm8016, %v8015, %v5996
      %vm8145 = vcmask 293888
      %v8147 = vsel %vm8145, %v8018, %v6046
      %v8149 = vsel %vm8145, %v8020, %v6048
      %v8151 = vsel %vm8145, %v8022, %v6050
      %v8153 = vsel %vm8145, %v8024, %v6052
      %v8155 = vsel %vm8145, %v8026, %v6054
      %v8157 = vsel %vm8145, %v8028, %v6056
      %v8159 = vsel %vm8145, %v8030, %v6058
      %v8161 = vsel %vm8145, %v8032, %v6060
      %v8163 = vsel %vm8145, %v8034, %v6062
      %v8165 = vsel %vm8145, %v8036, %v6064
      %v8167 = vsel %vm8145, %v8038, %v6066
      %v8169 = vsel %vm8145, %v8040, %v6068
      %v8171 = vsel %vm8145, %v8042, %v6070
      %v8173 = vsel %vm8145, %v8044, %v6072
      %v8175 = vsel %vm8145, %v8046, %v6074
      %v8177 = vsel %vm8145, %v8048, %v6076
      %v8179 = vsel %vm8145, %v8050, %v6078
      %v8181 = vsel %vm8145, %v8052, %v6080
      %v8183 = vsel %vm8145, %v8054, %v6082
      %v8185 = vsel %vm8145, %v8056, %v6084
      %v8187 = vsel %vm8145, %v8058, %v6086
      %v8189 = vsel %vm8145, %v8060, %v6088
      %v8191 = vsel %vm8145, %v8062, %v6090
      %v8193 = vsel %vm8145, %v8064, %v6092
      %v8195 = vsel %vm8145, %v8066, %v6094
      %v8197 = vsel %vm8145, %v8068, %v6096
      %v8199 = vsel %vm8145, %v8070, %v6098
      %v8201 = vsel %vm8145, %v8072, %v6100
      %v8203 = vsel %vm8145, %v8074, %v6102
      %v8205 = vsel %vm8145, %v8076, %v6104
      %v8207 = vsel %vm8145, %v8078, %v6106
      %v8209 = vsel %vm8145, %v8080, %v6108
      %v8211 = vsel %vm8145, %v8082, %v6110
      %v8213 = vsel %vm8145, %v8084, %v6112
      %v8215 = vsel %vm8145, %v8086, %v6114
      %v8217 = vsel %vm8145, %v8088, %v6116
      %v8219 = vsel %vm8145, %v8090, %v6118
      %v8221 = vsel %vm8145, %v8092, %v6120
      %v8223 = vsel %vm8145, %v8094, %v6122
      %v8225 = vsel %vm8145, %v8096, %v6124
      %v8227 = vsel %vm8145, %v8098, %v6126
      %v8229 = vsel %vm8145, %v8100, %v6128
      %v8231 = vsel %vm8145, %v8102, %v6130
      %v8233 = vsel %vm8145, %v8104, %v6132
      %v8235 = vsel %vm8145, %v8106, %v6134
      %v8237 = vsel %vm8145, %v8108, %v6136
      %v8239 = vsel %vm8145, %v8110, %v6138
      %v8241 = vsel %vm8145, %v8112, %v6140
      %v8243 = vsel %vm8145, %v8114, %v6142
      %v8245 = vsel %vm8145, %v8116, %v6144
      %v8247 = vsel %vm8145, %v8118, %v6146
      %v8249 = vsel %vm8145, %v8120, %v6148
      %v8251 = vsel %vm8145, %v8122, %v6150
      %v8253 = vsel %vm8145, %v8124, %v6152
      %v8255 = vsel %vm8145, %v8126, %v6154
      %v8257 = vsel %vm8145, %v8128, %v6156
      %v8259 = vsel %vm8145, %v8130, %v6158
      %v8261 = vsel %vm8145, %v8132, %v6160
      %v8263 = vsel %vm8145, %v8134, %v6162
      %v8265 = vsel %vm8145, %v8136, %v6164
      %v8267 = vsel %vm8145, %v8138, %v6166
      %v8269 = vsel %vm8145, %v8140, %v6168
      %v8271 = vsel %vm8145, %v8142, %v6170
      %v8273 = vsel %vm8145, %v8144, %v6172
      %vm8274 = vcmask 326656
      %v8276 = vsel %vm8274, %v8147, %v6222
      %v8278 = vsel %vm8274, %v8149, %v6224
      %v8280 = vsel %vm8274, %v8151, %v6226
      %v8282 = vsel %vm8274, %v8153, %v6228
      %v8284 = vsel %vm8274, %v8155, %v6230
      %v8286 = vsel %vm8274, %v8157, %v6232
      %v8288 = vsel %vm8274, %v8159, %v6234
      %v8290 = vsel %vm8274, %v8161, %v6236
      %v8292 = vsel %vm8274, %v8163, %v6238
      %v8294 = vsel %vm8274, %v8165, %v6240
      %v8296 = vsel %vm8274, %v8167, %v6242
      %v8298 = vsel %vm8274, %v8169, %v6244
      %v8300 = vsel %vm8274, %v8171, %v6246
      %v8302 = vsel %vm8274, %v8173, %v6248
      %v8304 = vsel %vm8274, %v8175, %v6250
      %v8306 = vsel %vm8274, %v8177, %v6252
      %v8308 = vsel %vm8274, %v8179, %v6254
      %v8310 = vsel %vm8274, %v8181, %v6256
      %v8312 = vsel %vm8274, %v8183, %v6258
      %v8314 = vsel %vm8274, %v8185, %v6260
      %v8316 = vsel %vm8274, %v8187, %v6262
      %v8318 = vsel %vm8274, %v8189, %v6264
      %v8320 = vsel %vm8274, %v8191, %v6266
      %v8322 = vsel %vm8274, %v8193, %v6268
      %v8324 = vsel %vm8274, %v8195, %v6270
      %v8326 = vsel %vm8274, %v8197, %v6272
      %v8328 = vsel %vm8274, %v8199, %v6274
      %v8330 = vsel %vm8274, %v8201, %v6276
      %v8332 = vsel %vm8274, %v8203, %v6278
      %v8334 = vsel %vm8274, %v8205, %v6280
      %v8336 = vsel %vm8274, %v8207, %v6282
      %v8338 = vsel %vm8274, %v8209, %v6284
      %v8340 = vsel %vm8274, %v8211, %v6286
      %v8342 = vsel %vm8274, %v8213, %v6288
      %v8344 = vsel %vm8274, %v8215, %v6290
      %v8346 = vsel %vm8274, %v8217, %v6292
      %v8348 = vsel %vm8274, %v8219, %v6294
      %v8350 = vsel %vm8274, %v8221, %v6296
      %v8352 = vsel %vm8274, %v8223, %v6298
      %v8354 = vsel %vm8274, %v8225, %v6300
      %v8356 = vsel %vm8274, %v8227, %v6302
      %v8358 = vsel %vm8274, %v8229, %v6304
      %v8360 = vsel %vm8274, %v8231, %v6306
      %v8362 = vsel %vm8274, %v8233, %v6308
      %v8364 = vsel %vm8274, %v8235, %v6310
      %v8366 = vsel %vm8274, %v8237, %v6312
      %v8368 = vsel %vm8274, %v8239, %v6314
      %v8370 = vsel %vm8274, %v8241, %v6316
      %v8372 = vsel %vm8274, %v8243, %v6318
      %v8374 = vsel %vm8274, %v8245, %v6320
      %v8376 = vsel %vm8274, %v8247, %v6322
      %v8378 = vsel %vm8274, %v8249, %v6324
      %v8380 = vsel %vm8274, %v8251, %v6326
      %v8382 = vsel %vm8274, %v8253, %v6328
      %v8384 = vsel %vm8274, %v8255, %v6330
      %v8386 = vsel %vm8274, %v8257, %v6332
      %v8388 = vsel %vm8274, %v8259, %v6334
      %v8390 = vsel %vm8274, %v8261, %v6336
      %v8392 = vsel %vm8274, %v8263, %v6338
      %v8394 = vsel %vm8274, %v8265, %v6340
      %v8396 = vsel %vm8274, %v8267, %v6342
      %v8398 = vsel %vm8274, %v8269, %v6344
      %v8400 = vsel %vm8274, %v8271, %v6346
      %v8402 = vsel %vm8274, %v8273, %v6348
      %vm8403 = vcmask 359424
      %v8405 = vsel %vm8403, %v8276, %v6398
      %v8407 = vsel %vm8403, %v8278, %v6400
      %v8409 = vsel %vm8403, %v8280, %v6402
      %v8411 = vsel %vm8403, %v8282, %v6404
      %v8413 = vsel %vm8403, %v8284, %v6406
      %v8415 = vsel %vm8403, %v8286, %v6408
      %v8417 = vsel %vm8403, %v8288, %v6410
      %v8419 = vsel %vm8403, %v8290, %v6412
      %v8421 = vsel %vm8403, %v8292, %v6414
      %v8423 = vsel %vm8403, %v8294, %v6416
      %v8425 = vsel %vm8403, %v8296, %v6418
      %v8427 = vsel %vm8403, %v8298, %v6420
      %v8429 = vsel %vm8403, %v8300, %v6422
      %v8431 = vsel %vm8403, %v8302, %v6424
      %v8433 = vsel %vm8403, %v8304, %v6426
      %v8435 = vsel %vm8403, %v8306, %v6428
      %v8437 = vsel %vm8403, %v8308, %v6430
      %v8439 = vsel %vm8403, %v8310, %v6432
      %v8441 = vsel %vm8403, %v8312, %v6434
      %v8443 = vsel %vm8403, %v8314, %v6436
      %v8445 = vsel %vm8403, %v8316, %v6438
      %v8447 = vsel %vm8403, %v8318, %v6440
      %v8449 = vsel %vm8403, %v8320, %v6442
      %v8451 = vsel %vm8403, %v8322, %v6444
      %v8453 = vsel %vm8403, %v8324, %v6446
      %v8455 = vsel %vm8403, %v8326, %v6448
      %v8457 = vsel %vm8403, %v8328, %v6450
      %v8459 = vsel %vm8403, %v8330, %v6452
      %v8461 = vsel %vm8403, %v8332, %v6454
      %v8463 = vsel %vm8403, %v8334, %v6456
      %v8465 = vsel %vm8403, %v8336, %v6458
      %v8467 = vsel %vm8403, %v8338, %v6460
      %v8469 = vsel %vm8403, %v8340, %v6462
      %v8471 = vsel %vm8403, %v8342, %v6464
      %v8473 = vsel %vm8403, %v8344, %v6466
      %v8475 = vsel %vm8403, %v8346, %v6468
      %v8477 = vsel %vm8403, %v8348, %v6470
      %v8479 = vsel %vm8403, %v8350, %v6472
      %v8481 = vsel %vm8403, %v8352, %v6474
      %v8483 = vsel %vm8403, %v8354, %v6476
      %v8485 = vsel %vm8403, %v8356, %v6478
      %v8487 = vsel %vm8403, %v8358, %v6480
      %v8489 = vsel %vm8403, %v8360, %v6482
      %v8491 = vsel %vm8403, %v8362, %v6484
      %v8493 = vsel %vm8403, %v8364, %v6486
      %v8495 = vsel %vm8403, %v8366, %v6488
      %v8497 = vsel %vm8403, %v8368, %v6490
      %v8499 = vsel %vm8403, %v8370, %v6492
      %v8501 = vsel %vm8403, %v8372, %v6494
      %v8503 = vsel %vm8403, %v8374, %v6496
      %v8505 = vsel %vm8403, %v8376, %v6498
      %v8507 = vsel %vm8403, %v8378, %v6500
      %v8509 = vsel %vm8403, %v8380, %v6502
      %v8511 = vsel %vm8403, %v8382, %v6504
      %v8513 = vsel %vm8403, %v8384, %v6506
      %v8515 = vsel %vm8403, %v8386, %v6508
      %v8517 = vsel %vm8403, %v8388, %v6510
      %v8519 = vsel %vm8403, %v8390, %v6512
      %v8521 = vsel %vm8403, %v8392, %v6514
      %v8523 = vsel %vm8403, %v8394, %v6516
      %v8525 = vsel %vm8403, %v8396, %v6518
      %v8527 = vsel %vm8403, %v8398, %v6520
      %v8529 = vsel %vm8403, %v8400, %v6522
      %v8531 = vsel %vm8403, %v8402, %v6524
      %vm8532 = vcmask 392192
      %v8534 = vsel %vm8532, %v8405, %v6529
      %v8536 = vsel %vm8532, %v8407, %v6531
      %v8538 = vsel %vm8532, %v8409, %v6533
      %v8540 = vsel %vm8532, %v8411, %v6535
      %v8542 = vsel %vm8532, %v8413, %v6537
      %v8544 = vsel %vm8532, %v8415, %v6539
      %v8546 = vsel %vm8532, %v8417, %v6541
      %v8548 = vsel %vm8532, %v8419, %v6543
      %v8550 = vsel %vm8532, %v8421, %v6545
      %v8552 = vsel %vm8532, %v8423, %v6547
      %v8554 = vsel %vm8532, %v8425, %v6549
      %v8556 = vsel %vm8532, %v8427, %v6551
      %v8558 = vsel %vm8532, %v8429, %v6553
      %v8560 = vsel %vm8532, %v8431, %v6555
      %v8562 = vsel %vm8532, %v8433, %v6557
      %v8564 = vsel %vm8532, %v8435, %v6559
      %v8566 = vsel %vm8532, %v8437, %v6561
      %v8568 = vsel %vm8532, %v8439, %v6563
      %v8570 = vsel %vm8532, %v8441, %v6565
      %v8572 = vsel %vm8532, %v8443, %v6567
      %v8574 = vsel %vm8532, %v8445, %v6569
      %v8576 = vsel %vm8532, %v8447, %v6571
      %v8578 = vsel %vm8532, %v8449, %v6573
      %v8580 = vsel %vm8532, %v8451, %v6575
      %v8582 = vsel %vm8532, %v8453, %v6577
      %v8584 = vsel %vm8532, %v8455, %v6579
      %v8586 = vsel %vm8532, %v8457, %v6581
      %v8588 = vsel %vm8532, %v8459, %v6583
      %v8590 = vsel %vm8532, %v8461, %v6585
      %v8592 = vsel %vm8532, %v8463, %v6587
      %v8594 = vsel %vm8532, %v8465, %v6589
      %v8596 = vsel %vm8532, %v8467, %v6591
      %v8598 = vsel %vm8532, %v8469, %v6593
      %v8600 = vsel %vm8532, %v8471, %v6595
      %v8602 = vsel %vm8532, %v8473, %v6597
      %v8604 = vsel %vm8532, %v8475, %v6599
      %v8606 = vsel %vm8532, %v8477, %v6601
      %v8608 = vsel %vm8532, %v8479, %v6603
      %v8610 = vsel %vm8532, %v8481, %v6605
      %v8612 = vsel %vm8532, %v8483, %v6607
      %v8614 = vsel %vm8532, %v8485, %v6609
      %v8616 = vsel %vm8532, %v8487, %v6611
      %v8618 = vsel %vm8532, %v8489, %v6613
      %v8620 = vsel %vm8532, %v8491, %v6615
      %v8622 = vsel %vm8532, %v8493, %v6617
      %v8624 = vsel %vm8532, %v8495, %v6619
      %v8626 = vsel %vm8532, %v8497, %v6621
      %v8628 = vsel %vm8532, %v8499, %v6623
      %v8630 = vsel %vm8532, %v8501, %v6625
      %v8632 = vsel %vm8532, %v8503, %v6627
      %v8634 = vsel %vm8532, %v8505, %v6629
      %v8636 = vsel %vm8532, %v8507, %v6631
      %v8638 = vsel %vm8532, %v8509, %v6633
      %v8640 = vsel %vm8532, %v8511, %v6635
      %v8642 = vsel %vm8532, %v8513, %v6637
      %v8644 = vsel %vm8532, %v8515, %v6639
      %v8646 = vsel %vm8532, %v8517, %v6641
      %v8648 = vsel %vm8532, %v8519, %v6643
      %v8650 = vsel %vm8532, %v8521, %v6645
      %v8652 = vsel %vm8532, %v8523, %v6647
      %v8654 = vsel %vm8532, %v8525, %v6649
      %v8656 = vsel %vm8532, %v8527, %v6651
      %v8658 = vsel %vm8532, %v8529, %v6653
      %v8660 = vsel %vm8532, %v8531, %v6655
      %vm8661 = vcmask 424960
      %v8663 = vsel %vm8661, %v8534, %v6660
      %v8665 = vsel %vm8661, %v8536, %v6662
      %v8667 = vsel %vm8661, %v8538, %v6664
      %v8669 = vsel %vm8661, %v8540, %v6666
      %v8671 = vsel %vm8661, %v8542, %v6668
      %v8673 = vsel %vm8661, %v8544, %v6670
      %v8675 = vsel %vm8661, %v8546, %v6672
      %v8677 = vsel %vm8661, %v8548, %v6674
      %v8679 = vsel %vm8661, %v8550, %v6676
      %v8681 = vsel %vm8661, %v8552, %v6678
      %v8683 = vsel %vm8661, %v8554, %v6680
      %v8685 = vsel %vm8661, %v8556, %v6682
      %v8687 = vsel %vm8661, %v8558, %v6684
      %v8689 = vsel %vm8661, %v8560, %v6686
      %v8691 = vsel %vm8661, %v8562, %v6688
      %v8693 = vsel %vm8661, %v8564, %v6690
      %v8695 = vsel %vm8661, %v8566, %v6692
      %v8697 = vsel %vm8661, %v8568, %v6694
      %v8699 = vsel %vm8661, %v8570, %v6696
      %v8701 = vsel %vm8661, %v8572, %v6698
      %v8703 = vsel %vm8661, %v8574, %v6700
      %v8705 = vsel %vm8661, %v8576, %v6702
      %v8707 = vsel %vm8661, %v8578, %v6704
      %v8709 = vsel %vm8661, %v8580, %v6706
      %v8711 = vsel %vm8661, %v8582, %v6708
      %v8713 = vsel %vm8661, %v8584, %v6710
      %v8715 = vsel %vm8661, %v8586, %v6712
      %v8717 = vsel %vm8661, %v8588, %v6714
      %v8719 = vsel %vm8661, %v8590, %v6716
      %v8721 = vsel %vm8661, %v8592, %v6718
      %v8723 = vsel %vm8661, %v8594, %v6720
      %v8725 = vsel %vm8661, %v8596, %v6722
      %v8727 = vsel %vm8661, %v8598, %v6724
      %v8729 = vsel %vm8661, %v8600, %v6726
      %v8731 = vsel %vm8661, %v8602, %v6728
      %v8733 = vsel %vm8661, %v8604, %v6730
      %v8735 = vsel %vm8661, %v8606, %v6732
      %v8737 = vsel %vm8661, %v8608, %v6734
      %v8739 = vsel %vm8661, %v8610, %v6736
      %v8741 = vsel %vm8661, %v8612, %v6738
      %v8743 = vsel %vm8661, %v8614, %v6740
      %v8745 = vsel %vm8661, %v8616, %v6742
      %v8747 = vsel %vm8661, %v8618, %v6744
      %v8749 = vsel %vm8661, %v8620, %v6746
      %v8751 = vsel %vm8661, %v8622, %v6748
      %v8753 = vsel %vm8661, %v8624, %v6750
      %v8755 = vsel %vm8661, %v8626, %v6752
      %v8757 = vsel %vm8661, %v8628, %v6754
      %v8759 = vsel %vm8661, %v8630, %v6756
      %v8761 = vsel %vm8661, %v8632, %v6758
      %v8763 = vsel %vm8661, %v8634, %v6760
      %v8765 = vsel %vm8661, %v8636, %v6762
      %v8767 = vsel %vm8661, %v8638, %v6764
      %v8769 = vsel %vm8661, %v8640, %v6766
      %v8771 = vsel %vm8661, %v8642, %v6768
      %v8773 = vsel %vm8661, %v8644, %v6770
      %v8775 = vsel %vm8661, %v8646, %v6772
      %v8777 = vsel %vm8661, %v8648, %v6774
      %v8779 = vsel %vm8661, %v8650, %v6776
      %v8781 = vsel %vm8661, %v8652, %v6778
      %v8783 = vsel %vm8661, %v8654, %v6780
      %v8785 = vsel %vm8661, %v8656, %v6782
      %v8787 = vsel %vm8661, %v8658, %v6784
      %v8789 = vsel %vm8661, %v8660, %v6786
      %vm8790 = vcmask 457728
      %v8792 = vsel %vm8790, %v8663, %v6791
      %v8794 = vsel %vm8790, %v8665, %v6793
      %v8796 = vsel %vm8790, %v8667, %v6795
      %v8798 = vsel %vm8790, %v8669, %v6797
      %v8800 = vsel %vm8790, %v8671, %v6799
      %v8802 = vsel %vm8790, %v8673, %v6801
      %v8804 = vsel %vm8790, %v8675, %v6803
      %v8806 = vsel %vm8790, %v8677, %v6805
      %v8808 = vsel %vm8790, %v8679, %v6807
      %v8810 = vsel %vm8790, %v8681, %v6809
      %v8812 = vsel %vm8790, %v8683, %v6811
      %v8814 = vsel %vm8790, %v8685, %v6813
      %v8816 = vsel %vm8790, %v8687, %v6815
      %v8818 = vsel %vm8790, %v8689, %v6817
      %v8820 = vsel %vm8790, %v8691, %v6819
      %v8822 = vsel %vm8790, %v8693, %v6821
      %v8824 = vsel %vm8790, %v8695, %v6823
      %v8826 = vsel %vm8790, %v8697, %v6825
      %v8828 = vsel %vm8790, %v8699, %v6827
      %v8830 = vsel %vm8790, %v8701, %v6829
      %v8832 = vsel %vm8790, %v8703, %v6831
      %v8834 = vsel %vm8790, %v8705, %v6833
      %v8836 = vsel %vm8790, %v8707, %v6835
      %v8838 = vsel %vm8790, %v8709, %v6837
      %v8840 = vsel %vm8790, %v8711, %v6839
      %v8842 = vsel %vm8790, %v8713, %v6841
      %v8844 = vsel %vm8790, %v8715, %v6843
      %v8846 = vsel %vm8790, %v8717, %v6845
      %v8848 = vsel %vm8790, %v8719, %v6847
      %v8850 = vsel %vm8790, %v8721, %v6849
      %v8852 = vsel %vm8790, %v8723, %v6851
      %v8854 = vsel %vm8790, %v8725, %v6853
      %v8856 = vsel %vm8790, %v8727, %v6855
      %v8858 = vsel %vm8790, %v8729, %v6857
      %v8860 = vsel %vm8790, %v8731, %v6859
      %v8862 = vsel %vm8790, %v8733, %v6861
      %v8864 = vsel %vm8790, %v8735, %v6863
      %v8866 = vsel %vm8790, %v8737, %v6865
      %v8868 = vsel %vm8790, %v8739, %v6867
      %v8870 = vsel %vm8790, %v8741, %v6869
      %v8872 = vsel %vm8790, %v8743, %v6871
      %v8874 = vsel %vm8790, %v8745, %v6873
      %v8876 = vsel %vm8790, %v8747, %v6875
      %v8878 = vsel %vm8790, %v8749, %v6877
      %v8880 = vsel %vm8790, %v8751, %v6879
      %v8882 = vsel %vm8790, %v8753, %v6881
      %v8884 = vsel %vm8790, %v8755, %v6883
      %v8886 = vsel %vm8790, %v8757, %v6885
      %v8888 = vsel %vm8790, %v8759, %v6887
      %v8890 = vsel %vm8790, %v8761, %v6889
      %v8892 = vsel %vm8790, %v8763, %v6891
      %v8894 = vsel %vm8790, %v8765, %v6893
      %v8896 = vsel %vm8790, %v8767, %v6895
      %v8898 = vsel %vm8790, %v8769, %v6897
      %v8900 = vsel %vm8790, %v8771, %v6899
      %v8902 = vsel %vm8790, %v8773, %v6901
      %v8904 = vsel %vm8790, %v8775, %v6903
      %v8906 = vsel %vm8790, %v8777, %v6905
      %v8908 = vsel %vm8790, %v8779, %v6907
      %v8910 = vsel %vm8790, %v8781, %v6909
      %v8912 = vsel %vm8790, %v8783, %v6911
      %v8914 = vsel %vm8790, %v8785, %v6913
      %v8916 = vsel %vm8790, %v8787, %v6915
      %v8918 = vsel %vm8790, %v8789, %v6917
      %vm8919 = vcmask 490496
      %v8921 = vsel %vm8919, %v8792, %v6922
      %v8923 = vsel %vm8919, %v8794, %v6924
      %v8925 = vsel %vm8919, %v8796, %v6926
      %v8927 = vsel %vm8919, %v8798, %v6928
      %v8929 = vsel %vm8919, %v8800, %v6930
      %v8931 = vsel %vm8919, %v8802, %v6932
      %v8933 = vsel %vm8919, %v8804, %v6934
      %v8935 = vsel %vm8919, %v8806, %v6936
      %v8937 = vsel %vm8919, %v8808, %v6938
      %v8939 = vsel %vm8919, %v8810, %v6940
      %v8941 = vsel %vm8919, %v8812, %v6942
      %v8943 = vsel %vm8919, %v8814, %v6944
      %v8945 = vsel %vm8919, %v8816, %v6946
      %v8947 = vsel %vm8919, %v8818, %v6948
      %v8949 = vsel %vm8919, %v8820, %v6950
      %v8951 = vsel %vm8919, %v8822, %v6952
      %v8953 = vsel %vm8919, %v8824, %v6954
      %v8955 = vsel %vm8919, %v8826, %v6956
      %v8957 = vsel %vm8919, %v8828, %v6958
      %v8959 = vsel %vm8919, %v8830, %v6960
      %v8961 = vsel %vm8919, %v8832, %v6962
      %v8963 = vsel %vm8919, %v8834, %v6964
      %v8965 = vsel %vm8919, %v8836, %v6966
      %v8967 = vsel %vm8919, %v8838, %v6968
      %v8969 = vsel %vm8919, %v8840, %v6970
      %v8971 = vsel %vm8919, %v8842, %v6972
      %v8973 = vsel %vm8919, %v8844, %v6974
      %v8975 = vsel %vm8919, %v8846, %v6976
      %v8977 = vsel %vm8919, %v8848, %v6978
      %v8979 = vsel %vm8919, %v8850, %v6980
      %v8981 = vsel %vm8919, %v8852, %v6982
      %v8983 = vsel %vm8919, %v8854, %v6984
      %v8985 = vsel %vm8919, %v8856, %v6986
      %v8987 = vsel %vm8919, %v8858, %v6988
      %v8989 = vsel %vm8919, %v8860, %v6990
      %v8991 = vsel %vm8919, %v8862, %v6992
      %v8993 = vsel %vm8919, %v8864, %v6994
      %v8995 = vsel %vm8919, %v8866, %v6996
      %v8997 = vsel %vm8919, %v8868, %v6998
      %v8999 = vsel %vm8919, %v8870, %v7000
      %v9001 = vsel %vm8919, %v8872, %v7002
      %v9003 = vsel %vm8919, %v8874, %v7004
      %v9005 = vsel %vm8919, %v8876, %v7006
      %v9007 = vsel %vm8919, %v8878, %v7008
      %v9009 = vsel %vm8919, %v8880, %v7010
      %v9011 = vsel %vm8919, %v8882, %v7012
      %v9013 = vsel %vm8919, %v8884, %v7014
      %v9015 = vsel %vm8919, %v8886, %v7016
      %v9017 = vsel %vm8919, %v8888, %v7018
      %v9019 = vsel %vm8919, %v8890, %v7020
      %v9021 = vsel %vm8919, %v8892, %v7022
      %v9023 = vsel %vm8919, %v8894, %v7024
      %v9025 = vsel %vm8919, %v8896, %v7026
      %v9027 = vsel %vm8919, %v8898, %v7028
      %v9029 = vsel %vm8919, %v8900, %v7030
      %v9031 = vsel %vm8919, %v8902, %v7032
      %v9033 = vsel %vm8919, %v8904, %v7034
      %v9035 = vsel %vm8919, %v8906, %v7036
      %v9037 = vsel %vm8919, %v8908, %v7038
      %v9039 = vsel %vm8919, %v8910, %v7040
      %v9041 = vsel %vm8919, %v8912, %v7042
      %v9043 = vsel %vm8919, %v8914, %v7044
      %v9045 = vsel %vm8919, %v8916, %v7046
      %v9047 = vsel %vm8919, %v8918, %v7048
      %v9048 = vunpack.c.l.b16 %v3692
      %v9049 = vunpack.c.l.b16 %v3702
      %v9050 = vpack.c.b16 %v9049, %v9048
      %v9051 = vunpack.c.l.b16 %v3709
      %v9052 = vunpack.c.l.b16 %v3712
      %v9053 = vpack.c.b16 %v9052, %v9051
      %9054 = vrot.lane.b32.xlu0 %v4983, 4
      %v9055 = vpop.permute.xlu0 %9054
      %9056 = vrot.lane.b32.xlu0 %v4984, 4
      %v9057 = vpop.permute.xlu0 %9056
      %9058 = vrot.lane.b32.xlu0 %v4985, 4
      %v9059 = vpop.permute.xlu0 %9058
      %9060 = vrot.lane.b32.xlu0 %v4986, 4
      %v9061 = vpop.permute.xlu0 %9060
      %9062 = vrot.lane.b32.xlu0 %v4987, 4
      %v9063 = vpop.permute.xlu0 %9062
      %9064 = vrot.lane.b32.xlu0 %v4988, 4
      %v9065 = vpop.permute.xlu0 %9064
      %9066 = vrot.lane.b32.xlu0 %v4989, 4
      %v9067 = vpop.permute.xlu0 %9066
      %9068 = vrot.lane.b32.xlu0 %v4990, 4
      %v9069 = vpop.permute.xlu0 %9068
      %9070 = vrot.lane.b32.xlu0 %v4991, 4
      %v9071 = vpop.permute.xlu0 %9070
      %9072 = vrot.lane.b32.xlu0 %v4992, 4
      %v9073 = vpop.permute.xlu0 %9072
      %9074 = vrot.lane.b32.xlu0 %v4993, 4
      %v9075 = vpop.permute.xlu0 %9074
      %9076 = vrot.lane.b32.xlu0 %v4994, 4
      %v9077 = vpop.permute.xlu0 %9076
      %9078 = vrot.lane.b32.xlu0 %v4995, 4
      %v9079 = vpop.permute.xlu0 %9078
      %9080 = vrot.lane.b32.xlu0 %v4996, 4
      %v9081 = vpop.permute.xlu0 %9080
      %9082 = vrot.lane.b32.xlu0 %v5446, 4
      %v9083 = vpop.permute.xlu0 %9082
      %9084 = vrot.lane.b32.xlu0 %v5866, 4
      %v9085 = vpop.permute.xlu0 %9084
      %9086 = vrot.lane.b32.xlu0 %v4999, 4
      %v9087 = vpop.permute.xlu0 %9086
      %9088 = vrot.lane.b32.xlu0 %v5000, 4
      %v9089 = vpop.permute.xlu0 %9088
      %9090 = vrot.lane.b32.xlu0 %v5001, 4
      %v9091 = vpop.permute.xlu0 %9090
      %9092 = vrot.lane.b32.xlu0 %v5002, 4
      %v9093 = vpop.permute.xlu0 %9092
      %9094 = vrot.lane.b32.xlu0 %v5003, 4
      %v9095 = vpop.permute.xlu0 %9094
      %9096 = vrot.lane.b32.xlu0 %v5004, 4
      %v9097 = vpop.permute.xlu0 %9096
      %9098 = vrot.lane.b32.xlu0 %v5005, 4
      %v9099 = vpop.permute.xlu0 %9098
      %9100 = vrot.lane.b32.xlu0 %v5006, 4
      %v9101 = vpop.permute.xlu0 %9100
      %9102 = vrot.lane.b32.xlu0 %v5007, 4
      %v9103 = vpop.permute.xlu0 %9102
      %9104 = vrot.lane.b32.xlu0 %v5008, 4
      %v9105 = vpop.permute.xlu0 %9104
      %9106 = vrot.lane.b32.xlu0 %v5009, 4
      %v9107 = vpop.permute.xlu0 %9106
      %9108 = vrot.lane.b32.xlu0 %v5010, 4
      %v9109 = vpop.permute.xlu0 %9108
      %9110 = vrot.lane.b32.xlu0 %v5011, 4
      %v9111 = vpop.permute.xlu0 %9110
      %9112 = vrot.lane.b32.xlu0 %v5012, 4
      %v9113 = vpop.permute.xlu0 %9112
      %9114 = vrot.lane.b32.xlu0 %v5447, 4
      %v9115 = vpop.permute.xlu0 %9114
      %9116 = vrot.lane.b32.xlu0 %v5867, 4
      %v9117 = vpop.permute.xlu0 %9116
      %9118 = vrot.lane.b32.xlu0 %v5015, 4
      %v9119 = vpop.permute.xlu0 %9118
      %9120 = vrot.lane.b32.xlu0 %v5016, 4
      %v9121 = vpop.permute.xlu0 %9120
      %9122 = vrot.lane.b32.xlu0 %v5017, 4
      %v9123 = vpop.permute.xlu0 %9122
      %9124 = vrot.lane.b32.xlu0 %v5018, 4
      %v9125 = vpop.permute.xlu0 %9124
      %9126 = vrot.lane.b32.xlu0 %v5019, 4
      %v9127 = vpop.permute.xlu0 %9126
      %9128 = vrot.lane.b32.xlu0 %v5020, 4
      %v9129 = vpop.permute.xlu0 %9128
      %9130 = vrot.lane.b32.xlu0 %v5021, 4
      %v9131 = vpop.permute.xlu0 %9130
      %9132 = vrot.lane.b32.xlu0 %v5022, 4
      %v9133 = vpop.permute.xlu0 %9132
      %9134 = vrot.lane.b32.xlu0 %v5023, 4
      %v9135 = vpop.permute.xlu0 %9134
      %9136 = vrot.lane.b32.xlu0 %v5024, 4
      %v9137 = vpop.permute.xlu0 %9136
      %9138 = vrot.lane.b32.xlu0 %v5025, 4
      %v9139 = vpop.permute.xlu0 %9138
      %9140 = vrot.lane.b32.xlu0 %v5026, 4
      %v9141 = vpop.permute.xlu0 %9140
      %9142 = vrot.lane.b32.xlu0 %v5027, 4
      %v9143 = vpop.permute.xlu0 %9142
      %9144 = vrot.lane.b32.xlu0 %v5028, 4
      %v9145 = vpop.permute.xlu0 %9144
      %9146 = vrot.lane.b32.xlu0 %v5448, 4
      %v9147 = vpop.permute.xlu0 %9146
      %9148 = vrot.lane.b32.xlu0 %v5868, 4
      %v9149 = vpop.permute.xlu0 %9148
      %9150 = vrot.lane.b32.xlu0 %v6383, 4
      %v9151 = vpop.permute.xlu0 %9150
      %9152 = vrot.lane.b32.xlu0 %v6384, 4
      %v9153 = vpop.permute.xlu0 %9152
      %9154 = vrot.lane.b32.xlu0 %v6385, 4
      %v9155 = vpop.permute.xlu0 %9154
      %9156 = vrot.lane.b32.xlu0 %v6386, 4
      %v9157 = vpop.permute.xlu0 %9156
      %9158 = vrot.lane.b32.xlu0 %v6387, 4
      %v9159 = vpop.permute.xlu0 %9158
      %9160 = vrot.lane.b32.xlu0 %v6388, 4
      %v9161 = vpop.permute.xlu0 %9160
      %9162 = vrot.lane.b32.xlu0 %v6389, 4
      %v9163 = vpop.permute.xlu0 %9162
      %9164 = vrot.lane.b32.xlu0 %v6390, 4
      %v9165 = vpop.permute.xlu0 %9164
      %9166 = vrot.lane.b32.xlu0 %v6391, 4
      %v9167 = vpop.permute.xlu0 %9166
      %9168 = vrot.lane.b32.xlu0 %v6392, 4
      %v9169 = vpop.permute.xlu0 %9168
      %9170 = vrot.lane.b32.xlu0 %v6393, 4
      %v9171 = vpop.permute.xlu0 %9170
      %9172 = vrot.lane.b32.xlu0 %v6394, 4
      %v9173 = vpop.permute.xlu0 %9172
      %9174 = vrot.lane.b32.xlu0 %v6395, 4
      %v9175 = vpop.permute.xlu0 %9174
      %9176 = vrot.lane.b32.xlu0 %v6396, 4
      %v9177 = vpop.permute.xlu0 %9176
      %9178 = vrot.lane.b32.xlu0 %v6789, 4
      %v9179 = vpop.permute.xlu0 %9178
      %9180 = vrot.lane.b32.xlu0 %v9053, 4
      %v9181 = vpop.permute.xlu0 %9180
      %v9182 = vunpack.c.l.b16 %v593
      %v9183 = vunpack.c.l.b16 %v594
      %v9184 = vunpack.c.l.b16 %v596
      %v9185 = vunpack.c.l.b16 %v597
      %v9186 = vunpack.c.l.b16 %v599
      %v9187 = vunpack.c.l.b16 %v600
      %v9188 = vunpack.c.l.b16 %v602
      %v9189 = vunpack.c.l.b16 %v603
      %v9190 = vunpack.c.l.b16 %v605
      %v9191 = vunpack.c.l.b16 %v606
      %v9192 = vunpack.c.l.b16 %v608
      %v9193 = vunpack.c.l.b16 %v609
      %v9194 = vunpack.c.l.b16 %v611
      %v9195 = vunpack.c.l.b16 %v612
      %v9196 = vunpack.c.l.b16 %v614
      %v9197 = vunpack.c.l.b16 %v615
      %v9198 = vunpack.c.l.b16 %v617
      %v9199 = vunpack.c.l.b16 %v618
      %v9200 = vunpack.c.l.b16 %v620
      %v9201 = vunpack.c.l.b16 %v621
      %v9202 = vunpack.c.l.b16 %v623
      %v9203 = vunpack.c.l.b16 %v624
      %v9204 = vunpack.c.l.b16 %v626
      %v9205 = vunpack.c.l.b16 %v627
      %v9206 = vunpack.c.l.b16 %v629
      %v9207 = vunpack.c.l.b16 %v630
      %v9208 = vunpack.c.l.b16 %v632
      %v9209 = vunpack.c.l.b16 %v633
      %v9210 = vunpack.c.l.b16 %v635
      %v9211 = vunpack.c.l.b16 %v636
      %v9212 = vunpack.c.l.b16 %v638
      %v9213 = vunpack.c.l.b16 %v639
      %v9214 = vpack.c.b16 %v9183, %v9182
      %v9215 = vpack.c.b16 %v9185, %v9184
      %v9216 = vpack.c.b16 %v9187, %v9186
      %v9217 = vpack.c.b16 %v9189, %v9188
      %v9218 = vpack.c.b16 %v9191, %v9190
      %v9219 = vpack.c.b16 %v9193, %v9192
      %v9220 = vpack.c.b16 %v9195, %v9194
      %v9221 = vpack.c.b16 %v9197, %v9196
      %v9222 = vpack.c.b16 %v9199, %v9198
      %v9223 = vpack.c.b16 %v9201, %v9200
      %v9224 = vpack.c.b16 %v9203, %v9202
      %v9225 = vpack.c.b16 %v9205, %v9204
      %v9226 = vpack.c.b16 %v9207, %v9206
      %v9227 = vpack.c.b16 %v9209, %v9208
      %v9228 = vpack.c.b16 %v9211, %v9210
      %v9229 = vpack.c.b16 %v9213, %v9212
      %9230 = vrot.lane.b32.xlu0 %v4485, 8
      %v9231 = vpop.permute.xlu0 %9230
      %9232 = vrot.lane.b32.xlu0 %v4486, 8
      %v9233 = vpop.permute.xlu0 %9232
      %9234 = vrot.lane.b32.xlu0 %v4487, 8
      %v9235 = vpop.permute.xlu0 %9234
      %9236 = vrot.lane.b32.xlu0 %v4488, 8
      %v9237 = vpop.permute.xlu0 %9236
      %9238 = vrot.lane.b32.xlu0 %v4489, 8
      %v9239 = vpop.permute.xlu0 %9238
      %9240 = vrot.lane.b32.xlu0 %v4490, 8
      %v9241 = vpop.permute.xlu0 %9240
      %9242 = vrot.lane.b32.xlu0 %v4491, 8
      %v9243 = vpop.permute.xlu0 %9242
      %9244 = vrot.lane.b32.xlu0 %v4492, 8
      %v9245 = vpop.permute.xlu0 %9244
      %9246 = vrot.lane.b32.xlu0 %v4493, 8
      %v9247 = vpop.permute.xlu0 %9246
      %9248 = vrot.lane.b32.xlu0 %v4494, 8
      %v9249 = vpop.permute.xlu0 %9248
      %9250 = vrot.lane.b32.xlu0 %v4495, 8
      %v9251 = vpop.permute.xlu0 %9250
      %9252 = vrot.lane.b32.xlu0 %v4496, 8
      %v9253 = vpop.permute.xlu0 %9252
      %9254 = vrot.lane.b32.xlu0 %v4497, 8
      %v9255 = vpop.permute.xlu0 %9254
      %9256 = vrot.lane.b32.xlu0 %v4498, 8
      %v9257 = vpop.permute.xlu0 %9256
      %9258 = vrot.lane.b32.xlu0 %v4499, 8
      %v9259 = vpop.permute.xlu0 %9258
      %9260 = vrot.lane.b32.xlu0 %v4500, 8
      %v9261 = vpop.permute.xlu0 %9260
      %9262 = vrot.lane.b32.xlu0 %v4501, 8
      %v9263 = vpop.permute.xlu0 %9262
      %9264 = vrot.lane.b32.xlu0 %v4502, 8
      %v9265 = vpop.permute.xlu0 %9264
      %9266 = vrot.lane.b32.xlu0 %v4503, 8
      %v9267 = vpop.permute.xlu0 %9266
      %9268 = vrot.lane.b32.xlu0 %v4504, 8
      %v9269 = vpop.permute.xlu0 %9268
      %9270 = vrot.lane.b32.xlu0 %v4505, 8
      %v9271 = vpop.permute.xlu0 %9270
      %9272 = vrot.lane.b32.xlu0 %v4506, 8
      %v9273 = vpop.permute.xlu0 %9272
      %9274 = vrot.lane.b32.xlu0 %v4507, 8
      %v9275 = vpop.permute.xlu0 %9274
      %9276 = vrot.lane.b32.xlu0 %v4508, 8
      %v9277 = vpop.permute.xlu0 %9276
      %9278 = vrot.lane.b32.xlu0 %v4509, 8
      %v9279 = vpop.permute.xlu0 %9278
      %9280 = vrot.lane.b32.xlu0 %v4510, 8
      %v9281 = vpop.permute.xlu0 %9280
      %9282 = vrot.lane.b32.xlu0 %v4511, 8
      %v9283 = vpop.permute.xlu0 %9282
      %9284 = vrot.lane.b32.xlu0 %v4512, 8
      %v9285 = vpop.permute.xlu0 %9284
      %9286 = vrot.lane.b32.xlu0 %v4513, 8
      %v9287 = vpop.permute.xlu0 %9286
      %9288 = vrot.lane.b32.xlu0 %v4514, 8
      %v9289 = vpop.permute.xlu0 %9288
      %9290 = vrot.lane.b32.xlu0 %v4515, 8
      %v9291 = vpop.permute.xlu0 %9290
      %9292 = vrot.lane.b32.xlu0 %v4516, 8
      %v9293 = vpop.permute.xlu0 %9292
      %9294 = vrot.lane.b32.xlu0 %v6029, 8
      %v9295 = vpop.permute.xlu0 %9294
      %9296 = vrot.lane.b32.xlu0 %v6030, 8
      %v9297 = vpop.permute.xlu0 %9296
      %9298 = vrot.lane.b32.xlu0 %v6031, 8
      %v9299 = vpop.permute.xlu0 %9298
      %9300 = vrot.lane.b32.xlu0 %v6032, 8
      %v9301 = vpop.permute.xlu0 %9300
      %9302 = vrot.lane.b32.xlu0 %v6033, 8
      %v9303 = vpop.permute.xlu0 %9302
      %9304 = vrot.lane.b32.xlu0 %v6034, 8
      %v9305 = vpop.permute.xlu0 %9304
      %9306 = vrot.lane.b32.xlu0 %v6035, 8
      %v9307 = vpop.permute.xlu0 %9306
      %9308 = vrot.lane.b32.xlu0 %v6036, 8
      %v9309 = vpop.permute.xlu0 %9308
      %9310 = vrot.lane.b32.xlu0 %v6037, 8
      %v9311 = vpop.permute.xlu0 %9310
      %9312 = vrot.lane.b32.xlu0 %v6038, 8
      %v9313 = vpop.permute.xlu0 %9312
      %9314 = vrot.lane.b32.xlu0 %v6039, 8
      %v9315 = vpop.permute.xlu0 %9314
      %9316 = vrot.lane.b32.xlu0 %v6040, 8
      %v9317 = vpop.permute.xlu0 %9316
      %9318 = vrot.lane.b32.xlu0 %v6041, 8
      %v9319 = vpop.permute.xlu0 %9318
      %9320 = vrot.lane.b32.xlu0 %v6042, 8
      %v9321 = vpop.permute.xlu0 %9320
      %9322 = vrot.lane.b32.xlu0 %v6043, 8
      %v9323 = vpop.permute.xlu0 %9322
      %9324 = vrot.lane.b32.xlu0 %v6044, 8
      %v9325 = vpop.permute.xlu0 %9324
      %9326 = vrot.lane.b32.xlu0 %v9214, 8
      %v9327 = vpop.permute.xlu0 %9326
      %9328 = vrot.lane.b32.xlu0 %v9215, 8
      %v9329 = vpop.permute.xlu0 %9328
      %9330 = vrot.lane.b32.xlu0 %v9216, 8
      %v9331 = vpop.permute.xlu0 %9330
      %9332 = vrot.lane.b32.xlu0 %v9217, 8
      %v9333 = vpop.permute.xlu0 %9332
      %9334 = vrot.lane.b32.xlu0 %v9218, 8
      %v9335 = vpop.permute.xlu0 %9334
      %9336 = vrot.lane.b32.xlu0 %v9219, 8
      %v9337 = vpop.permute.xlu0 %9336
      %9338 = vrot.lane.b32.xlu0 %v9220, 8
      %v9339 = vpop.permute.xlu0 %9338
      %9340 = vrot.lane.b32.xlu0 %v9221, 8
      %v9341 = vpop.permute.xlu0 %9340
      %9342 = vrot.lane.b32.xlu0 %v9222, 8
      %v9343 = vpop.permute.xlu0 %9342
      %9344 = vrot.lane.b32.xlu0 %v9223, 8
      %v9345 = vpop.permute.xlu0 %9344
      %9346 = vrot.lane.b32.xlu0 %v9224, 8
      %v9347 = vpop.permute.xlu0 %9346
      %9348 = vrot.lane.b32.xlu0 %v9225, 8
      %v9349 = vpop.permute.xlu0 %9348
      %9350 = vrot.lane.b32.xlu0 %v9226, 8
      %v9351 = vpop.permute.xlu0 %9350
      %9352 = vrot.lane.b32.xlu0 %v9227, 8
      %v9353 = vpop.permute.xlu0 %9352
      %9354 = vrot.lane.b32.xlu0 %v9228, 8
      %v9355 = vpop.permute.xlu0 %9354
      %9356 = vrot.lane.b32.xlu0 %v9229, 8
      %v9357 = vpop.permute.xlu0 %9356
      %v9358 = vunpack.c.l.b16 %v3726
      %v9359 = vunpack.c.l.b16 %v3736
      %v9360 = vunpack.c.l.b16 %v3750
      %v9361 = vunpack.c.l.b16 %v3760
      %v9362 = vunpack.c.l.b16 %v3774
      %v9363 = vunpack.c.l.b16 %v3784
      %v9364 = vunpack.c.l.b16 %v3798
      %v9365 = vunpack.c.l.b16 %v3808
      %v9366 = vunpack.c.l.b16 %v3822
      %v9367 = vunpack.c.l.b16 %v3832
      %v9368 = vunpack.c.l.b16 %v3846
      %v9369 = vunpack.c.l.b16 %v3856
      %v9370 = vunpack.c.l.b16 %v3870
      %v9371 = vunpack.c.l.b16 %v3880
      %v9372 = vunpack.c.l.b16 %v3894
      %v9373 = vunpack.c.l.b16 %v3904
      %v9374 = vunpack.c.l.b16 %v3918
      %v9375 = vunpack.c.l.b16 %v3928
      %v9376 = vunpack.c.l.b16 %v3942
      %v9377 = vunpack.c.l.b16 %v3952
      %v9378 = vunpack.c.l.b16 %v3966
      %v9379 = vunpack.c.l.b16 %v3976
      %v9380 = vunpack.c.l.b16 %v3990
      %v9381 = vunpack.c.l.b16 %v4000
      %v9382 = vunpack.c.l.b16 %v4014
      %v9383 = vunpack.c.l.b16 %v4024
      %v9384 = vunpack.c.l.b16 %v4038
      %v9385 = vunpack.c.l.b16 %v4048
      %v9386 = vunpack.c.l.b16 %v4062
      %v9387 = vunpack.c.l.b16 %v4072
      %v9388 = vunpack.c.l.b16 %v4086
      %v9389 = vunpack.c.l.b16 %v4096
      %v9390 = vpack.c.b16 %v9359, %v9358
      %v9391 = vpack.c.b16 %v9361, %v9360
      %v9392 = vpack.c.b16 %v9363, %v9362
      %v9393 = vpack.c.b16 %v9365, %v9364
      %v9394 = vpack.c.b16 %v9367, %v9366
      %v9395 = vpack.c.b16 %v9369, %v9368
      %v9396 = vpack.c.b16 %v9371, %v9370
      %v9397 = vpack.c.b16 %v9373, %v9372
      %v9398 = vpack.c.b16 %v9375, %v9374
      %v9399 = vpack.c.b16 %v9377, %v9376
      %v9400 = vpack.c.b16 %v9379, %v9378
      %v9401 = vpack.c.b16 %v9381, %v9380
      %v9402 = vpack.c.b16 %v9383, %v9382
      %v9403 = vpack.c.b16 %v9385, %v9384
      %v9404 = vpack.c.b16 %v9387, %v9386
      %v9405 = vpack.c.b16 %v9389, %v9388
      %9406 = vrot.lane.b32.xlu0 %v4677, 12
      %v9407 = vpop.permute.xlu0 %9406
      %9408 = vrot.lane.b32.xlu0 %v4678, 12
      %v9409 = vpop.permute.xlu0 %9408
      %9410 = vrot.lane.b32.xlu0 %v4679, 12
      %v9411 = vpop.permute.xlu0 %9410
      %9412 = vrot.lane.b32.xlu0 %v4680, 12
      %v9413 = vpop.permute.xlu0 %9412
      %9414 = vrot.lane.b32.xlu0 %v4681, 12
      %v9415 = vpop.permute.xlu0 %9414
      %9416 = vrot.lane.b32.xlu0 %v4682, 12
      %v9417 = vpop.permute.xlu0 %9416
      %9418 = vrot.lane.b32.xlu0 %v4683, 12
      %v9419 = vpop.permute.xlu0 %9418
      %9420 = vrot.lane.b32.xlu0 %v4684, 12
      %v9421 = vpop.permute.xlu0 %9420
      %9422 = vrot.lane.b32.xlu0 %v4685, 12
      %v9423 = vpop.permute.xlu0 %9422
      %9424 = vrot.lane.b32.xlu0 %v4686, 12
      %v9425 = vpop.permute.xlu0 %9424
      %9426 = vrot.lane.b32.xlu0 %v4687, 12
      %v9427 = vpop.permute.xlu0 %9426
      %9428 = vrot.lane.b32.xlu0 %v4688, 12
      %v9429 = vpop.permute.xlu0 %9428
      %9430 = vrot.lane.b32.xlu0 %v4689, 12
      %v9431 = vpop.permute.xlu0 %9430
      %9432 = vrot.lane.b32.xlu0 %v4690, 12
      %v9433 = vpop.permute.xlu0 %9432
      %9434 = vrot.lane.b32.xlu0 %v4691, 12
      %v9435 = vpop.permute.xlu0 %9434
      %9436 = vrot.lane.b32.xlu0 %v4692, 12
      %v9437 = vpop.permute.xlu0 %9436
      %9438 = vrot.lane.b32.xlu0 %v4693, 12
      %v9439 = vpop.permute.xlu0 %9438
      %9440 = vrot.lane.b32.xlu0 %v4694, 12
      %v9441 = vpop.permute.xlu0 %9440
      %9442 = vrot.lane.b32.xlu0 %v4695, 12
      %v9443 = vpop.permute.xlu0 %9442
      %9444 = vrot.lane.b32.xlu0 %v4696, 12
      %v9445 = vpop.permute.xlu0 %9444
      %9446 = vrot.lane.b32.xlu0 %v4697, 12
      %v9447 = vpop.permute.xlu0 %9446
      %9448 = vrot.lane.b32.xlu0 %v4698, 12
      %v9449 = vpop.permute.xlu0 %9448
      %9450 = vrot.lane.b32.xlu0 %v4699, 12
      %v9451 = vpop.permute.xlu0 %9450
      %9452 = vrot.lane.b32.xlu0 %v4700, 12
      %v9453 = vpop.permute.xlu0 %9452
      %9454 = vrot.lane.b32.xlu0 %v4701, 12
      %v9455 = vpop.permute.xlu0 %9454
      %9456 = vrot.lane.b32.xlu0 %v4702, 12
      %v9457 = vpop.permute.xlu0 %9456
      %9458 = vrot.lane.b32.xlu0 %v4703, 12
      %v9459 = vpop.permute.xlu0 %9458
      %9460 = vrot.lane.b32.xlu0 %v4704, 12
      %v9461 = vpop.permute.xlu0 %9460
      %9462 = vrot.lane.b32.xlu0 %v4705, 12
      %v9463 = vpop.permute.xlu0 %9462
      %9464 = vrot.lane.b32.xlu0 %v4706, 12
      %v9465 = vpop.permute.xlu0 %9464
      %9466 = vrot.lane.b32.xlu0 %v4707, 12
      %v9467 = vpop.permute.xlu0 %9466
      %9468 = vrot.lane.b32.xlu0 %v4708, 12
      %v9469 = vpop.permute.xlu0 %9468
      %9470 = vrot.lane.b32.xlu0 %v6205, 12
      %v9471 = vpop.permute.xlu0 %9470
      %9472 = vrot.lane.b32.xlu0 %v6206, 12
      %v9473 = vpop.permute.xlu0 %9472
      %9474 = vrot.lane.b32.xlu0 %v6207, 12
      %v9475 = vpop.permute.xlu0 %9474
      %9476 = vrot.lane.b32.xlu0 %v6208, 12
      %v9477 = vpop.permute.xlu0 %9476
      %9478 = vrot.lane.b32.xlu0 %v6209, 12
      %v9479 = vpop.permute.xlu0 %9478
      %9480 = vrot.lane.b32.xlu0 %v6210, 12
      %v9481 = vpop.permute.xlu0 %9480
      %9482 = vrot.lane.b32.xlu0 %v6211, 12
      %v9483 = vpop.permute.xlu0 %9482
      %9484 = vrot.lane.b32.xlu0 %v6212, 12
      %v9485 = vpop.permute.xlu0 %9484
      %9486 = vrot.lane.b32.xlu0 %v6213, 12
      %v9487 = vpop.permute.xlu0 %9486
      %9488 = vrot.lane.b32.xlu0 %v6214, 12
      %v9489 = vpop.permute.xlu0 %9488
      %9490 = vrot.lane.b32.xlu0 %v6215, 12
      %v9491 = vpop.permute.xlu0 %9490
      %9492 = vrot.lane.b32.xlu0 %v6216, 12
      %v9493 = vpop.permute.xlu0 %9492
      %9494 = vrot.lane.b32.xlu0 %v6217, 12
      %v9495 = vpop.permute.xlu0 %9494
      %9496 = vrot.lane.b32.xlu0 %v6218, 12
      %v9497 = vpop.permute.xlu0 %9496
      %9498 = vrot.lane.b32.xlu0 %v6219, 12
      %v9499 = vpop.permute.xlu0 %9498
      %9500 = vrot.lane.b32.xlu0 %v6220, 12
      %v9501 = vpop.permute.xlu0 %9500
      %9502 = vrot.lane.b32.xlu0 %v9390, 12
      %v9503 = vpop.permute.xlu0 %9502
      %9504 = vrot.lane.b32.xlu0 %v9391, 12
      %v9505 = vpop.permute.xlu0 %9504
      %9506 = vrot.lane.b32.xlu0 %v9392, 12
      %v9507 = vpop.permute.xlu0 %9506
      %9508 = vrot.lane.b32.xlu0 %v9393, 12
      %v9509 = vpop.permute.xlu0 %9508
      %9510 = vrot.lane.b32.xlu0 %v9394, 12
      %v9511 = vpop.permute.xlu0 %9510
      %9512 = vrot.lane.b32.xlu0 %v9395, 12
      %v9513 = vpop.permute.xlu0 %9512
      %9514 = vrot.lane.b32.xlu0 %v9396, 12
      %v9515 = vpop.permute.xlu0 %9514
      %9516 = vrot.lane.b32.xlu0 %v9397, 12
      %v9517 = vpop.permute.xlu0 %9516
      %9518 = vrot.lane.b32.xlu0 %v9398, 12
      %v9519 = vpop.permute.xlu0 %9518
      %9520 = vrot.lane.b32.xlu0 %v9399, 12
      %v9521 = vpop.permute.xlu0 %9520
      %9522 = vrot.lane.b32.xlu0 %v9400, 12
      %v9523 = vpop.permute.xlu0 %9522
      %9524 = vrot.lane.b32.xlu0 %v9401, 12
      %v9525 = vpop.permute.xlu0 %9524
      %9526 = vrot.lane.b32.xlu0 %v9402, 12
      %v9527 = vpop.permute.xlu0 %9526
      %9528 = vrot.lane.b32.xlu0 %v9403, 12
      %v9529 = vpop.permute.xlu0 %9528
      %9530 = vrot.lane.b32.xlu0 %v9404, 12
      %v9531 = vpop.permute.xlu0 %9530
      %9532 = vrot.lane.b32.xlu0 %v9405, 12
      %v9533 = vpop.permute.xlu0 %9532
      %v9534 = vunpack.c.l.b16 %v4148
      %v9535 = vunpack.c.l.b16 %v4151
      %v9536 = vunpack.c.l.b16 %v4155
      %v9537 = vunpack.c.l.b16 %v4158
      %v9538 = vunpack.c.l.b16 %v4162
      %v9539 = vunpack.c.l.b16 %v4165
      %v9540 = vunpack.c.l.b16 %v4169
      %v9541 = vunpack.c.l.b16 %v4172
      %v9542 = vunpack.c.l.b16 %v4176
      %v9543 = vunpack.c.l.b16 %v4179
      %v9544 = vunpack.c.l.b16 %v4183
      %v9545 = vunpack.c.l.b16 %v4186
      %v9546 = vunpack.c.l.b16 %v4190
      %v9547 = vunpack.c.l.b16 %v4193
      %v9548 = vunpack.c.l.b16 %v4197
      %v9549 = vunpack.c.l.b16 %v4200
      %v9550 = vunpack.c.l.b16 %v4204
      %v9551 = vunpack.c.l.b16 %v4207
      %v9552 = vunpack.c.l.b16 %v4211
      %v9553 = vunpack.c.l.b16 %v4214
      %v9554 = vunpack.c.l.b16 %v4218
      %v9555 = vunpack.c.l.b16 %v4221
      %v9556 = vunpack.c.l.b16 %v4225
      %v9557 = vunpack.c.l.b16 %v4228
      %v9558 = vunpack.c.l.b16 %v4232
      %v9559 = vunpack.c.l.b16 %v4235
      %v9560 = vunpack.c.l.b16 %v4239
      %v9561 = vunpack.c.l.b16 %v4242
      %v9562 = vunpack.c.l.b16 %v4246
      %v9563 = vunpack.c.l.b16 %v4249
      %v9564 = vunpack.c.l.b16 %v4253
      %v9565 = vunpack.c.l.b16 %v4256
      %v9566 = vpack.c.b16 %v9535, %v9534
      %v9567 = vpack.c.b16 %v9537, %v9536
      %v9568 = vpack.c.b16 %v9539, %v9538
      %v9569 = vpack.c.b16 %v9541, %v9540
      %v9570 = vpack.c.b16 %v9543, %v9542
      %v9571 = vpack.c.b16 %v9545, %v9544
      %v9572 = vpack.c.b16 %v9547, %v9546
      %v9573 = vpack.c.b16 %v9549, %v9548
      %v9574 = vpack.c.b16 %v9551, %v9550
      %v9575 = vpack.c.b16 %v9553, %v9552
      %v9576 = vpack.c.b16 %v9555, %v9554
      %v9577 = vpack.c.b16 %v9557, %v9556
      %v9578 = vpack.c.b16 %v9559, %v9558
      %v9579 = vpack.c.b16 %v9561, %v9560
      %v9580 = vpack.c.b16 %v9563, %v9562
      %v9581 = vpack.c.b16 %v9565, %v9564
      %9582 = vrot.lane.b32.xlu0 %v4997, 16
      %v9583 = vpop.permute.xlu0 %9582
      %9584 = vrot.lane.b32.xlu0 %v4998, 16
      %v9585 = vpop.permute.xlu0 %9584
      %9586 = vrot.lane.b32.xlu0 %v4999, 16
      %v9587 = vpop.permute.xlu0 %9586
      %9588 = vrot.lane.b32.xlu0 %v5000, 16
      %v9589 = vpop.permute.xlu0 %9588
      %9590 = vrot.lane.b32.xlu0 %v5001, 16
      %v9591 = vpop.permute.xlu0 %9590
      %9592 = vrot.lane.b32.xlu0 %v5002, 16
      %v9593 = vpop.permute.xlu0 %9592
      %9594 = vrot.lane.b32.xlu0 %v5003, 16
      %v9595 = vpop.permute.xlu0 %9594
      %9596 = vrot.lane.b32.xlu0 %v5004, 16
      %v9597 = vpop.permute.xlu0 %9596
      %9598 = vrot.lane.b32.xlu0 %v5005, 16
      %v9599 = vpop.permute.xlu0 %9598
      %9600 = vrot.lane.b32.xlu0 %v5006, 16
      %v9601 = vpop.permute.xlu0 %9600
      %9602 = vrot.lane.b32.xlu0 %v5007, 16
      %v9603 = vpop.permute.xlu0 %9602
      %9604 = vrot.lane.b32.xlu0 %v5008, 16
      %v9605 = vpop.permute.xlu0 %9604
      %9606 = vrot.lane.b32.xlu0 %v5009, 16
      %v9607 = vpop.permute.xlu0 %9606
      %9608 = vrot.lane.b32.xlu0 %v5010, 16
      %v9609 = vpop.permute.xlu0 %9608
      %9610 = vrot.lane.b32.xlu0 %v5011, 16
      %v9611 = vpop.permute.xlu0 %9610
      %9612 = vrot.lane.b32.xlu0 %v5012, 16
      %v9613 = vpop.permute.xlu0 %9612
      %9614 = vrot.lane.b32.xlu0 %v5013, 16
      %v9615 = vpop.permute.xlu0 %9614
      %9616 = vrot.lane.b32.xlu0 %v5014, 16
      %v9617 = vpop.permute.xlu0 %9616
      %9618 = vrot.lane.b32.xlu0 %v5015, 16
      %v9619 = vpop.permute.xlu0 %9618
      %9620 = vrot.lane.b32.xlu0 %v5016, 16
      %v9621 = vpop.permute.xlu0 %9620
      %9622 = vrot.lane.b32.xlu0 %v5017, 16
      %v9623 = vpop.permute.xlu0 %9622
      %9624 = vrot.lane.b32.xlu0 %v5018, 16
      %v9625 = vpop.permute.xlu0 %9624
      %9626 = vrot.lane.b32.xlu0 %v5019, 16
      %v9627 = vpop.permute.xlu0 %9626
      %9628 = vrot.lane.b32.xlu0 %v5020, 16
      %v9629 = vpop.permute.xlu0 %9628
      %9630 = vrot.lane.b32.xlu0 %v5021, 16
      %v9631 = vpop.permute.xlu0 %9630
      %9632 = vrot.lane.b32.xlu0 %v5022, 16
      %v9633 = vpop.permute.xlu0 %9632
      %9634 = vrot.lane.b32.xlu0 %v5023, 16
      %v9635 = vpop.permute.xlu0 %9634
      %9636 = vrot.lane.b32.xlu0 %v5024, 16
      %v9637 = vpop.permute.xlu0 %9636
      %9638 = vrot.lane.b32.xlu0 %v5025, 16
      %v9639 = vpop.permute.xlu0 %9638
      %9640 = vrot.lane.b32.xlu0 %v5026, 16
      %v9641 = vpop.permute.xlu0 %9640
      %9642 = vrot.lane.b32.xlu0 %v5027, 16
      %v9643 = vpop.permute.xlu0 %9642
      %9644 = vrot.lane.b32.xlu0 %v5028, 16
      %v9645 = vpop.permute.xlu0 %9644
      %9646 = vrot.lane.b32.xlu0 %v6381, 16
      %v9647 = vpop.permute.xlu0 %9646
      %9648 = vrot.lane.b32.xlu0 %v6382, 16
      %v9649 = vpop.permute.xlu0 %9648
      %9650 = vrot.lane.b32.xlu0 %v6383, 16
      %v9651 = vpop.permute.xlu0 %9650
      %9652 = vrot.lane.b32.xlu0 %v6384, 16
      %v9653 = vpop.permute.xlu0 %9652
      %9654 = vrot.lane.b32.xlu0 %v6385, 16
      %v9655 = vpop.permute.xlu0 %9654
      %9656 = vrot.lane.b32.xlu0 %v6386, 16
      %v9657 = vpop.permute.xlu0 %9656
      %9658 = vrot.lane.b32.xlu0 %v6387, 16
      %v9659 = vpop.permute.xlu0 %9658
      %9660 = vrot.lane.b32.xlu0 %v6388, 16
      %v9661 = vpop.permute.xlu0 %9660
      %9662 = vrot.lane.b32.xlu0 %v6389, 16
      %v9663 = vpop.permute.xlu0 %9662
      %9664 = vrot.lane.b32.xlu0 %v6390, 16
      %v9665 = vpop.permute.xlu0 %9664
      %9666 = vrot.lane.b32.xlu0 %v6391, 16
      %v9667 = vpop.permute.xlu0 %9666
      %9668 = vrot.lane.b32.xlu0 %v6392, 16
      %v9669 = vpop.permute.xlu0 %9668
      %9670 = vrot.lane.b32.xlu0 %v6393, 16
      %v9671 = vpop.permute.xlu0 %9670
      %9672 = vrot.lane.b32.xlu0 %v6394, 16
      %v9673 = vpop.permute.xlu0 %9672
      %9674 = vrot.lane.b32.xlu0 %v6395, 16
      %v9675 = vpop.permute.xlu0 %9674
      %9676 = vrot.lane.b32.xlu0 %v6396, 16
      %v9677 = vpop.permute.xlu0 %9676
      %9678 = vrot.lane.b32.xlu0 %v9566, 16
      %v9679 = vpop.permute.xlu0 %9678
      %9680 = vrot.lane.b32.xlu0 %v9567, 16
      %v9681 = vpop.permute.xlu0 %9680
      %9682 = vrot.lane.b32.xlu0 %v9568, 16
      %v9683 = vpop.permute.xlu0 %9682
      %9684 = vrot.lane.b32.xlu0 %v9569, 16
      %v9685 = vpop.permute.xlu0 %9684
      %9686 = vrot.lane.b32.xlu0 %v9570, 16
      %v9687 = vpop.permute.xlu0 %9686
      %9688 = vrot.lane.b32.xlu0 %v9571, 16
      %v9689 = vpop.permute.xlu0 %9688
      %9690 = vrot.lane.b32.xlu0 %v9572, 16
      %v9691 = vpop.permute.xlu0 %9690
      %9692 = vrot.lane.b32.xlu0 %v9573, 16
      %v9693 = vpop.permute.xlu0 %9692
      %9694 = vrot.lane.b32.xlu0 %v9574, 16
      %v9695 = vpop.permute.xlu0 %9694
      %9696 = vrot.lane.b32.xlu0 %v9575, 16
      %v9697 = vpop.permute.xlu0 %9696
      %9698 = vrot.lane.b32.xlu0 %v9576, 16
      %v9699 = vpop.permute.xlu0 %9698
      %9700 = vrot.lane.b32.xlu0 %v9577, 16
      %v9701 = vpop.permute.xlu0 %9700
      %9702 = vrot.lane.b32.xlu0 %v9578, 16
      %v9703 = vpop.permute.xlu0 %9702
      %9704 = vrot.lane.b32.xlu0 %v9579, 16
      %v9705 = vpop.permute.xlu0 %9704
      %9706 = vrot.lane.b32.xlu0 %v9580, 16
      %v9707 = vpop.permute.xlu0 %9706
      %9708 = vrot.lane.b32.xlu0 %v9581, 16
      %v9709 = vpop.permute.xlu0 %9708
      %v9710 = vunpack.c.l.b16 %v641
      %v9711 = vunpack.c.l.b16 %v642
      %v9712 = vpack.c.b16 %v9711, %v9710
      %9713 = vrot.lane.b32.xlu0 %v4486, 20
      %v9714 = vpop.permute.xlu0 %9713
      %9715 = vrot.lane.b32.xlu0 %v4487, 20
      %v9716 = vpop.permute.xlu0 %9715
      %9717 = vrot.lane.b32.xlu0 %v4488, 20
      %v9718 = vpop.permute.xlu0 %9717
      %9719 = vrot.lane.b32.xlu0 %v4489, 20
      %v9720 = vpop.permute.xlu0 %9719
      %9721 = vrot.lane.b32.xlu0 %v4490, 20
      %v9722 = vpop.permute.xlu0 %9721
      %9723 = vrot.lane.b32.xlu0 %v4491, 20
      %v9724 = vpop.permute.xlu0 %9723
      %9725 = vrot.lane.b32.xlu0 %v4492, 20
      %v9726 = vpop.permute.xlu0 %9725
      %9727 = vrot.lane.b32.xlu0 %v4493, 20
      %v9728 = vpop.permute.xlu0 %9727
      %9729 = vrot.lane.b32.xlu0 %v4494, 20
      %v9730 = vpop.permute.xlu0 %9729
      %9731 = vrot.lane.b32.xlu0 %v4495, 20
      %v9732 = vpop.permute.xlu0 %9731
      %9733 = vrot.lane.b32.xlu0 %v4496, 20
      %v9734 = vpop.permute.xlu0 %9733
      %9735 = vrot.lane.b32.xlu0 %v4497, 20
      %v9736 = vpop.permute.xlu0 %9735
      %9737 = vrot.lane.b32.xlu0 %v4498, 20
      %v9738 = vpop.permute.xlu0 %9737
      %9739 = vrot.lane.b32.xlu0 %v4499, 20
      %v9740 = vpop.permute.xlu0 %9739
      %9741 = vrot.lane.b32.xlu0 %v4500, 20
      %v9742 = vpop.permute.xlu0 %9741
      %9743 = vrot.lane.b32.xlu0 %v5167, 20
      %v9744 = vpop.permute.xlu0 %9743
      %9745 = vrot.lane.b32.xlu0 %v4502, 20
      %v9746 = vpop.permute.xlu0 %9745
      %9747 = vrot.lane.b32.xlu0 %v4503, 20
      %v9748 = vpop.permute.xlu0 %9747
      %9749 = vrot.lane.b32.xlu0 %v4504, 20
      %v9750 = vpop.permute.xlu0 %9749
      %9751 = vrot.lane.b32.xlu0 %v4505, 20
      %v9752 = vpop.permute.xlu0 %9751
      %9753 = vrot.lane.b32.xlu0 %v4506, 20
      %v9754 = vpop.permute.xlu0 %9753
      %9755 = vrot.lane.b32.xlu0 %v4507, 20
      %v9756 = vpop.permute.xlu0 %9755
      %9757 = vrot.lane.b32.xlu0 %v4508, 20
      %v9758 = vpop.permute.xlu0 %9757
      %9759 = vrot.lane.b32.xlu0 %v4509, 20
      %v9760 = vpop.permute.xlu0 %9759
      %9761 = vrot.lane.b32.xlu0 %v4510, 20
      %v9762 = vpop.permute.xlu0 %9761
      %9763 = vrot.lane.b32.xlu0 %v4511, 20
      %v9764 = vpop.permute.xlu0 %9763
      %9765 = vrot.lane.b32.xlu0 %v4512, 20
      %v9766 = vpop.permute.xlu0 %9765
      %9767 = vrot.lane.b32.xlu0 %v4513, 20
      %v9768 = vpop.permute.xlu0 %9767
      %9769 = vrot.lane.b32.xlu0 %v4514, 20
      %v9770 = vpop.permute.xlu0 %9769
      %9771 = vrot.lane.b32.xlu0 %v4515, 20
      %v9772 = vpop.permute.xlu0 %9771
      %9773 = vrot.lane.b32.xlu0 %v4516, 20
      %v9774 = vpop.permute.xlu0 %9773
      %9775 = vrot.lane.b32.xlu0 %v5168, 20
      %v9776 = vpop.permute.xlu0 %9775
      %9777 = vrot.lane.b32.xlu0 %v6030, 20
      %v9778 = vpop.permute.xlu0 %9777
      %9779 = vrot.lane.b32.xlu0 %v6031, 20
      %v9780 = vpop.permute.xlu0 %9779
      %9781 = vrot.lane.b32.xlu0 %v6032, 20
      %v9782 = vpop.permute.xlu0 %9781
      %9783 = vrot.lane.b32.xlu0 %v6033, 20
      %v9784 = vpop.permute.xlu0 %9783
      %9785 = vrot.lane.b32.xlu0 %v6034, 20
      %v9786 = vpop.permute.xlu0 %9785
      %9787 = vrot.lane.b32.xlu0 %v6035, 20
      %v9788 = vpop.permute.xlu0 %9787
      %9789 = vrot.lane.b32.xlu0 %v6036, 20
      %v9790 = vpop.permute.xlu0 %9789
      %9791 = vrot.lane.b32.xlu0 %v6037, 20
      %v9792 = vpop.permute.xlu0 %9791
      %9793 = vrot.lane.b32.xlu0 %v6038, 20
      %v9794 = vpop.permute.xlu0 %9793
      %9795 = vrot.lane.b32.xlu0 %v6039, 20
      %v9796 = vpop.permute.xlu0 %9795
      %9797 = vrot.lane.b32.xlu0 %v6040, 20
      %v9798 = vpop.permute.xlu0 %9797
      %9799 = vrot.lane.b32.xlu0 %v6041, 20
      %v9800 = vpop.permute.xlu0 %9799
      %9801 = vrot.lane.b32.xlu0 %v6042, 20
      %v9802 = vpop.permute.xlu0 %9801
      %9803 = vrot.lane.b32.xlu0 %v6043, 20
      %v9804 = vpop.permute.xlu0 %9803
      %9805 = vrot.lane.b32.xlu0 %v6044, 20
      %v9806 = vpop.permute.xlu0 %9805
      %9807 = vrot.lane.b32.xlu0 %v6527, 20
      %v9808 = vpop.permute.xlu0 %9807
      %9809 = vrot.lane.b32.xlu0 %v9215, 20
      %v9810 = vpop.permute.xlu0 %9809
      %9811 = vrot.lane.b32.xlu0 %v9216, 20
      %v9812 = vpop.permute.xlu0 %9811
      %9813 = vrot.lane.b32.xlu0 %v9217, 20
      %v9814 = vpop.permute.xlu0 %9813
      %9815 = vrot.lane.b32.xlu0 %v9218, 20
      %v9816 = vpop.permute.xlu0 %9815
      %9817 = vrot.lane.b32.xlu0 %v9219, 20
      %v9818 = vpop.permute.xlu0 %9817
      %9819 = vrot.lane.b32.xlu0 %v9220, 20
      %v9820 = vpop.permute.xlu0 %9819
      %9821 = vrot.lane.b32.xlu0 %v9221, 20
      %v9822 = vpop.permute.xlu0 %9821
      %9823 = vrot.lane.b32.xlu0 %v9222, 20
      %v9824 = vpop.permute.xlu0 %9823
      %9825 = vrot.lane.b32.xlu0 %v9223, 20
      %v9826 = vpop.permute.xlu0 %9825
      %9827 = vrot.lane.b32.xlu0 %v9224, 20
      %v9828 = vpop.permute.xlu0 %9827
      %9829 = vrot.lane.b32.xlu0 %v9225, 20
      %v9830 = vpop.permute.xlu0 %9829
      %9831 = vrot.lane.b32.xlu0 %v9226, 20
      %v9832 = vpop.permute.xlu0 %9831
      %9833 = vrot.lane.b32.xlu0 %v9227, 20
      %v9834 = vpop.permute.xlu0 %9833
      %9835 = vrot.lane.b32.xlu0 %v9228, 20
      %v9836 = vpop.permute.xlu0 %9835
      %9837 = vrot.lane.b32.xlu0 %v9229, 20
      %v9838 = vpop.permute.xlu0 %9837
      %9839 = vrot.lane.b32.xlu0 %v9712, 20
      %v9840 = vpop.permute.xlu0 %9839
      %v9841 = vunpack.c.l.b16 %v4270
      %v9842 = vunpack.c.l.b16 %v4280
      %v9843 = vpack.c.b16 %v9842, %v9841
      %9844 = vrot.lane.b32.xlu0 %v4678, 24
      %v9845 = vpop.permute.xlu0 %9844
      %9846 = vrot.lane.b32.xlu0 %v4679, 24
      %v9847 = vpop.permute.xlu0 %9846
      %9848 = vrot.lane.b32.xlu0 %v4680, 24
      %v9849 = vpop.permute.xlu0 %9848
      %9850 = vrot.lane.b32.xlu0 %v4681, 24
      %v9851 = vpop.permute.xlu0 %9850
      %9852 = vrot.lane.b32.xlu0 %v4682, 24
      %v9853 = vpop.permute.xlu0 %9852
      %9854 = vrot.lane.b32.xlu0 %v4683, 24
      %v9855 = vpop.permute.xlu0 %9854
      %9856 = vrot.lane.b32.xlu0 %v4684, 24
      %v9857 = vpop.permute.xlu0 %9856
      %9858 = vrot.lane.b32.xlu0 %v4685, 24
      %v9859 = vpop.permute.xlu0 %9858
      %9860 = vrot.lane.b32.xlu0 %v4686, 24
      %v9861 = vpop.permute.xlu0 %9860
      %9862 = vrot.lane.b32.xlu0 %v4687, 24
      %v9863 = vpop.permute.xlu0 %9862
      %9864 = vrot.lane.b32.xlu0 %v4688, 24
      %v9865 = vpop.permute.xlu0 %9864
      %9866 = vrot.lane.b32.xlu0 %v4689, 24
      %v9867 = vpop.permute.xlu0 %9866
      %9868 = vrot.lane.b32.xlu0 %v4690, 24
      %v9869 = vpop.permute.xlu0 %9868
      %9870 = vrot.lane.b32.xlu0 %v4691, 24
      %v9871 = vpop.permute.xlu0 %9870
      %9872 = vrot.lane.b32.xlu0 %v4692, 24
      %v9873 = vpop.permute.xlu0 %9872
      %9874 = vrot.lane.b32.xlu0 %v5307, 24
      %v9875 = vpop.permute.xlu0 %9874
      %9876 = vrot.lane.b32.xlu0 %v4694, 24
      %v9877 = vpop.permute.xlu0 %9876
      %9878 = vrot.lane.b32.xlu0 %v4695, 24
      %v9879 = vpop.permute.xlu0 %9878
      %9880 = vrot.lane.b32.xlu0 %v4696, 24
      %v9881 = vpop.permute.xlu0 %9880
      %9882 = vrot.lane.b32.xlu0 %v4697, 24
      %v9883 = vpop.permute.xlu0 %9882
      %9884 = vrot.lane.b32.xlu0 %v4698, 24
      %v9885 = vpop.permute.xlu0 %9884
      %9886 = vrot.lane.b32.xlu0 %v4699, 24
      %v9887 = vpop.permute.xlu0 %9886
      %9888 = vrot.lane.b32.xlu0 %v4700, 24
      %v9889 = vpop.permute.xlu0 %9888
      %9890 = vrot.lane.b32.xlu0 %v4701, 24
      %v9891 = vpop.permute.xlu0 %9890
      %9892 = vrot.lane.b32.xlu0 %v4702, 24
      %v9893 = vpop.permute.xlu0 %9892
      %9894 = vrot.lane.b32.xlu0 %v4703, 24
      %v9895 = vpop.permute.xlu0 %9894
      %9896 = vrot.lane.b32.xlu0 %v4704, 24
      %v9897 = vpop.permute.xlu0 %9896
      %9898 = vrot.lane.b32.xlu0 %v4705, 24
      %v9899 = vpop.permute.xlu0 %9898
      %9900 = vrot.lane.b32.xlu0 %v4706, 24
      %v9901 = vpop.permute.xlu0 %9900
      %9902 = vrot.lane.b32.xlu0 %v4707, 24
      %v9903 = vpop.permute.xlu0 %9902
      %9904 = vrot.lane.b32.xlu0 %v4708, 24
      %v9905 = vpop.permute.xlu0 %9904
      %9906 = vrot.lane.b32.xlu0 %v5308, 24
      %v9907 = vpop.permute.xlu0 %9906
      %9908 = vrot.lane.b32.xlu0 %v6206, 24
      %v9909 = vpop.permute.xlu0 %9908
      %9910 = vrot.lane.b32.xlu0 %v6207, 24
      %v9911 = vpop.permute.xlu0 %9910
      %9912 = vrot.lane.b32.xlu0 %v6208, 24
      %v9913 = vpop.permute.xlu0 %9912
      %9914 = vrot.lane.b32.xlu0 %v6209, 24
      %v9915 = vpop.permute.xlu0 %9914
      %9916 = vrot.lane.b32.xlu0 %v6210, 24
      %v9917 = vpop.permute.xlu0 %9916
      %9918 = vrot.lane.b32.xlu0 %v6211, 24
      %v9919 = vpop.permute.xlu0 %9918
      %9920 = vrot.lane.b32.xlu0 %v6212, 24
      %v9921 = vpop.permute.xlu0 %9920
      %9922 = vrot.lane.b32.xlu0 %v6213, 24
      %v9923 = vpop.permute.xlu0 %9922
      %9924 = vrot.lane.b32.xlu0 %v6214, 24
      %v9925 = vpop.permute.xlu0 %9924
      %9926 = vrot.lane.b32.xlu0 %v6215, 24
      %v9927 = vpop.permute.xlu0 %9926
      %9928 = vrot.lane.b32.xlu0 %v6216, 24
      %v9929 = vpop.permute.xlu0 %9928
      %9930 = vrot.lane.b32.xlu0 %v6217, 24
      %v9931 = vpop.permute.xlu0 %9930
      %9932 = vrot.lane.b32.xlu0 %v6218, 24
      %v9933 = vpop.permute.xlu0 %9932
      %9934 = vrot.lane.b32.xlu0 %v6219, 24
      %v9935 = vpop.permute.xlu0 %9934
      %9936 = vrot.lane.b32.xlu0 %v6220, 24
      %v9937 = vpop.permute.xlu0 %9936
      %9938 = vrot.lane.b32.xlu0 %v6658, 24
      %v9939 = vpop.permute.xlu0 %9938
      %9940 = vrot.lane.b32.xlu0 %v9391, 24
      %v9941 = vpop.permute.xlu0 %9940
      %9942 = vrot.lane.b32.xlu0 %v9392, 24
      %v9943 = vpop.permute.xlu0 %9942
      %9944 = vrot.lane.b32.xlu0 %v9393, 24
      %v9945 = vpop.permute.xlu0 %9944
      %9946 = vrot.lane.b32.xlu0 %v9394, 24
      %v9947 = vpop.permute.xlu0 %9946
      %9948 = vrot.lane.b32.xlu0 %v9395, 24
      %v9949 = vpop.permute.xlu0 %9948
      %9950 = vrot.lane.b32.xlu0 %v9396, 24
      %v9951 = vpop.permute.xlu0 %9950
      %9952 = vrot.lane.b32.xlu0 %v9397, 24
      %v9953 = vpop.permute.xlu0 %9952
      %9954 = vrot.lane.b32.xlu0 %v9398, 24
      %v9955 = vpop.permute.xlu0 %9954
      %9956 = vrot.lane.b32.xlu0 %v9399, 24
      %v9957 = vpop.permute.xlu0 %9956
      %9958 = vrot.lane.b32.xlu0 %v9400, 24
      %v9959 = vpop.permute.xlu0 %9958
      %9960 = vrot.lane.b32.xlu0 %v9401, 24
      %v9961 = vpop.permute.xlu0 %9960
      %9962 = vrot.lane.b32.xlu0 %v9402, 24
      %v9963 = vpop.permute.xlu0 %9962
      %9964 = vrot.lane.b32.xlu0 %v9403, 24
      %v9965 = vpop.permute.xlu0 %9964
      %9966 = vrot.lane.b32.xlu0 %v9404, 24
      %v9967 = vpop.permute.xlu0 %9966
      %9968 = vrot.lane.b32.xlu0 %v9405, 24
      %v9969 = vpop.permute.xlu0 %9968
      %9970 = vrot.lane.b32.xlu0 %v9843, 24
      %v9971 = vpop.permute.xlu0 %9970
      %v9972 = vunpack.c.l.b16 %v4287
      %v9973 = vunpack.c.l.b16 %v4290
      %v9974 = vpack.c.b16 %v9973, %v9972
      %9975 = vrot.lane.b32.xlu0 %v4998, 28
      %v9976 = vpop.permute.xlu0 %9975
      %9977 = vrot.lane.b32.xlu0 %v4999, 28
      %v9978 = vpop.permute.xlu0 %9977
      %9979 = vrot.lane.b32.xlu0 %v5000, 28
      %v9980 = vpop.permute.xlu0 %9979
      %9981 = vrot.lane.b32.xlu0 %v5001, 28
      %v9982 = vpop.permute.xlu0 %9981
      %9983 = vrot.lane.b32.xlu0 %v5002, 28
      %v9984 = vpop.permute.xlu0 %9983
      %9985 = vrot.lane.b32.xlu0 %v5003, 28
      %v9986 = vpop.permute.xlu0 %9985
      %9987 = vrot.lane.b32.xlu0 %v5004, 28
      %v9988 = vpop.permute.xlu0 %9987
      %9989 = vrot.lane.b32.xlu0 %v5005, 28
      %v9990 = vpop.permute.xlu0 %9989
      %9991 = vrot.lane.b32.xlu0 %v5006, 28
      %v9992 = vpop.permute.xlu0 %9991
      %9993 = vrot.lane.b32.xlu0 %v5007, 28
      %v9994 = vpop.permute.xlu0 %9993
      %9995 = vrot.lane.b32.xlu0 %v5008, 28
      %v9996 = vpop.permute.xlu0 %9995
      %9997 = vrot.lane.b32.xlu0 %v5009, 28
      %v9998 = vpop.permute.xlu0 %9997
      %9999 = vrot.lane.b32.xlu0 %v5010, 28
      %v10000 = vpop.permute.xlu0 %9999
      %10001 = vrot.lane.b32.xlu0 %v5011, 28
      %v10002 = vpop.permute.xlu0 %10001
      %10003 = vrot.lane.b32.xlu0 %v5012, 28
      %v10004 = vpop.permute.xlu0 %10003
      %10005 = vrot.lane.b32.xlu0 %v5447, 28
      %v10006 = vpop.permute.xlu0 %10005
      %10007 = vrot.lane.b32.xlu0 %v5014, 28
      %v10008 = vpop.permute.xlu0 %10007
      %10009 = vrot.lane.b32.xlu0 %v5015, 28
      %v10010 = vpop.permute.xlu0 %10009
      %10011 = vrot.lane.b32.xlu0 %v5016, 28
      %v10012 = vpop.permute.xlu0 %10011
      %10013 = vrot.lane.b32.xlu0 %v5017, 28
      %v10014 = vpop.permute.xlu0 %10013
      %10015 = vrot.lane.b32.xlu0 %v5018, 28
      %v10016 = vpop.permute.xlu0 %10015
      %10017 = vrot.lane.b32.xlu0 %v5019, 28
      %v10018 = vpop.permute.xlu0 %10017
      %10019 = vrot.lane.b32.xlu0 %v5020, 28
      %v10020 = vpop.permute.xlu0 %10019
      %10021 = vrot.lane.b32.xlu0 %v5021, 28
      %v10022 = vpop.permute.xlu0 %10021
      %10023 = vrot.lane.b32.xlu0 %v5022, 28
      %v10024 = vpop.permute.xlu0 %10023
      %10025 = vrot.lane.b32.xlu0 %v5023, 28
      %v10026 = vpop.permute.xlu0 %10025
      %10027 = vrot.lane.b32.xlu0 %v5024, 28
      %v10028 = vpop.permute.xlu0 %10027
      %10029 = vrot.lane.b32.xlu0 %v5025, 28
      %v10030 = vpop.permute.xlu0 %10029
      %10031 = vrot.lane.b32.xlu0 %v5026, 28
      %v10032 = vpop.permute.xlu0 %10031
      %10033 = vrot.lane.b32.xlu0 %v5027, 28
      %v10034 = vpop.permute.xlu0 %10033
      %10035 = vrot.lane.b32.xlu0 %v5028, 28
      %v10036 = vpop.permute.xlu0 %10035
      %10037 = vrot.lane.b32.xlu0 %v5448, 28
      %v10038 = vpop.permute.xlu0 %10037
      %10039 = vrot.lane.b32.xlu0 %v6382, 28
      %v10040 = vpop.permute.xlu0 %10039
      %10041 = vrot.lane.b32.xlu0 %v6383, 28
      %v10042 = vpop.permute.xlu0 %10041
      %10043 = vrot.lane.b32.xlu0 %v6384, 28
      %v10044 = vpop.permute.xlu0 %10043
      %10045 = vrot.lane.b32.xlu0 %v6385, 28
      %v10046 = vpop.permute.xlu0 %10045
      %10047 = vrot.lane.b32.xlu0 %v6386, 28
      %v10048 = vpop.permute.xlu0 %10047
      %10049 = vrot.lane.b32.xlu0 %v6387, 28
      %v10050 = vpop.permute.xlu0 %10049
      %10051 = vrot.lane.b32.xlu0 %v6388, 28
      %v10052 = vpop.permute.xlu0 %10051
      %10053 = vrot.lane.b32.xlu0 %v6389, 28
      %v10054 = vpop.permute.xlu0 %10053
      %10055 = vrot.lane.b32.xlu0 %v6390, 28
      %v10056 = vpop.permute.xlu0 %10055
      %10057 = vrot.lane.b32.xlu0 %v6391, 28
      %v10058 = vpop.permute.xlu0 %10057
      %10059 = vrot.lane.b32.xlu0 %v6392, 28
      %v10060 = vpop.permute.xlu0 %10059
      %10061 = vrot.lane.b32.xlu0 %v6393, 28
      %v10062 = vpop.permute.xlu0 %10061
      %10063 = vrot.lane.b32.xlu0 %v6394, 28
      %v10064 = vpop.permute.xlu0 %10063
      %10065 = vrot.lane.b32.xlu0 %v6395, 28
      %v10066 = vpop.permute.xlu0 %10065
      %10067 = vrot.lane.b32.xlu0 %v6396, 28
      %v10068 = vpop.permute.xlu0 %10067
      %10069 = vrot.lane.b32.xlu0 %v6789, 28
      %v10070 = vpop.permute.xlu0 %10069
      %10071 = vrot.lane.b32.xlu0 %v9567, 28
      %v10072 = vpop.permute.xlu0 %10071
      %10073 = vrot.lane.b32.xlu0 %v9568, 28
      %v10074 = vpop.permute.xlu0 %10073
      %10075 = vrot.lane.b32.xlu0 %v9569, 28
      %v10076 = vpop.permute.xlu0 %10075
      %10077 = vrot.lane.b32.xlu0 %v9570, 28
      %v10078 = vpop.permute.xlu0 %10077
      %10079 = vrot.lane.b32.xlu0 %v9571, 28
      %v10080 = vpop.permute.xlu0 %10079
      %10081 = vrot.lane.b32.xlu0 %v9572, 28
      %v10082 = vpop.permute.xlu0 %10081
      %10083 = vrot.lane.b32.xlu0 %v9573, 28
      %v10084 = vpop.permute.xlu0 %10083
      %10085 = vrot.lane.b32.xlu0 %v9574, 28
      %v10086 = vpop.permute.xlu0 %10085
      %10087 = vrot.lane.b32.xlu0 %v9575, 28
      %v10088 = vpop.permute.xlu0 %10087
      %10089 = vrot.lane.b32.xlu0 %v9576, 28
      %v10090 = vpop.permute.xlu0 %10089
      %10091 = vrot.lane.b32.xlu0 %v9577, 28
      %v10092 = vpop.permute.xlu0 %10091
      %10093 = vrot.lane.b32.xlu0 %v9578, 28
      %v10094 = vpop.permute.xlu0 %10093
      %10095 = vrot.lane.b32.xlu0 %v9579, 28
      %v10096 = vpop.permute.xlu0 %10095
      %10097 = vrot.lane.b32.xlu0 %v9580, 28
      %v10098 = vpop.permute.xlu0 %10097
      %10099 = vrot.lane.b32.xlu0 %v9581, 28
      %v10100 = vpop.permute.xlu0 %10099
      %10101 = vrot.lane.b32.xlu0 %v9974, 28
      %v10102 = vpop.permute.xlu0 %10101
      %v10103 = vunpack.c.l.b16 %v644
      %v10104 = vunpack.c.l.b16 %v645
      %v10105 = vpack.c.b16 %v10104, %v10103
      %10106 = vrot.lane.b32.xlu0 %v4487, 32
      %v10107 = vpop.permute.xlu0 %10106
      %10108 = vrot.lane.b32.xlu0 %v4488, 32
      %v10109 = vpop.permute.xlu0 %10108
      %10110 = vrot.lane.b32.xlu0 %v4489, 32
      %v10111 = vpop.permute.xlu0 %10110
      %10112 = vrot.lane.b32.xlu0 %v4490, 32
      %v10113 = vpop.permute.xlu0 %10112
      %10114 = vrot.lane.b32.xlu0 %v4491, 32
      %v10115 = vpop.permute.xlu0 %10114
      %10116 = vrot.lane.b32.xlu0 %v4492, 32
      %v10117 = vpop.permute.xlu0 %10116
      %10118 = vrot.lane.b32.xlu0 %v4493, 32
      %v10119 = vpop.permute.xlu0 %10118
      %10120 = vrot.lane.b32.xlu0 %v4494, 32
      %v10121 = vpop.permute.xlu0 %10120
      %10122 = vrot.lane.b32.xlu0 %v4495, 32
      %v10123 = vpop.permute.xlu0 %10122
      %10124 = vrot.lane.b32.xlu0 %v4496, 32
      %v10125 = vpop.permute.xlu0 %10124
      %10126 = vrot.lane.b32.xlu0 %v4497, 32
      %v10127 = vpop.permute.xlu0 %10126
      %10128 = vrot.lane.b32.xlu0 %v4498, 32
      %v10129 = vpop.permute.xlu0 %10128
      %10130 = vrot.lane.b32.xlu0 %v4499, 32
      %v10131 = vpop.permute.xlu0 %10130
      %10132 = vrot.lane.b32.xlu0 %v4500, 32
      %v10133 = vpop.permute.xlu0 %10132
      %10134 = vrot.lane.b32.xlu0 %v5167, 32
      %v10135 = vpop.permute.xlu0 %10134
      %10136 = vrot.lane.b32.xlu0 %v5587, 32
      %v10137 = vpop.permute.xlu0 %10136
      %10138 = vrot.lane.b32.xlu0 %v4503, 32
      %v10139 = vpop.permute.xlu0 %10138
      %10140 = vrot.lane.b32.xlu0 %v4504, 32
      %v10141 = vpop.permute.xlu0 %10140
      %10142 = vrot.lane.b32.xlu0 %v4505, 32
      %v10143 = vpop.permute.xlu0 %10142
      %10144 = vrot.lane.b32.xlu0 %v4506, 32
      %v10145 = vpop.permute.xlu0 %10144
      %10146 = vrot.lane.b32.xlu0 %v4507, 32
      %v10147 = vpop.permute.xlu0 %10146
      %10148 = vrot.lane.b32.xlu0 %v4508, 32
      %v10149 = vpop.permute.xlu0 %10148
      %10150 = vrot.lane.b32.xlu0 %v4509, 32
      %v10151 = vpop.permute.xlu0 %10150
      %10152 = vrot.lane.b32.xlu0 %v4510, 32
      %v10153 = vpop.permute.xlu0 %10152
      %10154 = vrot.lane.b32.xlu0 %v4511, 32
      %v10155 = vpop.permute.xlu0 %10154
      %10156 = vrot.lane.b32.xlu0 %v4512, 32
      %v10157 = vpop.permute.xlu0 %10156
      %10158 = vrot.lane.b32.xlu0 %v4513, 32
      %v10159 = vpop.permute.xlu0 %10158
      %10160 = vrot.lane.b32.xlu0 %v4514, 32
      %v10161 = vpop.permute.xlu0 %10160
      %10162 = vrot.lane.b32.xlu0 %v4515, 32
      %v10163 = vpop.permute.xlu0 %10162
      %10164 = vrot.lane.b32.xlu0 %v4516, 32
      %v10165 = vpop.permute.xlu0 %10164
      %10166 = vrot.lane.b32.xlu0 %v5168, 32
      %v10167 = vpop.permute.xlu0 %10166
      %10168 = vrot.lane.b32.xlu0 %v5588, 32
      %v10169 = vpop.permute.xlu0 %10168
      %10170 = vrot.lane.b32.xlu0 %v6031, 32
      %v10171 = vpop.permute.xlu0 %10170
      %10172 = vrot.lane.b32.xlu0 %v6032, 32
      %v10173 = vpop.permute.xlu0 %10172
      %10174 = vrot.lane.b32.xlu0 %v6033, 32
      %v10175 = vpop.permute.xlu0 %10174
      %10176 = vrot.lane.b32.xlu0 %v6034, 32
      %v10177 = vpop.permute.xlu0 %10176
      %10178 = vrot.lane.b32.xlu0 %v6035, 32
      %v10179 = vpop.permute.xlu0 %10178
      %10180 = vrot.lane.b32.xlu0 %v6036, 32
      %v10181 = vpop.permute.xlu0 %10180
      %10182 = vrot.lane.b32.xlu0 %v6037, 32
      %v10183 = vpop.permute.xlu0 %10182
      %10184 = vrot.lane.b32.xlu0 %v6038, 32
      %v10185 = vpop.permute.xlu0 %10184
      %10186 = vrot.lane.b32.xlu0 %v6039, 32
      %v10187 = vpop.permute.xlu0 %10186
      %10188 = vrot.lane.b32.xlu0 %v6040, 32
      %v10189 = vpop.permute.xlu0 %10188
      %10190 = vrot.lane.b32.xlu0 %v6041, 32
      %v10191 = vpop.permute.xlu0 %10190
      %10192 = vrot.lane.b32.xlu0 %v6042, 32
      %v10193 = vpop.permute.xlu0 %10192
      %10194 = vrot.lane.b32.xlu0 %v6043, 32
      %v10195 = vpop.permute.xlu0 %10194
      %10196 = vrot.lane.b32.xlu0 %v6044, 32
      %v10197 = vpop.permute.xlu0 %10196
      %10198 = vrot.lane.b32.xlu0 %v6527, 32
      %v10199 = vpop.permute.xlu0 %10198
      %10200 = vrot.lane.b32.xlu0 %v6920, 32
      %v10201 = vpop.permute.xlu0 %10200
      %10202 = vrot.lane.b32.xlu0 %v9216, 32
      %v10203 = vpop.permute.xlu0 %10202
      %10204 = vrot.lane.b32.xlu0 %v9217, 32
      %v10205 = vpop.permute.xlu0 %10204
      %10206 = vrot.lane.b32.xlu0 %v9218, 32
      %v10207 = vpop.permute.xlu0 %10206
      %10208 = vrot.lane.b32.xlu0 %v9219, 32
      %v10209 = vpop.permute.xlu0 %10208
      %10210 = vrot.lane.b32.xlu0 %v9220, 32
      %v10211 = vpop.permute.xlu0 %10210
      %10212 = vrot.lane.b32.xlu0 %v9221, 32
      %v10213 = vpop.permute.xlu0 %10212
      %10214 = vrot.lane.b32.xlu0 %v9222, 32
      %v10215 = vpop.permute.xlu0 %10214
      %10216 = vrot.lane.b32.xlu0 %v9223, 32
      %v10217 = vpop.permute.xlu0 %10216
      %10218 = vrot.lane.b32.xlu0 %v9224, 32
      %v10219 = vpop.permute.xlu0 %10218
      %10220 = vrot.lane.b32.xlu0 %v9225, 32
      %v10221 = vpop.permute.xlu0 %10220
      %10222 = vrot.lane.b32.xlu0 %v9226, 32
      %v10223 = vpop.permute.xlu0 %10222
      %10224 = vrot.lane.b32.xlu0 %v9227, 32
      %v10225 = vpop.permute.xlu0 %10224
      %10226 = vrot.lane.b32.xlu0 %v9228, 32
      %v10227 = vpop.permute.xlu0 %10226
      %10228 = vrot.lane.b32.xlu0 %v9229, 32
      %v10229 = vpop.permute.xlu0 %10228
      %10230 = vrot.lane.b32.xlu0 %v9712, 32
      %v10231 = vpop.permute.xlu0 %10230
      %10232 = vrot.lane.b32.xlu0 %v10105, 32
      %v10233 = vpop.permute.xlu0 %10232
      %v10234 = vunpack.c.l.b16 %v4304
      %v10235 = vunpack.c.l.b16 %v4314
      %v10236 = vpack.c.b16 %v10235, %v10234
      %10237 = vrot.lane.b32.xlu0 %v4679, 36
      %v10238 = vpop.permute.xlu0 %10237
      %10239 = vrot.lane.b32.xlu0 %v4680, 36
      %v10240 = vpop.permute.xlu0 %10239
      %10241 = vrot.lane.b32.xlu0 %v4681, 36
      %v10242 = vpop.permute.xlu0 %10241
      %10243 = vrot.lane.b32.xlu0 %v4682, 36
      %v10244 = vpop.permute.xlu0 %10243
      %10245 = vrot.lane.b32.xlu0 %v4683, 36
      %v10246 = vpop.permute.xlu0 %10245
      %10247 = vrot.lane.b32.xlu0 %v4684, 36
      %v10248 = vpop.permute.xlu0 %10247
      %10249 = vrot.lane.b32.xlu0 %v4685, 36
      %v10250 = vpop.permute.xlu0 %10249
      %10251 = vrot.lane.b32.xlu0 %v4686, 36
      %v10252 = vpop.permute.xlu0 %10251
      %10253 = vrot.lane.b32.xlu0 %v4687, 36
      %v10254 = vpop.permute.xlu0 %10253
      %10255 = vrot.lane.b32.xlu0 %v4688, 36
      %v10256 = vpop.permute.xlu0 %10255
      %10257 = vrot.lane.b32.xlu0 %v4689, 36
      %v10258 = vpop.permute.xlu0 %10257
      %10259 = vrot.lane.b32.xlu0 %v4690, 36
      %v10260 = vpop.permute.xlu0 %10259
      %10261 = vrot.lane.b32.xlu0 %v4691, 36
      %v10262 = vpop.permute.xlu0 %10261
      %10263 = vrot.lane.b32.xlu0 %v4692, 36
      %v10264 = vpop.permute.xlu0 %10263
      %10265 = vrot.lane.b32.xlu0 %v5307, 36
      %v10266 = vpop.permute.xlu0 %10265
      %10267 = vrot.lane.b32.xlu0 %v5727, 36
      %v10268 = vpop.permute.xlu0 %10267
      %10269 = vrot.lane.b32.xlu0 %v4695, 36
      %v10270 = vpop.permute.xlu0 %10269
      %10271 = vrot.lane.b32.xlu0 %v4696, 36
      %v10272 = vpop.permute.xlu0 %10271
      %10273 = vrot.lane.b32.xlu0 %v4697, 36
      %v10274 = vpop.permute.xlu0 %10273
      %10275 = vrot.lane.b32.xlu0 %v4698, 36
      %v10276 = vpop.permute.xlu0 %10275
      %10277 = vrot.lane.b32.xlu0 %v4699, 36
      %v10278 = vpop.permute.xlu0 %10277
      %10279 = vrot.lane.b32.xlu0 %v4700, 36
      %v10280 = vpop.permute.xlu0 %10279
      %10281 = vrot.lane.b32.xlu0 %v4701, 36
      %v10282 = vpop.permute.xlu0 %10281
      %10283 = vrot.lane.b32.xlu0 %v4702, 36
      %v10284 = vpop.permute.xlu0 %10283
      %10285 = vrot.lane.b32.xlu0 %v4703, 36
      %v10286 = vpop.permute.xlu0 %10285
      %10287 = vrot.lane.b32.xlu0 %v4704, 36
      %v10288 = vpop.permute.xlu0 %10287
      %10289 = vrot.lane.b32.xlu0 %v4705, 36
      %v10290 = vpop.permute.xlu0 %10289
      %10291 = vrot.lane.b32.xlu0 %v4706, 36
      %v10292 = vpop.permute.xlu0 %10291
      %10293 = vrot.lane.b32.xlu0 %v4707, 36
      %v10294 = vpop.permute.xlu0 %10293
      %10295 = vrot.lane.b32.xlu0 %v4708, 36
      %v10296 = vpop.permute.xlu0 %10295
      %10297 = vrot.lane.b32.xlu0 %v5308, 36
      %v10298 = vpop.permute.xlu0 %10297
      %10299 = vrot.lane.b32.xlu0 %v5728, 36
      %v10300 = vpop.permute.xlu0 %10299
      %10301 = vrot.lane.b32.xlu0 %v6207, 36
      %v10302 = vpop.permute.xlu0 %10301
      %10303 = vrot.lane.b32.xlu0 %v6208, 36
      %v10304 = vpop.permute.xlu0 %10303
      %10305 = vrot.lane.b32.xlu0 %v6209, 36
      %v10306 = vpop.permute.xlu0 %10305
      %10307 = vrot.lane.b32.xlu0 %v6210, 36
      %v10308 = vpop.permute.xlu0 %10307
      %10309 = vrot.lane.b32.xlu0 %v6211, 36
      %v10310 = vpop.permute.xlu0 %10309
      %10311 = vrot.lane.b32.xlu0 %v6212, 36
      %v10312 = vpop.permute.xlu0 %10311
      %10313 = vrot.lane.b32.xlu0 %v6213, 36
      %v10314 = vpop.permute.xlu0 %10313
      %10315 = vrot.lane.b32.xlu0 %v6214, 36
      %v10316 = vpop.permute.xlu0 %10315
      %10317 = vrot.lane.b32.xlu0 %v6215, 36
      %v10318 = vpop.permute.xlu0 %10317
      %10319 = vrot.lane.b32.xlu0 %v6216, 36
      %v10320 = vpop.permute.xlu0 %10319
      %10321 = vrot.lane.b32.xlu0 %v6217, 36
      %v10322 = vpop.permute.xlu0 %10321
      %10323 = vrot.lane.b32.xlu0 %v6218, 36
      %v10324 = vpop.permute.xlu0 %10323
      %10325 = vrot.lane.b32.xlu0 %v6219, 36
      %v10326 = vpop.permute.xlu0 %10325
      %10327 = vrot.lane.b32.xlu0 %v6220, 36
      %v10328 = vpop.permute.xlu0 %10327
      %10329 = vrot.lane.b32.xlu0 %v6658, 36
      %v10330 = vpop.permute.xlu0 %10329
      %10331 = vrot.lane.b32.xlu0 %v9050, 36
      %v10332 = vpop.permute.xlu0 %10331
      %10333 = vrot.lane.b32.xlu0 %v9392, 36
      %v10334 = vpop.permute.xlu0 %10333
      %10335 = vrot.lane.b32.xlu0 %v9393, 36
      %v10336 = vpop.permute.xlu0 %10335
      %10337 = vrot.lane.b32.xlu0 %v9394, 36
      %v10338 = vpop.permute.xlu0 %10337
      %10339 = vrot.lane.b32.xlu0 %v9395, 36
      %v10340 = vpop.permute.xlu0 %10339
      %10341 = vrot.lane.b32.xlu0 %v9396, 36
      %v10342 = vpop.permute.xlu0 %10341
      %10343 = vrot.lane.b32.xlu0 %v9397, 36
      %v10344 = vpop.permute.xlu0 %10343
      %10345 = vrot.lane.b32.xlu0 %v9398, 36
      %v10346 = vpop.permute.xlu0 %10345
      %10347 = vrot.lane.b32.xlu0 %v9399, 36
      %v10348 = vpop.permute.xlu0 %10347
      %10349 = vrot.lane.b32.xlu0 %v9400, 36
      %v10350 = vpop.permute.xlu0 %10349
      %10351 = vrot.lane.b32.xlu0 %v9401, 36
      %v10352 = vpop.permute.xlu0 %10351
      %10353 = vrot.lane.b32.xlu0 %v9402, 36
      %v10354 = vpop.permute.xlu0 %10353
      %10355 = vrot.lane.b32.xlu0 %v9403, 36
      %v10356 = vpop.permute.xlu0 %10355
      %10357 = vrot.lane.b32.xlu0 %v9404, 36
      %v10358 = vpop.permute.xlu0 %10357
      %10359 = vrot.lane.b32.xlu0 %v9405, 36
      %v10360 = vpop.permute.xlu0 %10359
      %10361 = vrot.lane.b32.xlu0 %v9843, 36
      %v10362 = vpop.permute.xlu0 %10361
      %10363 = vrot.lane.b32.xlu0 %v10236, 36
      %v10364 = vpop.permute.xlu0 %10363
      %v10365 = vunpack.c.l.b16 %v4321
      %v10366 = vunpack.c.l.b16 %v4324
      %v10367 = vpack.c.b16 %v10366, %v10365
      %10368 = vrot.lane.b32.xlu0 %v4999, 40
      %v10369 = vpop.permute.xlu0 %10368
      %10370 = vrot.lane.b32.xlu0 %v5000, 40
      %v10371 = vpop.permute.xlu0 %10370
      %10372 = vrot.lane.b32.xlu0 %v5001, 40
      %v10373 = vpop.permute.xlu0 %10372
      %10374 = vrot.lane.b32.xlu0 %v5002, 40
      %v10375 = vpop.permute.xlu0 %10374
      %10376 = vrot.lane.b32.xlu0 %v5003, 40
      %v10377 = vpop.permute.xlu0 %10376
      %10378 = vrot.lane.b32.xlu0 %v5004, 40
      %v10379 = vpop.permute.xlu0 %10378
      %10380 = vrot.lane.b32.xlu0 %v5005, 40
      %v10381 = vpop.permute.xlu0 %10380
      %10382 = vrot.lane.b32.xlu0 %v5006, 40
      %v10383 = vpop.permute.xlu0 %10382
      %10384 = vrot.lane.b32.xlu0 %v5007, 40
      %v10385 = vpop.permute.xlu0 %10384
      %10386 = vrot.lane.b32.xlu0 %v5008, 40
      %v10387 = vpop.permute.xlu0 %10386
      %10388 = vrot.lane.b32.xlu0 %v5009, 40
      %v10389 = vpop.permute.xlu0 %10388
      %10390 = vrot.lane.b32.xlu0 %v5010, 40
      %v10391 = vpop.permute.xlu0 %10390
      %10392 = vrot.lane.b32.xlu0 %v5011, 40
      %v10393 = vpop.permute.xlu0 %10392
      %10394 = vrot.lane.b32.xlu0 %v5012, 40
      %v10395 = vpop.permute.xlu0 %10394
      %10396 = vrot.lane.b32.xlu0 %v5447, 40
      %v10397 = vpop.permute.xlu0 %10396
      %10398 = vrot.lane.b32.xlu0 %v5867, 40
      %v10399 = vpop.permute.xlu0 %10398
      %10400 = vrot.lane.b32.xlu0 %v5015, 40
      %v10401 = vpop.permute.xlu0 %10400
      %10402 = vrot.lane.b32.xlu0 %v5016, 40
      %v10403 = vpop.permute.xlu0 %10402
      %10404 = vrot.lane.b32.xlu0 %v5017, 40
      %v10405 = vpop.permute.xlu0 %10404
      %10406 = vrot.lane.b32.xlu0 %v5018, 40
      %v10407 = vpop.permute.xlu0 %10406
      %10408 = vrot.lane.b32.xlu0 %v5019, 40
      %v10409 = vpop.permute.xlu0 %10408
      %10410 = vrot.lane.b32.xlu0 %v5020, 40
      %v10411 = vpop.permute.xlu0 %10410
      %10412 = vrot.lane.b32.xlu0 %v5021, 40
      %v10413 = vpop.permute.xlu0 %10412
      %10414 = vrot.lane.b32.xlu0 %v5022, 40
      %v10415 = vpop.permute.xlu0 %10414
      %10416 = vrot.lane.b32.xlu0 %v5023, 40
      %v10417 = vpop.permute.xlu0 %10416
      %10418 = vrot.lane.b32.xlu0 %v5024, 40
      %v10419 = vpop.permute.xlu0 %10418
      %10420 = vrot.lane.b32.xlu0 %v5025, 40
      %v10421 = vpop.permute.xlu0 %10420
      %10422 = vrot.lane.b32.xlu0 %v5026, 40
      %v10423 = vpop.permute.xlu0 %10422
      %10424 = vrot.lane.b32.xlu0 %v5027, 40
      %v10425 = vpop.permute.xlu0 %10424
      %10426 = vrot.lane.b32.xlu0 %v5028, 40
      %v10427 = vpop.permute.xlu0 %10426
      %10428 = vrot.lane.b32.xlu0 %v5448, 40
      %v10429 = vpop.permute.xlu0 %10428
      %10430 = vrot.lane.b32.xlu0 %v5868, 40
      %v10431 = vpop.permute.xlu0 %10430
      %10432 = vrot.lane.b32.xlu0 %v6383, 40
      %v10433 = vpop.permute.xlu0 %10432
      %10434 = vrot.lane.b32.xlu0 %v6384, 40
      %v10435 = vpop.permute.xlu0 %10434
      %10436 = vrot.lane.b32.xlu0 %v6385, 40
      %v10437 = vpop.permute.xlu0 %10436
      %10438 = vrot.lane.b32.xlu0 %v6386, 40
      %v10439 = vpop.permute.xlu0 %10438
      %10440 = vrot.lane.b32.xlu0 %v6387, 40
      %v10441 = vpop.permute.xlu0 %10440
      %10442 = vrot.lane.b32.xlu0 %v6388, 40
      %v10443 = vpop.permute.xlu0 %10442
      %10444 = vrot.lane.b32.xlu0 %v6389, 40
      %v10445 = vpop.permute.xlu0 %10444
      %10446 = vrot.lane.b32.xlu0 %v6390, 40
      %v10447 = vpop.permute.xlu0 %10446
      %10448 = vrot.lane.b32.xlu0 %v6391, 40
      %v10449 = vpop.permute.xlu0 %10448
      %10450 = vrot.lane.b32.xlu0 %v6392, 40
      %v10451 = vpop.permute.xlu0 %10450
      %10452 = vrot.lane.b32.xlu0 %v6393, 40
      %v10453 = vpop.permute.xlu0 %10452
      %10454 = vrot.lane.b32.xlu0 %v6394, 40
      %v10455 = vpop.permute.xlu0 %10454
      %10456 = vrot.lane.b32.xlu0 %v6395, 40
      %v10457 = vpop.permute.xlu0 %10456
      %10458 = vrot.lane.b32.xlu0 %v6396, 40
      %v10459 = vpop.permute.xlu0 %10458
      %10460 = vrot.lane.b32.xlu0 %v6789, 40
      %v10461 = vpop.permute.xlu0 %10460
      %10462 = vrot.lane.b32.xlu0 %v9053, 40
      %v10463 = vpop.permute.xlu0 %10462
      %10464 = vrot.lane.b32.xlu0 %v9568, 40
      %v10465 = vpop.permute.xlu0 %10464
      %10466 = vrot.lane.b32.xlu0 %v9569, 40
      %v10467 = vpop.permute.xlu0 %10466
      %10468 = vrot.lane.b32.xlu0 %v9570, 40
      %v10469 = vpop.permute.xlu0 %10468
      %10470 = vrot.lane.b32.xlu0 %v9571, 40
      %v10471 = vpop.permute.xlu0 %10470
      %10472 = vrot.lane.b32.xlu0 %v9572, 40
      %v10473 = vpop.permute.xlu0 %10472
      %10474 = vrot.lane.b32.xlu0 %v9573, 40
      %v10475 = vpop.permute.xlu0 %10474
      %10476 = vrot.lane.b32.xlu0 %v9574, 40
      %v10477 = vpop.permute.xlu0 %10476
      %10478 = vrot.lane.b32.xlu0 %v9575, 40
      %v10479 = vpop.permute.xlu0 %10478
      %10480 = vrot.lane.b32.xlu0 %v9576, 40
      %v10481 = vpop.permute.xlu0 %10480
      %10482 = vrot.lane.b32.xlu0 %v9577, 40
      %v10483 = vpop.permute.xlu0 %10482
      %10484 = vrot.lane.b32.xlu0 %v9578, 40
      %v10485 = vpop.permute.xlu0 %10484
      %10486 = vrot.lane.b32.xlu0 %v9579, 40
      %v10487 = vpop.permute.xlu0 %10486
      %10488 = vrot.lane.b32.xlu0 %v9580, 40
      %v10489 = vpop.permute.xlu0 %10488
      %10490 = vrot.lane.b32.xlu0 %v9581, 40
      %v10491 = vpop.permute.xlu0 %10490
      %10492 = vrot.lane.b32.xlu0 %v9974, 40
      %v10493 = vpop.permute.xlu0 %10492
      %10494 = vrot.lane.b32.xlu0 %v10367, 40
      %v10495 = vpop.permute.xlu0 %10494
      %v10498 = vsel %vm7049, %v4663, %v9055
      %v10501 = vsel %vm7049, %v4664, %v9057
      %v10504 = vsel %vm7049, %v4665, %v9059
      %v10507 = vsel %vm7049, %v4666, %v9061
      %v10510 = vsel %vm7049, %v4667, %v9063
      %v10513 = vsel %vm7049, %v4668, %v9065
      %v10516 = vsel %vm7049, %v4669, %v9067
      %v10519 = vsel %vm7049, %v4670, %v9069
      %v10522 = vsel %vm7049, %v4671, %v9071
      %v10525 = vsel %vm7049, %v4672, %v9073
      %v10528 = vsel %vm7049, %v4673, %v9075
      %v10531 = vsel %vm7049, %v4674, %v9077
      %v10534 = vsel %vm7049, %v4675, %v9079
      %v10537 = vsel %vm7049, %v4676, %v9081
      %v10540 = vsel %vm7049, %v5306, %v9083
      %v10543 = vsel %vm7049, %v5726, %v9085
      %v10546 = vsel %vm7049, %v4679, %v9087
      %v10549 = vsel %vm7049, %v4680, %v9089
      %v10552 = vsel %vm7049, %v4681, %v9091
      %v10555 = vsel %vm7049, %v4682, %v9093
      %v10558 = vsel %vm7049, %v4683, %v9095
      %v10561 = vsel %vm7049, %v4684, %v9097
      %v10564 = vsel %vm7049, %v4685, %v9099
      %v10567 = vsel %vm7049, %v4686, %v9101
      %v10570 = vsel %vm7049, %v4687, %v9103
      %v10573 = vsel %vm7049, %v4688, %v9105
      %v10576 = vsel %vm7049, %v4689, %v9107
      %v10579 = vsel %vm7049, %v4690, %v9109
      %v10582 = vsel %vm7049, %v4691, %v9111
      %v10585 = vsel %vm7049, %v4692, %v9113
      %v10588 = vsel %vm7049, %v5307, %v9115
      %v10591 = vsel %vm7049, %v5727, %v9117
      %v10594 = vsel %vm7049, %v4695, %v9119
      %v10597 = vsel %vm7049, %v4696, %v9121
      %v10600 = vsel %vm7049, %v4697, %v9123
      %v10603 = vsel %vm7049, %v4698, %v9125
      %v10606 = vsel %vm7049, %v4699, %v9127
      %v10609 = vsel %vm7049, %v4700, %v9129
      %v10612 = vsel %vm7049, %v4701, %v9131
      %v10615 = vsel %vm7049, %v4702, %v9133
      %v10618 = vsel %vm7049, %v4703, %v9135
      %v10621 = vsel %vm7049, %v4704, %v9137
      %v10624 = vsel %vm7049, %v4705, %v9139
      %v10627 = vsel %vm7049, %v4706, %v9141
      %v10630 = vsel %vm7049, %v4707, %v9143
      %v10633 = vsel %vm7049, %v4708, %v9145
      %v10636 = vsel %vm7049, %v5308, %v9147
      %v10639 = vsel %vm7049, %v5728, %v9149
      %v10642 = vsel %vm7049, %v6207, %v9151
      %v10645 = vsel %vm7049, %v6208, %v9153
      %v10648 = vsel %vm7049, %v6209, %v9155
      %v10651 = vsel %vm7049, %v6210, %v9157
      %v10654 = vsel %vm7049, %v6211, %v9159
      %v10657 = vsel %vm7049, %v6212, %v9161
      %v10660 = vsel %vm7049, %v6213, %v9163
      %v10663 = vsel %vm7049, %v6214, %v9165
      %v10666 = vsel %vm7049, %v6215, %v9167
      %v10669 = vsel %vm7049, %v6216, %v9169
      %v10672 = vsel %vm7049, %v6217, %v9171
      %v10675 = vsel %vm7049, %v6218, %v9173
      %v10678 = vsel %vm7049, %v6219, %v9175
      %v10681 = vsel %vm7049, %v6220, %v9177
      %v10684 = vsel %vm7049, %v6658, %v9179
      %v10687 = vsel %vm7049, %v9050, %v9181
      %v10689 = vsel %vm7242, %v10498, %v9231
      %v10691 = vsel %vm7242, %v10501, %v9233
      %v10693 = vsel %vm7242, %v10504, %v9235
      %v10695 = vsel %vm7242, %v10507, %v9237
      %v10697 = vsel %vm7242, %v10510, %v9239
      %v10699 = vsel %vm7242, %v10513, %v9241
      %v10701 = vsel %vm7242, %v10516, %v9243
      %v10703 = vsel %vm7242, %v10519, %v9245
      %v10705 = vsel %vm7242, %v10522, %v9247
      %v10707 = vsel %vm7242, %v10525, %v9249
      %v10709 = vsel %vm7242, %v10528, %v9251
      %v10711 = vsel %vm7242, %v10531, %v9253
      %v10713 = vsel %vm7242, %v10534, %v9255
      %v10715 = vsel %vm7242, %v10537, %v9257
      %v10717 = vsel %vm7242, %v10540, %v9259
      %v10719 = vsel %vm7242, %v10543, %v9261
      %v10721 = vsel %vm7242, %v10546, %v9263
      %v10723 = vsel %vm7242, %v10549, %v9265
      %v10725 = vsel %vm7242, %v10552, %v9267
      %v10727 = vsel %vm7242, %v10555, %v9269
      %v10729 = vsel %vm7242, %v10558, %v9271
      %v10731 = vsel %vm7242, %v10561, %v9273
      %v10733 = vsel %vm7242, %v10564, %v9275
      %v10735 = vsel %vm7242, %v10567, %v9277
      %v10737 = vsel %vm7242, %v10570, %v9279
      %v10739 = vsel %vm7242, %v10573, %v9281
      %v10741 = vsel %vm7242, %v10576, %v9283
      %v10743 = vsel %vm7242, %v10579, %v9285
      %v10745 = vsel %vm7242, %v10582, %v9287
      %v10747 = vsel %vm7242, %v10585, %v9289
      %v10749 = vsel %vm7242, %v10588, %v9291
      %v10751 = vsel %vm7242, %v10591, %v9293
      %v10753 = vsel %vm7242, %v10594, %v9295
      %v10755 = vsel %vm7242, %v10597, %v9297
      %v10757 = vsel %vm7242, %v10600, %v9299
      %v10759 = vsel %vm7242, %v10603, %v9301
      %v10761 = vsel %vm7242, %v10606, %v9303
      %v10763 = vsel %vm7242, %v10609, %v9305
      %v10765 = vsel %vm7242, %v10612, %v9307
      %v10767 = vsel %vm7242, %v10615, %v9309
      %v10769 = vsel %vm7242, %v10618, %v9311
      %v10771 = vsel %vm7242, %v10621, %v9313
      %v10773 = vsel %vm7242, %v10624, %v9315
      %v10775 = vsel %vm7242, %v10627, %v9317
      %v10777 = vsel %vm7242, %v10630, %v9319
      %v10779 = vsel %vm7242, %v10633, %v9321
      %v10781 = vsel %vm7242, %v10636, %v9323
      %v10783 = vsel %vm7242, %v10639, %v9325
      %v10785 = vsel %vm7242, %v10642, %v9327
      %v10787 = vsel %vm7242, %v10645, %v9329
      %v10789 = vsel %vm7242, %v10648, %v9331
      %v10791 = vsel %vm7242, %v10651, %v9333
      %v10793 = vsel %vm7242, %v10654, %v9335
      %v10795 = vsel %vm7242, %v10657, %v9337
      %v10797 = vsel %vm7242, %v10660, %v9339
      %v10799 = vsel %vm7242, %v10663, %v9341
      %v10801 = vsel %vm7242, %v10666, %v9343
      %v10803 = vsel %vm7242, %v10669, %v9345
      %v10805 = vsel %vm7242, %v10672, %v9347
      %v10807 = vsel %vm7242, %v10675, %v9349
      %v10809 = vsel %vm7242, %v10678, %v9351
      %v10811 = vsel %vm7242, %v10681, %v9353
      %v10813 = vsel %vm7242, %v10684, %v9355
      %v10815 = vsel %vm7242, %v10687, %v9357
      %v10817 = vsel %vm7371, %v10689, %v9407
      %v10819 = vsel %vm7371, %v10691, %v9409
      %v10821 = vsel %vm7371, %v10693, %v9411
      %v10823 = vsel %vm7371, %v10695, %v9413
      %v10825 = vsel %vm7371, %v10697, %v9415
      %v10827 = vsel %vm7371, %v10699, %v9417
      %v10829 = vsel %vm7371, %v10701, %v9419
      %v10831 = vsel %vm7371, %v10703, %v9421
      %v10833 = vsel %vm7371, %v10705, %v9423
      %v10835 = vsel %vm7371, %v10707, %v9425
      %v10837 = vsel %vm7371, %v10709, %v9427
      %v10839 = vsel %vm7371, %v10711, %v9429
      %v10841 = vsel %vm7371, %v10713, %v9431
      %v10843 = vsel %vm7371, %v10715, %v9433
      %v10845 = vsel %vm7371, %v10717, %v9435
      %v10847 = vsel %vm7371, %v10719, %v9437
      %v10849 = vsel %vm7371, %v10721, %v9439
      %v10851 = vsel %vm7371, %v10723, %v9441
      %v10853 = vsel %vm7371, %v10725, %v9443
      %v10855 = vsel %vm7371, %v10727, %v9445
      %v10857 = vsel %vm7371, %v10729, %v9447
      %v10859 = vsel %vm7371, %v10731, %v9449
      %v10861 = vsel %vm7371, %v10733, %v9451
      %v10863 = vsel %vm7371, %v10735, %v9453
      %v10865 = vsel %vm7371, %v10737, %v9455
      %v10867 = vsel %vm7371, %v10739, %v9457
      %v10869 = vsel %vm7371, %v10741, %v9459
      %v10871 = vsel %vm7371, %v10743, %v9461
      %v10873 = vsel %vm7371, %v10745, %v9463
      %v10875 = vsel %vm7371, %v10747, %v9465
      %v10877 = vsel %vm7371, %v10749, %v9467
      %v10879 = vsel %vm7371, %v10751, %v9469
      %v10881 = vsel %vm7371, %v10753, %v9471
      %v10883 = vsel %vm7371, %v10755, %v9473
      %v10885 = vsel %vm7371, %v10757, %v9475
      %v10887 = vsel %vm7371, %v10759, %v9477
      %v10889 = vsel %vm7371, %v10761, %v9479
      %v10891 = vsel %vm7371, %v10763, %v9481
      %v10893 = vsel %vm7371, %v10765, %v9483
      %v10895 = vsel %vm7371, %v10767, %v9485
      %v10897 = vsel %vm7371, %v10769, %v9487
      %v10899 = vsel %vm7371, %v10771, %v9489
      %v10901 = vsel %vm7371, %v10773, %v9491
      %v10903 = vsel %vm7371, %v10775, %v9493
      %v10905 = vsel %vm7371, %v10777, %v9495
      %v10907 = vsel %vm7371, %v10779, %v9497
      %v10909 = vsel %vm7371, %v10781, %v9499
      %v10911 = vsel %vm7371, %v10783, %v9501
      %v10913 = vsel %vm7371, %v10785, %v9503
      %v10915 = vsel %vm7371, %v10787, %v9505
      %v10917 = vsel %vm7371, %v10789, %v9507
      %v10919 = vsel %vm7371, %v10791, %v9509
      %v10921 = vsel %vm7371, %v10793, %v9511
      %v10923 = vsel %vm7371, %v10795, %v9513
      %v10925 = vsel %vm7371, %v10797, %v9515
      %v10927 = vsel %vm7371, %v10799, %v9517
      %v10929 = vsel %vm7371, %v10801, %v9519
      %v10931 = vsel %vm7371, %v10803, %v9521
      %v10933 = vsel %vm7371, %v10805, %v9523
      %v10935 = vsel %vm7371, %v10807, %v9525
      %v10937 = vsel %vm7371, %v10809, %v9527
      %v10939 = vsel %vm7371, %v10811, %v9529
      %v10941 = vsel %vm7371, %v10813, %v9531
      %v10943 = vsel %vm7371, %v10815, %v9533
      %v10945 = vsel %vm7500, %v10817, %v9583
      %v10947 = vsel %vm7500, %v10819, %v9585
      %v10949 = vsel %vm7500, %v10821, %v9587
      %v10951 = vsel %vm7500, %v10823, %v9589
      %v10953 = vsel %vm7500, %v10825, %v9591
      %v10955 = vsel %vm7500, %v10827, %v9593
      %v10957 = vsel %vm7500, %v10829, %v9595
      %v10959 = vsel %vm7500, %v10831, %v9597
      %v10961 = vsel %vm7500, %v10833, %v9599
      %v10963 = vsel %vm7500, %v10835, %v9601
      %v10965 = vsel %vm7500, %v10837, %v9603
      %v10967 = vsel %vm7500, %v10839, %v9605
      %v10969 = vsel %vm7500, %v10841, %v9607
      %v10971 = vsel %vm7500, %v10843, %v9609
      %v10973 = vsel %vm7500, %v10845, %v9611
      %v10975 = vsel %vm7500, %v10847, %v9613
      %v10977 = vsel %vm7500, %v10849, %v9615
      %v10979 = vsel %vm7500, %v10851, %v9617
      %v10981 = vsel %vm7500, %v10853, %v9619
      %v10983 = vsel %vm7500, %v10855, %v9621
      %v10985 = vsel %vm7500, %v10857, %v9623
      %v10987 = vsel %vm7500, %v10859, %v9625
      %v10989 = vsel %vm7500, %v10861, %v9627
      %v10991 = vsel %vm7500, %v10863, %v9629
      %v10993 = vsel %vm7500, %v10865, %v9631
      %v10995 = vsel %vm7500, %v10867, %v9633
      %v10997 = vsel %vm7500, %v10869, %v9635
      %v10999 = vsel %vm7500, %v10871, %v9637
      %v11001 = vsel %vm7500, %v10873, %v9639
      %v11003 = vsel %vm7500, %v10875, %v9641
      %v11005 = vsel %vm7500, %v10877, %v9643
      %v11007 = vsel %vm7500, %v10879, %v9645
      %v11009 = vsel %vm7500, %v10881, %v9647
      %v11011 = vsel %vm7500, %v10883, %v9649
      %v11013 = vsel %vm7500, %v10885, %v9651
      %v11015 = vsel %vm7500, %v10887, %v9653
      %v11017 = vsel %vm7500, %v10889, %v9655
      %v11019 = vsel %vm7500, %v10891, %v9657
      %v11021 = vsel %vm7500, %v10893, %v9659
      %v11023 = vsel %vm7500, %v10895, %v9661
      %v11025 = vsel %vm7500, %v10897, %v9663
      %v11027 = vsel %vm7500, %v10899, %v9665
      %v11029 = vsel %vm7500, %v10901, %v9667
      %v11031 = vsel %vm7500, %v10903, %v9669
      %v11033 = vsel %vm7500, %v10905, %v9671
      %v11035 = vsel %vm7500, %v10907, %v9673
      %v11037 = vsel %vm7500, %v10909, %v9675
      %v11039 = vsel %vm7500, %v10911, %v9677
      %v11041 = vsel %vm7500, %v10913, %v9679
      %v11043 = vsel %vm7500, %v10915, %v9681
      %v11045 = vsel %vm7500, %v10917, %v9683
      %v11047 = vsel %vm7500, %v10919, %v9685
      %v11049 = vsel %vm7500, %v10921, %v9687
      %v11051 = vsel %vm7500, %v10923, %v9689
      %v11053 = vsel %vm7500, %v10925, %v9691
      %v11055 = vsel %vm7500, %v10927, %v9693
      %v11057 = vsel %vm7500, %v10929, %v9695
      %v11059 = vsel %vm7500, %v10931, %v9697
      %v11061 = vsel %vm7500, %v10933, %v9699
      %v11063 = vsel %vm7500, %v10935, %v9701
      %v11065 = vsel %vm7500, %v10937, %v9703
      %v11067 = vsel %vm7500, %v10939, %v9705
      %v11069 = vsel %vm7500, %v10941, %v9707
      %v11071 = vsel %vm7500, %v10943, %v9709
      %v11073 = vsel %vm7629, %v10945, %v9714
      %v11075 = vsel %vm7629, %v10947, %v9716
      %v11077 = vsel %vm7629, %v10949, %v9718
      %v11079 = vsel %vm7629, %v10951, %v9720
      %v11081 = vsel %vm7629, %v10953, %v9722
      %v11083 = vsel %vm7629, %v10955, %v9724
      %v11085 = vsel %vm7629, %v10957, %v9726
      %v11087 = vsel %vm7629, %v10959, %v9728
      %v11089 = vsel %vm7629, %v10961, %v9730
      %v11091 = vsel %vm7629, %v10963, %v9732
      %v11093 = vsel %vm7629, %v10965, %v9734
      %v11095 = vsel %vm7629, %v10967, %v9736
      %v11097 = vsel %vm7629, %v10969, %v9738
      %v11099 = vsel %vm7629, %v10971, %v9740
      %v11101 = vsel %vm7629, %v10973, %v9742
      %v11103 = vsel %vm7629, %v10975, %v9744
      %v11105 = vsel %vm7629, %v10977, %v9746
      %v11107 = vsel %vm7629, %v10979, %v9748
      %v11109 = vsel %vm7629, %v10981, %v9750
      %v11111 = vsel %vm7629, %v10983, %v9752
      %v11113 = vsel %vm7629, %v10985, %v9754
      %v11115 = vsel %vm7629, %v10987, %v9756
      %v11117 = vsel %vm7629, %v10989, %v9758
      %v11119 = vsel %vm7629, %v10991, %v9760
      %v11121 = vsel %vm7629, %v10993, %v9762
      %v11123 = vsel %vm7629, %v10995, %v9764
      %v11125 = vsel %vm7629, %v10997, %v9766
      %v11127 = vsel %vm7629, %v10999, %v9768
      %v11129 = vsel %vm7629, %v11001, %v9770
      %v11131 = vsel %vm7629, %v11003, %v9772
      %v11133 = vsel %vm7629, %v11005, %v9774
      %v11135 = vsel %vm7629, %v11007, %v9776
      %v11137 = vsel %vm7629, %v11009, %v9778
      %v11139 = vsel %vm7629, %v11011, %v9780
      %v11141 = vsel %vm7629, %v11013, %v9782
      %v11143 = vsel %vm7629, %v11015, %v9784
      %v11145 = vsel %vm7629, %v11017, %v9786
      %v11147 = vsel %vm7629, %v11019, %v9788
      %v11149 = vsel %vm7629, %v11021, %v9790
      %v11151 = vsel %vm7629, %v11023, %v9792
      %v11153 = vsel %vm7629, %v11025, %v9794
      %v11155 = vsel %vm7629, %v11027, %v9796
      %v11157 = vsel %vm7629, %v11029, %v9798
      %v11159 = vsel %vm7629, %v11031, %v9800
      %v11161 = vsel %vm7629, %v11033, %v9802
      %v11163 = vsel %vm7629, %v11035, %v9804
      %v11165 = vsel %vm7629, %v11037, %v9806
      %v11167 = vsel %vm7629, %v11039, %v9808
      %v11169 = vsel %vm7629, %v11041, %v9810
      %v11171 = vsel %vm7629, %v11043, %v9812
      %v11173 = vsel %vm7629, %v11045, %v9814
      %v11175 = vsel %vm7629, %v11047, %v9816
      %v11177 = vsel %vm7629, %v11049, %v9818
      %v11179 = vsel %vm7629, %v11051, %v9820
      %v11181 = vsel %vm7629, %v11053, %v9822
      %v11183 = vsel %vm7629, %v11055, %v9824
      %v11185 = vsel %vm7629, %v11057, %v9826
      %v11187 = vsel %vm7629, %v11059, %v9828
      %v11189 = vsel %vm7629, %v11061, %v9830
      %v11191 = vsel %vm7629, %v11063, %v9832
      %v11193 = vsel %vm7629, %v11065, %v9834
      %v11195 = vsel %vm7629, %v11067, %v9836
      %v11197 = vsel %vm7629, %v11069, %v9838
      %v11199 = vsel %vm7629, %v11071, %v9840
      %v11201 = vsel %vm7758, %v11073, %v9845
      %v11203 = vsel %vm7758, %v11075, %v9847
      %v11205 = vsel %vm7758, %v11077, %v9849
      %v11207 = vsel %vm7758, %v11079, %v9851
      %v11209 = vsel %vm7758, %v11081, %v9853
      %v11211 = vsel %vm7758, %v11083, %v9855
      %v11213 = vsel %vm7758, %v11085, %v9857
      %v11215 = vsel %vm7758, %v11087, %v9859
      %v11217 = vsel %vm7758, %v11089, %v9861
      %v11219 = vsel %vm7758, %v11091, %v9863
      %v11221 = vsel %vm7758, %v11093, %v9865
      %v11223 = vsel %vm7758, %v11095, %v9867
      %v11225 = vsel %vm7758, %v11097, %v9869
      %v11227 = vsel %vm7758, %v11099, %v9871
      %v11229 = vsel %vm7758, %v11101, %v9873
      %v11231 = vsel %vm7758, %v11103, %v9875
      %v11233 = vsel %vm7758, %v11105, %v9877
      %v11235 = vsel %vm7758, %v11107, %v9879
      %v11237 = vsel %vm7758, %v11109, %v9881
      %v11239 = vsel %vm7758, %v11111, %v9883
      %v11241 = vsel %vm7758, %v11113, %v9885
      %v11243 = vsel %vm7758, %v11115, %v9887
      %v11245 = vsel %vm7758, %v11117, %v9889
      %v11247 = vsel %vm7758, %v11119, %v9891
      %v11249 = vsel %vm7758, %v11121, %v9893
      %v11251 = vsel %vm7758, %v11123, %v9895
      %v11253 = vsel %vm7758, %v11125, %v9897
      %v11255 = vsel %vm7758, %v11127, %v9899
      %v11257 = vsel %vm7758, %v11129, %v9901
      %v11259 = vsel %vm7758, %v11131, %v9903
      %v11261 = vsel %vm7758, %v11133, %v9905
      %v11263 = vsel %vm7758, %v11135, %v9907
      %v11265 = vsel %vm7758, %v11137, %v9909
      %v11267 = vsel %vm7758, %v11139, %v9911
      %v11269 = vsel %vm7758, %v11141, %v9913
      %v11271 = vsel %vm7758, %v11143, %v9915
      %v11273 = vsel %vm7758, %v11145, %v9917
      %v11275 = vsel %vm7758, %v11147, %v9919
      %v11277 = vsel %vm7758, %v11149, %v9921
      %v11279 = vsel %vm7758, %v11151, %v9923
      %v11281 = vsel %vm7758, %v11153, %v9925
      %v11283 = vsel %vm7758, %v11155, %v9927
      %v11285 = vsel %vm7758, %v11157, %v9929
      %v11287 = vsel %vm7758, %v11159, %v9931
      %v11289 = vsel %vm7758, %v11161, %v9933
      %v11291 = vsel %vm7758, %v11163, %v9935
      %v11293 = vsel %vm7758, %v11165, %v9937
      %v11295 = vsel %vm7758, %v11167, %v9939
      %v11297 = vsel %vm7758, %v11169, %v9941
      %v11299 = vsel %vm7758, %v11171, %v9943
      %v11301 = vsel %vm7758, %v11173, %v9945
      %v11303 = vsel %vm7758, %v11175, %v9947
      %v11305 = vsel %vm7758, %v11177, %v9949
      %v11307 = vsel %vm7758, %v11179, %v9951
      %v11309 = vsel %vm7758, %v11181, %v9953
      %v11311 = vsel %vm7758, %v11183, %v9955
      %v11313 = vsel %vm7758, %v11185, %v9957
      %v11315 = vsel %vm7758, %v11187, %v9959
      %v11317 = vsel %vm7758, %v11189, %v9961
      %v11319 = vsel %vm7758, %v11191, %v9963
      %v11321 = vsel %vm7758, %v11193, %v9965
      %v11323 = vsel %vm7758, %v11195, %v9967
      %v11325 = vsel %vm7758, %v11197, %v9969
      %v11327 = vsel %vm7758, %v11199, %v9971
      %v11329 = vsel %vm7887, %v11201, %v9976
      %v11331 = vsel %vm7887, %v11203, %v9978
      %v11333 = vsel %vm7887, %v11205, %v9980
      %v11335 = vsel %vm7887, %v11207, %v9982
      %v11337 = vsel %vm7887, %v11209, %v9984
      %v11339 = vsel %vm7887, %v11211, %v9986
      %v11341 = vsel %vm7887, %v11213, %v9988
      %v11343 = vsel %vm7887, %v11215, %v9990
      %v11345 = vsel %vm7887, %v11217, %v9992
      %v11347 = vsel %vm7887, %v11219, %v9994
      %v11349 = vsel %vm7887, %v11221, %v9996
      %v11351 = vsel %vm7887, %v11223, %v9998
      %v11353 = vsel %vm7887, %v11225, %v10000
      %v11355 = vsel %vm7887, %v11227, %v10002
      %v11357 = vsel %vm7887, %v11229, %v10004
      %v11359 = vsel %vm7887, %v11231, %v10006
      %v11361 = vsel %vm7887, %v11233, %v10008
      %v11363 = vsel %vm7887, %v11235, %v10010
      %v11365 = vsel %vm7887, %v11237, %v10012
      %v11367 = vsel %vm7887, %v11239, %v10014
      %v11369 = vsel %vm7887, %v11241, %v10016
      %v11371 = vsel %vm7887, %v11243, %v10018
      %v11373 = vsel %vm7887, %v11245, %v10020
      %v11375 = vsel %vm7887, %v11247, %v10022
      %v11377 = vsel %vm7887, %v11249, %v10024
      %v11379 = vsel %vm7887, %v11251, %v10026
      %v11381 = vsel %vm7887, %v11253, %v10028
      %v11383 = vsel %vm7887, %v11255, %v10030
      %v11385 = vsel %vm7887, %v11257, %v10032
      %v11387 = vsel %vm7887, %v11259, %v10034
      %v11389 = vsel %vm7887, %v11261, %v10036
      %v11391 = vsel %vm7887, %v11263, %v10038
      %v11393 = vsel %vm7887, %v11265, %v10040
      %v11395 = vsel %vm7887, %v11267, %v10042
      %v11397 = vsel %vm7887, %v11269, %v10044
      %v11399 = vsel %vm7887, %v11271, %v10046
      %v11401 = vsel %vm7887, %v11273, %v10048
      %v11403 = vsel %vm7887, %v11275, %v10050
      %v11405 = vsel %vm7887, %v11277, %v10052
      %v11407 = vsel %vm7887, %v11279, %v10054
      %v11409 = vsel %vm7887, %v11281, %v10056
      %v11411 = vsel %vm7887, %v11283, %v10058
      %v11413 = vsel %vm7887, %v11285, %v10060
      %v11415 = vsel %vm7887, %v11287, %v10062
      %v11417 = vsel %vm7887, %v11289, %v10064
      %v11419 = vsel %vm7887, %v11291, %v10066
      %v11421 = vsel %vm7887, %v11293, %v10068
      %v11423 = vsel %vm7887, %v11295, %v10070
      %v11425 = vsel %vm7887, %v11297, %v10072
      %v11427 = vsel %vm7887, %v11299, %v10074
      %v11429 = vsel %vm7887, %v11301, %v10076
      %v11431 = vsel %vm7887, %v11303, %v10078
      %v11433 = vsel %vm7887, %v11305, %v10080
      %v11435 = vsel %vm7887, %v11307, %v10082
      %v11437 = vsel %vm7887, %v11309, %v10084
      %v11439 = vsel %vm7887, %v11311, %v10086
      %v11441 = vsel %vm7887, %v11313, %v10088
      %v11443 = vsel %vm7887, %v11315, %v10090
      %v11445 = vsel %vm7887, %v11317, %v10092
      %v11447 = vsel %vm7887, %v11319, %v10094
      %v11449 = vsel %vm7887, %v11321, %v10096
      %v11451 = vsel %vm7887, %v11323, %v10098
      %v11453 = vsel %vm7887, %v11325, %v10100
      %v11455 = vsel %vm7887, %v11327, %v10102
      %v11457 = vsel %vm8016, %v11329, %v10107
      %v11459 = vsel %vm8016, %v11331, %v10109
      %v11461 = vsel %vm8016, %v11333, %v10111
      %v11463 = vsel %vm8016, %v11335, %v10113
      %v11465 = vsel %vm8016, %v11337, %v10115
      %v11467 = vsel %vm8016, %v11339, %v10117
      %v11469 = vsel %vm8016, %v11341, %v10119
      %v11471 = vsel %vm8016, %v11343, %v10121
      %v11473 = vsel %vm8016, %v11345, %v10123
      %v11475 = vsel %vm8016, %v11347, %v10125
      %v11477 = vsel %vm8016, %v11349, %v10127
      %v11479 = vsel %vm8016, %v11351, %v10129
      %v11481 = vsel %vm8016, %v11353, %v10131
      %v11483 = vsel %vm8016, %v11355, %v10133
      %v11485 = vsel %vm8016, %v11357, %v10135
      %v11487 = vsel %vm8016, %v11359, %v10137
      %v11489 = vsel %vm8016, %v11361, %v10139
      %v11491 = vsel %vm8016, %v11363, %v10141
      %v11493 = vsel %vm8016, %v11365, %v10143
      %v11495 = vsel %vm8016, %v11367, %v10145
      %v11497 = vsel %vm8016, %v11369, %v10147
      %v11499 = vsel %vm8016, %v11371, %v10149
      %v11501 = vsel %vm8016, %v11373, %v10151
      %v11503 = vsel %vm8016, %v11375, %v10153
      %v11505 = vsel %vm8016, %v11377, %v10155
      %v11507 = vsel %vm8016, %v11379, %v10157
      %v11509 = vsel %vm8016, %v11381, %v10159
      %v11511 = vsel %vm8016, %v11383, %v10161
      %v11513 = vsel %vm8016, %v11385, %v10163
      %v11515 = vsel %vm8016, %v11387, %v10165
      %v11517 = vsel %vm8016, %v11389, %v10167
      %v11519 = vsel %vm8016, %v11391, %v10169
      %v11521 = vsel %vm8016, %v11393, %v10171
      %v11523 = vsel %vm8016, %v11395, %v10173
      %v11525 = vsel %vm8016, %v11397, %v10175
      %v11527 = vsel %vm8016, %v11399, %v10177
      %v11529 = vsel %vm8016, %v11401, %v10179
      %v11531 = vsel %vm8016, %v11403, %v10181
      %v11533 = vsel %vm8016, %v11405, %v10183
      %v11535 = vsel %vm8016, %v11407, %v10185
      %v11537 = vsel %vm8016, %v11409, %v10187
      %v11539 = vsel %vm8016, %v11411, %v10189
      %v11541 = vsel %vm8016, %v11413, %v10191
      %v11543 = vsel %vm8016, %v11415, %v10193
      %v11545 = vsel %vm8016, %v11417, %v10195
      %v11547 = vsel %vm8016, %v11419, %v10197
      %v11549 = vsel %vm8016, %v11421, %v10199
      %v11551 = vsel %vm8016, %v11423, %v10201
      %v11553 = vsel %vm8016, %v11425, %v10203
      %v11555 = vsel %vm8016, %v11427, %v10205
      %v11557 = vsel %vm8016, %v11429, %v10207
      %v11559 = vsel %vm8016, %v11431, %v10209
      %v11561 = vsel %vm8016, %v11433, %v10211
      %v11563 = vsel %vm8016, %v11435, %v10213
      %v11565 = vsel %vm8016, %v11437, %v10215
      %v11567 = vsel %vm8016, %v11439, %v10217
      %v11569 = vsel %vm8016, %v11441, %v10219
      %v11571 = vsel %vm8016, %v11443, %v10221
      %v11573 = vsel %vm8016, %v11445, %v10223
      %v11575 = vsel %vm8016, %v11447, %v10225
      %v11577 = vsel %vm8016, %v11449, %v10227
      %v11579 = vsel %vm8016, %v11451, %v10229
      %v11581 = vsel %vm8016, %v11453, %v10231
      %v11583 = vsel %vm8016, %v11455, %v10233
      %v11585 = vsel %vm8145, %v11457, %v10238
      %v11587 = vsel %vm8145, %v11459, %v10240
      %v11589 = vsel %vm8145, %v11461, %v10242
      %v11591 = vsel %vm8145, %v11463, %v10244
      %v11593 = vsel %vm8145, %v11465, %v10246
      %v11595 = vsel %vm8145, %v11467, %v10248
      %v11597 = vsel %vm8145, %v11469, %v10250
      %v11599 = vsel %vm8145, %v11471, %v10252
      %v11601 = vsel %vm8145, %v11473, %v10254
      %v11603 = vsel %vm8145, %v11475, %v10256
      %v11605 = vsel %vm8145, %v11477, %v10258
      %v11607 = vsel %vm8145, %v11479, %v10260
      %v11609 = vsel %vm8145, %v11481, %v10262
      %v11611 = vsel %vm8145, %v11483, %v10264
      %v11613 = vsel %vm8145, %v11485, %v10266
      %v11615 = vsel %vm8145, %v11487, %v10268
      %v11617 = vsel %vm8145, %v11489, %v10270
      %v11619 = vsel %vm8145, %v11491, %v10272
      %v11621 = vsel %vm8145, %v11493, %v10274
      %v11623 = vsel %vm8145, %v11495, %v10276
      %v11625 = vsel %vm8145, %v11497, %v10278
      %v11627 = vsel %vm8145, %v11499, %v10280
      %v11629 = vsel %vm8145, %v11501, %v10282
      %v11631 = vsel %vm8145, %v11503, %v10284
      %v11633 = vsel %vm8145, %v11505, %v10286
      %v11635 = vsel %vm8145, %v11507, %v10288
      %v11637 = vsel %vm8145, %v11509, %v10290
      %v11639 = vsel %vm8145, %v11511, %v10292
      %v11641 = vsel %vm8145, %v11513, %v10294
      %v11643 = vsel %vm8145, %v11515, %v10296
      %v11645 = vsel %vm8145, %v11517, %v10298
      %v11647 = vsel %vm8145, %v11519, %v10300
      %v11649 = vsel %vm8145, %v11521, %v10302
      %v11651 = vsel %vm8145, %v11523, %v10304
      %v11653 = vsel %vm8145, %v11525, %v10306
      %v11655 = vsel %vm8145, %v11527, %v10308
      %v11657 = vsel %vm8145, %v11529, %v10310
      %v11659 = vsel %vm8145, %v11531, %v10312
      %v11661 = vsel %vm8145, %v11533, %v10314
      %v11663 = vsel %vm8145, %v11535, %v10316
      %v11665 = vsel %vm8145, %v11537, %v10318
      %v11667 = vsel %vm8145, %v11539, %v10320
      %v11669 = vsel %vm8145, %v11541, %v10322
      %v11671 = vsel %vm8145, %v11543, %v10324
      %v11673 = vsel %vm8145, %v11545, %v10326
      %v11675 = vsel %vm8145, %v11547, %v10328
      %v11677 = vsel %vm8145, %v11549, %v10330
      %v11679 = vsel %vm8145, %v11551, %v10332
      %v11681 = vsel %vm8145, %v11553, %v10334
      %v11683 = vsel %vm8145, %v11555, %v10336
      %v11685 = vsel %vm8145, %v11557, %v10338
      %v11687 = vsel %vm8145, %v11559, %v10340
      %v11689 = vsel %vm8145, %v11561, %v10342
      %v11691 = vsel %vm8145, %v11563, %v10344
      %v11693 = vsel %vm8145, %v11565, %v10346
      %v11695 = vsel %vm8145, %v11567, %v10348
      %v11697 = vsel %vm8145, %v11569, %v10350
      %v11699 = vsel %vm8145, %v11571, %v10352
      %v11701 = vsel %vm8145, %v11573, %v10354
      %v11703 = vsel %vm8145, %v11575, %v10356
      %v11705 = vsel %vm8145, %v11577, %v10358
      %v11707 = vsel %vm8145, %v11579, %v10360
      %v11709 = vsel %vm8145, %v11581, %v10362
      %v11711 = vsel %vm8145, %v11583, %v10364
      %v11713 = vsel %vm8274, %v11585, %v10369
      %v11715 = vsel %vm8274, %v11587, %v10371
      %v11717 = vsel %vm8274, %v11589, %v10373
      %v11719 = vsel %vm8274, %v11591, %v10375
      %v11721 = vsel %vm8274, %v11593, %v10377
      %v11723 = vsel %vm8274, %v11595, %v10379
      %v11725 = vsel %vm8274, %v11597, %v10381
      %v11727 = vsel %vm8274, %v11599, %v10383
      %v11729 = vsel %vm8274, %v11601, %v10385
      %v11731 = vsel %vm8274, %v11603, %v10387
      %v11733 = vsel %vm8274, %v11605, %v10389
      %v11735 = vsel %vm8274, %v11607, %v10391
      %v11737 = vsel %vm8274, %v11609, %v10393
      %v11739 = vsel %vm8274, %v11611, %v10395
      %v11741 = vsel %vm8274, %v11613, %v10397
      %v11743 = vsel %vm8274, %v11615, %v10399
      %v11745 = vsel %vm8274, %v11617, %v10401
      %v11747 = vsel %vm8274, %v11619, %v10403
      %v11749 = vsel %vm8274, %v11621, %v10405
      %v11751 = vsel %vm8274, %v11623, %v10407
      %v11753 = vsel %vm8274, %v11625, %v10409
      %v11755 = vsel %vm8274, %v11627, %v10411
      %v11757 = vsel %vm8274, %v11629, %v10413
      %v11759 = vsel %vm8274, %v11631, %v10415
      %v11761 = vsel %vm8274, %v11633, %v10417
      %v11763 = vsel %vm8274, %v11635, %v10419
      %v11765 = vsel %vm8274, %v11637, %v10421
      %v11767 = vsel %vm8274, %v11639, %v10423
      %v11769 = vsel %vm8274, %v11641, %v10425
      %v11771 = vsel %vm8274, %v11643, %v10427
      %v11773 = vsel %vm8274, %v11645, %v10429
      %v11775 = vsel %vm8274, %v11647, %v10431
      %v11777 = vsel %vm8274, %v11649, %v10433
      %v11779 = vsel %vm8274, %v11651, %v10435
      %v11781 = vsel %vm8274, %v11653, %v10437
      %v11783 = vsel %vm8274, %v11655, %v10439
      %v11785 = vsel %vm8274, %v11657, %v10441
      %v11787 = vsel %vm8274, %v11659, %v10443
      %v11789 = vsel %vm8274, %v11661, %v10445
      %v11791 = vsel %vm8274, %v11663, %v10447
      %v11793 = vsel %vm8274, %v11665, %v10449
      %v11795 = vsel %vm8274, %v11667, %v10451
      %v11797 = vsel %vm8274, %v11669, %v10453
      %v11799 = vsel %vm8274, %v11671, %v10455
      %v11801 = vsel %vm8274, %v11673, %v10457
      %v11803 = vsel %vm8274, %v11675, %v10459
      %v11805 = vsel %vm8274, %v11677, %v10461
      %v11807 = vsel %vm8274, %v11679, %v10463
      %v11809 = vsel %vm8274, %v11681, %v10465
      %v11811 = vsel %vm8274, %v11683, %v10467
      %v11813 = vsel %vm8274, %v11685, %v10469
      %v11815 = vsel %vm8274, %v11687, %v10471
      %v11817 = vsel %vm8274, %v11689, %v10473
      %v11819 = vsel %vm8274, %v11691, %v10475
      %v11821 = vsel %vm8274, %v11693, %v10477
      %v11823 = vsel %vm8274, %v11695, %v10479
      %v11825 = vsel %vm8274, %v11697, %v10481
      %v11827 = vsel %vm8274, %v11699, %v10483
      %v11829 = vsel %vm8274, %v11701, %v10485
      %v11831 = vsel %vm8274, %v11703, %v10487
      %v11833 = vsel %vm8274, %v11705, %v10489
      %v11835 = vsel %vm8274, %v11707, %v10491
      %v11837 = vsel %vm8274, %v11709, %v10493
      %v11839 = vsel %vm8274, %v11711, %v10495
      %11904 = vrot.lane.b32.xlu0 %v11713, 64
      %v11905 = vpop.permute.xlu0 %11904
      %11906 = vrot.lane.b32.xlu0 %v11715, 64
      %v11907 = vpop.permute.xlu0 %11906
      %11908 = vrot.lane.b32.xlu0 %v11717, 64
      %v11909 = vpop.permute.xlu0 %11908
      %11910 = vrot.lane.b32.xlu0 %v11719, 64
      %v11911 = vpop.permute.xlu0 %11910
      %11912 = vrot.lane.b32.xlu0 %v11721, 64
      %v11913 = vpop.permute.xlu0 %11912
      %11914 = vrot.lane.b32.xlu0 %v11723, 64
      %v11915 = vpop.permute.xlu0 %11914
      %11916 = vrot.lane.b32.xlu0 %v11725, 64
      %v11917 = vpop.permute.xlu0 %11916
      %11918 = vrot.lane.b32.xlu0 %v11727, 64
      %v11919 = vpop.permute.xlu0 %11918
      %11920 = vrot.lane.b32.xlu0 %v11729, 64
      %v11921 = vpop.permute.xlu0 %11920
      %11922 = vrot.lane.b32.xlu0 %v11731, 64
      %v11923 = vpop.permute.xlu0 %11922
      %11924 = vrot.lane.b32.xlu0 %v11733, 64
      %v11925 = vpop.permute.xlu0 %11924
      %11926 = vrot.lane.b32.xlu0 %v11735, 64
      %v11927 = vpop.permute.xlu0 %11926
      %11928 = vrot.lane.b32.xlu0 %v11737, 64
      %v11929 = vpop.permute.xlu0 %11928
      %11930 = vrot.lane.b32.xlu0 %v11739, 64
      %v11931 = vpop.permute.xlu0 %11930
      %11932 = vrot.lane.b32.xlu0 %v11741, 64
      %v11933 = vpop.permute.xlu0 %11932
      %11934 = vrot.lane.b32.xlu0 %v11743, 64
      %v11935 = vpop.permute.xlu0 %11934
      %11936 = vrot.lane.b32.xlu0 %v11745, 64
      %v11937 = vpop.permute.xlu0 %11936
      %11938 = vrot.lane.b32.xlu0 %v11747, 64
      %v11939 = vpop.permute.xlu0 %11938
      %11940 = vrot.lane.b32.xlu0 %v11749, 64
      %v11941 = vpop.permute.xlu0 %11940
      %11942 = vrot.lane.b32.xlu0 %v11751, 64
      %v11943 = vpop.permute.xlu0 %11942
      %11944 = vrot.lane.b32.xlu0 %v11753, 64
      %v11945 = vpop.permute.xlu0 %11944
      %11946 = vrot.lane.b32.xlu0 %v11755, 64
      %v11947 = vpop.permute.xlu0 %11946
      %11948 = vrot.lane.b32.xlu0 %v11757, 64
      %v11949 = vpop.permute.xlu0 %11948
      %11950 = vrot.lane.b32.xlu0 %v11759, 64
      %v11951 = vpop.permute.xlu0 %11950
      %11952 = vrot.lane.b32.xlu0 %v11761, 64
      %v11953 = vpop.permute.xlu0 %11952
      %11954 = vrot.lane.b32.xlu0 %v11763, 64
      %v11955 = vpop.permute.xlu0 %11954
      %11956 = vrot.lane.b32.xlu0 %v11765, 64
      %v11957 = vpop.permute.xlu0 %11956
      %11958 = vrot.lane.b32.xlu0 %v11767, 64
      %v11959 = vpop.permute.xlu0 %11958
      %11960 = vrot.lane.b32.xlu0 %v11769, 64
      %v11961 = vpop.permute.xlu0 %11960
      %11962 = vrot.lane.b32.xlu0 %v11771, 64
      %v11963 = vpop.permute.xlu0 %11962
      %11964 = vrot.lane.b32.xlu0 %v11773, 64
      %v11965 = vpop.permute.xlu0 %11964
      %11966 = vrot.lane.b32.xlu0 %v11775, 64
      %v11967 = vpop.permute.xlu0 %11966
      %11968 = vrot.lane.b32.xlu0 %v11777, 64
      %v11969 = vpop.permute.xlu0 %11968
      %11970 = vrot.lane.b32.xlu0 %v11779, 64
      %v11971 = vpop.permute.xlu0 %11970
      %11972 = vrot.lane.b32.xlu0 %v11781, 64
      %v11973 = vpop.permute.xlu0 %11972
      %11974 = vrot.lane.b32.xlu0 %v11783, 64
      %v11975 = vpop.permute.xlu0 %11974
      %11976 = vrot.lane.b32.xlu0 %v11785, 64
      %v11977 = vpop.permute.xlu0 %11976
      %11978 = vrot.lane.b32.xlu0 %v11787, 64
      %v11979 = vpop.permute.xlu0 %11978
      %11980 = vrot.lane.b32.xlu0 %v11789, 64
      %v11981 = vpop.permute.xlu0 %11980
      %11982 = vrot.lane.b32.xlu0 %v11791, 64
      %v11983 = vpop.permute.xlu0 %11982
      %11984 = vrot.lane.b32.xlu0 %v11793, 64
      %v11985 = vpop.permute.xlu0 %11984
      %11986 = vrot.lane.b32.xlu0 %v11795, 64
      %v11987 = vpop.permute.xlu0 %11986
      %11988 = vrot.lane.b32.xlu0 %v11797, 64
      %v11989 = vpop.permute.xlu0 %11988
      %11990 = vrot.lane.b32.xlu0 %v11799, 64
      %v11991 = vpop.permute.xlu0 %11990
      %11992 = vrot.lane.b32.xlu0 %v11801, 64
      %v11993 = vpop.permute.xlu0 %11992
      %11994 = vrot.lane.b32.xlu0 %v11803, 64
      %v11995 = vpop.permute.xlu0 %11994
      %11996 = vrot.lane.b32.xlu0 %v11805, 64
      %v11997 = vpop.permute.xlu0 %11996
      %11998 = vrot.lane.b32.xlu0 %v11807, 64
      %v11999 = vpop.permute.xlu0 %11998
      %12000 = vrot.lane.b32.xlu0 %v11809, 64
      %v12001 = vpop.permute.xlu0 %12000
      %12002 = vrot.lane.b32.xlu0 %v11811, 64
      %v12003 = vpop.permute.xlu0 %12002
      %12004 = vrot.lane.b32.xlu0 %v11813, 64
      %v12005 = vpop.permute.xlu0 %12004
      %12006 = vrot.lane.b32.xlu0 %v11815, 64
      %v12007 = vpop.permute.xlu0 %12006
      %12008 = vrot.lane.b32.xlu0 %v11817, 64
      %v12009 = vpop.permute.xlu0 %12008
      %12010 = vrot.lane.b32.xlu0 %v11819, 64
      %v12011 = vpop.permute.xlu0 %12010
      %12012 = vrot.lane.b32.xlu0 %v11821, 64
      %v12013 = vpop.permute.xlu0 %12012
      %12014 = vrot.lane.b32.xlu0 %v11823, 64
      %v12015 = vpop.permute.xlu0 %12014
      %12016 = vrot.lane.b32.xlu0 %v11825, 64
      %v12017 = vpop.permute.xlu0 %12016
      %12018 = vrot.lane.b32.xlu0 %v11827, 64
      %v12019 = vpop.permute.xlu0 %12018
      %12020 = vrot.lane.b32.xlu0 %v11829, 64
      %v12021 = vpop.permute.xlu0 %12020
      %12022 = vrot.lane.b32.xlu0 %v11831, 64
      %v12023 = vpop.permute.xlu0 %12022
      %12024 = vrot.lane.b32.xlu0 %v11833, 64
      %v12025 = vpop.permute.xlu0 %12024
      %12026 = vrot.lane.b32.xlu0 %v11835, 64
      %v12027 = vpop.permute.xlu0 %12026
      %12028 = vrot.lane.b32.xlu0 %v11837, 64
      %v12029 = vpop.permute.xlu0 %12028
      %12030 = vrot.lane.b32.xlu0 %v11839, 64
      %v12031 = vpop.permute.xlu0 %12030
      %vm12032 = vcmask 523264
      %v12034 = vsel %vm12032, %v8921, %v11905
      %v12036 = vsel %vm12032, %v8923, %v11907
      %v12038 = vsel %vm12032, %v8925, %v11909
      %v12040 = vsel %vm12032, %v8927, %v11911
      %v12042 = vsel %vm12032, %v8929, %v11913
      %v12044 = vsel %vm12032, %v8931, %v11915
      %v12046 = vsel %vm12032, %v8933, %v11917
      %v12048 = vsel %vm12032, %v8935, %v11919
      %v12050 = vsel %vm12032, %v8937, %v11921
      %v12052 = vsel %vm12032, %v8939, %v11923
      %v12054 = vsel %vm12032, %v8941, %v11925
      %v12056 = vsel %vm12032, %v8943, %v11927
      %v12058 = vsel %vm12032, %v8945, %v11929
      %v12060 = vsel %vm12032, %v8947, %v11931
      %v12062 = vsel %vm12032, %v8949, %v11933
      %v12064 = vsel %vm12032, %v8951, %v11935
      %v12066 = vsel %vm12032, %v8953, %v11937
      %v12068 = vsel %vm12032, %v8955, %v11939
      %v12070 = vsel %vm12032, %v8957, %v11941
      %v12072 = vsel %vm12032, %v8959, %v11943
      %v12074 = vsel %vm12032, %v8961, %v11945
      %v12076 = vsel %vm12032, %v8963, %v11947
      %v12078 = vsel %vm12032, %v8965, %v11949
      %v12080 = vsel %vm12032, %v8967, %v11951
      %v12082 = vsel %vm12032, %v8969, %v11953
      %v12084 = vsel %vm12032, %v8971, %v11955
      %v12086 = vsel %vm12032, %v8973, %v11957
      %v12088 = vsel %vm12032, %v8975, %v11959
      %v12090 = vsel %vm12032, %v8977, %v11961
      %v12092 = vsel %vm12032, %v8979, %v11963
      %v12094 = vsel %vm12032, %v8981, %v11965
      %v12096 = vsel %vm12032, %v8983, %v11967
      %v12098 = vsel %vm12032, %v8985, %v11969
      %v12100 = vsel %vm12032, %v8987, %v11971
      %v12102 = vsel %vm12032, %v8989, %v11973
      %v12104 = vsel %vm12032, %v8991, %v11975
      %v12106 = vsel %vm12032, %v8993, %v11977
      %v12108 = vsel %vm12032, %v8995, %v11979
      %v12110 = vsel %vm12032, %v8997, %v11981
      %v12112 = vsel %vm12032, %v8999, %v11983
      %v12114 = vsel %vm12032, %v9001, %v11985
      %v12116 = vsel %vm12032, %v9003, %v11987
      %v12118 = vsel %vm12032, %v9005, %v11989
      %v12120 = vsel %vm12032, %v9007, %v11991
      %v12122 = vsel %vm12032, %v9009, %v11993
      %v12124 = vsel %vm12032, %v9011, %v11995
      %v12126 = vsel %vm12032, %v9013, %v11997
      %v12128 = vsel %vm12032, %v9015, %v11999
      %v12130 = vsel %vm12032, %v9017, %v12001
      %v12132 = vsel %vm12032, %v9019, %v12003
      %v12134 = vsel %vm12032, %v9021, %v12005
      %v12136 = vsel %vm12032, %v9023, %v12007
      %v12138 = vsel %vm12032, %v9025, %v12009
      %v12140 = vsel %vm12032, %v9027, %v12011
      %v12142 = vsel %vm12032, %v9029, %v12013
      %v12144 = vsel %vm12032, %v9031, %v12015
      %v12146 = vsel %vm12032, %v9033, %v12017
      %v12148 = vsel %vm12032, %v9035, %v12019
      %v12150 = vsel %vm12032, %v9037, %v12021
      %v12152 = vsel %vm12032, %v9039, %v12023
      %v12154 = vsel %vm12032, %v9041, %v12025
      %v12156 = vsel %vm12032, %v9043, %v12027
      %v12158 = vsel %vm12032, %v9045, %v12029
      %v12160 = vsel %vm12032, %v9047, %v12031
      %v12161 = vld [vmem:[%s2] sm:$0xf]
      %v12162 = vld [vmem:[%s2 + $0x4] sm:$0xf]
      %v12163 = vld [vmem:[%s2 + $0x8] sm:$0xf]
      %v12164 = vld [vmem:[%s2 + $0xc] sm:$0xf]
      %v12165 = vld [vmem:[%s2 + $0x10] sm:$0xf]
      %v12166 = vld [vmem:[%s2 + $0x14] sm:$0xf]
      %v12167 = vld [vmem:[%s2 + $0x18] sm:$0xf]
      %v12168 = vld [vmem:[%s2 + $0x1c] sm:$0xf]
      %v12169 = vld [vmem:[%s2 + $0x20] sm:$0xf]
      %v12170 = vld [vmem:[%s2 + $0x24] sm:$0xf]
      %v12171 = vld [vmem:[%s2 + $0x28] sm:$0xf]
      %v12172 = vld [vmem:[%s2 + $0x2c] sm:$0xf]
      %v12173 = vld [vmem:[%s2 + $0x30] sm:$0xf]
      %v12174 = vld [vmem:[%s2 + $0x34] sm:$0x3]
      %v12175 = vld [vmem:[%s3] sm:$0x1]
      %v12177 = vperm.slane %v12175, 0
      %v12193 = vunpack.c.l.b16 %v12161
      %v12194 = vunpack.c.l.b16 %v12162
      %v12195 = vunpack.c.l.b16 %v12163
      %v12196 = vunpack.c.l.b16 %v12164
      %v12197 = vunpack.c.l.b16 %v12165
      %v12198 = vunpack.c.l.b16 %v12166
      %v12199 = vunpack.c.l.b16 %v12167
      %v12200 = vunpack.c.l.b16 %v12168
      %v12201 = vunpack.c.l.b16 %v12169
      %v12202 = vunpack.c.l.b16 %v12170
      %v12203 = vunpack.c.l.b16 %v12171
      %v12204 = vunpack.c.l.b16 %v12172
      %v12205 = vunpack.c.l.b16 %v12173
      %v12206 = vunpack.c.l.b16 %v12174
      %v12207 = vpack.c.b16 %v12194, %v12193
      %v12208 = vpack.c.b16 %v12196, %v12195
      %v12209 = vpack.c.b16 %v12198, %v12197
      %v12210 = vpack.c.b16 %v12200, %v12199
      %v12211 = vpack.c.b16 %v12202, %v12201
      %v12212 = vpack.c.b16 %v12204, %v12203
      %v12213 = vpack.c.b16 %v12206, %v12205
      %vm12220 = vcmask 883712
      %v12221 = vsel %vm12220, %v12034, 0
      %v12223 = vsel %vm12220, %v12036, 0
      %v12225 = vsel %vm12220, %v12038, 0
      %v12227 = vsel %vm12220, %v12040, 0
      %v12229 = vsel %vm12220, %v12042, 0
      %v12231 = vsel %vm12220, %v12044, 0
      %v12233 = vsel %vm12220, %v12046, 0
      %v12235 = vsel %vm12220, %v12048, 0
      %v12237 = vsel %vm12220, %v12050, 0
      %v12239 = vsel %vm12220, %v12052, 0
      %v12241 = vsel %vm12220, %v12054, 0
      %v12243 = vsel %vm12220, %v12056, 0
      %v12245 = vsel %vm12220, %v12058, 0
      %v12247 = vsel %vm12220, %v12060, 0
      %v12249 = vsel %vm12220, %v12062, 0
      %v12251 = vsel %vm12220, %v12064, 0
      %v12253 = vsel %vm12220, %v12066, 0
      %v12255 = vsel %vm12220, %v12068, 0
      %v12257 = vsel %vm12220, %v12070, 0
      %v12259 = vsel %vm12220, %v12072, 0
      %v12261 = vsel %vm12220, %v12074, 0
      %v12263 = vsel %vm12220, %v12076, 0
      %v12265 = vsel %vm12220, %v12078, 0
      %v12267 = vsel %vm12220, %v12080, 0
      %v12269 = vsel %vm12220, %v12082, 0
      %v12271 = vsel %vm12220, %v12084, 0
      %v12273 = vsel %vm12220, %v12086, 0
      %v12275 = vsel %vm12220, %v12088, 0
      %v12277 = vsel %vm12220, %v12090, 0
      %v12279 = vsel %vm12220, %v12092, 0
      %v12281 = vsel %vm12220, %v12094, 0
      %v12283 = vsel %vm12220, %v12096, 0
      %v12285 = vsel %vm12220, %v12098, 0
      %v12287 = vsel %vm12220, %v12100, 0
      %v12289 = vsel %vm12220, %v12102, 0
      %v12291 = vsel %vm12220, %v12104, 0
      %v12293 = vsel %vm12220, %v12106, 0
      %v12295 = vsel %vm12220, %v12108, 0
      %v12297 = vsel %vm12220, %v12110, 0
      %v12299 = vsel %vm12220, %v12112, 0
      %v12301 = vsel %vm12220, %v12114, 0
      %v12303 = vsel %vm12220, %v12116, 0
      %v12305 = vsel %vm12220, %v12118, 0
      %v12307 = vsel %vm12220, %v12120, 0
      %v12309 = vsel %vm12220, %v12122, 0
      %v12311 = vsel %vm12220, %v12124, 0
      %v12313 = vsel %vm12220, %v12126, 0
      %v12315 = vsel %vm12220, %v12128, 0
      %v12317 = vsel %vm12220, %v12130, 0
      %v12319 = vsel %vm12220, %v12132, 0
      %v12321 = vsel %vm12220, %v12134, 0
      %v12323 = vsel %vm12220, %v12136, 0
      %v12325 = vsel %vm12220, %v12138, 0
      %v12327 = vsel %vm12220, %v12140, 0
      %v12329 = vsel %vm12220, %v12142, 0
      %v12331 = vsel %vm12220, %v12144, 0
      %v12333 = vsel %vm12220, %v12146, 0
      %v12335 = vsel %vm12220, %v12148, 0
      %v12337 = vsel %vm12220, %v12150, 0
      %v12339 = vsel %vm12220, %v12152, 0
      %v12341 = vsel %vm12220, %v12154, 0
      %v12343 = vsel %vm12220, %v12156, 0
      %v12345 = vsel %vm12220, %v12158, 0
      %v12347 = vsel %vm12220, %v12160, 0
      %vm12349 = vcmask 1045504
      %v12351 = vsel %vm12349, %v12213, 0
      %12353 = vmatpush.bf16.msra.mxu0 0
      %12354 = vmatpush.bf16.msra.mxu0 %v12351
      %12355 = vmatpush.bf16.msra.mxu0 %v12212
      %12356 = vmatpush.bf16.msra.mxu0 %v12211
      %12357 = vmatpush.bf16.msra.mxu0 %v12210
      %12358 = vmatpush.bf16.msra.mxu0 %v12209
      %12359 = vmatpush.bf16.msra.mxu0 %v12208
      %12360 = vmatpush.bf16.msra.mxu0 %v12207
      %12361 = vmatmul.bf16.gmra.mxu0 %v12221
      %v12362 = vpop.f32.mrf.mxu0
      %v12363 = vadd.f32 %v12177, %v12362
      %v12364 = vpop.f32.mrf.mxu0
      %v12365 = vadd.f32 %v12177, %v12364
      %12366 = vmatmul.bf16.gmra.mxu0 %v12223
      %v12367 = vpop.f32.mrf.mxu0
      %v12368 = vadd.f32 %v12177, %v12367
      %v12369 = vpop.f32.mrf.mxu0
      %v12370 = vadd.f32 %v12177, %v12369
      %12371 = vmatmul.bf16.gmra.mxu0 %v12225
      %v12372 = vpop.f32.mrf.mxu0
      %v12373 = vadd.f32 %v12177, %v12372
      %v12374 = vpop.f32.mrf.mxu0
      %v12375 = vadd.f32 %v12177, %v12374
      %12376 = vmatmul.bf16.gmra.mxu0 %v12227
      %v12377 = vpop.f32.mrf.mxu0
      %v12378 = vadd.f32 %v12177, %v12377
      %v12379 = vpop.f32.mrf.mxu0
      %v12380 = vadd.f32 %v12177, %v12379
      %12381 = vmatmul.bf16.gmra.mxu0 %v12229
      %v12382 = vpop.f32.mrf.mxu0
      %v12383 = vadd.f32 %v12177, %v12382
      %v12384 = vpop.f32.mrf.mxu0
      %v12385 = vadd.f32 %v12177, %v12384
      %12386 = vmatmul.bf16.gmra.mxu0 %v12231
      %v12387 = vpop.f32.mrf.mxu0
      %v12388 = vadd.f32 %v12177, %v12387
      %v12389 = vpop.f32.mrf.mxu0
      %v12390 = vadd.f32 %v12177, %v12389
      %12391 = vmatmul.bf16.gmra.mxu0 %v12233
      %v12392 = vpop.f32.mrf.mxu0
      %v12393 = vadd.f32 %v12177, %v12392
      %v12394 = vpop.f32.mrf.mxu0
      %v12395 = vadd.f32 %v12177, %v12394
      %12396 = vmatmul.bf16.gmra.mxu0 %v12235
      %v12397 = vpop.f32.mrf.mxu0
      %v12398 = vadd.f32 %v12177, %v12397
      %v12399 = vpop.f32.mrf.mxu0
      %v12400 = vadd.f32 %v12177, %v12399
      %12401 = vmatmul.bf16.gmra.mxu0 %v12237
      %v12402 = vpop.f32.mrf.mxu0
      %v12403 = vadd.f32 %v12177, %v12402
      %v12404 = vpop.f32.mrf.mxu0
      %v12405 = vadd.f32 %v12177, %v12404
      %12406 = vmatmul.bf16.gmra.mxu0 %v12239
      %v12407 = vpop.f32.mrf.mxu0
      %v12408 = vadd.f32 %v12177, %v12407
      %v12409 = vpop.f32.mrf.mxu0
      %v12410 = vadd.f32 %v12177, %v12409
      %12411 = vmatmul.bf16.gmra.mxu0 %v12241
      %v12412 = vpop.f32.mrf.mxu0
      %v12413 = vadd.f32 %v12177, %v12412
      %v12414 = vpop.f32.mrf.mxu0
      %v12415 = vadd.f32 %v12177, %v12414
      %12416 = vmatmul.bf16.gmra.mxu0 %v12243
      %v12417 = vpop.f32.mrf.mxu0
      %v12418 = vadd.f32 %v12177, %v12417
      %v12419 = vpop.f32.mrf.mxu0
      %v12420 = vadd.f32 %v12177, %v12419
      %12421 = vmatmul.bf16.gmra.mxu0 %v12245
      %v12422 = vpop.f32.mrf.mxu0
      %v12423 = vadd.f32 %v12177, %v12422
      %v12424 = vpop.f32.mrf.mxu0
      %v12425 = vadd.f32 %v12177, %v12424
      %12426 = vmatmul.bf16.gmra.mxu0 %v12247
      %v12427 = vpop.f32.mrf.mxu0
      %v12428 = vadd.f32 %v12177, %v12427
      %v12429 = vpop.f32.mrf.mxu0
      %v12430 = vadd.f32 %v12177, %v12429
      %12431 = vmatmul.bf16.gmra.mxu0 %v12249
      %v12432 = vpop.f32.mrf.mxu0
      %v12433 = vadd.f32 %v12177, %v12432
      %v12434 = vpop.f32.mrf.mxu0
      %v12435 = vadd.f32 %v12177, %v12434
      %12436 = vmatmul.bf16.gmra.mxu0 %v12251
      %v12437 = vpop.f32.mrf.mxu0
      %v12438 = vadd.f32 %v12177, %v12437
      %v12439 = vpop.f32.mrf.mxu0
      %v12440 = vadd.f32 %v12177, %v12439
      %12441 = vmatmul.bf16.gmra.mxu0 %v12253
      %v12442 = vpop.f32.mrf.mxu0
      %v12443 = vadd.f32 %v12177, %v12442
      %v12444 = vpop.f32.mrf.mxu0
      %v12445 = vadd.f32 %v12177, %v12444
      %12446 = vmatmul.bf16.gmra.mxu0 %v12255
      %v12447 = vpop.f32.mrf.mxu0
      %v12448 = vadd.f32 %v12177, %v12447
      %v12449 = vpop.f32.mrf.mxu0
      %v12450 = vadd.f32 %v12177, %v12449
      %12451 = vmatmul.bf16.gmra.mxu0 %v12257
      %v12452 = vpop.f32.mrf.mxu0
      %v12453 = vadd.f32 %v12177, %v12452
      %v12454 = vpop.f32.mrf.mxu0
      %v12455 = vadd.f32 %v12177, %v12454
      %12456 = vmatmul.bf16.gmra.mxu0 %v12259
      %v12457 = vpop.f32.mrf.mxu0
      %v12458 = vadd.f32 %v12177, %v12457
      %v12459 = vpop.f32.mrf.mxu0
      %v12460 = vadd.f32 %v12177, %v12459
      %12461 = vmatmul.bf16.gmra.mxu0 %v12261
      %v12462 = vpop.f32.mrf.mxu0
      %v12463 = vadd.f32 %v12177, %v12462
      %v12464 = vpop.f32.mrf.mxu0
      %v12465 = vadd.f32 %v12177, %v12464
      %12466 = vmatmul.bf16.gmra.mxu0 %v12263
      %v12467 = vpop.f32.mrf.mxu0
      %v12468 = vadd.f32 %v12177, %v12467
      %v12469 = vpop.f32.mrf.mxu0
      %v12470 = vadd.f32 %v12177, %v12469
      %12471 = vmatmul.bf16.gmra.mxu0 %v12265
      %v12472 = vpop.f32.mrf.mxu0
      %v12473 = vadd.f32 %v12177, %v12472
      %v12474 = vpop.f32.mrf.mxu0
      %v12475 = vadd.f32 %v12177, %v12474
      %12476 = vmatmul.bf16.gmra.mxu0 %v12267
      %v12477 = vpop.f32.mrf.mxu0
      %v12478 = vadd.f32 %v12177, %v12477
      %v12479 = vpop.f32.mrf.mxu0
      %v12480 = vadd.f32 %v12177, %v12479
      %12481 = vmatmul.bf16.gmra.mxu0 %v12269
      %v12482 = vpop.f32.mrf.mxu0
      %v12483 = vadd.f32 %v12177, %v12482
      %v12484 = vpop.f32.mrf.mxu0
      %v12485 = vadd.f32 %v12177, %v12484
      %12486 = vmatmul.bf16.gmra.mxu0 %v12271
      %v12487 = vpop.f32.mrf.mxu0
      %v12488 = vadd.f32 %v12177, %v12487
      %v12489 = vpop.f32.mrf.mxu0
      %v12490 = vadd.f32 %v12177, %v12489
      %12491 = vmatmul.bf16.gmra.mxu0 %v12273
      %v12492 = vpop.f32.mrf.mxu0
      %v12493 = vadd.f32 %v12177, %v12492
      %v12494 = vpop.f32.mrf.mxu0
      %v12495 = vadd.f32 %v12177, %v12494
      %12496 = vmatmul.bf16.gmra.mxu0 %v12275
      %v12497 = vpop.f32.mrf.mxu0
      %v12498 = vadd.f32 %v12177, %v12497
      %v12499 = vpop.f32.mrf.mxu0
      %v12500 = vadd.f32 %v12177, %v12499
      %12501 = vmatmul.bf16.gmra.mxu0 %v12277
      %v12502 = vpop.f32.mrf.mxu0
      %v12503 = vadd.f32 %v12177, %v12502
      %v12504 = vpop.f32.mrf.mxu0
      %v12505 = vadd.f32 %v12177, %v12504
      %12506 = vmatmul.bf16.gmra.mxu0 %v12279
      %v12507 = vpop.f32.mrf.mxu0
      %v12508 = vadd.f32 %v12177, %v12507
      %v12509 = vpop.f32.mrf.mxu0
      %v12510 = vadd.f32 %v12177, %v12509
      %12511 = vmatmul.bf16.gmra.mxu0 %v12281
      %v12512 = vpop.f32.mrf.mxu0
      %v12513 = vadd.f32 %v12177, %v12512
      %v12514 = vpop.f32.mrf.mxu0
      %v12515 = vadd.f32 %v12177, %v12514
      %12516 = vmatmul.bf16.gmra.mxu0 %v12283
      %v12517 = vpop.f32.mrf.mxu0
      %v12518 = vadd.f32 %v12177, %v12517
      %v12519 = vpop.f32.mrf.mxu0
      %v12520 = vadd.f32 %v12177, %v12519
      %12521 = vmatmul.bf16.gmra.mxu0 %v12285
      %v12522 = vpop.f32.mrf.mxu0
      %v12523 = vadd.f32 %v12177, %v12522
      %v12524 = vpop.f32.mrf.mxu0
      %v12525 = vadd.f32 %v12177, %v12524
      %12526 = vmatmul.bf16.gmra.mxu0 %v12287
      %v12527 = vpop.f32.mrf.mxu0
      %v12528 = vadd.f32 %v12177, %v12527
      %v12529 = vpop.f32.mrf.mxu0
      %v12530 = vadd.f32 %v12177, %v12529
      %12531 = vmatmul.bf16.gmra.mxu0 %v12289
      %v12532 = vpop.f32.mrf.mxu0
      %v12533 = vadd.f32 %v12177, %v12532
      %v12534 = vpop.f32.mrf.mxu0
      %v12535 = vadd.f32 %v12177, %v12534
      %12536 = vmatmul.bf16.gmra.mxu0 %v12291
      %v12537 = vpop.f32.mrf.mxu0
      %v12538 = vadd.f32 %v12177, %v12537
      %v12539 = vpop.f32.mrf.mxu0
      %v12540 = vadd.f32 %v12177, %v12539
      %12541 = vmatmul.bf16.gmra.mxu0 %v12293
      %v12542 = vpop.f32.mrf.mxu0
      %v12543 = vadd.f32 %v12177, %v12542
      %v12544 = vpop.f32.mrf.mxu0
      %v12545 = vadd.f32 %v12177, %v12544
      %12546 = vmatmul.bf16.gmra.mxu0 %v12295
      %v12547 = vpop.f32.mrf.mxu0
      %v12548 = vadd.f32 %v12177, %v12547
      %v12549 = vpop.f32.mrf.mxu0
      %v12550 = vadd.f32 %v12177, %v12549
      %12551 = vmatmul.bf16.gmra.mxu0 %v12297
      %v12552 = vpop.f32.mrf.mxu0
      %v12553 = vadd.f32 %v12177, %v12552
      %v12554 = vpop.f32.mrf.mxu0
      %v12555 = vadd.f32 %v12177, %v12554
      %12556 = vmatmul.bf16.gmra.mxu0 %v12299
      %v12557 = vpop.f32.mrf.mxu0
      %v12558 = vadd.f32 %v12177, %v12557
      %v12559 = vpop.f32.mrf.mxu0
      %v12560 = vadd.f32 %v12177, %v12559
      %12561 = vmatmul.bf16.gmra.mxu0 %v12301
      %v12562 = vpop.f32.mrf.mxu0
      %v12563 = vadd.f32 %v12177, %v12562
      %v12564 = vpop.f32.mrf.mxu0
      %v12565 = vadd.f32 %v12177, %v12564
      %12566 = vmatmul.bf16.gmra.mxu0 %v12303
      %v12567 = vpop.f32.mrf.mxu0
      %v12568 = vadd.f32 %v12177, %v12567
      %v12569 = vpop.f32.mrf.mxu0
      %v12570 = vadd.f32 %v12177, %v12569
      %12571 = vmatmul.bf16.gmra.mxu0 %v12305
      %v12572 = vpop.f32.mrf.mxu0
      %v12573 = vadd.f32 %v12177, %v12572
      %v12574 = vpop.f32.mrf.mxu0
      %v12575 = vadd.f32 %v12177, %v12574
      %12576 = vmatmul.bf16.gmra.mxu0 %v12307
      %v12577 = vpop.f32.mrf.mxu0
      %v12578 = vadd.f32 %v12177, %v12577
      %v12579 = vpop.f32.mrf.mxu0
      %v12580 = vadd.f32 %v12177, %v12579
      %12581 = vmatmul.bf16.gmra.mxu0 %v12309
      %v12582 = vpop.f32.mrf.mxu0
      %v12583 = vadd.f32 %v12177, %v12582
      %v12584 = vpop.f32.mrf.mxu0
      %v12585 = vadd.f32 %v12177, %v12584
      %12586 = vmatmul.bf16.gmra.mxu0 %v12311
      %v12587 = vpop.f32.mrf.mxu0
      %v12588 = vadd.f32 %v12177, %v12587
      %v12589 = vpop.f32.mrf.mxu0
      %v12590 = vadd.f32 %v12177, %v12589
      %12591 = vmatmul.bf16.gmra.mxu0 %v12313
      %v12592 = vpop.f32.mrf.mxu0
      %v12593 = vadd.f32 %v12177, %v12592
      %v12594 = vpop.f32.mrf.mxu0
      %v12595 = vadd.f32 %v12177, %v12594
      %12596 = vmatmul.bf16.gmra.mxu0 %v12315
      %v12597 = vpop.f32.mrf.mxu0
      %v12598 = vadd.f32 %v12177, %v12597
      %v12599 = vpop.f32.mrf.mxu0
      %v12600 = vadd.f32 %v12177, %v12599
      %12601 = vmatmul.bf16.gmra.mxu0 %v12317
      %v12602 = vpop.f32.mrf.mxu0
      %v12603 = vadd.f32 %v12177, %v12602
      %v12604 = vpop.f32.mrf.mxu0
      %v12605 = vadd.f32 %v12177, %v12604
      %12606 = vmatmul.bf16.gmra.mxu0 %v12319
      %v12607 = vpop.f32.mrf.mxu0
      %v12608 = vadd.f32 %v12177, %v12607
      %v12609 = vpop.f32.mrf.mxu0
      %v12610 = vadd.f32 %v12177, %v12609
      %12611 = vmatmul.bf16.gmra.mxu0 %v12321
      %v12612 = vpop.f32.mrf.mxu0
      %v12613 = vadd.f32 %v12177, %v12612
      %v12614 = vpop.f32.mrf.mxu0
      %v12615 = vadd.f32 %v12177, %v12614
      %12616 = vmatmul.bf16.gmra.mxu0 %v12323
      %v12617 = vpop.f32.mrf.mxu0
      %v12618 = vadd.f32 %v12177, %v12617
      %v12619 = vpop.f32.mrf.mxu0
      %v12620 = vadd.f32 %v12177, %v12619
      %12621 = vmatmul.bf16.gmra.mxu0 %v12325
      %v12622 = vpop.f32.mrf.mxu0
      %v12623 = vadd.f32 %v12177, %v12622
      %v12624 = vpop.f32.mrf.mxu0
      %v12625 = vadd.f32 %v12177, %v12624
      %12626 = vmatmul.bf16.gmra.mxu0 %v12327
      %v12627 = vpop.f32.mrf.mxu0
      %v12628 = vadd.f32 %v12177, %v12627
      %v12629 = vpop.f32.mrf.mxu0
      %v12630 = vadd.f32 %v12177, %v12629
      %12631 = vmatmul.bf16.gmra.mxu0 %v12329
      %v12632 = vpop.f32.mrf.mxu0
      %v12633 = vadd.f32 %v12177, %v12632
      %v12634 = vpop.f32.mrf.mxu0
      %v12635 = vadd.f32 %v12177, %v12634
      %12636 = vmatmul.bf16.gmra.mxu0 %v12331
      %v12637 = vpop.f32.mrf.mxu0
      %v12638 = vadd.f32 %v12177, %v12637
      %v12639 = vpop.f32.mrf.mxu0
      %v12640 = vadd.f32 %v12177, %v12639
      %12641 = vmatmul.bf16.gmra.mxu0 %v12333
      %v12642 = vpop.f32.mrf.mxu0
      %v12643 = vadd.f32 %v12177, %v12642
      %v12644 = vpop.f32.mrf.mxu0
      %v12645 = vadd.f32 %v12177, %v12644
      %12646 = vmatmul.bf16.gmra.mxu0 %v12335
      %v12647 = vpop.f32.mrf.mxu0
      %v12648 = vadd.f32 %v12177, %v12647
      %v12649 = vpop.f32.mrf.mxu0
      %v12650 = vadd.f32 %v12177, %v12649
      %12651 = vmatmul.bf16.gmra.mxu0 %v12337
      %v12652 = vpop.f32.mrf.mxu0
      %v12653 = vadd.f32 %v12177, %v12652
      %v12654 = vpop.f32.mrf.mxu0
      %v12655 = vadd.f32 %v12177, %v12654
      %12656 = vmatmul.bf16.gmra.mxu0 %v12339
      %v12657 = vpop.f32.mrf.mxu0
      %v12658 = vadd.f32 %v12177, %v12657
      %v12659 = vpop.f32.mrf.mxu0
      %v12660 = vadd.f32 %v12177, %v12659
      %12661 = vmatmul.bf16.gmra.mxu0 %v12341
      %v12662 = vpop.f32.mrf.mxu0
      %v12663 = vadd.f32 %v12177, %v12662
      %v12664 = vpop.f32.mrf.mxu0
      %v12665 = vadd.f32 %v12177, %v12664
      %12666 = vmatmul.bf16.gmra.mxu0 %v12343
      %v12667 = vpop.f32.mrf.mxu0
      %v12668 = vadd.f32 %v12177, %v12667
      %v12669 = vpop.f32.mrf.mxu0
      %v12670 = vadd.f32 %v12177, %v12669
      %12671 = vmatmul.bf16.gmra.mxu0 %v12345
      %v12672 = vpop.f32.mrf.mxu0
      %v12673 = vadd.f32 %v12177, %v12672
      %v12674 = vpop.f32.mrf.mxu0
      %v12675 = vadd.f32 %v12177, %v12674
      %12676 = vmatmul.bf16.gmra.mxu0 %v12347
      %v12677 = vpop.f32.mrf.mxu0
      %v12678 = vadd.f32 %v12177, %v12677
      %v12679 = vpop.f32.mrf.mxu0
      %v12680 = vadd.f32 %v12177, %v12679
      %12681 = vdwg.mxu0
      %12682 = vst.msk [vmem:[%s321] sm:$0xff] %vm8016, %v12363
      %12683 = vst.msk [vmem:[%s321 + $0x8] sm:$0xff] %vm8016, %v12365
      %12684 = vst.msk [vmem:[%s321 + $0x10] sm:$0xff] %vm8016, %v12368
      %12685 = vst.msk [vmem:[%s321 + $0x18] sm:$0xff] %vm8016, %v12370
      %12686 = vst.msk [vmem:[%s321 + $0x20] sm:$0xff] %vm8016, %v12373
      %12687 = vst.msk [vmem:[%s321 + $0x28] sm:$0xff] %vm8016, %v12375
      %12688 = vst.msk [vmem:[%s321 + $0x30] sm:$0xff] %vm8016, %v12378
      %12689 = vst.msk [vmem:[%s321 + $0x38] sm:$0xff] %vm8016, %v12380
      %12690 = vst.msk [vmem:[%s321 + $0x40] sm:$0xff] %vm8016, %v12383
      %12691 = vst.msk [vmem:[%s321 + $0x48] sm:$0xff] %vm8016, %v12385
      %12692 = vst.msk [vmem:[%s321 + $0x50] sm:$0xff] %vm8016, %v12388
      %12693 = vst.msk [vmem:[%s321 + $0x58] sm:$0xff] %vm8016, %v12390
      %12694 = vst.msk [vmem:[%s321 + $0x60] sm:$0xff] %vm8016, %v12393
      %12695 = vst.msk [vmem:[%s321 + $0x68] sm:$0xff] %vm8016, %v12395
      %12696 = vst.msk [vmem:[%s321 + $0x70] sm:$0xff] %vm8016, %v12398
      %12697 = vst.msk [vmem:[%s321 + $0x78] sm:$0xff] %vm8016, %v12400
      %12698 = vst.msk [vmem:[%s321 + $0x80] sm:$0xff] %vm8016, %v12403
      %12699 = vst.msk [vmem:[%s321 + $0x88] sm:$0xff] %vm8016, %v12405
      %12700 = vst.msk [vmem:[%s321 + $0x90] sm:$0xff] %vm8016, %v12408
      %12701 = vst.msk [vmem:[%s321 + $0x98] sm:$0xff] %vm8016, %v12410
      %12702 = vst.msk [vmem:[%s321 + $0xa0] sm:$0xff] %vm8016, %v12413
      %12703 = vst.msk [vmem:[%s321 + $0xa8] sm:$0xff] %vm8016, %v12415
      %12704 = vst.msk [vmem:[%s321 + $0xb0] sm:$0xff] %vm8016, %v12418
      %12705 = vst.msk [vmem:[%s321 + $0xb8] sm:$0xff] %vm8016, %v12420
      %12706 = vst.msk [vmem:[%s321 + $0xc0] sm:$0xff] %vm8016, %v12423
      %12707 = vst.msk [vmem:[%s321 + $0xc8] sm:$0xff] %vm8016, %v12425
      %12708 = vst.msk [vmem:[%s321 + $0xd0] sm:$0xff] %vm8016, %v12428
      %12709 = vst.msk [vmem:[%s321 + $0xd8] sm:$0xff] %vm8016, %v12430
      %12710 = vst.msk [vmem:[%s321 + $0xe0] sm:$0xff] %vm8016, %v12433
      %12711 = vst.msk [vmem:[%s321 + $0xe8] sm:$0xff] %vm8016, %v12435
      %12712 = vst.msk [vmem:[%s321 + $0xf0] sm:$0xff] %vm8016, %v12438
      %12713 = vst.msk [vmem:[%s321 + $0xf8] sm:$0xff] %vm8016, %v12440
      %12714 = vst.msk [vmem:[%s321 + $0x100] sm:$0xff] %vm8016, %v12443
      %12715 = vst.msk [vmem:[%s321 + $0x108] sm:$0xff] %vm8016, %v12445
      %12716 = vst.msk [vmem:[%s321 + $0x110] sm:$0xff] %vm8016, %v12448
      %12717 = vst.msk [vmem:[%s321 + $0x118] sm:$0xff] %vm8016, %v12450
      %12718 = vst.msk [vmem:[%s321 + $0x120] sm:$0xff] %vm8016, %v12453
      %12719 = vst.msk [vmem:[%s321 + $0x128] sm:$0xff] %vm8016, %v12455
      %12720 = vst.msk [vmem:[%s321 + $0x130] sm:$0xff] %vm8016, %v12458
      %12721 = vst.msk [vmem:[%s321 + $0x138] sm:$0xff] %vm8016, %v12460
      %12722 = vst.msk [vmem:[%s321 + $0x140] sm:$0xff] %vm8016, %v12463
      %12723 = vst.msk [vmem:[%s321 + $0x148] sm:$0xff] %vm8016, %v12465
      %12724 = vst.msk [vmem:[%s321 + $0x150] sm:$0xff] %vm8016, %v12468
      %12725 = vst.msk [vmem:[%s321 + $0x158] sm:$0xff] %vm8016, %v12470
      %12726 = vst.msk [vmem:[%s321 + $0x160] sm:$0xff] %vm8016, %v12473
      %12727 = vst.msk [vmem:[%s321 + $0x168] sm:$0xff] %vm8016, %v12475
      %12728 = vst.msk [vmem:[%s321 + $0x170] sm:$0xff] %vm8016, %v12478
      %12729 = vst.msk [vmem:[%s321 + $0x178] sm:$0xff] %vm8016, %v12480
      %12730 = vst.msk [vmem:[%s321 + $0x180] sm:$0xff] %vm8016, %v12483
      %12731 = vst.msk [vmem:[%s321 + $0x188] sm:$0xff] %vm8016, %v12485
      %12732 = vst.msk [vmem:[%s321 + $0x190] sm:$0xff] %vm8016, %v12488
      %12733 = vst.msk [vmem:[%s321 + $0x198] sm:$0xff] %vm8016, %v12490
      %12734 = vst.msk [vmem:[%s321 + $0x1a0] sm:$0xff] %vm8016, %v12493
      %12735 = vst.msk [vmem:[%s321 + $0x1a8] sm:$0xff] %vm8016, %v12495
      %12736 = vst.msk [vmem:[%s321 + $0x1b0] sm:$0xff] %vm8016, %v12498
      %12737 = vst.msk [vmem:[%s321 + $0x1b8] sm:$0xff] %vm8016, %v12500
      %12738 = vst.msk [vmem:[%s321 + $0x1c0] sm:$0xff] %vm8016, %v12503
      %12739 = vst.msk [vmem:[%s321 + $0x1c8] sm:$0xff] %vm8016, %v12505
      %12740 = vst.msk [vmem:[%s321 + $0x1d0] sm:$0xff] %vm8016, %v12508
      %12741 = vst.msk [vmem:[%s321 + $0x1d8] sm:$0xff] %vm8016, %v12510
      %12742 = vst.msk [vmem:[%s321 + $0x1e0] sm:$0xff] %vm8016, %v12513
      %12743 = vst.msk [vmem:[%s321 + $0x1e8] sm:$0xff] %vm8016, %v12515
      %12744 = vst.msk [vmem:[%s321 + $0x1f0] sm:$0xff] %vm8016, %v12518
      %12745 = vst.msk [vmem:[%s321 + $0x1f8] sm:$0xff] %vm8016, %v12520
      %12746 = vst.msk [vmem:[%s321 + $0x200] sm:$0xff] %vm8016, %v12523
      %12747 = vst.msk [vmem:[%s321 + $0x208] sm:$0xff] %vm8016, %v12525
      %12748 = vst.msk [vmem:[%s321 + $0x210] sm:$0xff] %vm8016, %v12528
      %12749 = vst.msk [vmem:[%s321 + $0x218] sm:$0xff] %vm8016, %v12530
      %12750 = vst.msk [vmem:[%s321 + $0x220] sm:$0xff] %vm8016, %v12533
      %12751 = vst.msk [vmem:[%s321 + $0x228] sm:$0xff] %vm8016, %v12535
      %12752 = vst.msk [vmem:[%s321 + $0x230] sm:$0xff] %vm8016, %v12538
      %12753 = vst.msk [vmem:[%s321 + $0x238] sm:$0xff] %vm8016, %v12540
      %12754 = vst.msk [vmem:[%s321 + $0x240] sm:$0xff] %vm8016, %v12543
      %12755 = vst.msk [vmem:[%s321 + $0x248] sm:$0xff] %vm8016, %v12545
      %12756 = vst.msk [vmem:[%s321 + $0x250] sm:$0xff] %vm8016, %v12548
      %12757 = vst.msk [vmem:[%s321 + $0x258] sm:$0xff] %vm8016, %v12550
      %12758 = vst.msk [vmem:[%s321 + $0x260] sm:$0xff] %vm8016, %v12553
      %12759 = vst.msk [vmem:[%s321 + $0x268] sm:$0xff] %vm8016, %v12555
      %12760 = vst.msk [vmem:[%s321 + $0x270] sm:$0xff] %vm8016, %v12558
      %12761 = vst.msk [vmem:[%s321 + $0x278] sm:$0xff] %vm8016, %v12560
      %12762 = vst.msk [vmem:[%s321 + $0x280] sm:$0xff] %vm8016, %v12563
      %12763 = vst.msk [vmem:[%s321 + $0x288] sm:$0xff] %vm8016, %v12565
      %12764 = vst.msk [vmem:[%s321 + $0x290] sm:$0xff] %vm8016, %v12568
      %12765 = vst.msk [vmem:[%s321 + $0x298] sm:$0xff] %vm8016, %v12570
      %12766 = vst.msk [vmem:[%s321 + $0x2a0] sm:$0xff] %vm8016, %v12573
      %12767 = vst.msk [vmem:[%s321 + $0x2a8] sm:$0xff] %vm8016, %v12575
      %12768 = vst.msk [vmem:[%s321 + $0x2b0] sm:$0xff] %vm8016, %v12578
      %12769 = vst.msk [vmem:[%s321 + $0x2b8] sm:$0xff] %vm8016, %v12580
      %12770 = vst.msk [vmem:[%s321 + $0x2c0] sm:$0xff] %vm8016, %v12583
      %12771 = vst.msk [vmem:[%s321 + $0x2c8] sm:$0xff] %vm8016, %v12585
      %12772 = vst.msk [vmem:[%s321 + $0x2d0] sm:$0xff] %vm8016, %v12588
      %12773 = vst.msk [vmem:[%s321 + $0x2d8] sm:$0xff] %vm8016, %v12590
      %12774 = vst.msk [vmem:[%s321 + $0x2e0] sm:$0xff] %vm8016, %v12593
      %12775 = vst.msk [vmem:[%s321 + $0x2e8] sm:$0xff] %vm8016, %v12595
      %12776 = vst.msk [vmem:[%s321 + $0x2f0] sm:$0xff] %vm8016, %v12598
      %12777 = vst.msk [vmem:[%s321 + $0x2f8] sm:$0xff] %vm8016, %v12600
      %12778 = vst.msk [vmem:[%s321 + $0x300] sm:$0xff] %vm8016, %v12603
      %12779 = vst.msk [vmem:[%s321 + $0x308] sm:$0xff] %vm8016, %v12605
      %12780 = vst.msk [vmem:[%s321 + $0x310] sm:$0xff] %vm8016, %v12608
      %12781 = vst.msk [vmem:[%s321 + $0x318] sm:$0xff] %vm8016, %v12610
      %12782 = vst.msk [vmem:[%s321 + $0x320] sm:$0xff] %vm8016, %v12613
      %12783 = vst.msk [vmem:[%s321 + $0x328] sm:$0xff] %vm8016, %v12615
      %12784 = vst.msk [vmem:[%s321 + $0x330] sm:$0xff] %vm8016, %v12618
      %12785 = vst.msk [vmem:[%s321 + $0x338] sm:$0xff] %vm8016, %v12620
      %12786 = vst.msk [vmem:[%s321 + $0x340] sm:$0xff] %vm8016, %v12623
      %12787 = vst.msk [vmem:[%s321 + $0x348] sm:$0xff] %vm8016, %v12625
      %12788 = vst.msk [vmem:[%s321 + $0x350] sm:$0xff] %vm8016, %v12628
      %12789 = vst.msk [vmem:[%s321 + $0x358] sm:$0xff] %vm8016, %v12630
      %12790 = vst.msk [vmem:[%s321 + $0x360] sm:$0xff] %vm8016, %v12633
      %12791 = vst.msk [vmem:[%s321 + $0x368] sm:$0xff] %vm8016, %v12635
      %12792 = vst.msk [vmem:[%s321 + $0x370] sm:$0xff] %vm8016, %v12638
      %12793 = vst.msk [vmem:[%s321 + $0x378] sm:$0xff] %vm8016, %v12640
      %12794 = vst.msk [vmem:[%s321 + $0x380] sm:$0xff] %vm8016, %v12643
      %12795 = vst.msk [vmem:[%s321 + $0x388] sm:$0xff] %vm8016, %v12645
      %12796 = vst.msk [vmem:[%s321 + $0x390] sm:$0xff] %vm8016, %v12648
      %12797 = vst.msk [vmem:[%s321 + $0x398] sm:$0xff] %vm8016, %v12650
      %12798 = vst.msk [vmem:[%s321 + $0x3a0] sm:$0xff] %vm8016, %v12653
      %12799 = vst.msk [vmem:[%s321 + $0x3a8] sm:$0xff] %vm8016, %v12655
      %12800 = vst.msk [vmem:[%s321 + $0x3b0] sm:$0xff] %vm8016, %v12658
      %12801 = vst.msk [vmem:[%s321 + $0x3b8] sm:$0xff] %vm8016, %v12660
      %12802 = vst.msk [vmem:[%s321 + $0x3c0] sm:$0xff] %vm8016, %v12663
      %12803 = vst.msk [vmem:[%s321 + $0x3c8] sm:$0xff] %vm8016, %v12665
      %12804 = vst.msk [vmem:[%s321 + $0x3d0] sm:$0xff] %vm8016, %v12668
      %12805 = vst.msk [vmem:[%s321 + $0x3d8] sm:$0xff] %vm8016, %v12670
      %12806 = vst.msk [vmem:[%s321 + $0x3e0] sm:$0xff] %vm8016, %v12673
      %12807 = vst.msk [vmem:[%s321 + $0x3e8] sm:$0xff] %vm8016, %v12675
      %12808 = vst.msk [vmem:[%s321 + $0x3f0] sm:$0xff] %vm8016, %v12678
      %12809 = vst.msk [vmem:[%s321 + $0x3f8] sm:$0xff] %vm8016, %v12680
      %p12810 = scmp.lt.s32.totalorder %s19, 1
      %s12811 = scalar_select %p12810, %s19, 1
      %p12812 = scmp.lt.s32.totalorder %s20, 0
      %s12813 = scalar_select %p12812, %s20, 0
      %s12814 = smul.addr %s12813, 128
      %s12815 = smul.addr %s12811, 128
      %s12816 = sadd.s32 %s12814, %s12815
      %s12817 = smul.addr %s12816, 8
      %s12818 = scalar_lea.vmem %s4, %s12817
      // Predicated region
      $region37: #{cylindrical_conv_trans.1} parent=35 // pred_check
        %p12819 = pneg %p149
      $region38: #{cylindrical_conv_trans.1} parent=35 // pred_check_branch
        %12821 = sbr.rel (%p12819) target = $region40
      $region39: #{cylindrical_conv_trans.1} parent=35 // pred_region
        _
      $region40: #{cylindrical_conv_trans.1} parent=35 // pred_fallthru
        _
    $region36: #{cylindrical_conv_trans.1} parent=5 // pred_fallthru
      _
    %p12822 = scmp.le.s32.totalorder 2, %s10
    // Predicated region
    $region41: #{cylindrical_conv_trans.1} parent=5 // pred_check
      %p12823 = pneg %p12822
    $region42: #{cylindrical_conv_trans.1} parent=5 // pred_check_branch
      %12825 = sbr.rel (%p12823) target = $region44
    $region43: #{cylindrical_conv_trans.1} parent=5 // pred_region
      %s12826 = ssub.s32 %s10, 2
      // Predicated region
      $region45: #{cylindrical_conv_trans.1} parent=43 // pred_check
        %p12827 = pneg %p155
      $region46: #{cylindrical_conv_trans.1} parent=43 // pred_check_branch
        %12829 = sbr.rel (%p12827) target = $region48
      $region47: #{cylindrical_conv_trans.1} parent=43 // pred_region
        %p12830 = scmp.lt.s32.totalorder %s21, 1
        %s12831 = scalar_select %p12830, %s21, 1
        %p12832 = scmp.lt.s32.totalorder %s22, 0
        %s12833 = scalar_select %p12832, %s22, 0
        %s12834 = smul.addr %s12833, 128
        %s12835 = smul.addr %s12831, 128
        %s12836 = sadd.s32 %s12834, %s12835
        %s12837 = smul.addr %s12836, 8
        %s12838 = scalar_lea.vmem %s4, %s12837
      $region48: #{cylindrical_conv_trans.1} parent=43 // pred_fallthru
        _
    $region44: #{cylindrical_conv_trans.1} parent=5 // pred_fallthru
      _
  $region6: #{cylindrical_conv_trans.1} parent=0 // loop_footer
    %s14 = sadd.s32 1, %s10
  $region7: #{cylindrical_conv_trans.1} parent=0 // loop_footer_branch
    %9 = sbr.rel target = $region3
  $region8: #{cylindrical_conv_trans.1} parent=0 // loop_exit
    _

</llo_original>
